<compile_context>
chip_gen: v7x
topology: tpu7x:2x2x1
jax: 0.10.0
libtpu: 0.0.40
codegen_flags: <defaults>
</compile_context>

<pallas_src>
import functools
import math

import jax
import jax.numpy as jnp
from jax.experimental import pallas as pl
from jax.experimental.pallas import tpu as pltpu


def _sigmoid(x):
    # One transcendental (tanh on the EUP) instead of exp + divide.
    return 0.5 * jnp.tanh(0.5 * x) + 0.5


def _physical_vmem_bytes():
    """Per-core physical VMEM; conservative fallback if the query is unavailable."""
    try:
        return int(pltpu.get_tpu_info().vmem_capacity_bytes)
    except Exception:
        return 64 << 20   # v7x per-TC size: safe lower bound across generations


def _interaction_kernel(acted_ref, action_ref, w0_ref, b0_ref, w12_ref, b12_ref,
                        *out_refs, step, d, emit_outs):
    acted = acted_ref[...].astype(jnp.float32)
    action = action_ref[...].astype(jnp.float32)
    cdt = w0_ref.dtype  # matmul operand dtype (bf16 fast path / f32 exact path)

    # ---- layer 0: the four chains fused into a single (D, 4D) matmul -------------
    z0 = jnp.dot(action.astype(cdt), w0_ref[...],
                 preferred_element_type=jnp.float32) + b0_ref[...]
    # Activations carried in the operand dtype: cast ONCE after the nonlinearity.
    h = [_sigmoid(z0[:, 0 * d:1 * d]).astype(cdt),   # sigmoid_1 layer 0
         _sigmoid(z0[:, 1 * d:2 * d]).astype(cdt),   # sigmoid_2 layer 0
         _sigmoid(z0[:, 2 * d:3 * d]).astype(cdt),   # sigmoid_3 layer 0
         jnp.tanh(z0[:, 3 * d:4 * d]).astype(cdt)]   # tanh      layer 0

    # ---- layers 1 & 2: four independent chains, matmuls issued back-to-back ------
    for l in range(2):
        z = [jnp.dot(h[c], w12_ref[l, c], preferred_element_type=jnp.float32)
             + b12_ref[l, c]
             for c in range(4)]
        h = [_sigmoid(z[0]).astype(cdt), _sigmoid(z[1]).astype(cdt),
             _sigmoid(z[2]).astype(cdt), jnp.tanh(z[3]).astype(cdt)]

    s1 = h[0].astype(jnp.float32)
    s2 = h[1].astype(jnp.float32)
    s3 = h[2].astype(jnp.float32)
    t = h[3].astype(jnp.float32)

    # ---- elementwise epilogue (identical to the torch forward) -------------------
    first_l = acted * s1
    acted_out_up = s2 * t + first_l               # == second_l
    action_out_up = jnp.tanh(acted_out_up) * s3

    if emit_outs:
        acted_out_ref, action_out_ref, acted_up_ref, action_up_ref = out_refs
        acted_out_ref[...] = (acted + step * acted_out_up).astype(acted_out_ref.dtype)
        action_out_ref[...] = (action + step * action_out_up).astype(action_out_ref.dtype)
    else:
        acted_up_ref, action_up_ref = out_refs

    acted_up_ref[...] = acted_out_up.astype(acted_up_ref.dtype)
    action_up_ref[...] = action_out_up.astype(action_up_ref.dtype)


def interaction_forward(acted, action, packed, *, step=0.1, tile_b=512,
                        compute_dtype=jnp.bfloat16, outs_in_kernel=False,
                        dimension_semantics=None):
    """acted, action: (B, D) f32.  packed = (w0, b0, w12, b12), see pack_params().

    Returns (acted_out, action_out, acted_out_up, action_out_up), exactly matching
    the torch module's forward.
    """
    w0, b0, w12, b12 = packed
    B, D = acted.shape
    assert D % 128 == 0, "feature dim must be lane-aligned (multiple of 128)"
    tile_b = min(tile_b, B)
    assert B % tile_b == 0, "batch must be divisible by tile_b"
    grid = (B // tile_b,)

    # Weights in compute dtype (bf16 halves HBM fetch + VMEM residency); biases f32.
    w0 = w0.astype(compute_dtype)
    w12 = w12.astype(compute_dtype)
    b0 = b0.astype(jnp.float32)
    b12 = b12.astype(jnp.float32)

    act_spec = pl.BlockSpec((tile_b, D), lambda i: (i, 0))
    # Whole-array VMEM residency for the constant weights: single-buffered, copied
    # once, never re-staged per grid step.
    resident = pl.BlockSpec(memory_space=pltpu.MemorySpace.VMEM)

    n_out = 4 if outs_in_kernel else 2

    # --- generation-aware VMEM budget ---------------------------------------------
    wsz = jnp.dtype(compute_dtype).itemsize
    weight_bytes = int((w0.size + w12.size) * wsz + (b0.size + b12.size) * 4)
    # double-buffered input + output activation tiles:
    act_tile_bytes = (2 + n_out) * tile_b * D * 4 * 2
    # kernel intermediates: z0 (4*tile*D) + h (4*tile*D) + z (4*tile*D) + epilogue
    # temps, all f32 in the worst case  -> ~16 * tile_b * D * 4 bytes.
    inter_bytes = 16 * tile_b * D * 4
    physical = _physical_vmem_bytes()
    need = weight_bytes + act_tile_bytes + inter_bytes
    vmem_limit = int(min(max(32 << 20, need), physical - (8 << 20)))

    # --- scheduler hint -------------------------------------------------------------
    cost = pl.CostEstimate(
        flops=2 * 12 * B * D * D,                 # 12 (B,D)x(D,D) matmuls
        transcendentals=13 * B * D,               # 12 chain activations + epilogue tanh
        bytes_accessed=(2 + n_out) * B * D * 4 + weight_bytes)

    if dimension_semantics is None:
        # On v7x, pass (pltpu.CORE_PARALLEL,) to shard the batch axis across both TCs.
        dimension_semantics = ("parallel",)

    if outs_in_kernel:
        out_shape = tuple(jax.ShapeDtypeStruct((B, D), jnp.float32) for _ in range(4))
        out_specs = [act_spec, act_spec, act_spec, act_spec]
    else:
        out_shape = tuple(jax.ShapeDtypeStruct((B, D), jnp.float32) for _ in range(2))
        out_specs = [act_spec, act_spec]

    result = pl.pallas_call(
        functools.partial(_interaction_kernel, step=step, d=D,
                          emit_outs=outs_in_kernel),
        out_shape=out_shape,
        grid_spec=pltpu.PrefetchScalarGridSpec(
            num_scalar_prefetch=0,
            grid=grid,
            in_specs=[act_spec, act_spec, resident, resident, resident, resident],
            out_specs=out_specs,
        ),
        compiler_params=pltpu.CompilerParams(
            dimension_semantics=dimension_semantics,
            vmem_limit_bytes=vmem_limit),
        cost_estimate=cost,
    )(acted, action, w0, b0, w12, b12)

    if outs_in_kernel:
        return result

    acted_up, action_up = result
    # Trivial axpy epilogue left to XLA (fuses with consumers); halves the kernel's
    # output HBM/store traffic in the mem-bound small-D regime.
    acted_out = acted + step * acted_up
    action_out = action + step * action_up
    return acted_out, action_out, acted_up, action_up


# --------------------------- parameters (torch layout) ----------------------------

def init_params(key, size):
    """Deterministic synthetic params in torch nn.Linear layout:
    per chain (sigmoid_1, sigmoid_2, sigmoid_3, tanh), 3 layers each,
    weight (out, in) and bias (out,)."""
    scale = 1.0 / math.sqrt(size)
    keys = jax.random.split(key, 24)
    weights, biases = [], []
    for c in range(4):
        wc, bc = [], []
        for l in range(3):
            kw = keys[(c * 3 + l) * 2]
            kb = keys[(c * 3 + l) * 2 + 1]
            wc.append(jax.random.uniform(kw, (size, size), jnp.float32, -scale, scale))
            bc.append(jax.random.uniform(kb, (size,), jnp.float32, -scale, scale))
        weights.append(wc)
        biases.append(bc)
    return weights, biases


def pack_params(params):
    """Pack torch-layout params for the kernel:
       w0  : (D, 4D)      layer-0 weights of the 4 chains, transposed & concatenated
       b0  : (1, 4D)      layer-0 biases
       w12 : (2, 4, D, D) layers 1..2 per chain, transposed to [in, out]
       b12 : (2, 4, 1, D) layers 1..2 biases per chain."""
    weights, biases = params
    d = weights[0][0].shape[0]
    w0 = jnp.concatenate([weights[c][0].T for c in range(4)], axis=1)
    b0 = jnp.concatenate([biases[c][0] for c in range(4)]).reshape(1, 4 * d)
    w12 = jnp.stack([jnp.stack([weights[c][l].T for c in range(4)]) for l in (1, 2)])
    b12 = jnp.stack([jnp.stack([biases[c][l].reshape(1, d) for c in range(4)])
                     for l in (1, 2)])
    return w0, b0, w12, b12


def reference_forward(acted, action, params, step=0.1):
    """Pure-JAX reference mirroring the PyTorch module (f32 everywhere)."""
    weights, biases = params

    def chain(x, c, act_fn):
        h = x
        for l in range(3):
            h = act_fn(h @ weights[c][l].T + biases[c][l])
        return h

    s1 = chain(action, 0, jax.nn.sigmoid)
    s2 = chain(action, 1, jax.nn.sigmoid)
    s3 = chain(action, 2, jax.nn.sigmoid)
    t = chain(action, 3, jnp.tanh)
    first_l = acted * s1
    acted_out_up = s2 * t + first_l
    action_out_up = jnp.tanh(acted_out_up) * s3
    return (acted + step * acted_out_up,
            action + step * action_out_up,
            acted_out_up,
            action_out_up)


if __name__ == "__main__":
    SIZE = 128     # feature dim (module default is 1024; lane-aligned small size here)
    BATCH = 1024   # 2 batch tiles of 512 rows: big tiles for the mem-bound small-D case
    STEP = 0.1

    key = jax.random.PRNGKey(0)
    k_acted, k_action, k_params = jax.random.split(key, 3)
    acted = jax.random.normal(k_acted, (BATCH, SIZE), jnp.float32)
    action = jax.random.normal(k_action, (BATCH, SIZE), jnp.float32)
    params = init_params(k_params, SIZE)
    packed = pack_params(params)

    refs = reference_forward(acted, action, params, STEP)

    # Exact path (test-only): f32 matmul operands, outputs computed inside the kernel.
    outs_f32 = interaction_forward(acted, action, packed, step=STEP, tile_b=512,
                                   compute_dtype=jnp.float32, outs_in_kernel=True)
    outs_f32 = jax.block_until_ready(outs_f32)
    for o, r in zip(outs_f32, refs):
        assert o.shape == r.shape and o.dtype == r.dtype
        assert jnp.max(jnp.abs(o - r)) < 5e-4, "f32 (in-kernel outs) mismatch"

    # Exact path, default output layout (kernel emits only the *_up pair; the axpy
    # epilogue is fused by XLA in the wrapper).
    outs_f32b = interaction_forward(acted, action, packed, step=STEP, tile_b=512,
                                    compute_dtype=jnp.float32, outs_in_kernel=False)
    outs_f32b = jax.block_until_ready(outs_f32b)
    for o, r in zip(outs_f32b, refs):
        assert o.shape == r.shape and o.dtype == r.dtype
        assert jnp.max(jnp.abs(o - r)) < 5e-4, "f32 (wrapper outs) mismatch"

    # Fast path (default): bf16 matmul operands + bf16-carried activations, f32 accum.
    outs_bf16 = interaction_forward(acted, action, packed, step=STEP, tile_b=512)
    outs_bf16 = jax.block_until_ready(outs_bf16)
    for o, r in zip(outs_bf16, refs):
        assert o.shape == r.shape and o.dtype == r.dtype
        assert jnp.max(jnp.abs(o - r)) < 1e-1, "bf16 mismatch vs reference"

    print("KERNEL_OK")
</pallas_src>

<mosaic_0001>
module attributes {stable_mosaic.version = 11 : i64} {
  func.func @_interaction_kernel(%arg0: i32, %arg1: memref<512x128xf32, #tpu.memory_space<vmem>>, %arg2: memref<512x128xf32, #tpu.memory_space<vmem>>, %arg3: memref<128x512xf32, #tpu.memory_space<vmem>>, %arg4: memref<1x512xf32, #tpu.memory_space<vmem>>, %arg5: memref<2x4x128x128xf32, #tpu.memory_space<vmem>>, %arg6: memref<2x4x1x128xf32, #tpu.memory_space<vmem>>, %arg7: memref<512x128xf32, #tpu.memory_space<vmem>>, %arg8: memref<512x128xf32, #tpu.memory_space<vmem>>, %arg9: memref<512x128xf32, #tpu.memory_space<vmem>>, %arg10: memref<512x128xf32, #tpu.memory_space<vmem>>) attributes {dimension_semantics = [#tpu.dimension_semantics<parallel>], iteration_bounds = array<i64: 2>, scalar_prefetch = 0 : i64, scratch_operands = 0 : i64, tpu.core_type = #tpu.core_type<tc>, window_params = [{transform_indices = @transform_0, window_bounds = array<i64: 512, 128>}, {transform_indices = @transform_1, window_bounds = array<i64: 512, 128>}, {pipeline_mode = #tpu.pipeline_mode<synchronous>, transform_indices = @transform_2, window_bounds = array<i64: 128, 512>}, {pipeline_mode = #tpu.pipeline_mode<synchronous>, transform_indices = @transform_3, window_bounds = array<i64: 1, 512>}, {pipeline_mode = #tpu.pipeline_mode<synchronous>, transform_indices = @transform_4, window_bounds = array<i64: 2, 4, 128, 128>}, {pipeline_mode = #tpu.pipeline_mode<synchronous>, transform_indices = @transform_5, window_bounds = array<i64: 2, 4, 1, 128>}, {transform_indices = @transform_6, window_bounds = array<i64: 512, 128>}, {transform_indices = @transform_7, window_bounds = array<i64: 512, 128>}, {transform_indices = @transform_8, window_bounds = array<i64: 512, 128>}, {transform_indices = @transform_9, window_bounds = array<i64: 512, 128>}]} {
    %c0 = arith.constant 0 : index
    %c0_0 = arith.constant 0 : index
    %0 = vector.load %arg1[%c0, %c0_0] : memref<512x128xf32, #tpu.memory_space<vmem>>, vector<512x128xf32>
    %c0_1 = arith.constant 0 : index
    %c0_2 = arith.constant 0 : index
    %1 = vector.load %arg2[%c0_1, %c0_2] : memref<512x128xf32, #tpu.memory_space<vmem>>, vector<512x128xf32>
    %c0_3 = arith.constant 0 : index
    %c0_4 = arith.constant 0 : index
    %2 = vector.load %arg3[%c0_3, %c0_4] : memref<128x512xf32, #tpu.memory_space<vmem>>, vector<128x512xf32>
    %cst = arith.constant dense<0.000000e+00> : vector<512x512xf32>
    %3 = tpu.matmul %1, %2, %cst {dimension_numbers = #tpu.dot_dimension_numbers<[1], [0], [0], [1], [0, 0, 1, 1], [], []>} : vector<512x128xf32>, vector<128x512xf32>, vector<512x512xf32> -> vector<512x512xf32>
    %c0_5 = arith.constant 0 : index
    %c0_6 = arith.constant 0 : index
    %4 = vector.load %arg4[%c0_5, %c0_6] : memref<1x512xf32, #tpu.memory_space<vmem>>, vector<1x512xf32>
    %5 = vector.broadcast %4 : vector<1x512xf32> to vector<512x512xf32>
    %6 = arith.addf %3, %5 : vector<512x512xf32>
    %7 = vector.extract_strided_slice %6 {offsets = [0, 0], sizes = [512, 128], strides = [1, 1]} : vector<512x512xf32> to vector<512x128xf32>
    %cst_7 = arith.constant 5.000000e-01 : f32
    %8 = vector.broadcast %cst_7 : f32 to vector<512x128xf32>
    %9 = arith.mulf %8, %7 : vector<512x128xf32>
    %10 = math.tanh %9 : vector<512x128xf32>
    %cst_8 = arith.constant 5.000000e-01 : f32
    %11 = vector.broadcast %cst_8 : f32 to vector<512x128xf32>
    %12 = arith.mulf %11, %10 : vector<512x128xf32>
    %cst_9 = arith.constant 5.000000e-01 : f32
    %13 = vector.broadcast %cst_9 : f32 to vector<512x128xf32>
    %14 = arith.addf %12, %13 : vector<512x128xf32>
    %15 = vector.extract_strided_slice %6 {offsets = [0, 128], sizes = [512, 128], strides = [1, 1]} : vector<512x512xf32> to vector<512x128xf32>
    %cst_10 = arith.constant 5.000000e-01 : f32
    %16 = vector.broadcast %cst_10 : f32 to vector<512x128xf32>
    %17 = arith.mulf %16, %15 : vector<512x128xf32>
    %18 = math.tanh %17 : vector<512x128xf32>
    %cst_11 = arith.constant 5.000000e-01 : f32
    %19 = vector.broadcast %cst_11 : f32 to vector<512x128xf32>
    %20 = arith.mulf %19, %18 : vector<512x128xf32>
    %cst_12 = arith.constant 5.000000e-01 : f32
    %21 = vector.broadcast %cst_12 : f32 to vector<512x128xf32>
    %22 = arith.addf %20, %21 : vector<512x128xf32>
    %23 = vector.extract_strided_slice %6 {offsets = [0, 256], sizes = [512, 128], strides = [1, 1]} : vector<512x512xf32> to vector<512x128xf32>
    %cst_13 = arith.constant 5.000000e-01 : f32
    %24 = vector.broadcast %cst_13 : f32 to vector<512x128xf32>
    %25 = arith.mulf %24, %23 : vector<512x128xf32>
    %26 = math.tanh %25 : vector<512x128xf32>
    %cst_14 = arith.constant 5.000000e-01 : f32
    %27 = vector.broadcast %cst_14 : f32 to vector<512x128xf32>
    %28 = arith.mulf %27, %26 : vector<512x128xf32>
    %cst_15 = arith.constant 5.000000e-01 : f32
    %29 = vector.broadcast %cst_15 : f32 to vector<512x128xf32>
    %30 = arith.addf %28, %29 : vector<512x128xf32>
    %31 = vector.extract_strided_slice %6 {offsets = [0, 384], sizes = [512, 128], strides = [1, 1]} : vector<512x512xf32> to vector<512x128xf32>
    %32 = math.tanh %31 : vector<512x128xf32>
    %c0_16 = arith.constant 0 : index
    %c0_17 = arith.constant 0 : index
    %c0_18 = arith.constant 0 : index
    %c0_19 = arith.constant 0 : index
    %33 = vector.load %arg5[%c0_16, %c0_17, %c0_18, %c0_19] : memref<2x4x128x128xf32, #tpu.memory_space<vmem>>, vector<1x1x128x128xf32>
    %34 = vector.shape_cast %33 : vector<1x1x128x128xf32> to vector<128x128xf32>
    %cst_20 = arith.constant dense<0.000000e+00> : vector<512x128xf32>
    %35 = tpu.matmul %14, %34, %cst_20 {dimension_numbers = #tpu.dot_dimension_numbers<[1], [0], [0], [1], [0, 0, 1, 1], [], []>} : vector<512x128xf32>, vector<128x128xf32>, vector<512x128xf32> -> vector<512x128xf32>
    %c0_21 = arith.constant 0 : index
    %c0_22 = arith.constant 0 : index
    %c0_23 = arith.constant 0 : index
    %c0_24 = arith.constant 0 : index
    %36 = vector.load %arg6[%c0_21, %c0_22, %c0_23, %c0_24] : memref<2x4x1x128xf32, #tpu.memory_space<vmem>>, vector<1x1x1x128xf32>
    %37 = vector.shape_cast %36 : vector<1x1x1x128xf32> to vector<1x128xf32>
    %38 = vector.broadcast %37 : vector<1x128xf32> to vector<512x128xf32>
    %39 = arith.addf %35, %38 : vector<512x128xf32>
    %c0_25 = arith.constant 0 : index
    %c1 = arith.constant 1 : index
    %c0_26 = arith.constant 0 : index
    %c0_27 = arith.constant 0 : index
    %40 = vector.load %arg5[%c0_25, %c1, %c0_26, %c0_27] : memref<2x4x128x128xf32, #tpu.memory_space<vmem>>, vector<1x1x128x128xf32>
    %41 = vector.shape_cast %40 : vector<1x1x128x128xf32> to vector<128x128xf32>
    %cst_28 = arith.constant dense<0.000000e+00> : vector<512x128xf32>
    %42 = tpu.matmul %22, %41, %cst_28 {dimension_numbers = #tpu.dot_dimension_numbers<[1], [0], [0], [1], [0, 0, 1, 1], [], []>} : vector<512x128xf32>, vector<128x128xf32>, vector<512x128xf32> -> vector<512x128xf32>
    %c0_29 = arith.constant 0 : index
    %c1_30 = arith.constant 1 : index
    %c0_31 = arith.constant 0 : index
    %c0_32 = arith.constant 0 : index
    %43 = vector.load %arg6[%c0_29, %c1_30, %c0_31, %c0_32] : memref<2x4x1x128xf32, #tpu.memory_space<vmem>>, vector<1x1x1x128xf32>
    %44 = vector.shape_cast %43 : vector<1x1x1x128xf32> to vector<1x128xf32>
    %45 = vector.broadcast %44 : vector<1x128xf32> to vector<512x128xf32>
    %46 = arith.addf %42, %45 : vector<512x128xf32>
    %c0_33 = arith.constant 0 : index
    %c2 = arith.constant 2 : index
    %c0_34 = arith.constant 0 : index
    %c0_35 = arith.constant 0 : index
    %47 = vector.load %arg5[%c0_33, %c2, %c0_34, %c0_35] : memref<2x4x128x128xf32, #tpu.memory_space<vmem>>, vector<1x1x128x128xf32>
    %48 = vector.shape_cast %47 : vector<1x1x128x128xf32> to vector<128x128xf32>
    %cst_36 = arith.constant dense<0.000000e+00> : vector<512x128xf32>
    %49 = tpu.matmul %30, %48, %cst_36 {dimension_numbers = #tpu.dot_dimension_numbers<[1], [0], [0], [1], [0, 0, 1, 1], [], []>} : vector<512x128xf32>, vector<128x128xf32>, vector<512x128xf32> -> vector<512x128xf32>
    %c0_37 = arith.constant 0 : index
    %c2_38 = arith.constant 2 : index
    %c0_39 = arith.constant 0 : index
    %c0_40 = arith.constant 0 : index
    %50 = vector.load %arg6[%c0_37, %c2_38, %c0_39, %c0_40] : memref<2x4x1x128xf32, #tpu.memory_space<vmem>>, vector<1x1x1x128xf32>
    %51 = vector.shape_cast %50 : vector<1x1x1x128xf32> to vector<1x128xf32>
    %52 = vector.broadcast %51 : vector<1x128xf32> to vector<512x128xf32>
    %53 = arith.addf %49, %52 : vector<512x128xf32>
    %c0_41 = arith.constant 0 : index
    %c3 = arith.constant 3 : index
    %c0_42 = arith.constant 0 : index
    %c0_43 = arith.constant 0 : index
    %54 = vector.load %arg5[%c0_41, %c3, %c0_42, %c0_43] : memref<2x4x128x128xf32, #tpu.memory_space<vmem>>, vector<1x1x128x128xf32>
    %55 = vector.shape_cast %54 : vector<1x1x128x128xf32> to vector<128x128xf32>
    %cst_44 = arith.constant dense<0.000000e+00> : vector<512x128xf32>
    %56 = tpu.matmul %32, %55, %cst_44 {dimension_numbers = #tpu.dot_dimension_numbers<[1], [0], [0], [1], [0, 0, 1, 1], [], []>} : vector<512x128xf32>, vector<128x128xf32>, vector<512x128xf32> -> vector<512x128xf32>
    %c0_45 = arith.constant 0 : index
    %c3_46 = arith.constant 3 : index
    %c0_47 = arith.constant 0 : index
    %c0_48 = arith.constant 0 : index
    %57 = vector.load %arg6[%c0_45, %c3_46, %c0_47, %c0_48] : memref<2x4x1x128xf32, #tpu.memory_space<vmem>>, vector<1x1x1x128xf32>
    %58 = vector.shape_cast %57 : vector<1x1x1x128xf32> to vector<1x128xf32>
    %59 = vector.broadcast %58 : vector<1x128xf32> to vector<512x128xf32>
    %60 = arith.addf %56, %59 : vector<512x128xf32>
    %cst_49 = arith.constant 5.000000e-01 : f32
    %61 = vector.broadcast %cst_49 : f32 to vector<512x128xf32>
    %62 = arith.mulf %61, %39 : vector<512x128xf32>
    %63 = math.tanh %62 : vector<512x128xf32>
    %cst_50 = arith.constant 5.000000e-01 : f32
    %64 = vector.broadcast %cst_50 : f32 to vector<512x128xf32>
    %65 = arith.mulf %64, %63 : vector<512x128xf32>
    %cst_51 = arith.constant 5.000000e-01 : f32
    %66 = vector.broadcast %cst_51 : f32 to vector<512x128xf32>
    %67 = arith.addf %65, %66 : vector<512x128xf32>
    %cst_52 = arith.constant 5.000000e-01 : f32
    %68 = vector.broadcast %cst_52 : f32 to vector<512x128xf32>
    %69 = arith.mulf %68, %46 : vector<512x128xf32>
    %70 = math.tanh %69 : vector<512x128xf32>
    %cst_53 = arith.constant 5.000000e-01 : f32
    %71 = vector.broadcast %cst_53 : f32 to vector<512x128xf32>
    %72 = arith.mulf %71, %70 : vector<512x128xf32>
    %cst_54 = arith.constant 5.000000e-01 : f32
    %73 = vector.broadcast %cst_54 : f32 to vector<512x128xf32>
    %74 = arith.addf %72, %73 : vector<512x128xf32>
    %cst_55 = arith.constant 5.000000e-01 : f32
    %75 = vector.broadcast %cst_55 : f32 to vector<512x128xf32>
    %76 = arith.mulf %75, %53 : vector<512x128xf32>
    %77 = math.tanh %76 : vector<512x128xf32>
    %cst_56 = arith.constant 5.000000e-01 : f32
    %78 = vector.broadcast %cst_56 : f32 to vector<512x128xf32>
    %79 = arith.mulf %78, %77 : vector<512x128xf32>
    %cst_57 = arith.constant 5.000000e-01 : f32
    %80 = vector.broadcast %cst_57 : f32 to vector<512x128xf32>
    %81 = arith.addf %79, %80 : vector<512x128xf32>
    %82 = math.tanh %60 : vector<512x128xf32>
    %c1_58 = arith.constant 1 : index
    %c0_59 = arith.constant 0 : index
    %c0_60 = arith.constant 0 : index
    %c0_61 = arith.constant 0 : index
    %83 = vector.load %arg5[%c1_58, %c0_59, %c0_60, %c0_61] : memref<2x4x128x128xf32, #tpu.memory_space<vmem>>, vector<1x1x128x128xf32>
    %84 = vector.shape_cast %83 : vector<1x1x128x128xf32> to vector<128x128xf32>
    %cst_62 = arith.constant dense<0.000000e+00> : vector<512x128xf32>
    %85 = tpu.matmul %67, %84, %cst_62 {dimension_numbers = #tpu.dot_dimension_numbers<[1], [0], [0], [1], [0, 0, 1, 1], [], []>} : vector<512x128xf32>, vector<128x128xf32>, vector<512x128xf32> -> vector<512x128xf32>
    %c1_63 = arith.constant 1 : index
    %c0_64 = arith.constant 0 : index
    %c0_65 = arith.constant 0 : index
    %c0_66 = arith.constant 0 : index
    %86 = vector.load %arg6[%c1_63, %c0_64, %c0_65, %c0_66] : memref<2x4x1x128xf32, #tpu.memory_space<vmem>>, vector<1x1x1x128xf32>
    %87 = vector.shape_cast %86 : vector<1x1x1x128xf32> to vector<1x128xf32>
    %88 = vector.broadcast %87 : vector<1x128xf32> to vector<512x128xf32>
    %89 = arith.addf %85, %88 : vector<512x128xf32>
    %c1_67 = arith.constant 1 : index
    %c1_68 = arith.constant 1 : index
    %c0_69 = arith.constant 0 : index
    %c0_70 = arith.constant 0 : index
    %90 = vector.load %arg5[%c1_67, %c1_68, %c0_69, %c0_70] : memref<2x4x128x128xf32, #tpu.memory_space<vmem>>, vector<1x1x128x128xf32>
    %91 = vector.shape_cast %90 : vector<1x1x128x128xf32> to vector<128x128xf32>
    %cst_71 = arith.constant dense<0.000000e+00> : vector<512x128xf32>
    %92 = tpu.matmul %74, %91, %cst_71 {dimension_numbers = #tpu.dot_dimension_numbers<[1], [0], [0], [1], [0, 0, 1, 1], [], []>} : vector<512x128xf32>, vector<128x128xf32>, vector<512x128xf32> -> vector<512x128xf32>
    %c1_72 = arith.constant 1 : index
    %c1_73 = arith.constant 1 : index
    %c0_74 = arith.constant 0 : index
    %c0_75 = arith.constant 0 : index
    %93 = vector.load %arg6[%c1_72, %c1_73, %c0_74, %c0_75] : memref<2x4x1x128xf32, #tpu.memory_space<vmem>>, vector<1x1x1x128xf32>
    %94 = vector.shape_cast %93 : vector<1x1x1x128xf32> to vector<1x128xf32>
    %95 = vector.broadcast %94 : vector<1x128xf32> to vector<512x128xf32>
    %96 = arith.addf %92, %95 : vector<512x128xf32>
    %c1_76 = arith.constant 1 : index
    %c2_77 = arith.constant 2 : index
    %c0_78 = arith.constant 0 : index
    %c0_79 = arith.constant 0 : index
    %97 = vector.load %arg5[%c1_76, %c2_77, %c0_78, %c0_79] : memref<2x4x128x128xf32, #tpu.memory_space<vmem>>, vector<1x1x128x128xf32>
    %98 = vector.shape_cast %97 : vector<1x1x128x128xf32> to vector<128x128xf32>
    %cst_80 = arith.constant dense<0.000000e+00> : vector<512x128xf32>
    %99 = tpu.matmul %81, %98, %cst_80 {dimension_numbers = #tpu.dot_dimension_numbers<[1], [0], [0], [1], [0, 0, 1, 1], [], []>} : vector<512x128xf32>, vector<128x128xf32>, vector<512x128xf32> -> vector<512x128xf32>
    %c1_81 = arith.constant 1 : index
    %c2_82 = arith.constant 2 : index
    %c0_83 = arith.constant 0 : index
    %c0_84 = arith.constant 0 : index
    %100 = vector.load %arg6[%c1_81, %c2_82, %c0_83, %c0_84] : memref<2x4x1x128xf32, #tpu.memory_space<vmem>>, vector<1x1x1x128xf32>
    %101 = vector.shape_cast %100 : vector<1x1x1x128xf32> to vector<1x128xf32>
    %102 = vector.broadcast %101 : vector<1x128xf32> to vector<512x128xf32>
    %103 = arith.addf %99, %102 : vector<512x128xf32>
    %c1_85 = arith.constant 1 : index
    %c3_86 = arith.constant 3 : index
    %c0_87 = arith.constant 0 : index
    %c0_88 = arith.constant 0 : index
    %104 = vector.load %arg5[%c1_85, %c3_86, %c0_87, %c0_88] : memref<2x4x128x128xf32, #tpu.memory_space<vmem>>, vector<1x1x128x128xf32>
    %105 = vector.shape_cast %104 : vector<1x1x128x128xf32> to vector<128x128xf32>
    %cst_89 = arith.constant dense<0.000000e+00> : vector<512x128xf32>
    %106 = tpu.matmul %82, %105, %cst_89 {dimension_numbers = #tpu.dot_dimension_numbers<[1], [0], [0], [1], [0, 0, 1, 1], [], []>} : vector<512x128xf32>, vector<128x128xf32>, vector<512x128xf32> -> vector<512x128xf32>
    %c1_90 = arith.constant 1 : index
    %c3_91 = arith.constant 3 : index
    %c0_92 = arith.constant 0 : index
    %c0_93 = arith.constant 0 : index
    %107 = vector.load %arg6[%c1_90, %c3_91, %c0_92, %c0_93] : memref<2x4x1x128xf32, #tpu.memory_space<vmem>>, vector<1x1x1x128xf32>
    %108 = vector.shape_cast %107 : vector<1x1x1x128xf32> to vector<1x128xf32>
    %109 = vector.broadcast %108 : vector<1x128xf32> to vector<512x128xf32>
    %110 = arith.addf %106, %109 : vector<512x128xf32>
    %cst_94 = arith.constant 5.000000e-01 : f32
    %111 = vector.broadcast %cst_94 : f32 to vector<512x128xf32>
    %112 = arith.mulf %111, %89 : vector<512x128xf32>
    %113 = math.tanh %112 : vector<512x128xf32>
    %cst_95 = arith.constant 5.000000e-01 : f32
    %114 = vector.broadcast %cst_95 : f32 to vector<512x128xf32>
    %115 = arith.mulf %114, %113 : vector<512x128xf32>
    %cst_96 = arith.constant 5.000000e-01 : f32
    %116 = vector.broadcast %cst_96 : f32 to vector<512x128xf32>
    %117 = arith.addf %115, %116 : vector<512x128xf32>
    %cst_97 = arith.constant 5.000000e-01 : f32
    %118 = vector.broadcast %cst_97 : f32 to vector<512x128xf32>
    %119 = arith.mulf %118, %96 : vector<512x128xf32>
    %120 = math.tanh %119 : vector<512x128xf32>
    %cst_98 = arith.constant 5.000000e-01 : f32
    %121 = vector.broadcast %cst_98 : f32 to vector<512x128xf32>
    %122 = arith.mulf %121, %120 : vector<512x128xf32>
    %cst_99 = arith.constant 5.000000e-01 : f32
    %123 = vector.broadcast %cst_99 : f32 to vector<512x128xf32>
    %124 = arith.addf %122, %123 : vector<512x128xf32>
    %cst_100 = arith.constant 5.000000e-01 : f32
    %125 = vector.broadcast %cst_100 : f32 to vector<512x128xf32>
    %126 = arith.mulf %125, %103 : vector<512x128xf32>
    %127 = math.tanh %126 : vector<512x128xf32>
    %cst_101 = arith.constant 5.000000e-01 : f32
    %128 = vector.broadcast %cst_101 : f32 to vector<512x128xf32>
    %129 = arith.mulf %128, %127 : vector<512x128xf32>
    %cst_102 = arith.constant 5.000000e-01 : f32
    %130 = vector.broadcast %cst_102 : f32 to vector<512x128xf32>
    %131 = arith.addf %129, %130 : vector<512x128xf32>
    %132 = math.tanh %110 : vector<512x128xf32>
    %133 = arith.mulf %0, %117 : vector<512x128xf32>
    %134 = arith.mulf %124, %132 : vector<512x128xf32>
    %135 = arith.addf %134, %133 : vector<512x128xf32>
    %136 = math.tanh %135 : vector<512x128xf32>
    %137 = arith.mulf %136, %131 : vector<512x128xf32>
    %cst_103 = arith.constant 1.000000e-01 : f32
    %138 = vector.broadcast %cst_103 : f32 to vector<512x128xf32>
    %139 = arith.mulf %138, %135 : vector<512x128xf32>
    %140 = arith.addf %0, %139 : vector<512x128xf32>
    %c0_104 = arith.constant 0 : index
    %c0_105 = arith.constant 0 : index
    %141 = vector.load %arg7[%c0_104, %c0_105] : memref<512x128xf32, #tpu.memory_space<vmem>>, vector<512x128xf32>
    tpu.vector_store %arg7[%c0_104, %c0_105], %140 {strides = array<i32>} : memref<512x128xf32, #tpu.memory_space<vmem>>, vector<512x128xf32>,
    %cst_106 = arith.constant 1.000000e-01 : f32
    %142 = vector.broadcast %cst_106 : f32 to vector<512x128xf32>
    %143 = arith.mulf %142, %137 : vector<512x128xf32>
    %144 = arith.addf %1, %143 : vector<512x128xf32>
    %c0_107 = arith.constant 0 : index
    %c0_108 = arith.constant 0 : index
    %145 = vector.load %arg8[%c0_107, %c0_108] : memref<512x128xf32, #tpu.memory_space<vmem>>, vector<512x128xf32>
    tpu.vector_store %arg8[%c0_107, %c0_108], %144 {strides = array<i32>} : memref<512x128xf32, #tpu.memory_space<vmem>>, vector<512x128xf32>,
    %c0_109 = arith.constant 0 : index
    %c0_110 = arith.constant 0 : index
    %146 = vector.load %arg9[%c0_109, %c0_110] : memref<512x128xf32, #tpu.memory_space<vmem>>, vector<512x128xf32>
    tpu.vector_store %arg9[%c0_109, %c0_110], %135 {strides = array<i32>} : memref<512x128xf32, #tpu.memory_space<vmem>>, vector<512x128xf32>,
    %c0_111 = arith.constant 0 : index
    %c0_112 = arith.constant 0 : index
    %147 = vector.load %arg10[%c0_111, %c0_112] : memref<512x128xf32, #tpu.memory_space<vmem>>, vector<512x128xf32>
    tpu.vector_store %arg10[%c0_111, %c0_112], %137 {strides = array<i32>} : memref<512x128xf32, #tpu.memory_space<vmem>>, vector<512x128xf32>,
    return
  }
  func.func @transform_0(%arg0: i32) -> (i32, i32) {
    %c0_i32 = arith.constant 0 : i32
    %c0_i32_0 = arith.constant 0 : i32
    return %arg0, %c0_i32 : i32, i32
  }
  func.func @transform_1(%arg0: i32) -> (i32, i32) {
    %c0_i32 = arith.constant 0 : i32
    %c0_i32_0 = arith.constant 0 : i32
    return %arg0, %c0_i32 : i32, i32
  }
  func.func @transform_2(%arg0: i32) -> (i32, i32) {
    %c0_i32 = arith.constant 0 : i32
    %c0_i32_0 = arith.constant 0 : i32
    %c0_i32_1 = arith.constant 0 : i32
    return %c0_i32, %c0_i32_0 : i32, i32
  }
  func.func @transform_3(%arg0: i32) -> (i32, i32) {
    %c0_i32 = arith.constant 0 : i32
    %c0_i32_0 = arith.constant 0 : i32
    %c0_i32_1 = arith.constant 0 : i32
    return %c0_i32, %c0_i32_0 : i32, i32
  }
  func.func @transform_4(%arg0: i32) -> (i32, i32, i32, i32) {
    %c0_i32 = arith.constant 0 : i32
    %c0_i32_0 = arith.constant 0 : i32
    %c0_i32_1 = arith.constant 0 : i32
    %c0_i32_2 = arith.constant 0 : i32
    %c0_i32_3 = arith.constant 0 : i32
    return %c0_i32, %c0_i32_0, %c0_i32_1, %c0_i32_2 : i32, i32, i32, i32
  }
  func.func @transform_5(%arg0: i32) -> (i32, i32, i32, i32) {
    %c0_i32 = arith.constant 0 : i32
    %c0_i32_0 = arith.constant 0 : i32
    %c0_i32_1 = arith.constant 0 : i32
    %c0_i32_2 = arith.constant 0 : i32
    %c0_i32_3 = arith.constant 0 : i32
    return %c0_i32, %c0_i32_0, %c0_i32_1, %c0_i32_2 : i32, i32, i32, i32
  }
  func.func @transform_6(%arg0: i32) -> (i32, i32) {
    %c0_i32 = arith.constant 0 : i32
    %c0_i32_0 = arith.constant 0 : i32
    return %arg0, %c0_i32 : i32, i32
  }
  func.func @transform_7(%arg0: i32) -> (i32, i32) {
    %c0_i32 = arith.constant 0 : i32
    %c0_i32_0 = arith.constant 0 : i32
    return %arg0, %c0_i32 : i32, i32
  }
  func.func @transform_8(%arg0: i32) -> (i32, i32) {
    %c0_i32 = arith.constant 0 : i32
    %c0_i32_0 = arith.constant 0 : i32
    return %arg0, %c0_i32 : i32, i32
  }
  func.func @transform_9(%arg0: i32) -> (i32, i32) {
    %c0_i32 = arith.constant 0 : i32
    %c0_i32_0 = arith.constant 0 : i32
    return %arg0, %c0_i32 : i32, i32
  }
}

</mosaic_0001>

<llo_original>
// kernel: tpu_custom_call.1
$region0: #{tpu_custom_call.1}
  #allocation0 [shape = 'u32[]', space=smem, size = 0x4, offset = 0x4, fixed_abs, tag = 'smem constant byte address 0x4 - core index']
  #allocation1 [shape = 'u32[144,128]{1,0:T(1,128)}', space=vmem, size = 0x12000, scoped, tag = 'internal scratch']
  %s0 = inlined_call_operand.hbm [shape: f32[1024,128], index: 0, kind: input, shape index: {}]
  %s1 = inlined_call_operand.hbm [shape: f32[1024,128], index: 1, kind: input, shape index: {}]
  %s2 = inlined_call_operand.hbm [shape: f32[128,512], index: 2, kind: input, shape index: {}]
  %s3 = inlined_call_operand.vmem [shape: f32[1,512], index: 3, kind: input, shape index: {}]
  %s4 = inlined_call_operand.hbm [shape: f32[2,4,128,128], index: 4, kind: input, shape index: {}]
  %s5 = inlined_call_operand.vmem [shape: f32[2,4,1,128], index: 5, kind: input, shape index: {}]
  %s6 = inlined_call_operand.hbm [shape: f32[1024,128], index: 6, kind: output, shape index: {0}]
  %s7 = inlined_call_operand.hbm [shape: f32[1024,128], index: 7, kind: output, shape index: {1}]
  %s8 = inlined_call_operand.hbm [shape: f32[1024,128], index: 8, kind: output, shape index: {2}]
  %s9 = inlined_call_operand.hbm [shape: f32[1024,128], index: 9, kind: output, shape index: {3}]
  %10 = xla_tuple %s6, %s7, %s8, %s9
  %s11 = sld [smem:[#allocation0]]
  $region97: #{tpu_custom_call.1} parent=0
    _
  %s13 = ssub.s32 1, %s11
  %s14 = scalar_select 0, %s13, %s11
  $region1: #{tpu_custom_call.1} parent=0
    #allocation2 [shape = 'u8[524288]{0}', space=vmem, size = 0x80000, scoped, tag = 'input window, operand 0']
    #allocation3 [shape = 's32[2]{0}', space=sflag, size = 0x8, scoped, tag = 'scoped memory for tpu_custom_call.1']
    #allocation4 [shape = 's32[2]{0}', space=sflag, size = 0x8, scoped, tag = 'scoped memory for tpu_custom_call.1']
    #allocation5 [shape = 'u8[524288]{0}', space=vmem, size = 0x80000, scoped, tag = 'input window, operand 1']
    #allocation6 [shape = 's32[2]{0}', space=sflag, size = 0x8, scoped, tag = 'scoped memory for tpu_custom_call.1']
    #allocation7 [shape = 'u8[262144]{0}', space=vmem, size = 0x40000, scoped, tag = 'input window, operand 2, single buffered']
    #allocation8 [shape = 'u8[524288]{0}', space=vmem, size = 0x80000, scoped, tag = 'input window, operand 4, single buffered']
    #allocation9 [shape = 's32[1]{0}', space=sflag, size = 0x4, scoped, tag = 'scoped memory for tpu_custom_call.1']
    #allocation10 [shape = 'u8[524288]{0}', space=vmem, size = 0x80000, scoped, tag = 'output window, operand 0']
    #allocation11 [shape = 'u8[524288]{0}', space=vmem, size = 0x80000, scoped, tag = 'output window, operand 1']
    #allocation12 [shape = 's32[2]{0}', space=sflag, size = 0x8, scoped, tag = 'scoped memory for tpu_custom_call.1']
    #allocation13 [shape = 'u8[524288]{0}', space=vmem, size = 0x80000, scoped, tag = 'output window, operand 2']
    #allocation14 [shape = 'u8[524288]{0}', space=vmem, size = 0x80000, scoped, tag = 'output window, operand 3']
    #allocation15 [shape = 's32[2]{0}', space=sflag, size = 0x8, scoped, tag = 'scoped memory for tpu_custom_call.1']
    %15 = vsyncpa [#allocation3], 0
    %s16 = scalar_lea.sflag [#allocation3], 1
    %17 = vsyncpa %s16, 0
    %18 = vsyncpa [#allocation6], 0
    %s19 = scalar_lea.sflag [#allocation6], 1
    %20 = vsyncpa %s19, 0
    %21 = vsyncpa [#allocation9], 0
    %22 = vsyncpa [#allocation4], 0
    %s23 = scalar_lea.sflag [#allocation4], 1
    %24 = vsyncpa %s23, 0
    %25 = vsyncpa [#allocation12], 0
    %s26 = scalar_lea.sflag [#allocation12], 1
    %27 = vsyncpa %s26, 0
    %28 = vsyncpa [#allocation15], 0
    %s29 = scalar_lea.sflag [#allocation15], 1
    %30 = vsyncpa %s29, 0
    loop: start=0, step=1, limit=4
    $region2: #{tpu_custom_call.1} parent=1 // loop_pre_header
      _
    $region3: #{tpu_custom_call.1} parent=1 // loop_header
      %s32 = sphi 0, %s36
      %p33 = scmp.ge.s32.totalorder %s32, 4
      %s42 = sphi 0, %s44
      %s45 = sphi 0, %s42
      %s46 = sphi 0, %s45
      %s62 = sphi 0, %s46
      %s68 = sphi 0, %s70
      %s71 = sphi 0, %s68
      %s72 = sphi 0, %s71
      %s88 = sphi 0, %s72
      %s92 = sphi 0, %s92
      %s94 = sphi 0, %s92
      %s95 = sphi 0, %s94
      %s109 = sphi 0, %s95
      %s113 = sphi 0, %s113
      %s115 = sphi 0, %s113
      %s116 = sphi 0, %s115
      %s130 = sphi 0, %s116
      %s134 = sphi 0, %s134
      %s136 = sphi 0, %s134
      %s137 = sphi 0, %s136
      %s151 = sphi 0, %s137
      %s155 = sphi 0, %s155
      %s157 = sphi 0, %s155
      %s158 = sphi 0, %s157
      %s172 = sphi 0, %s158
      %s178 = sphi 0, %s180
      %s181 = sphi 0, %s178
      %s182 = sphi 0, %s181
      %s198 = sphi 0, %s182
      %s204 = sphi 0, %s206
      %s207 = sphi 0, %s204
      %s208 = sphi 0, %s207
      %s224 = sphi 0, %s208
      %s230 = sphi 0, %s232
      %s233 = sphi 0, %s230
      %s234 = sphi 0, %s233
      %s250 = sphi 0, %s234
      %s256 = sphi 0, %s258
      %s259 = sphi 0, %s256
      %s260 = sphi 0, %s259
      %s276 = sphi 0, %s260
    $region4: #{tpu_custom_call.1} parent=1 // loop_header_branch
      %35 = sbr.rel (%p33) target = $region8
    $region5: #{tpu_custom_call.1} parent=1 // loop_body
      %s37 = ssub.s32 %s32, 1
      %s38 = ssub.s32 %s32, 2
      %s39 = sadd.s32 %s32, 1
      %s40 = ssub.s32 %s32, %s39
      %p41 = scmp.eq.s32.totalorder %s40, 0
      %s43 = sadd.s32 %s42, 1
      %s44 = scalar_select %p41, %s42, %s43
      %p47 = pneg %p41
      %p48 = scmp.eq.s32.totalorder %s32, 1
      %p49 = por %p47, %p48
      %p50 = scmp.ne.s32.totalorder %s42, %s45
      %p51 = scmp.eq.s32.totalorder %s32, 0
      %p52 = por %p50, %p51
      %p53 = scmp.ne.s32.totalorder %s42, %s45
      %p54 = scmp.eq.s32.totalorder %s37, 1
      %p55 = por %p53, %p54
      %p56 = scmp.ne.s32.totalorder %s45, %s46
      %p57 = scmp.eq.s32.totalorder %s37, 0
      %p58 = por %p56, %p57
      %p59 = scmp.ne.s32.totalorder %s45, %s46
      %p60 = scmp.eq.s32.totalorder %s38, 1
      %p61 = por %p59, %p60
      %p63 = scmp.ne.s32.totalorder %s46, %s62
      %p64 = scmp.eq.s32.totalorder %s38, 0
      %p65 = por %p63, %p64
      %s66 = ssub.s32 %s32, %s39
      %p67 = scmp.eq.s32.totalorder %s66, 0
      %s69 = sadd.s32 %s68, 1
      %s70 = scalar_select %p67, %s68, %s69
      %p73 = pneg %p67
      %p74 = scmp.eq.s32.totalorder %s32, 1
      %p75 = por %p73, %p74
      %p76 = scmp.ne.s32.totalorder %s68, %s71
      %p77 = scmp.eq.s32.totalorder %s32, 0
      %p78 = por %p76, %p77
      %p79 = scmp.ne.s32.totalorder %s68, %s71
      %p80 = scmp.eq.s32.totalorder %s37, 1
      %p81 = por %p79, %p80
      %p82 = scmp.ne.s32.totalorder %s71, %s72
      %p83 = scmp.eq.s32.totalorder %s37, 0
      %p84 = por %p82, %p83
      %p85 = scmp.ne.s32.totalorder %s71, %s72
      %p86 = scmp.eq.s32.totalorder %s38, 1
      %p87 = por %p85, %p86
      %p89 = scmp.ne.s32.totalorder %s72, %s88
      %p90 = scmp.eq.s32.totalorder %s38, 0
      %p91 = por %p89, %p90
      %s93 = sadd.s32 %s92, 1
      %p96 = scmp.eq.s32.totalorder %s32, 1
      %p97 = scmp.ne.s32.totalorder %s92, %s94
      %p98 = scmp.eq.s32.totalorder %s32, 0
      %p99 = por %p97, %p98
      %p100 = scmp.ne.s32.totalorder %s92, %s94
      %p101 = scmp.eq.s32.totalorder %s37, 1
      %p102 = por %p100, %p101
      %p103 = scmp.ne.s32.totalorder %s94, %s95
      %p104 = scmp.eq.s32.totalorder %s37, 0
      %p105 = por %p103, %p104
      %p106 = scmp.ne.s32.totalorder %s94, %s95
      %p107 = scmp.eq.s32.totalorder %s38, 1
      %p108 = por %p106, %p107
      %p110 = scmp.ne.s32.totalorder %s95, %s109
      %p111 = scmp.eq.s32.totalorder %s38, 0
      %p112 = por %p110, %p111
      %s114 = sadd.s32 %s113, 1
      %p117 = scmp.eq.s32.totalorder %s32, 1
      %p118 = scmp.ne.s32.totalorder %s113, %s115
      %p119 = scmp.eq.s32.totalorder %s32, 0
      %p120 = por %p118, %p119
      %p121 = scmp.ne.s32.totalorder %s113, %s115
      %p122 = scmp.eq.s32.totalorder %s37, 1
      %p123 = por %p121, %p122
      %p124 = scmp.ne.s32.totalorder %s115, %s116
      %p125 = scmp.eq.s32.totalorder %s37, 0
      %p126 = por %p124, %p125
      %p127 = scmp.ne.s32.totalorder %s115, %s116
      %p128 = scmp.eq.s32.totalorder %s38, 1
      %p129 = por %p127, %p128
      %p131 = scmp.ne.s32.totalorder %s116, %s130
      %p132 = scmp.eq.s32.totalorder %s38, 0
      %p133 = por %p131, %p132
      %s135 = sadd.s32 %s134, 1
      %p138 = scmp.eq.s32.totalorder %s32, 1
      %p139 = scmp.ne.s32.totalorder %s134, %s136
      %p140 = scmp.eq.s32.totalorder %s32, 0
      %p141 = por %p139, %p140
      %p142 = scmp.ne.s32.totalorder %s134, %s136
      %p143 = scmp.eq.s32.totalorder %s37, 1
      %p144 = por %p142, %p143
      %p145 = scmp.ne.s32.totalorder %s136, %s137
      %p146 = scmp.eq.s32.totalorder %s37, 0
      %p147 = por %p145, %p146
      %p148 = scmp.ne.s32.totalorder %s136, %s137
      %p149 = scmp.eq.s32.totalorder %s38, 1
      %p150 = por %p148, %p149
      %p152 = scmp.ne.s32.totalorder %s137, %s151
      %p153 = scmp.eq.s32.totalorder %s38, 0
      %p154 = por %p152, %p153
      %s156 = sadd.s32 %s155, 1
      %p159 = scmp.eq.s32.totalorder %s32, 1
      %p160 = scmp.ne.s32.totalorder %s155, %s157
      %p161 = scmp.eq.s32.totalorder %s32, 0
      %p162 = por %p160, %p161
      %p163 = scmp.ne.s32.totalorder %s155, %s157
      %p164 = scmp.eq.s32.totalorder %s37, 1
      %p165 = por %p163, %p164
      %p166 = scmp.ne.s32.totalorder %s157, %s158
      %p167 = scmp.eq.s32.totalorder %s37, 0
      %p168 = por %p166, %p167
      %p169 = scmp.ne.s32.totalorder %s157, %s158
      %p170 = scmp.eq.s32.totalorder %s38, 1
      %p171 = por %p169, %p170
      %p173 = scmp.ne.s32.totalorder %s158, %s172
      %p174 = scmp.eq.s32.totalorder %s38, 0
      %p175 = por %p173, %p174
      %s176 = ssub.s32 %s32, %s39
      %p177 = scmp.eq.s32.totalorder %s176, 0
      %s179 = sadd.s32 %s178, 1
      %s180 = scalar_select %p177, %s178, %s179
      %p183 = pneg %p177
      %p184 = scmp.eq.s32.totalorder %s32, 1
      %p185 = por %p183, %p184
      %p186 = scmp.ne.s32.totalorder %s178, %s181
      %p187 = scmp.eq.s32.totalorder %s32, 0
      %p188 = por %p186, %p187
      %p189 = scmp.ne.s32.totalorder %s178, %s181
      %p190 = scmp.eq.s32.totalorder %s37, 1
      %p191 = por %p189, %p190
      %p192 = scmp.ne.s32.totalorder %s181, %s182
      %p193 = scmp.eq.s32.totalorder %s37, 0
      %p194 = por %p192, %p193
      %p195 = scmp.ne.s32.totalorder %s181, %s182
      %p196 = scmp.eq.s32.totalorder %s38, 1
      %p197 = por %p195, %p196
      %p199 = scmp.ne.s32.totalorder %s182, %s198
      %p200 = scmp.eq.s32.totalorder %s38, 0
      %p201 = por %p199, %p200
      %s202 = ssub.s32 %s32, %s39
      %p203 = scmp.eq.s32.totalorder %s202, 0
      %s205 = sadd.s32 %s204, 1
      %s206 = scalar_select %p203, %s204, %s205
      %p209 = pneg %p203
      %p210 = scmp.eq.s32.totalorder %s32, 1
      %p211 = por %p209, %p210
      %p212 = scmp.ne.s32.totalorder %s204, %s207
      %p213 = scmp.eq.s32.totalorder %s32, 0
      %p214 = por %p212, %p213
      %p215 = scmp.ne.s32.totalorder %s204, %s207
      %p216 = scmp.eq.s32.totalorder %s37, 1
      %p217 = por %p215, %p216
      %p218 = scmp.ne.s32.totalorder %s207, %s208
      %p219 = scmp.eq.s32.totalorder %s37, 0
      %p220 = por %p218, %p219
      %p221 = scmp.ne.s32.totalorder %s207, %s208
      %p222 = scmp.eq.s32.totalorder %s38, 1
      %p223 = por %p221, %p222
      %p225 = scmp.ne.s32.totalorder %s208, %s224
      %p226 = scmp.eq.s32.totalorder %s38, 0
      %p227 = por %p225, %p226
      %s228 = ssub.s32 %s32, %s39
      %p229 = scmp.eq.s32.totalorder %s228, 0
      %s231 = sadd.s32 %s230, 1
      %s232 = scalar_select %p229, %s230, %s231
      %p235 = pneg %p229
      %p236 = scmp.eq.s32.totalorder %s32, 1
      %p237 = por %p235, %p236
      %p238 = scmp.ne.s32.totalorder %s230, %s233
      %p239 = scmp.eq.s32.totalorder %s32, 0
      %p240 = por %p238, %p239
      %p241 = scmp.ne.s32.totalorder %s230, %s233
      %p242 = scmp.eq.s32.totalorder %s37, 1
      %p243 = por %p241, %p242
      %p244 = scmp.ne.s32.totalorder %s233, %s234
      %p245 = scmp.eq.s32.totalorder %s37, 0
      %p246 = por %p244, %p245
      %p247 = scmp.ne.s32.totalorder %s233, %s234
      %p248 = scmp.eq.s32.totalorder %s38, 1
      %p249 = por %p247, %p248
      %p251 = scmp.ne.s32.totalorder %s234, %s250
      %p252 = scmp.eq.s32.totalorder %s38, 0
      %p253 = por %p251, %p252
      %s254 = ssub.s32 %s32, %s39
      %p255 = scmp.eq.s32.totalorder %s254, 0
      %s257 = sadd.s32 %s256, 1
      %s258 = scalar_select %p255, %s256, %s257
      %p261 = pneg %p255
      %p262 = scmp.eq.s32.totalorder %s32, 1
      %p263 = por %p261, %p262
      %p264 = scmp.ne.s32.totalorder %s256, %s259
      %p265 = scmp.eq.s32.totalorder %s32, 0
      %p266 = por %p264, %p265
      %p267 = scmp.ne.s32.totalorder %s256, %s259
      %p268 = scmp.eq.s32.totalorder %s37, 1
      %p269 = por %p267, %p268
      %p270 = scmp.ne.s32.totalorder %s259, %s260
      %p271 = scmp.eq.s32.totalorder %s37, 0
      %p272 = por %p270, %p271
      %p273 = scmp.ne.s32.totalorder %s259, %s260
      %p274 = scmp.eq.s32.totalorder %s38, 1
      %p275 = por %p273, %p274
      %p277 = scmp.ne.s32.totalorder %s260, %s276
      %p278 = scmp.eq.s32.totalorder %s38, 0
      %p279 = por %p277, %p278
      %p280 = scmp.le.s32.totalorder 1, %s32
      %p281 = scmp.lt.s32.totalorder %s32, 3
      %p282 = pnand %p280, %p281
      %p283 = pneg %p282
      // Predicated region
      $region9: #{tpu_custom_call.1} parent=5 // pred_check
        _
      $region10: #{tpu_custom_call.1} parent=5 // pred_check_branch
        %285 = sbr.rel (%p282) target = $region12
      $region11: #{tpu_custom_call.1} parent=5 // pred_region
        %s286 = ssub.s32 %s32, 1
        // Predicated region
        $region13: #{tpu_custom_call.1} parent=11 // pred_check
          %p287 = pneg %p105
        $region14: #{tpu_custom_call.1} parent=11 // pred_check_branch
          %289 = sbr.rel (%p287) target = $region16
        $region15: #{tpu_custom_call.1} parent=11 // pred_region
          %s291 = ssub.s32 8192, 8192
          %292 = vsyncadd [#allocation6], %s291
          %s293 = sshll.u32 [#allocation7], 4
          %s294 = int_to_ptr.vmem [resolvable:$true] %s293
          %299 = dma.hbm_to_vmem [thread:$0]  %s2, 8192, %s294, [#allocation6], 512, 512, 32
        $region16: #{tpu_custom_call.1} parent=11 // pred_fallthru
          _
        // Predicated region
        $region17: #{tpu_custom_call.1} parent=11 // pred_check
          %p300 = pneg %p126
        $region18: #{tpu_custom_call.1} parent=11 // pred_check_branch
          %302 = sbr.rel (%p300) target = $region20
        $region19: #{tpu_custom_call.1} parent=11 // pred_region
          _
        $region20: #{tpu_custom_call.1} parent=11 // pred_fallthru
          _
        // Predicated region
        $region21: #{tpu_custom_call.1} parent=11 // pred_check
          %p303 = pneg %p147
        $region22: #{tpu_custom_call.1} parent=11 // pred_check_branch
          %305 = sbr.rel (%p303) target = $region24
        $region23: #{tpu_custom_call.1} parent=11 // pred_region
          %s307 = ssub.s32 16384, 16384
          %308 = vsyncadd [#allocation9], %s307
          %s309 = sshll.u32 [#allocation8], 4
          %s310 = int_to_ptr.vmem [resolvable:$true] %s309
          %315 = dma.hbm_to_vmem [thread:$0]  %s4, 16384, %s310, [#allocation9], 128, 128, 8
        $region24: #{tpu_custom_call.1} parent=11 // pred_fallthru
          _
        // Predicated region
        $region25: #{tpu_custom_call.1} parent=11 // pred_check
          %p316 = pneg %p168
        $region26: #{tpu_custom_call.1} parent=11 // pred_check_branch
          %318 = sbr.rel (%p316) target = $region28
        $region27: #{tpu_custom_call.1} parent=11 // pred_region
          _
        $region28: #{tpu_custom_call.1} parent=11 // pred_fallthru
          _
      $region12: #{tpu_custom_call.1} parent=5 // pred_fallthru
        _
      %p319 = scmp.lt.s32.totalorder %s32, 2
      // Predicated region
      $region29: #{tpu_custom_call.1} parent=5 // pred_check
        %p320 = pneg %p319
      $region30: #{tpu_custom_call.1} parent=5 // pred_check_branch
        %322 = sbr.rel (%p320) target = $region32
      $region31: #{tpu_custom_call.1} parent=5 // pred_region
        // Predicated region
        $region33: #{tpu_custom_call.1} parent=31 // pred_check
          %p323 = pneg %p52
        $region34: #{tpu_custom_call.1} parent=31 // pred_check_branch
          %325 = sbr.rel (%p323) target = $region36
        $region35: #{tpu_custom_call.1} parent=31 // pred_region
          %s326 = sand.u32 %s42, 1
          %s327 = scalar_lea.sflag [#allocation3], %s326
          %s328 = sand.u32 %s42, 1
          %s329 = smul.addr %s328, 512
          %s330 = scalar_lea.vmem [#allocation2], %s329
          %s331 = smul.u32 64, %s32
          %s333 = ssub.s32 8192, 8192
          %334 = vsyncadd %s327, %s333
          %s335 = smul.addr %s331, 128
          %s336 = scalar_lea.hbm %s0, %s335
          %s337 = sshll.u32 %s330, 4
          %s338 = int_to_ptr.vmem [resolvable:$true] %s337
          %343 = dma.hbm_to_vmem [thread:$0]  %s336, 8192, %s338, %s327, 128, 128, 8
        $region36: #{tpu_custom_call.1} parent=31 // pred_fallthru
          _
        // Predicated region
        $region37: #{tpu_custom_call.1} parent=31 // pred_check
          %p344 = pneg %p78
        $region38: #{tpu_custom_call.1} parent=31 // pred_check_branch
          %346 = sbr.rel (%p344) target = $region40
        $region39: #{tpu_custom_call.1} parent=31 // pred_region
          %s347 = sand.u32 %s32, 1
          %s348 = scalar_lea.sflag [#allocation6], %s347
          %s349 = sand.u32 %s68, 1
          %s350 = smul.addr %s349, 512
          %s351 = scalar_lea.vmem [#allocation5], %s350
          %s352 = smul.u32 64, %s32
          %s354 = ssub.s32 8192, 8192
          %355 = vsyncadd %s348, %s354
          %s356 = smul.addr %s352, 128
          %s357 = scalar_lea.hbm %s1, %s356
          %s358 = sshll.u32 %s351, 4
          %s359 = int_to_ptr.vmem [resolvable:$true] %s358
          %364 = dma.hbm_to_vmem [thread:$0]  %s357, 8192, %s359, %s348, 128, 128, 8
        $region40: #{tpu_custom_call.1} parent=31 // pred_fallthru
          _
      $region32: #{tpu_custom_call.1} parent=5 // pred_fallthru
        _
      %p365 = scmp.le.s32.totalorder 1, %s32
      %p366 = scmp.lt.s32.totalorder %s32, 3
      %p367 = pnand %p365, %p366
      %p368 = pneg %p367
      // Predicated region
      $region41: #{tpu_custom_call.1} parent=5 // pred_check
        _
      $region42: #{tpu_custom_call.1} parent=5 // pred_check_branch
        %370 = sbr.rel (%p367) target = $region44
      $region43: #{tpu_custom_call.1} parent=5 // pred_region
        %s371 = ssub.s32 %s32, 1
        %s372 = sand.u32 %s45, 1
        %s373 = scalar_lea.sflag [#allocation3], %s372
        %s374 = sand.u32 %s45, 1
        %s375 = smul.addr %s374, 512
        %s376 = scalar_lea.vmem [#allocation2], %s375
        // Predicated region
        $region45: #{tpu_custom_call.1} parent=43 // pred_check
          %p377 = pneg %p58
        $region46: #{tpu_custom_call.1} parent=43 // pred_check_branch
          %379 = sbr.rel (%p377) target = $region48
        $region47: #{tpu_custom_call.1} parent=43 // pred_region
          %380 = dma.done %s373, 8192
        $region48: #{tpu_custom_call.1} parent=43 // pred_fallthru
          _
        %s381 = sand.u32 %s37, 1
        %s382 = scalar_lea.sflag [#allocation6], %s381
        %s383 = sand.u32 %s71, 1
        %s384 = smul.addr %s383, 512
        %s385 = scalar_lea.vmem [#allocation5], %s384
        // Predicated region
        $region49: #{tpu_custom_call.1} parent=43 // pred_check
          %p386 = pneg %p84
        $region50: #{tpu_custom_call.1} parent=43 // pred_check_branch
          %388 = sbr.rel (%p386) target = $region52
        $region51: #{tpu_custom_call.1} parent=43 // pred_region
          %389 = dma.done %s382, 8192
        $region52: #{tpu_custom_call.1} parent=43 // pred_fallthru
          _
        // Predicated region
        $region53: #{tpu_custom_call.1} parent=43 // pred_check
          %p390 = pneg %p105
        $region54: #{tpu_custom_call.1} parent=43 // pred_check_branch
          %392 = sbr.rel (%p390) target = $region56
        $region55: #{tpu_custom_call.1} parent=43 // pred_region
          %393 = dma.done [#allocation6], 8192
        $region56: #{tpu_custom_call.1} parent=43 // pred_fallthru
          _
        // Predicated region
        $region57: #{tpu_custom_call.1} parent=43 // pred_check
          %p394 = pneg %p147
        $region58: #{tpu_custom_call.1} parent=43 // pred_check_branch
          %396 = sbr.rel (%p394) target = $region60
        $region59: #{tpu_custom_call.1} parent=43 // pred_region
          %397 = dma.done [#allocation9], 16384
        $region60: #{tpu_custom_call.1} parent=43 // pred_fallthru
          _
        %s398 = sand.u32 %s45, 1
        %s399 = scalar_lea.sflag [#allocation3], %s398
        %s400 = sand.u32 %s45, 1
        %s401 = smul.addr %s400, 512
        %s402 = scalar_lea.vmem [#allocation2], %s401
        %p403 = pneg %p58
        %p404 = pneg %p55
        %s405 = sand.u32 %s37, 1
        %s406 = scalar_lea.sflag [#allocation6], %s405
        %s407 = sand.u32 %s71, 1
        %s408 = smul.addr %s407, 512
        %s409 = scalar_lea.vmem [#allocation5], %s408
        %p410 = pneg %p84
        %p411 = pneg %p81
        %p412 = pneg %p105
        %p413 = pneg %p102
        %p414 = pneg %p126
        %p415 = pneg %p123
        %p416 = pneg %p147
        %p417 = pneg %p144
        %p418 = pneg %p168
        %p419 = pneg %p165
        %p420 = pneg %p194
        %p421 = pneg %p191
        %s422 = sand.u32 %s181, 1
        %s423 = scalar_lea.sflag [#allocation4], %s422
        %s424 = sand.u32 %s181, 1
        %s425 = smul.addr %s424, 512
        %s426 = scalar_lea.vmem [#allocation10], %s425
        %p427 = pneg %p220
        %p428 = pneg %p217
        %s429 = sand.u32 %s37, 1
        %s430 = scalar_lea.sflag [#allocation12], %s429
        %s431 = sand.u32 %s207, 1
        %s432 = smul.addr %s431, 512
        %s433 = scalar_lea.vmem [#allocation11], %s432
        %p434 = pneg %p246
        %p435 = pneg %p243
        %s436 = sand.u32 %s37, 1
        %s437 = scalar_lea.sflag [#allocation12], %s436
        %s438 = sand.u32 %s233, 1
        %s439 = smul.addr %s438, 512
        %s440 = scalar_lea.vmem [#allocation13], %s439
        %p441 = pneg %p272
        %p442 = pneg %p269
        %s443 = sand.u32 %s259, 1
        %s444 = scalar_lea.sflag [#allocation15], %s443
        %s445 = sand.u32 %s259, 1
        %s446 = smul.addr %s445, 512
        %s447 = scalar_lea.vmem [#allocation14], %s446
        %s448 = smul.u32 64, %s37
        %s449 = smul.u32 64, %s37
        %s450 = smul.u32 64, %s37
        %s451 = smul.u32 64, %s37
        %s452 = smul.u32 64, %s37
        %s453 = smul.u32 64, %s37
        %v454 = vld [vmem:[%s376] sm:$0xff]
        %v455 = vld [vmem:[%s376 + $0x8] sm:$0xff]
        %v456 = vld [vmem:[%s376 + $0x10] sm:$0xff]
        %v457 = vld [vmem:[%s376 + $0x18] sm:$0xff]
        %v458 = vld [vmem:[%s376 + $0x20] sm:$0xff]
        %v459 = vld [vmem:[%s376 + $0x28] sm:$0xff]
        %v460 = vld [vmem:[%s376 + $0x30] sm:$0xff]
        %v461 = vld [vmem:[%s376 + $0x38] sm:$0xff]
        %v462 = vld [vmem:[%s376 + $0x40] sm:$0xff]
        %v463 = vld [vmem:[%s376 + $0x48] sm:$0xff]
        %v464 = vld [vmem:[%s376 + $0x50] sm:$0xff]
        %v465 = vld [vmem:[%s376 + $0x58] sm:$0xff]
        %v466 = vld [vmem:[%s376 + $0x60] sm:$0xff]
        %v467 = vld [vmem:[%s376 + $0x68] sm:$0xff]
        %v468 = vld [vmem:[%s376 + $0x70] sm:$0xff]
        %v469 = vld [vmem:[%s376 + $0x78] sm:$0xff]
        %v470 = vld [vmem:[%s376 + $0x80] sm:$0xff]
        %v471 = vld [vmem:[%s376 + $0x88] sm:$0xff]
        %v472 = vld [vmem:[%s376 + $0x90] sm:$0xff]
        %v473 = vld [vmem:[%s376 + $0x98] sm:$0xff]
        %v474 = vld [vmem:[%s376 + $0xa0] sm:$0xff]
        %v475 = vld [vmem:[%s376 + $0xa8] sm:$0xff]
        %v476 = vld [vmem:[%s376 + $0xb0] sm:$0xff]
        %v477 = vld [vmem:[%s376 + $0xb8] sm:$0xff]
        %v478 = vld [vmem:[%s376 + $0xc0] sm:$0xff]
        %v479 = vld [vmem:[%s376 + $0xc8] sm:$0xff]
        %v480 = vld [vmem:[%s376 + $0xd0] sm:$0xff]
        %v481 = vld [vmem:[%s376 + $0xd8] sm:$0xff]
        %v482 = vld [vmem:[%s376 + $0xe0] sm:$0xff]
        %v483 = vld [vmem:[%s376 + $0xe8] sm:$0xff]
        %v484 = vld [vmem:[%s376 + $0xf0] sm:$0xff]
        %v485 = vld [vmem:[%s376 + $0xf8] sm:$0xff]
        %v486 = vld [vmem:[%s376 + $0x100] sm:$0xff]
        %v487 = vld [vmem:[%s376 + $0x108] sm:$0xff]
        %v488 = vld [vmem:[%s376 + $0x110] sm:$0xff]
        %v489 = vld [vmem:[%s376 + $0x118] sm:$0xff]
        %v490 = vld [vmem:[%s376 + $0x120] sm:$0xff]
        %v491 = vld [vmem:[%s376 + $0x128] sm:$0xff]
        %v492 = vld [vmem:[%s376 + $0x130] sm:$0xff]
        %v493 = vld [vmem:[%s376 + $0x138] sm:$0xff]
        %v494 = vld [vmem:[%s376 + $0x140] sm:$0xff]
        %v495 = vld [vmem:[%s376 + $0x148] sm:$0xff]
        %v496 = vld [vmem:[%s376 + $0x150] sm:$0xff]
        %v497 = vld [vmem:[%s376 + $0x158] sm:$0xff]
        %v498 = vld [vmem:[%s376 + $0x160] sm:$0xff]
        %v499 = vld [vmem:[%s376 + $0x168] sm:$0xff]
        %v500 = vld [vmem:[%s376 + $0x170] sm:$0xff]
        %v501 = vld [vmem:[%s376 + $0x178] sm:$0xff]
        %v502 = vld [vmem:[%s376 + $0x180] sm:$0xff]
        %v503 = vld [vmem:[%s376 + $0x188] sm:$0xff]
        %v504 = vld [vmem:[%s376 + $0x190] sm:$0xff]
        %v505 = vld [vmem:[%s376 + $0x198] sm:$0xff]
        %v506 = vld [vmem:[%s376 + $0x1a0] sm:$0xff]
        %v507 = vld [vmem:[%s376 + $0x1a8] sm:$0xff]
        %v508 = vld [vmem:[%s376 + $0x1b0] sm:$0xff]
        %v509 = vld [vmem:[%s376 + $0x1b8] sm:$0xff]
        %v510 = vld [vmem:[%s376 + $0x1c0] sm:$0xff]
        %v511 = vld [vmem:[%s376 + $0x1c8] sm:$0xff]
        %v512 = vld [vmem:[%s376 + $0x1d0] sm:$0xff]
        %v513 = vld [vmem:[%s376 + $0x1d8] sm:$0xff]
        %v514 = vld [vmem:[%s376 + $0x1e0] sm:$0xff]
        %v515 = vld [vmem:[%s376 + $0x1e8] sm:$0xff]
        %v516 = vld [vmem:[%s376 + $0x1f0] sm:$0xff]
        %v517 = vld [vmem:[%s376 + $0x1f8] sm:$0xff]
        %v518 = vld [vmem:[%s385] sm:$0xff]
        %v519 = vld [vmem:[%s385 + $0x8] sm:$0xff]
        %v520 = vld [vmem:[%s385 + $0x10] sm:$0xff]
        %v521 = vld [vmem:[%s385 + $0x18] sm:$0xff]
        %v522 = vld [vmem:[%s385 + $0x20] sm:$0xff]
        %v523 = vld [vmem:[%s385 + $0x28] sm:$0xff]
        %v524 = vld [vmem:[%s385 + $0x30] sm:$0xff]
        %v525 = vld [vmem:[%s385 + $0x38] sm:$0xff]
        %v526 = vld [vmem:[%s385 + $0x40] sm:$0xff]
        %v527 = vld [vmem:[%s385 + $0x48] sm:$0xff]
        %v528 = vld [vmem:[%s385 + $0x50] sm:$0xff]
        %v529 = vld [vmem:[%s385 + $0x58] sm:$0xff]
        %v530 = vld [vmem:[%s385 + $0x60] sm:$0xff]
        %v531 = vld [vmem:[%s385 + $0x68] sm:$0xff]
        %v532 = vld [vmem:[%s385 + $0x70] sm:$0xff]
        %v533 = vld [vmem:[%s385 + $0x78] sm:$0xff]
        %v534 = vld [vmem:[%s385 + $0x80] sm:$0xff]
        %v535 = vld [vmem:[%s385 + $0x88] sm:$0xff]
        %v536 = vld [vmem:[%s385 + $0x90] sm:$0xff]
        %v537 = vld [vmem:[%s385 + $0x98] sm:$0xff]
        %v538 = vld [vmem:[%s385 + $0xa0] sm:$0xff]
        %v539 = vld [vmem:[%s385 + $0xa8] sm:$0xff]
        %v540 = vld [vmem:[%s385 + $0xb0] sm:$0xff]
        %v541 = vld [vmem:[%s385 + $0xb8] sm:$0xff]
        %v542 = vld [vmem:[%s385 + $0xc0] sm:$0xff]
        %v543 = vld [vmem:[%s385 + $0xc8] sm:$0xff]
        %v544 = vld [vmem:[%s385 + $0xd0] sm:$0xff]
        %v545 = vld [vmem:[%s385 + $0xd8] sm:$0xff]
        %v546 = vld [vmem:[%s385 + $0xe0] sm:$0xff]
        %v547 = vld [vmem:[%s385 + $0xe8] sm:$0xff]
        %v548 = vld [vmem:[%s385 + $0xf0] sm:$0xff]
        %v549 = vld [vmem:[%s385 + $0xf8] sm:$0xff]
        %v550 = vld [vmem:[%s385 + $0x100] sm:$0xff]
        %v551 = vld [vmem:[%s385 + $0x108] sm:$0xff]
        %v552 = vld [vmem:[%s385 + $0x110] sm:$0xff]
        %v553 = vld [vmem:[%s385 + $0x118] sm:$0xff]
        %v554 = vld [vmem:[%s385 + $0x120] sm:$0xff]
        %v555 = vld [vmem:[%s385 + $0x128] sm:$0xff]
        %v556 = vld [vmem:[%s385 + $0x130] sm:$0xff]
        %v557 = vld [vmem:[%s385 + $0x138] sm:$0xff]
        %v558 = vld [vmem:[%s385 + $0x140] sm:$0xff]
        %v559 = vld [vmem:[%s385 + $0x148] sm:$0xff]
        %v560 = vld [vmem:[%s385 + $0x150] sm:$0xff]
        %v561 = vld [vmem:[%s385 + $0x158] sm:$0xff]
        %v562 = vld [vmem:[%s385 + $0x160] sm:$0xff]
        %v563 = vld [vmem:[%s385 + $0x168] sm:$0xff]
        %v564 = vld [vmem:[%s385 + $0x170] sm:$0xff]
        %v565 = vld [vmem:[%s385 + $0x178] sm:$0xff]
        %v566 = vld [vmem:[%s385 + $0x180] sm:$0xff]
        %v567 = vld [vmem:[%s385 + $0x188] sm:$0xff]
        %v568 = vld [vmem:[%s385 + $0x190] sm:$0xff]
        %v569 = vld [vmem:[%s385 + $0x198] sm:$0xff]
        %v570 = vld [vmem:[%s385 + $0x1a0] sm:$0xff]
        %v571 = vld [vmem:[%s385 + $0x1a8] sm:$0xff]
        %v572 = vld [vmem:[%s385 + $0x1b0] sm:$0xff]
        %v573 = vld [vmem:[%s385 + $0x1b8] sm:$0xff]
        %v574 = vld [vmem:[%s385 + $0x1c0] sm:$0xff]
        %v575 = vld [vmem:[%s385 + $0x1c8] sm:$0xff]
        %v576 = vld [vmem:[%s385 + $0x1d0] sm:$0xff]
        %v577 = vld [vmem:[%s385 + $0x1d8] sm:$0xff]
        %v578 = vld [vmem:[%s385 + $0x1e0] sm:$0xff]
        %v579 = vld [vmem:[%s385 + $0x1e8] sm:$0xff]
        %v580 = vld [vmem:[%s385 + $0x1f0] sm:$0xff]
        %v581 = vld [vmem:[%s385 + $0x1f8] sm:$0xff]
        %v582 = vld [vmem:[#allocation7] sm:$0xff]
        %v583 = vld [vmem:[#allocation7 + $0x8] sm:$0xff]
        %v584 = vld [vmem:[#allocation7 + $0x10] sm:$0xff]
        %v585 = vld [vmem:[#allocation7 + $0x18] sm:$0xff]
        %v586 = vld [vmem:[#allocation7 + $0x20] sm:$0xff]
        %v587 = vld [vmem:[#allocation7 + $0x28] sm:$0xff]
        %v588 = vld [vmem:[#allocation7 + $0x30] sm:$0xff]
        %v589 = vld [vmem:[#allocation7 + $0x38] sm:$0xff]
        %v590 = vld [vmem:[#allocation7 + $0x40] sm:$0xff]
        %v591 = vld [vmem:[#allocation7 + $0x48] sm:$0xff]
        %v592 = vld [vmem:[#allocation7 + $0x50] sm:$0xff]
        %v593 = vld [vmem:[#allocation7 + $0x58] sm:$0xff]
        %v594 = vld [vmem:[#allocation7 + $0x60] sm:$0xff]
        %v595 = vld [vmem:[#allocation7 + $0x68] sm:$0xff]
        %v596 = vld [vmem:[#allocation7 + $0x70] sm:$0xff]
        %v597 = vld [vmem:[#allocation7 + $0x78] sm:$0xff]
        %v598 = vld [vmem:[#allocation7 + $0x80] sm:$0xff]
        %v599 = vld [vmem:[#allocation7 + $0x88] sm:$0xff]
        %v600 = vld [vmem:[#allocation7 + $0x90] sm:$0xff]
        %v601 = vld [vmem:[#allocation7 + $0x98] sm:$0xff]
        %v602 = vld [vmem:[#allocation7 + $0xa0] sm:$0xff]
        %v603 = vld [vmem:[#allocation7 + $0xa8] sm:$0xff]
        %v604 = vld [vmem:[#allocation7 + $0xb0] sm:$0xff]
        %v605 = vld [vmem:[#allocation7 + $0xb8] sm:$0xff]
        %v606 = vld [vmem:[#allocation7 + $0xc0] sm:$0xff]
        %v607 = vld [vmem:[#allocation7 + $0xc8] sm:$0xff]
        %v608 = vld [vmem:[#allocation7 + $0xd0] sm:$0xff]
        %v609 = vld [vmem:[#allocation7 + $0xd8] sm:$0xff]
        %v610 = vld [vmem:[#allocation7 + $0xe0] sm:$0xff]
        %v611 = vld [vmem:[#allocation7 + $0xe8] sm:$0xff]
        %v612 = vld [vmem:[#allocation7 + $0xf0] sm:$0xff]
        %v613 = vld [vmem:[#allocation7 + $0xf8] sm:$0xff]
        %v614 = vld [vmem:[#allocation7 + $0x100] sm:$0xff]
        %v615 = vld [vmem:[#allocation7 + $0x108] sm:$0xff]
        %v616 = vld [vmem:[#allocation7 + $0x110] sm:$0xff]
        %v617 = vld [vmem:[#allocation7 + $0x118] sm:$0xff]
        %v618 = vld [vmem:[#allocation7 + $0x120] sm:$0xff]
        %v619 = vld [vmem:[#allocation7 + $0x128] sm:$0xff]
        %v620 = vld [vmem:[#allocation7 + $0x130] sm:$0xff]
        %v621 = vld [vmem:[#allocation7 + $0x138] sm:$0xff]
        %v622 = vld [vmem:[#allocation7 + $0x140] sm:$0xff]
        %v623 = vld [vmem:[#allocation7 + $0x148] sm:$0xff]
        %v624 = vld [vmem:[#allocation7 + $0x150] sm:$0xff]
        %v625 = vld [vmem:[#allocation7 + $0x158] sm:$0xff]
        %v626 = vld [vmem:[#allocation7 + $0x160] sm:$0xff]
        %v627 = vld [vmem:[#allocation7 + $0x168] sm:$0xff]
        %v628 = vld [vmem:[#allocation7 + $0x170] sm:$0xff]
        %v629 = vld [vmem:[#allocation7 + $0x178] sm:$0xff]
        %v630 = vld [vmem:[#allocation7 + $0x180] sm:$0xff]
        %v631 = vld [vmem:[#allocation7 + $0x188] sm:$0xff]
        %v632 = vld [vmem:[#allocation7 + $0x190] sm:$0xff]
        %v633 = vld [vmem:[#allocation7 + $0x198] sm:$0xff]
        %v634 = vld [vmem:[#allocation7 + $0x1a0] sm:$0xff]
        %v635 = vld [vmem:[#allocation7 + $0x1a8] sm:$0xff]
        %v636 = vld [vmem:[#allocation7 + $0x1b0] sm:$0xff]
        %v637 = vld [vmem:[#allocation7 + $0x1b8] sm:$0xff]
        %v638 = vld [vmem:[#allocation7 + $0x1c0] sm:$0xff]
        %v639 = vld [vmem:[#allocation7 + $0x1c8] sm:$0xff]
        %v640 = vld [vmem:[#allocation7 + $0x1d0] sm:$0xff]
        %v641 = vld [vmem:[#allocation7 + $0x1d8] sm:$0xff]
        %v642 = vld [vmem:[#allocation7 + $0x1e0] sm:$0xff]
        %v643 = vld [vmem:[#allocation7 + $0x1e8] sm:$0xff]
        %v644 = vld [vmem:[#allocation7 + $0x1f0] sm:$0xff]
        %v645 = vld [vmem:[#allocation7 + $0x1f8] sm:$0xff]
        %v646 = vld [vmem:[%s3] sm:$0xf]
        %v648 = vlaneseq
        %v649 = vshrl.u32 %v648, 7
        %v650 = vsub.s32 0, %v649
        %v651 = vrot.slane %v646, %v650
        %v652 = vlaneseq
        %v653 = vshrl.u32 %v652, 7
        %v654 = vsub.s32 1, %v653
        %v655 = vrot.slane %v646, %v654
        %v656 = vlaneseq
        %v657 = vshrl.u32 %v656, 7
        %v658 = vsub.s32 2, %v657
        %v659 = vrot.slane %v646, %v658
        %v660 = vlaneseq
        %v661 = vshrl.u32 %v660, 7
        %v662 = vsub.s32 3, %v661
        %v663 = vrot.slane %v646, %v662
        %668 = vmatprep.subr.mxu0 %v583
        %669 = vmatpush1.msra.mxu0 %v582
        %670 = vmatprep.subr.mxu0 %v587
        %671 = vmatpush1.msra.mxu0 %v586
        %672 = vmatprep.subr.mxu0 %v591
        %673 = vmatpush1.msra.mxu0 %v590
        %674 = vmatprep.subr.mxu0 %v595
        %675 = vmatpush1.msra.mxu0 %v594
        %676 = vmatprep.subr.mxu0 %v599
        %677 = vmatpush1.msra.mxu0 %v598
        %678 = vmatprep.subr.mxu0 %v603
        %679 = vmatpush1.msra.mxu0 %v602
        %680 = vmatprep.subr.mxu0 %v607
        %681 = vmatpush1.msra.mxu0 %v606
        %682 = vmatprep.subr.mxu0 %v611
        %683 = vmatpush1.msra.mxu0 %v610
        %684 = vmatprep.subr.mxu0 %v615
        %685 = vmatpush1.msra.mxu0 %v614
        %686 = vmatprep.subr.mxu0 %v619
        %687 = vmatpush1.msra.mxu0 %v618
        %688 = vmatprep.subr.mxu0 %v623
        %689 = vmatpush1.msra.mxu0 %v622
        %690 = vmatprep.subr.mxu0 %v627
        %691 = vmatpush1.msra.mxu0 %v626
        %692 = vmatprep.subr.mxu0 %v631
        %693 = vmatpush1.msra.mxu0 %v630
        %694 = vmatprep.subr.mxu0 %v635
        %695 = vmatpush1.msra.mxu0 %v634
        %696 = vmatprep.subr.mxu0 %v639
        %697 = vmatpush1.msra.mxu0 %v638
        %698 = vmatprep.subr.mxu0 %v643
        %699 = vmatpush1.msra.mxu0 %v642
        %700 = vmatprep.subr.mxu0 0.0
        %701 = vmatpush1.msra.mxu0 0.0
        %702 = vmatprep.subr.mxu0 0.0
        %703 = vmatpush1.msra.mxu0 0.0
        %704 = vmatprep.subr.mxu0 0.0
        %705 = vmatpush1.msra.mxu0 0.0
        %706 = vmatprep.subr.mxu0 0.0
        %707 = vmatpush1.msra.mxu0 0.0
        %708 = vmatprep.subr.mxu0 0.0
        %709 = vmatpush1.msra.mxu0 0.0
        %710 = vmatprep.subr.mxu0 0.0
        %711 = vmatpush1.msra.mxu0 0.0
        %712 = vmatprep.subr.mxu0 0.0
        %713 = vmatpush1.msra.mxu0 0.0
        %714 = vmatprep.subr.mxu0 0.0
        %715 = vmatpush1.msra.mxu0 0.0
        %716 = vmatprep.subr.mxu0 0.0
        %717 = vmatpush1.msra.mxu0 0.0
        %718 = vmatprep.subr.mxu0 0.0
        %719 = vmatpush1.msra.mxu0 0.0
        %720 = vmatprep.subr.mxu0 0.0
        %721 = vmatpush1.msra.mxu0 0.0
        %722 = vmatprep.subr.mxu0 0.0
        %723 = vmatpush1.msra.mxu0 0.0
        %724 = vmatprep.subr.mxu0 0.0
        %725 = vmatpush1.msra.mxu0 0.0
        %726 = vmatprep.subr.mxu0 0.0
        %727 = vmatpush1.msra.mxu0 0.0
        %728 = vmatprep.subr.mxu0 0.0
        %729 = vmatpush1.msra.mxu0 0.0
        %730 = vmatprep.subr.mxu0 0.0
        %731 = vmatpush1.msra.mxu0 0.0
        %732 = vmatprep.mubr.f32.mxu0 0.0
        %733 = vmatmul.mubr.f32.gmra.mrb[0].mxu0 %v518
        %v734 = vpop.f32.mrb[0].mxu0
        %v735 = vadd.f32 %v651, %v734
        %v736 = vpop.f32.mrb[0].mxu0
        %v737 = vadd.f32 %v655, %v736
        %738 = vmatprep.mubr.f32.mxu0 0.0
        %739 = vmatmul.mubr.f32.gmra.mrb[0].mxu0 %v519
        %v740 = vpop.f32.mrb[0].mxu0
        %v741 = vadd.f32 %v651, %v740
        %v742 = vpop.f32.mrb[0].mxu0
        %v743 = vadd.f32 %v655, %v742
        %744 = vmatprep.mubr.f32.mxu0 0.0
        %745 = vmatmul.mubr.f32.gmra.mrb[0].mxu0 %v520
        %v746 = vpop.f32.mrb[0].mxu0
        %v747 = vadd.f32 %v651, %v746
        %v748 = vpop.f32.mrb[0].mxu0
        %v749 = vadd.f32 %v655, %v748
        %750 = vmatprep.mubr.f32.mxu0 0.0
        %751 = vmatmul.mubr.f32.gmra.mrb[0].mxu0 %v521
        %v752 = vpop.f32.mrb[0].mxu0
        %v753 = vadd.f32 %v651, %v752
        %v754 = vpop.f32.mrb[0].mxu0
        %v755 = vadd.f32 %v655, %v754
        %756 = vmatprep.mubr.f32.mxu0 0.0
        %757 = vmatmul.mubr.f32.gmra.mrb[0].mxu0 %v522
        %v758 = vpop.f32.mrb[0].mxu0
        %v759 = vadd.f32 %v651, %v758
        %v760 = vpop.f32.mrb[0].mxu0
        %v761 = vadd.f32 %v655, %v760
        %762 = vmatprep.mubr.f32.mxu0 0.0
        %763 = vmatmul.mubr.f32.gmra.mrb[0].mxu0 %v523
        %v764 = vpop.f32.mrb[0].mxu0
        %v765 = vadd.f32 %v651, %v764
        %v766 = vpop.f32.mrb[0].mxu0
        %v767 = vadd.f32 %v655, %v766
        %768 = vmatprep.mubr.f32.mxu0 0.0
        %769 = vmatmul.mubr.f32.gmra.mrb[0].mxu0 %v524
        %v770 = vpop.f32.mrb[0].mxu0
        %v771 = vadd.f32 %v651, %v770
        %v772 = vpop.f32.mrb[0].mxu0
        %v773 = vadd.f32 %v655, %v772
        %774 = vmatprep.mubr.f32.mxu0 0.0
        %775 = vmatmul.mubr.f32.gmra.mrb[0].mxu0 %v525
        %v776 = vpop.f32.mrb[0].mxu0
        %v777 = vadd.f32 %v651, %v776
        %v778 = vpop.f32.mrb[0].mxu0
        %v779 = vadd.f32 %v655, %v778
        %780 = vmatprep.mubr.f32.mxu0 0.0
        %781 = vmatmul.mubr.f32.gmra.mrb[0].mxu0 %v526
        %v782 = vpop.f32.mrb[0].mxu0
        %v783 = vadd.f32 %v651, %v782
        %v784 = vpop.f32.mrb[0].mxu0
        %v785 = vadd.f32 %v655, %v784
        %786 = vmatprep.mubr.f32.mxu0 0.0
        %787 = vmatmul.mubr.f32.gmra.mrb[0].mxu0 %v527
        %v788 = vpop.f32.mrb[0].mxu0
        %v789 = vadd.f32 %v651, %v788
        %v790 = vpop.f32.mrb[0].mxu0
        %v791 = vadd.f32 %v655, %v790
        %792 = vmatprep.mubr.f32.mxu0 0.0
        %793 = vmatmul.mubr.f32.gmra.mrb[0].mxu0 %v528
        %v794 = vpop.f32.mrb[0].mxu0
        %v795 = vadd.f32 %v651, %v794
        %v796 = vpop.f32.mrb[0].mxu0
        %v797 = vadd.f32 %v655, %v796
        %798 = vmatprep.mubr.f32.mxu0 0.0
        %799 = vmatmul.mubr.f32.gmra.mrb[0].mxu0 %v529
        %v800 = vpop.f32.mrb[0].mxu0
        %v801 = vadd.f32 %v651, %v800
        %v802 = vpop.f32.mrb[0].mxu0
        %v803 = vadd.f32 %v655, %v802
        %804 = vmatprep.mubr.f32.mxu0 0.0
        %805 = vmatmul.mubr.f32.gmra.mrb[0].mxu0 %v530
        %v806 = vpop.f32.mrb[0].mxu0
        %v807 = vadd.f32 %v651, %v806
        %v808 = vpop.f32.mrb[0].mxu0
        %v809 = vadd.f32 %v655, %v808
        %810 = vmatprep.mubr.f32.mxu0 0.0
        %811 = vmatmul.mubr.f32.gmra.mrb[0].mxu0 %v531
        %v812 = vpop.f32.mrb[0].mxu0
        %v813 = vadd.f32 %v651, %v812
        %v814 = vpop.f32.mrb[0].mxu0
        %v815 = vadd.f32 %v655, %v814
        %816 = vmatprep.mubr.f32.mxu0 0.0
        %817 = vmatmul.mubr.f32.gmra.mrb[0].mxu0 %v532
        %v818 = vpop.f32.mrb[0].mxu0
        %v819 = vadd.f32 %v651, %v818
        %v820 = vpop.f32.mrb[0].mxu0
        %v821 = vadd.f32 %v655, %v820
        %822 = vmatprep.mubr.f32.mxu0 0.0
        %823 = vmatmul.mubr.f32.gmra.mrb[0].mxu0 %v533
        %v824 = vpop.f32.mrb[0].mxu0
        %v825 = vadd.f32 %v651, %v824
        %v826 = vpop.f32.mrb[0].mxu0
        %v827 = vadd.f32 %v655, %v826
        %828 = vmatprep.mubr.f32.mxu0 0.0
        %829 = vmatmul.mubr.f32.gmra.mrb[0].mxu0 %v534
        %v830 = vpop.f32.mrb[0].mxu0
        %v831 = vadd.f32 %v651, %v830
        %v832 = vpop.f32.mrb[0].mxu0
        %v833 = vadd.f32 %v655, %v832
        %834 = vmatprep.mubr.f32.mxu0 0.0
        %835 = vmatmul.mubr.f32.gmra.mrb[0].mxu0 %v535
        %v836 = vpop.f32.mrb[0].mxu0
        %v837 = vadd.f32 %v651, %v836
        %v838 = vpop.f32.mrb[0].mxu0
        %v839 = vadd.f32 %v655, %v838
        %840 = vmatprep.mubr.f32.mxu0 0.0
        %841 = vmatmul.mubr.f32.gmra.mrb[0].mxu0 %v536
        %v842 = vpop.f32.mrb[0].mxu0
        %v843 = vadd.f32 %v651, %v842
        %v844 = vpop.f32.mrb[0].mxu0
        %v845 = vadd.f32 %v655, %v844
        %846 = vmatprep.mubr.f32.mxu0 0.0
        %847 = vmatmul.mubr.f32.gmra.mrb[0].mxu0 %v537
        %v848 = vpop.f32.mrb[0].mxu0
        %v849 = vadd.f32 %v651, %v848
        %v850 = vpop.f32.mrb[0].mxu0
        %v851 = vadd.f32 %v655, %v850
        %852 = vmatprep.mubr.f32.mxu0 0.0
        %853 = vmatmul.mubr.f32.gmra.mrb[0].mxu0 %v538
        %v854 = vpop.f32.mrb[0].mxu0
        %v855 = vadd.f32 %v651, %v854
        %v856 = vpop.f32.mrb[0].mxu0
        %v857 = vadd.f32 %v655, %v856
        %858 = vmatprep.mubr.f32.mxu0 0.0
        %859 = vmatmul.mubr.f32.gmra.mrb[0].mxu0 %v539
        %v860 = vpop.f32.mrb[0].mxu0
        %v861 = vadd.f32 %v651, %v860
        %v862 = vpop.f32.mrb[0].mxu0
        %v863 = vadd.f32 %v655, %v862
        %864 = vmatprep.mubr.f32.mxu0 0.0
        %865 = vmatmul.mubr.f32.gmra.mrb[0].mxu0 %v540
        %v866 = vpop.f32.mrb[0].mxu0
        %v867 = vadd.f32 %v651, %v866
        %v868 = vpop.f32.mrb[0].mxu0
        %v869 = vadd.f32 %v655, %v868
        %870 = vmatprep.mubr.f32.mxu0 0.0
        %871 = vmatmul.mubr.f32.gmra.mrb[0].mxu0 %v541
        %v872 = vpop.f32.mrb[0].mxu0
        %v873 = vadd.f32 %v651, %v872
        %v874 = vpop.f32.mrb[0].mxu0
        %v875 = vadd.f32 %v655, %v874
        %876 = vmatprep.mubr.f32.mxu0 0.0
        %877 = vmatmul.mubr.f32.gmra.mrb[0].mxu0 %v542
        %v878 = vpop.f32.mrb[0].mxu0
        %v879 = vadd.f32 %v651, %v878
        %v880 = vpop.f32.mrb[0].mxu0
        %v881 = vadd.f32 %v655, %v880
        %882 = vmatprep.mubr.f32.mxu0 0.0
        %883 = vmatmul.mubr.f32.gmra.mrb[0].mxu0 %v543
        %v884 = vpop.f32.mrb[0].mxu0
        %v885 = vadd.f32 %v651, %v884
        %v886 = vpop.f32.mrb[0].mxu0
        %v887 = vadd.f32 %v655, %v886
        %888 = vmatprep.mubr.f32.mxu0 0.0
        %889 = vmatmul.mubr.f32.gmra.mrb[0].mxu0 %v544
        %v890 = vpop.f32.mrb[0].mxu0
        %v891 = vadd.f32 %v651, %v890
        %v892 = vpop.f32.mrb[0].mxu0
        %v893 = vadd.f32 %v655, %v892
        %894 = vmatprep.mubr.f32.mxu0 0.0
        %895 = vmatmul.mubr.f32.gmra.mrb[0].mxu0 %v545
        %v896 = vpop.f32.mrb[0].mxu0
        %v897 = vadd.f32 %v651, %v896
        %v898 = vpop.f32.mrb[0].mxu0
        %v899 = vadd.f32 %v655, %v898
        %900 = vmatprep.mubr.f32.mxu0 0.0
        %901 = vmatmul.mubr.f32.gmra.mrb[0].mxu0 %v546
        %v902 = vpop.f32.mrb[0].mxu0
        %v903 = vadd.f32 %v651, %v902
        %v904 = vpop.f32.mrb[0].mxu0
        %v905 = vadd.f32 %v655, %v904
        %906 = vmatprep.mubr.f32.mxu0 0.0
        %907 = vmatmul.mubr.f32.gmra.mrb[0].mxu0 %v547
        %v908 = vpop.f32.mrb[0].mxu0
        %v909 = vadd.f32 %v651, %v908
        %v910 = vpop.f32.mrb[0].mxu0
        %v911 = vadd.f32 %v655, %v910
        %912 = vmatprep.mubr.f32.mxu0 0.0
        %913 = vmatmul.mubr.f32.gmra.mrb[0].mxu0 %v548
        %v914 = vpop.f32.mrb[0].mxu0
        %v915 = vadd.f32 %v651, %v914
        %v916 = vpop.f32.mrb[0].mxu0
        %v917 = vadd.f32 %v655, %v916
        %918 = vmatprep.mubr.f32.mxu0 0.0
        %919 = vmatmul.mubr.f32.gmra.mrb[0].mxu0 %v549
        %v920 = vpop.f32.mrb[0].mxu0
        %v921 = vadd.f32 %v651, %v920
        %v922 = vpop.f32.mrb[0].mxu0
        %v923 = vadd.f32 %v655, %v922
        %924 = vmatprep.mubr.f32.mxu0 0.0
        %925 = vmatmul.mubr.f32.gmra.mrb[0].mxu0 %v550
        %v926 = vpop.f32.mrb[0].mxu0
        %v927 = vadd.f32 %v651, %v926
        %v928 = vpop.f32.mrb[0].mxu0
        %v929 = vadd.f32 %v655, %v928
        %930 = vmatprep.mubr.f32.mxu0 0.0
        %931 = vmatmul.mubr.f32.gmra.mrb[0].mxu0 %v551
        %v932 = vpop.f32.mrb[0].mxu0
        %v933 = vadd.f32 %v651, %v932
        %v934 = vpop.f32.mrb[0].mxu0
        %v935 = vadd.f32 %v655, %v934
        %936 = vmatprep.mubr.f32.mxu0 0.0
        %937 = vmatmul.mubr.f32.gmra.mrb[0].mxu0 %v552
        %v938 = vpop.f32.mrb[0].mxu0
        %v939 = vadd.f32 %v651, %v938
        %v940 = vpop.f32.mrb[0].mxu0
        %v941 = vadd.f32 %v655, %v940
        %942 = vmatprep.mubr.f32.mxu0 0.0
        %943 = vmatmul.mubr.f32.gmra.mrb[0].mxu0 %v553
        %v944 = vpop.f32.mrb[0].mxu0
        %v945 = vadd.f32 %v651, %v944
        %v946 = vpop.f32.mrb[0].mxu0
        %v947 = vadd.f32 %v655, %v946
        %948 = vmatprep.mubr.f32.mxu0 0.0
        %949 = vmatmul.mubr.f32.gmra.mrb[0].mxu0 %v554
        %v950 = vpop.f32.mrb[0].mxu0
        %v951 = vadd.f32 %v651, %v950
        %v952 = vpop.f32.mrb[0].mxu0
        %v953 = vadd.f32 %v655, %v952
        %954 = vmatprep.mubr.f32.mxu0 0.0
        %955 = vmatmul.mubr.f32.gmra.mrb[0].mxu0 %v555
        %v956 = vpop.f32.mrb[0].mxu0
        %v957 = vadd.f32 %v651, %v956
        %v958 = vpop.f32.mrb[0].mxu0
        %v959 = vadd.f32 %v655, %v958
        %960 = vmatprep.mubr.f32.mxu0 0.0
        %961 = vmatmul.mubr.f32.gmra.mrb[0].mxu0 %v556
        %v962 = vpop.f32.mrb[0].mxu0
        %v963 = vadd.f32 %v651, %v962
        %v964 = vpop.f32.mrb[0].mxu0
        %v965 = vadd.f32 %v655, %v964
        %966 = vmatprep.mubr.f32.mxu0 0.0
        %967 = vmatmul.mubr.f32.gmra.mrb[0].mxu0 %v557
        %v968 = vpop.f32.mrb[0].mxu0
        %v969 = vadd.f32 %v651, %v968
        %v970 = vpop.f32.mrb[0].mxu0
        %v971 = vadd.f32 %v655, %v970
        %972 = vmatprep.mubr.f32.mxu0 0.0
        %973 = vmatmul.mubr.f32.gmra.mrb[0].mxu0 %v558
        %v974 = vpop.f32.mrb[0].mxu0
        %v975 = vadd.f32 %v651, %v974
        %v976 = vpop.f32.mrb[0].mxu0
        %v977 = vadd.f32 %v655, %v976
        %978 = vmatprep.mubr.f32.mxu0 0.0
        %979 = vmatmul.mubr.f32.gmra.mrb[0].mxu0 %v559
        %v980 = vpop.f32.mrb[0].mxu0
        %v981 = vadd.f32 %v651, %v980
        %v982 = vpop.f32.mrb[0].mxu0
        %v983 = vadd.f32 %v655, %v982
        %984 = vmatprep.mubr.f32.mxu0 0.0
        %985 = vmatmul.mubr.f32.gmra.mrb[0].mxu0 %v560
        %v986 = vpop.f32.mrb[0].mxu0
        %v987 = vadd.f32 %v651, %v986
        %v988 = vpop.f32.mrb[0].mxu0
        %v989 = vadd.f32 %v655, %v988
        %990 = vmatprep.mubr.f32.mxu0 0.0
        %991 = vmatmul.mubr.f32.gmra.mrb[0].mxu0 %v561
        %v992 = vpop.f32.mrb[0].mxu0
        %v993 = vadd.f32 %v651, %v992
        %v994 = vpop.f32.mrb[0].mxu0
        %v995 = vadd.f32 %v655, %v994
        %996 = vmatprep.mubr.f32.mxu0 0.0
        %997 = vmatmul.mubr.f32.gmra.mrb[0].mxu0 %v562
        %v998 = vpop.f32.mrb[0].mxu0
        %v999 = vadd.f32 %v651, %v998
        %v1000 = vpop.f32.mrb[0].mxu0
        %v1001 = vadd.f32 %v655, %v1000
        %1002 = vmatprep.mubr.f32.mxu0 0.0
        %1003 = vmatmul.mubr.f32.gmra.mrb[0].mxu0 %v563
        %v1004 = vpop.f32.mrb[0].mxu0
        %v1005 = vadd.f32 %v651, %v1004
        %v1006 = vpop.f32.mrb[0].mxu0
        %v1007 = vadd.f32 %v655, %v1006
        %1008 = vmatprep.mubr.f32.mxu0 0.0
        %1009 = vmatmul.mubr.f32.gmra.mrb[0].mxu0 %v564
        %v1010 = vpop.f32.mrb[0].mxu0
        %v1011 = vadd.f32 %v651, %v1010
        %v1012 = vpop.f32.mrb[0].mxu0
        %v1013 = vadd.f32 %v655, %v1012
        %1014 = vmatprep.mubr.f32.mxu0 0.0
        %1015 = vmatmul.mubr.f32.gmra.mrb[0].mxu0 %v565
        %v1016 = vpop.f32.mrb[0].mxu0
        %v1017 = vadd.f32 %v651, %v1016
        %v1018 = vpop.f32.mrb[0].mxu0
        %v1019 = vadd.f32 %v655, %v1018
        %1020 = vmatprep.mubr.f32.mxu0 0.0
        %1021 = vmatmul.mubr.f32.gmra.mrb[0].mxu0 %v566
        %v1022 = vpop.f32.mrb[0].mxu0
        %v1023 = vadd.f32 %v651, %v1022
        %v1024 = vpop.f32.mrb[0].mxu0
        %v1025 = vadd.f32 %v655, %v1024
        %1026 = vmatprep.mubr.f32.mxu0 0.0
        %1027 = vmatmul.mubr.f32.gmra.mrb[0].mxu0 %v567
        %v1028 = vpop.f32.mrb[0].mxu0
        %v1029 = vadd.f32 %v651, %v1028
        %v1030 = vpop.f32.mrb[0].mxu0
        %v1031 = vadd.f32 %v655, %v1030
        %1032 = vmatprep.mubr.f32.mxu0 0.0
        %1033 = vmatmul.mubr.f32.gmra.mrb[0].mxu0 %v568
        %v1034 = vpop.f32.mrb[0].mxu0
        %v1035 = vadd.f32 %v651, %v1034
        %v1036 = vpop.f32.mrb[0].mxu0
        %v1037 = vadd.f32 %v655, %v1036
        %1038 = vmatprep.mubr.f32.mxu0 0.0
        %1039 = vmatmul.mubr.f32.gmra.mrb[0].mxu0 %v569
        %v1040 = vpop.f32.mrb[0].mxu0
        %v1041 = vadd.f32 %v651, %v1040
        %v1042 = vpop.f32.mrb[0].mxu0
        %v1043 = vadd.f32 %v655, %v1042
        %1044 = vmatprep.mubr.f32.mxu0 0.0
        %1045 = vmatmul.mubr.f32.gmra.mrb[0].mxu0 %v570
        %v1046 = vpop.f32.mrb[0].mxu0
        %v1047 = vadd.f32 %v651, %v1046
        %v1048 = vpop.f32.mrb[0].mxu0
        %v1049 = vadd.f32 %v655, %v1048
        %1050 = vmatprep.mubr.f32.mxu0 0.0
        %1051 = vmatmul.mubr.f32.gmra.mrb[0].mxu0 %v571
        %v1052 = vpop.f32.mrb[0].mxu0
        %v1053 = vadd.f32 %v651, %v1052
        %v1054 = vpop.f32.mrb[0].mxu0
        %v1055 = vadd.f32 %v655, %v1054
        %1056 = vmatprep.mubr.f32.mxu0 0.0
        %1057 = vmatmul.mubr.f32.gmra.mrb[0].mxu0 %v572
        %v1058 = vpop.f32.mrb[0].mxu0
        %v1059 = vadd.f32 %v651, %v1058
        %v1060 = vpop.f32.mrb[0].mxu0
        %v1061 = vadd.f32 %v655, %v1060
        %1062 = vmatprep.mubr.f32.mxu0 0.0
        %1063 = vmatmul.mubr.f32.gmra.mrb[0].mxu0 %v573
        %v1064 = vpop.f32.mrb[0].mxu0
        %v1065 = vadd.f32 %v651, %v1064
        %v1066 = vpop.f32.mrb[0].mxu0
        %v1067 = vadd.f32 %v655, %v1066
        %1068 = vmatprep.mubr.f32.mxu0 0.0
        %1069 = vmatmul.mubr.f32.gmra.mrb[0].mxu0 %v574
        %v1070 = vpop.f32.mrb[0].mxu0
        %v1071 = vadd.f32 %v651, %v1070
        %v1072 = vpop.f32.mrb[0].mxu0
        %v1073 = vadd.f32 %v655, %v1072
        %1074 = vmatprep.mubr.f32.mxu0 0.0
        %1075 = vmatmul.mubr.f32.gmra.mrb[0].mxu0 %v575
        %v1076 = vpop.f32.mrb[0].mxu0
        %v1077 = vadd.f32 %v651, %v1076
        %v1078 = vpop.f32.mrb[0].mxu0
        %v1079 = vadd.f32 %v655, %v1078
        %1080 = vmatprep.mubr.f32.mxu0 0.0
        %1081 = vmatmul.mubr.f32.gmra.mrb[0].mxu0 %v576
        %v1082 = vpop.f32.mrb[0].mxu0
        %v1083 = vadd.f32 %v651, %v1082
        %v1084 = vpop.f32.mrb[0].mxu0
        %v1085 = vadd.f32 %v655, %v1084
        %1086 = vmatprep.mubr.f32.mxu0 0.0
        %1087 = vmatmul.mubr.f32.gmra.mrb[0].mxu0 %v577
        %v1088 = vpop.f32.mrb[0].mxu0
        %v1089 = vadd.f32 %v651, %v1088
        %v1090 = vpop.f32.mrb[0].mxu0
        %v1091 = vadd.f32 %v655, %v1090
        %1092 = vmatprep.mubr.f32.mxu0 0.0
        %1093 = vmatmul.mubr.f32.gmra.mrb[0].mxu0 %v578
        %v1094 = vpop.f32.mrb[0].mxu0
        %v1095 = vadd.f32 %v651, %v1094
        %v1096 = vpop.f32.mrb[0].mxu0
        %v1097 = vadd.f32 %v655, %v1096
        %1098 = vmatprep.mubr.f32.mxu0 0.0
        %1099 = vmatmul.mubr.f32.gmra.mrb[0].mxu0 %v579
        %v1100 = vpop.f32.mrb[0].mxu0
        %v1101 = vadd.f32 %v651, %v1100
        %v1102 = vpop.f32.mrb[0].mxu0
        %v1103 = vadd.f32 %v655, %v1102
        %1104 = vmatprep.mubr.f32.mxu0 0.0
        %1105 = vmatmul.mubr.f32.gmra.mrb[0].mxu0 %v580
        %v1106 = vpop.f32.mrb[0].mxu0
        %v1107 = vadd.f32 %v651, %v1106
        %v1108 = vpop.f32.mrb[0].mxu0
        %v1109 = vadd.f32 %v655, %v1108
        %1110 = vmatprep.mubr.f32.mxu0 0.0
        %1111 = vmatmul.mubr.f32.gmra.mrb[0].mxu0 %v581
        %v1112 = vpop.f32.mrb[0].mxu0
        %v1113 = vadd.f32 %v651, %v1112
        %v1114 = vpop.f32.mrb[0].mxu0
        %v1115 = vadd.f32 %v655, %v1114
        %1116 = vdwg.mxu0
        %1117 = vmatprep.subr.mxu0 %v585
        %1118 = vmatpush1.msra.mxu0 %v584
        %1119 = vmatprep.subr.mxu0 %v589
        %1120 = vmatpush1.msra.mxu0 %v588
        %1121 = vmatprep.subr.mxu0 %v593
        %1122 = vmatpush1.msra.mxu0 %v592
        %1123 = vmatprep.subr.mxu0 %v597
        %1124 = vmatpush1.msra.mxu0 %v596
        %1125 = vmatprep.subr.mxu0 %v601
        %1126 = vmatpush1.msra.mxu0 %v600
        %1127 = vmatprep.subr.mxu0 %v605
        %1128 = vmatpush1.msra.mxu0 %v604
        %1129 = vmatprep.subr.mxu0 %v609
        %1130 = vmatpush1.msra.mxu0 %v608
        %1131 = vmatprep.subr.mxu0 %v613
        %1132 = vmatpush1.msra.mxu0 %v612
        %1133 = vmatprep.subr.mxu0 %v617
        %1134 = vmatpush1.msra.mxu0 %v616
        %1135 = vmatprep.subr.mxu0 %v621
        %1136 = vmatpush1.msra.mxu0 %v620
        %1137 = vmatprep.subr.mxu0 %v625
        %1138 = vmatpush1.msra.mxu0 %v624
        %1139 = vmatprep.subr.mxu0 %v629
        %1140 = vmatpush1.msra.mxu0 %v628
        %1141 = vmatprep.subr.mxu0 %v633
        %1142 = vmatpush1.msra.mxu0 %v632
        %1143 = vmatprep.subr.mxu0 %v637
        %1144 = vmatpush1.msra.mxu0 %v636
        %1145 = vmatprep.subr.mxu0 %v641
        %1146 = vmatpush1.msra.mxu0 %v640
        %1147 = vmatprep.subr.mxu0 %v645
        %1148 = vmatpush1.msra.mxu0 %v644
        %1149 = vmatprep.subr.mxu0 0.0
        %1150 = vmatpush1.msra.mxu0 0.0
        %1151 = vmatprep.subr.mxu0 0.0
        %1152 = vmatpush1.msra.mxu0 0.0
        %1153 = vmatprep.subr.mxu0 0.0
        %1154 = vmatpush1.msra.mxu0 0.0
        %1155 = vmatprep.subr.mxu0 0.0
        %1156 = vmatpush1.msra.mxu0 0.0
        %1157 = vmatprep.subr.mxu0 0.0
        %1158 = vmatpush1.msra.mxu0 0.0
        %1159 = vmatprep.subr.mxu0 0.0
        %1160 = vmatpush1.msra.mxu0 0.0
        %1161 = vmatprep.subr.mxu0 0.0
        %1162 = vmatpush1.msra.mxu0 0.0
        %1163 = vmatprep.subr.mxu0 0.0
        %1164 = vmatpush1.msra.mxu0 0.0
        %1165 = vmatprep.subr.mxu0 0.0
        %1166 = vmatpush1.msra.mxu0 0.0
        %1167 = vmatprep.subr.mxu0 0.0
        %1168 = vmatpush1.msra.mxu0 0.0
        %1169 = vmatprep.subr.mxu0 0.0
        %1170 = vmatpush1.msra.mxu0 0.0
        %1171 = vmatprep.subr.mxu0 0.0
        %1172 = vmatpush1.msra.mxu0 0.0
        %1173 = vmatprep.subr.mxu0 0.0
        %1174 = vmatpush1.msra.mxu0 0.0
        %1175 = vmatprep.subr.mxu0 0.0
        %1176 = vmatpush1.msra.mxu0 0.0
        %1177 = vmatprep.subr.mxu0 0.0
        %1178 = vmatpush1.msra.mxu0 0.0
        %1179 = vmatprep.subr.mxu0 0.0
        %1180 = vmatpush1.msra.mxu0 0.0
        %1181 = vmatprep.mubr.f32.mxu0 0.0
        %1182 = vmatmul.mubr.f32.gmra.mrb[0].mxu0 %v518
        %v1183 = vpop.f32.mrb[0].mxu0
        %v1184 = vadd.f32 %v659, %v1183
        %v1185 = vpop.f32.mrb[0].mxu0
        %v1186 = vadd.f32 %v663, %v1185
        %1187 = vmatprep.mubr.f32.mxu0 0.0
        %1188 = vmatmul.mubr.f32.gmra.mrb[0].mxu0 %v519
        %v1189 = vpop.f32.mrb[0].mxu0
        %v1190 = vadd.f32 %v659, %v1189
        %v1191 = vpop.f32.mrb[0].mxu0
        %v1192 = vadd.f32 %v663, %v1191
        %1193 = vmatprep.mubr.f32.mxu0 0.0
        %1194 = vmatmul.mubr.f32.gmra.mrb[0].mxu0 %v520
        %v1195 = vpop.f32.mrb[0].mxu0
        %v1196 = vadd.f32 %v659, %v1195
        %v1197 = vpop.f32.mrb[0].mxu0
        %v1198 = vadd.f32 %v663, %v1197
        %1199 = vmatprep.mubr.f32.mxu0 0.0
        %1200 = vmatmul.mubr.f32.gmra.mrb[0].mxu0 %v521
        %v1201 = vpop.f32.mrb[0].mxu0
        %v1202 = vadd.f32 %v659, %v1201
        %v1203 = vpop.f32.mrb[0].mxu0
        %v1204 = vadd.f32 %v663, %v1203
        %1205 = vmatprep.mubr.f32.mxu0 0.0
        %1206 = vmatmul.mubr.f32.gmra.mrb[0].mxu0 %v522
        %v1207 = vpop.f32.mrb[0].mxu0
        %v1208 = vadd.f32 %v659, %v1207
        %v1209 = vpop.f32.mrb[0].mxu0
        %v1210 = vadd.f32 %v663, %v1209
        %1211 = vmatprep.mubr.f32.mxu0 0.0
        %1212 = vmatmul.mubr.f32.gmra.mrb[0].mxu0 %v523
        %v1213 = vpop.f32.mrb[0].mxu0
        %v1214 = vadd.f32 %v659, %v1213
        %v1215 = vpop.f32.mrb[0].mxu0
        %v1216 = vadd.f32 %v663, %v1215
        %1217 = vmatprep.mubr.f32.mxu0 0.0
        %1218 = vmatmul.mubr.f32.gmra.mrb[0].mxu0 %v524
        %v1219 = vpop.f32.mrb[0].mxu0
        %v1220 = vadd.f32 %v659, %v1219
        %v1221 = vpop.f32.mrb[0].mxu0
        %v1222 = vadd.f32 %v663, %v1221
        %1223 = vmatprep.mubr.f32.mxu0 0.0
        %1224 = vmatmul.mubr.f32.gmra.mrb[0].mxu0 %v525
        %v1225 = vpop.f32.mrb[0].mxu0
        %v1226 = vadd.f32 %v659, %v1225
        %v1227 = vpop.f32.mrb[0].mxu0
        %v1228 = vadd.f32 %v663, %v1227
        %1229 = vmatprep.mubr.f32.mxu0 0.0
        %1230 = vmatmul.mubr.f32.gmra.mrb[0].mxu0 %v526
        %v1231 = vpop.f32.mrb[0].mxu0
        %v1232 = vadd.f32 %v659, %v1231
        %v1233 = vpop.f32.mrb[0].mxu0
        %v1234 = vadd.f32 %v663, %v1233
        %1235 = vmatprep.mubr.f32.mxu0 0.0
        %1236 = vmatmul.mubr.f32.gmra.mrb[0].mxu0 %v527
        %v1237 = vpop.f32.mrb[0].mxu0
        %v1238 = vadd.f32 %v659, %v1237
        %v1239 = vpop.f32.mrb[0].mxu0
        %v1240 = vadd.f32 %v663, %v1239
        %1241 = vmatprep.mubr.f32.mxu0 0.0
        %1242 = vmatmul.mubr.f32.gmra.mrb[0].mxu0 %v528
        %v1243 = vpop.f32.mrb[0].mxu0
        %v1244 = vadd.f32 %v659, %v1243
        %v1245 = vpop.f32.mrb[0].mxu0
        %v1246 = vadd.f32 %v663, %v1245
        %1247 = vmatprep.mubr.f32.mxu0 0.0
        %1248 = vmatmul.mubr.f32.gmra.mrb[0].mxu0 %v529
        %v1249 = vpop.f32.mrb[0].mxu0
        %v1250 = vadd.f32 %v659, %v1249
        %v1251 = vpop.f32.mrb[0].mxu0
        %v1252 = vadd.f32 %v663, %v1251
        %1253 = vmatprep.mubr.f32.mxu0 0.0
        %1254 = vmatmul.mubr.f32.gmra.mrb[0].mxu0 %v530
        %v1255 = vpop.f32.mrb[0].mxu0
        %v1256 = vadd.f32 %v659, %v1255
        %v1257 = vpop.f32.mrb[0].mxu0
        %v1258 = vadd.f32 %v663, %v1257
        %1259 = vmatprep.mubr.f32.mxu0 0.0
        %1260 = vmatmul.mubr.f32.gmra.mrb[0].mxu0 %v531
        %v1261 = vpop.f32.mrb[0].mxu0
        %v1262 = vadd.f32 %v659, %v1261
        %v1263 = vpop.f32.mrb[0].mxu0
        %v1264 = vadd.f32 %v663, %v1263
        %1265 = vmatprep.mubr.f32.mxu0 0.0
        %1266 = vmatmul.mubr.f32.gmra.mrb[0].mxu0 %v532
        %v1267 = vpop.f32.mrb[0].mxu0
        %v1268 = vadd.f32 %v659, %v1267
        %v1269 = vpop.f32.mrb[0].mxu0
        %v1270 = vadd.f32 %v663, %v1269
        %1271 = vmatprep.mubr.f32.mxu0 0.0
        %1272 = vmatmul.mubr.f32.gmra.mrb[0].mxu0 %v533
        %v1273 = vpop.f32.mrb[0].mxu0
        %v1274 = vadd.f32 %v659, %v1273
        %v1275 = vpop.f32.mrb[0].mxu0
        %v1276 = vadd.f32 %v663, %v1275
        %1277 = vmatprep.mubr.f32.mxu0 0.0
        %1278 = vmatmul.mubr.f32.gmra.mrb[0].mxu0 %v534
        %v1279 = vpop.f32.mrb[0].mxu0
        %v1280 = vadd.f32 %v659, %v1279
        %v1281 = vpop.f32.mrb[0].mxu0
        %v1282 = vadd.f32 %v663, %v1281
        %1283 = vmatprep.mubr.f32.mxu0 0.0
        %1284 = vmatmul.mubr.f32.gmra.mrb[0].mxu0 %v535
        %v1285 = vpop.f32.mrb[0].mxu0
        %v1286 = vadd.f32 %v659, %v1285
        %v1287 = vpop.f32.mrb[0].mxu0
        %v1288 = vadd.f32 %v663, %v1287
        %1289 = vmatprep.mubr.f32.mxu0 0.0
        %1290 = vmatmul.mubr.f32.gmra.mrb[0].mxu0 %v536
        %v1291 = vpop.f32.mrb[0].mxu0
        %v1292 = vadd.f32 %v659, %v1291
        %v1293 = vpop.f32.mrb[0].mxu0
        %v1294 = vadd.f32 %v663, %v1293
        %1295 = vmatprep.mubr.f32.mxu0 0.0
        %1296 = vmatmul.mubr.f32.gmra.mrb[0].mxu0 %v537
        %v1297 = vpop.f32.mrb[0].mxu0
        %v1298 = vadd.f32 %v659, %v1297
        %v1299 = vpop.f32.mrb[0].mxu0
        %v1300 = vadd.f32 %v663, %v1299
        %1301 = vmatprep.mubr.f32.mxu0 0.0
        %1302 = vmatmul.mubr.f32.gmra.mrb[0].mxu0 %v538
        %v1303 = vpop.f32.mrb[0].mxu0
        %v1304 = vadd.f32 %v659, %v1303
        %v1305 = vpop.f32.mrb[0].mxu0
        %v1306 = vadd.f32 %v663, %v1305
        %1307 = vmatprep.mubr.f32.mxu0 0.0
        %1308 = vmatmul.mubr.f32.gmra.mrb[0].mxu0 %v539
        %v1309 = vpop.f32.mrb[0].mxu0
        %v1310 = vadd.f32 %v659, %v1309
        %v1311 = vpop.f32.mrb[0].mxu0
        %v1312 = vadd.f32 %v663, %v1311
        %1313 = vmatprep.mubr.f32.mxu0 0.0
        %1314 = vmatmul.mubr.f32.gmra.mrb[0].mxu0 %v540
        %v1315 = vpop.f32.mrb[0].mxu0
        %v1316 = vadd.f32 %v659, %v1315
        %v1317 = vpop.f32.mrb[0].mxu0
        %v1318 = vadd.f32 %v663, %v1317
        %1319 = vmatprep.mubr.f32.mxu0 0.0
        %1320 = vmatmul.mubr.f32.gmra.mrb[0].mxu0 %v541
        %v1321 = vpop.f32.mrb[0].mxu0
        %v1322 = vadd.f32 %v659, %v1321
        %v1323 = vpop.f32.mrb[0].mxu0
        %v1324 = vadd.f32 %v663, %v1323
        %1325 = vmatprep.mubr.f32.mxu0 0.0
        %1326 = vmatmul.mubr.f32.gmra.mrb[0].mxu0 %v542
        %v1327 = vpop.f32.mrb[0].mxu0
        %v1328 = vadd.f32 %v659, %v1327
        %v1329 = vpop.f32.mrb[0].mxu0
        %v1330 = vadd.f32 %v663, %v1329
        %1331 = vmatprep.mubr.f32.mxu0 0.0
        %1332 = vmatmul.mubr.f32.gmra.mrb[0].mxu0 %v543
        %v1333 = vpop.f32.mrb[0].mxu0
        %v1334 = vadd.f32 %v659, %v1333
        %v1335 = vpop.f32.mrb[0].mxu0
        %v1336 = vadd.f32 %v663, %v1335
        %1337 = vmatprep.mubr.f32.mxu0 0.0
        %1338 = vmatmul.mubr.f32.gmra.mrb[0].mxu0 %v544
        %v1339 = vpop.f32.mrb[0].mxu0
        %v1340 = vadd.f32 %v659, %v1339
        %v1341 = vpop.f32.mrb[0].mxu0
        %v1342 = vadd.f32 %v663, %v1341
        %1343 = vmatprep.mubr.f32.mxu0 0.0
        %1344 = vmatmul.mubr.f32.gmra.mrb[0].mxu0 %v545
        %v1345 = vpop.f32.mrb[0].mxu0
        %v1346 = vadd.f32 %v659, %v1345
        %v1347 = vpop.f32.mrb[0].mxu0
        %v1348 = vadd.f32 %v663, %v1347
        %1349 = vmatprep.mubr.f32.mxu0 0.0
        %1350 = vmatmul.mubr.f32.gmra.mrb[0].mxu0 %v546
        %v1351 = vpop.f32.mrb[0].mxu0
        %v1352 = vadd.f32 %v659, %v1351
        %v1353 = vpop.f32.mrb[0].mxu0
        %v1354 = vadd.f32 %v663, %v1353
        %1355 = vmatprep.mubr.f32.mxu0 0.0
        %1356 = vmatmul.mubr.f32.gmra.mrb[0].mxu0 %v547
        %v1357 = vpop.f32.mrb[0].mxu0
        %v1358 = vadd.f32 %v659, %v1357
        %v1359 = vpop.f32.mrb[0].mxu0
        %v1360 = vadd.f32 %v663, %v1359
        %1361 = vmatprep.mubr.f32.mxu0 0.0
        %1362 = vmatmul.mubr.f32.gmra.mrb[0].mxu0 %v548
        %v1363 = vpop.f32.mrb[0].mxu0
        %v1364 = vadd.f32 %v659, %v1363
        %v1365 = vpop.f32.mrb[0].mxu0
        %v1366 = vadd.f32 %v663, %v1365
        %1367 = vmatprep.mubr.f32.mxu0 0.0
        %1368 = vmatmul.mubr.f32.gmra.mrb[0].mxu0 %v549
        %v1369 = vpop.f32.mrb[0].mxu0
        %v1370 = vadd.f32 %v659, %v1369
        %v1371 = vpop.f32.mrb[0].mxu0
        %v1372 = vadd.f32 %v663, %v1371
        %1373 = vmatprep.mubr.f32.mxu0 0.0
        %1374 = vmatmul.mubr.f32.gmra.mrb[0].mxu0 %v550
        %v1375 = vpop.f32.mrb[0].mxu0
        %v1376 = vadd.f32 %v659, %v1375
        %v1377 = vpop.f32.mrb[0].mxu0
        %v1378 = vadd.f32 %v663, %v1377
        %1379 = vmatprep.mubr.f32.mxu0 0.0
        %1380 = vmatmul.mubr.f32.gmra.mrb[0].mxu0 %v551
        %v1381 = vpop.f32.mrb[0].mxu0
        %v1382 = vadd.f32 %v659, %v1381
        %v1383 = vpop.f32.mrb[0].mxu0
        %v1384 = vadd.f32 %v663, %v1383
        %1385 = vmatprep.mubr.f32.mxu0 0.0
        %1386 = vmatmul.mubr.f32.gmra.mrb[0].mxu0 %v552
        %v1387 = vpop.f32.mrb[0].mxu0
        %v1388 = vadd.f32 %v659, %v1387
        %v1389 = vpop.f32.mrb[0].mxu0
        %v1390 = vadd.f32 %v663, %v1389
        %1391 = vmatprep.mubr.f32.mxu0 0.0
        %1392 = vmatmul.mubr.f32.gmra.mrb[0].mxu0 %v553
        %v1393 = vpop.f32.mrb[0].mxu0
        %v1394 = vadd.f32 %v659, %v1393
        %v1395 = vpop.f32.mrb[0].mxu0
        %v1396 = vadd.f32 %v663, %v1395
        %1397 = vmatprep.mubr.f32.mxu0 0.0
        %1398 = vmatmul.mubr.f32.gmra.mrb[0].mxu0 %v554
        %v1399 = vpop.f32.mrb[0].mxu0
        %v1400 = vadd.f32 %v659, %v1399
        %v1401 = vpop.f32.mrb[0].mxu0
        %v1402 = vadd.f32 %v663, %v1401
        %1403 = vmatprep.mubr.f32.mxu0 0.0
        %1404 = vmatmul.mubr.f32.gmra.mrb[0].mxu0 %v555
        %v1405 = vpop.f32.mrb[0].mxu0
        %v1406 = vadd.f32 %v659, %v1405
        %v1407 = vpop.f32.mrb[0].mxu0
        %v1408 = vadd.f32 %v663, %v1407
        %1409 = vmatprep.mubr.f32.mxu0 0.0
        %1410 = vmatmul.mubr.f32.gmra.mrb[0].mxu0 %v556
        %v1411 = vpop.f32.mrb[0].mxu0
        %v1412 = vadd.f32 %v659, %v1411
        %v1413 = vpop.f32.mrb[0].mxu0
        %v1414 = vadd.f32 %v663, %v1413
        %1415 = vmatprep.mubr.f32.mxu0 0.0
        %1416 = vmatmul.mubr.f32.gmra.mrb[0].mxu0 %v557
        %v1417 = vpop.f32.mrb[0].mxu0
        %v1418 = vadd.f32 %v659, %v1417
        %v1419 = vpop.f32.mrb[0].mxu0
        %v1420 = vadd.f32 %v663, %v1419
        %1421 = vmatprep.mubr.f32.mxu0 0.0
        %1422 = vmatmul.mubr.f32.gmra.mrb[0].mxu0 %v558
        %v1423 = vpop.f32.mrb[0].mxu0
        %v1424 = vadd.f32 %v659, %v1423
        %v1425 = vpop.f32.mrb[0].mxu0
        %v1426 = vadd.f32 %v663, %v1425
        %1427 = vmatprep.mubr.f32.mxu0 0.0
        %1428 = vmatmul.mubr.f32.gmra.mrb[0].mxu0 %v559
        %v1429 = vpop.f32.mrb[0].mxu0
        %v1430 = vadd.f32 %v659, %v1429
        %v1431 = vpop.f32.mrb[0].mxu0
        %v1432 = vadd.f32 %v663, %v1431
        %1433 = vmatprep.mubr.f32.mxu0 0.0
        %1434 = vmatmul.mubr.f32.gmra.mrb[0].mxu0 %v560
        %v1435 = vpop.f32.mrb[0].mxu0
        %v1436 = vadd.f32 %v659, %v1435
        %v1437 = vpop.f32.mrb[0].mxu0
        %v1438 = vadd.f32 %v663, %v1437
        %1439 = vmatprep.mubr.f32.mxu0 0.0
        %1440 = vmatmul.mubr.f32.gmra.mrb[0].mxu0 %v561
        %v1441 = vpop.f32.mrb[0].mxu0
        %v1442 = vadd.f32 %v659, %v1441
        %v1443 = vpop.f32.mrb[0].mxu0
        %v1444 = vadd.f32 %v663, %v1443
        %1445 = vmatprep.mubr.f32.mxu0 0.0
        %1446 = vmatmul.mubr.f32.gmra.mrb[0].mxu0 %v562
        %v1447 = vpop.f32.mrb[0].mxu0
        %v1448 = vadd.f32 %v659, %v1447
        %v1449 = vpop.f32.mrb[0].mxu0
        %v1450 = vadd.f32 %v663, %v1449
        %1451 = vmatprep.mubr.f32.mxu0 0.0
        %1452 = vmatmul.mubr.f32.gmra.mrb[0].mxu0 %v563
        %v1453 = vpop.f32.mrb[0].mxu0
        %v1454 = vadd.f32 %v659, %v1453
        %v1455 = vpop.f32.mrb[0].mxu0
        %v1456 = vadd.f32 %v663, %v1455
        %1457 = vmatprep.mubr.f32.mxu0 0.0
        %1458 = vmatmul.mubr.f32.gmra.mrb[0].mxu0 %v564
        %v1459 = vpop.f32.mrb[0].mxu0
        %v1460 = vadd.f32 %v659, %v1459
        %v1461 = vpop.f32.mrb[0].mxu0
        %v1462 = vadd.f32 %v663, %v1461
        %1463 = vmatprep.mubr.f32.mxu0 0.0
        %1464 = vmatmul.mubr.f32.gmra.mrb[0].mxu0 %v565
        %v1465 = vpop.f32.mrb[0].mxu0
        %v1466 = vadd.f32 %v659, %v1465
        %v1467 = vpop.f32.mrb[0].mxu0
        %v1468 = vadd.f32 %v663, %v1467
        %1469 = vmatprep.mubr.f32.mxu0 0.0
        %1470 = vmatmul.mubr.f32.gmra.mrb[0].mxu0 %v566
        %v1471 = vpop.f32.mrb[0].mxu0
        %v1472 = vadd.f32 %v659, %v1471
        %v1473 = vpop.f32.mrb[0].mxu0
        %v1474 = vadd.f32 %v663, %v1473
        %1475 = vmatprep.mubr.f32.mxu0 0.0
        %1476 = vmatmul.mubr.f32.gmra.mrb[0].mxu0 %v567
        %v1477 = vpop.f32.mrb[0].mxu0
        %v1478 = vadd.f32 %v659, %v1477
        %v1479 = vpop.f32.mrb[0].mxu0
        %v1480 = vadd.f32 %v663, %v1479
        %1481 = vmatprep.mubr.f32.mxu0 0.0
        %1482 = vmatmul.mubr.f32.gmra.mrb[0].mxu0 %v568
        %v1483 = vpop.f32.mrb[0].mxu0
        %v1484 = vadd.f32 %v659, %v1483
        %v1485 = vpop.f32.mrb[0].mxu0
        %v1486 = vadd.f32 %v663, %v1485
        %1487 = vmatprep.mubr.f32.mxu0 0.0
        %1488 = vmatmul.mubr.f32.gmra.mrb[0].mxu0 %v569
        %v1489 = vpop.f32.mrb[0].mxu0
        %v1490 = vadd.f32 %v659, %v1489
        %v1491 = vpop.f32.mrb[0].mxu0
        %v1492 = vadd.f32 %v663, %v1491
        %1493 = vmatprep.mubr.f32.mxu0 0.0
        %1494 = vmatmul.mubr.f32.gmra.mrb[0].mxu0 %v570
        %v1495 = vpop.f32.mrb[0].mxu0
        %v1496 = vadd.f32 %v659, %v1495
        %v1497 = vpop.f32.mrb[0].mxu0
        %v1498 = vadd.f32 %v663, %v1497
        %1499 = vmatprep.mubr.f32.mxu0 0.0
        %1500 = vmatmul.mubr.f32.gmra.mrb[0].mxu0 %v571
        %v1501 = vpop.f32.mrb[0].mxu0
        %v1502 = vadd.f32 %v659, %v1501
        %v1503 = vpop.f32.mrb[0].mxu0
        %v1504 = vadd.f32 %v663, %v1503
        %1505 = vmatprep.mubr.f32.mxu0 0.0
        %1506 = vmatmul.mubr.f32.gmra.mrb[0].mxu0 %v572
        %v1507 = vpop.f32.mrb[0].mxu0
        %v1508 = vadd.f32 %v659, %v1507
        %v1509 = vpop.f32.mrb[0].mxu0
        %v1510 = vadd.f32 %v663, %v1509
        %1511 = vmatprep.mubr.f32.mxu0 0.0
        %1512 = vmatmul.mubr.f32.gmra.mrb[0].mxu0 %v573
        %v1513 = vpop.f32.mrb[0].mxu0
        %v1514 = vadd.f32 %v659, %v1513
        %v1515 = vpop.f32.mrb[0].mxu0
        %v1516 = vadd.f32 %v663, %v1515
        %1517 = vmatprep.mubr.f32.mxu0 0.0
        %1518 = vmatmul.mubr.f32.gmra.mrb[0].mxu0 %v574
        %v1519 = vpop.f32.mrb[0].mxu0
        %v1520 = vadd.f32 %v659, %v1519
        %v1521 = vpop.f32.mrb[0].mxu0
        %v1522 = vadd.f32 %v663, %v1521
        %1523 = vmatprep.mubr.f32.mxu0 0.0
        %1524 = vmatmul.mubr.f32.gmra.mrb[0].mxu0 %v575
        %v1525 = vpop.f32.mrb[0].mxu0
        %v1526 = vadd.f32 %v659, %v1525
        %v1527 = vpop.f32.mrb[0].mxu0
        %v1528 = vadd.f32 %v663, %v1527
        %1529 = vmatprep.mubr.f32.mxu0 0.0
        %1530 = vmatmul.mubr.f32.gmra.mrb[0].mxu0 %v576
        %v1531 = vpop.f32.mrb[0].mxu0
        %v1532 = vadd.f32 %v659, %v1531
        %v1533 = vpop.f32.mrb[0].mxu0
        %v1534 = vadd.f32 %v663, %v1533
        %1535 = vmatprep.mubr.f32.mxu0 0.0
        %1536 = vmatmul.mubr.f32.gmra.mrb[0].mxu0 %v577
        %v1537 = vpop.f32.mrb[0].mxu0
        %v1538 = vadd.f32 %v659, %v1537
        %v1539 = vpop.f32.mrb[0].mxu0
        %v1540 = vadd.f32 %v663, %v1539
        %1541 = vmatprep.mubr.f32.mxu0 0.0
        %1542 = vmatmul.mubr.f32.gmra.mrb[0].mxu0 %v578
        %v1543 = vpop.f32.mrb[0].mxu0
        %v1544 = vadd.f32 %v659, %v1543
        %v1545 = vpop.f32.mrb[0].mxu0
        %v1546 = vadd.f32 %v663, %v1545
        %1547 = vmatprep.mubr.f32.mxu0 0.0
        %1548 = vmatmul.mubr.f32.gmra.mrb[0].mxu0 %v579
        %v1549 = vpop.f32.mrb[0].mxu0
        %v1550 = vadd.f32 %v659, %v1549
        %v1551 = vpop.f32.mrb[0].mxu0
        %v1552 = vadd.f32 %v663, %v1551
        %1553 = vmatprep.mubr.f32.mxu0 0.0
        %1554 = vmatmul.mubr.f32.gmra.mrb[0].mxu0 %v580
        %v1555 = vpop.f32.mrb[0].mxu0
        %v1556 = vadd.f32 %v659, %v1555
        %v1557 = vpop.f32.mrb[0].mxu0
        %v1558 = vadd.f32 %v663, %v1557
        %1559 = vmatprep.mubr.f32.mxu0 0.0
        %1560 = vmatmul.mubr.f32.gmra.mrb[0].mxu0 %v581
        %v1561 = vpop.f32.mrb[0].mxu0
        %v1562 = vadd.f32 %v659, %v1561
        %v1563 = vpop.f32.mrb[0].mxu0
        %v1564 = vadd.f32 %v663, %v1563
        %1565 = vdwg.mxu0
        %v1566 = vmul.f32 %v735, 0.5
        %v1567 = vmul.f32 %v741, 0.5
        %v1568 = vmul.f32 %v747, 0.5
        %v1569 = vmul.f32 %v753, 0.5
        %v1570 = vmul.f32 %v759, 0.5
        %v1571 = vmul.f32 %v765, 0.5
        %v1572 = vmul.f32 %v771, 0.5
        %v1573 = vmul.f32 %v777, 0.5
        %v1574 = vmul.f32 %v783, 0.5
        %v1575 = vmul.f32 %v789, 0.5
        %v1576 = vmul.f32 %v795, 0.5
        %v1577 = vmul.f32 %v801, 0.5
        %v1578 = vmul.f32 %v807, 0.5
        %v1579 = vmul.f32 %v813, 0.5
        %v1580 = vmul.f32 %v819, 0.5
        %v1581 = vmul.f32 %v825, 0.5
        %v1582 = vmul.f32 %v831, 0.5
        %v1583 = vmul.f32 %v837, 0.5
        %v1584 = vmul.f32 %v843, 0.5
        %v1585 = vmul.f32 %v849, 0.5
        %v1586 = vmul.f32 %v855, 0.5
        %v1587 = vmul.f32 %v861, 0.5
        %v1588 = vmul.f32 %v867, 0.5
        %v1589 = vmul.f32 %v873, 0.5
        %v1590 = vmul.f32 %v879, 0.5
        %v1591 = vmul.f32 %v885, 0.5
        %v1592 = vmul.f32 %v891, 0.5
        %v1593 = vmul.f32 %v897, 0.5
        %v1594 = vmul.f32 %v903, 0.5
        %v1595 = vmul.f32 %v909, 0.5
        %v1596 = vmul.f32 %v915, 0.5
        %v1597 = vmul.f32 %v921, 0.5
        %v1598 = vmul.f32 %v927, 0.5
        %v1599 = vmul.f32 %v933, 0.5
        %v1600 = vmul.f32 %v939, 0.5
        %v1601 = vmul.f32 %v945, 0.5
        %v1602 = vmul.f32 %v951, 0.5
        %v1603 = vmul.f32 %v957, 0.5
        %v1604 = vmul.f32 %v963, 0.5
        %v1605 = vmul.f32 %v969, 0.5
        %v1606 = vmul.f32 %v975, 0.5
        %v1607 = vmul.f32 %v981, 0.5
        %v1608 = vmul.f32 %v987, 0.5
        %v1609 = vmul.f32 %v993, 0.5
        %v1610 = vmul.f32 %v999, 0.5
        %v1611 = vmul.f32 %v1005, 0.5
        %v1612 = vmul.f32 %v1011, 0.5
        %v1613 = vmul.f32 %v1017, 0.5
        %v1614 = vmul.f32 %v1023, 0.5
        %v1615 = vmul.f32 %v1029, 0.5
        %v1616 = vmul.f32 %v1035, 0.5
        %v1617 = vmul.f32 %v1041, 0.5
        %v1618 = vmul.f32 %v1047, 0.5
        %v1619 = vmul.f32 %v1053, 0.5
        %v1620 = vmul.f32 %v1059, 0.5
        %v1621 = vmul.f32 %v1065, 0.5
        %v1622 = vmul.f32 %v1071, 0.5
        %v1623 = vmul.f32 %v1077, 0.5
        %v1624 = vmul.f32 %v1083, 0.5
        %v1625 = vmul.f32 %v1089, 0.5
        %v1626 = vmul.f32 %v1095, 0.5
        %v1627 = vmul.f32 %v1101, 0.5
        %v1628 = vmul.f32 %v1107, 0.5
        %v1629 = vmul.f32 %v1113, 0.5
        %v1630 = vtanh.pop %v1566
        %v1631 = vtanh.pop %v1567
        %v1632 = vtanh.pop %v1568
        %v1633 = vtanh.pop %v1569
        %v1634 = vtanh.pop %v1570
        %v1635 = vtanh.pop %v1571
        %v1636 = vtanh.pop %v1572
        %v1637 = vtanh.pop %v1573
        %v1638 = vtanh.pop %v1574
        %v1639 = vtanh.pop %v1575
        %v1640 = vtanh.pop %v1576
        %v1641 = vtanh.pop %v1577
        %v1642 = vtanh.pop %v1578
        %v1643 = vtanh.pop %v1579
        %v1644 = vtanh.pop %v1580
        %v1645 = vtanh.pop %v1581
        %v1646 = vtanh.pop %v1582
        %v1647 = vtanh.pop %v1583
        %v1648 = vtanh.pop %v1584
        %v1649 = vtanh.pop %v1585
        %v1650 = vtanh.pop %v1586
        %v1651 = vtanh.pop %v1587
        %v1652 = vtanh.pop %v1588
        %v1653 = vtanh.pop %v1589
        %v1654 = vtanh.pop %v1590
        %v1655 = vtanh.pop %v1591
        %v1656 = vtanh.pop %v1592
        %v1657 = vtanh.pop %v1593
        %v1658 = vtanh.pop %v1594
        %v1659 = vtanh.pop %v1595
        %v1660 = vtanh.pop %v1596
        %v1661 = vtanh.pop %v1597
        %v1662 = vtanh.pop %v1598
        %v1663 = vtanh.pop %v1599
        %v1664 = vtanh.pop %v1600
        %v1665 = vtanh.pop %v1601
        %v1666 = vtanh.pop %v1602
        %v1667 = vtanh.pop %v1603
        %v1668 = vtanh.pop %v1604
        %v1669 = vtanh.pop %v1605
        %v1670 = vtanh.pop %v1606
        %v1671 = vtanh.pop %v1607
        %v1672 = vtanh.pop %v1608
        %v1673 = vtanh.pop %v1609
        %v1674 = vtanh.pop %v1610
        %v1675 = vtanh.pop %v1611
        %v1676 = vtanh.pop %v1612
        %v1677 = vtanh.pop %v1613
        %v1678 = vtanh.pop %v1614
        %v1679 = vtanh.pop %v1615
        %v1680 = vtanh.pop %v1616
        %v1681 = vtanh.pop %v1617
        %v1682 = vtanh.pop %v1618
        %v1683 = vtanh.pop %v1619
        %v1684 = vtanh.pop %v1620
        %v1685 = vtanh.pop %v1621
        %v1686 = vtanh.pop %v1622
        %v1687 = vtanh.pop %v1623
        %v1688 = vtanh.pop %v1624
        %v1689 = vtanh.pop %v1625
        %v1690 = vtanh.pop %v1626
        %v1691 = vtanh.pop %v1627
        %v1692 = vtanh.pop %v1628
        %v1693 = vtanh.pop %v1629
        %v1694 = vmul.f32 %v1630, 0.5
        %v1695 = vmul.f32 %v1631, 0.5
        %v1696 = vmul.f32 %v1632, 0.5
        %v1697 = vmul.f32 %v1633, 0.5
        %v1698 = vmul.f32 %v1634, 0.5
        %v1699 = vmul.f32 %v1635, 0.5
        %v1700 = vmul.f32 %v1636, 0.5
        %v1701 = vmul.f32 %v1637, 0.5
        %v1702 = vmul.f32 %v1638, 0.5
        %v1703 = vmul.f32 %v1639, 0.5
        %v1704 = vmul.f32 %v1640, 0.5
        %v1705 = vmul.f32 %v1641, 0.5
        %v1706 = vmul.f32 %v1642, 0.5
        %v1707 = vmul.f32 %v1643, 0.5
        %v1708 = vmul.f32 %v1644, 0.5
        %v1709 = vmul.f32 %v1645, 0.5
        %v1710 = vmul.f32 %v1646, 0.5
        %v1711 = vmul.f32 %v1647, 0.5
        %v1712 = vmul.f32 %v1648, 0.5
        %v1713 = vmul.f32 %v1649, 0.5
        %v1714 = vmul.f32 %v1650, 0.5
        %v1715 = vmul.f32 %v1651, 0.5
        %v1716 = vmul.f32 %v1652, 0.5
        %v1717 = vmul.f32 %v1653, 0.5
        %v1718 = vmul.f32 %v1654, 0.5
        %v1719 = vmul.f32 %v1655, 0.5
        %v1720 = vmul.f32 %v1656, 0.5
        %v1721 = vmul.f32 %v1657, 0.5
        %v1722 = vmul.f32 %v1658, 0.5
        %v1723 = vmul.f32 %v1659, 0.5
        %v1724 = vmul.f32 %v1660, 0.5
        %v1725 = vmul.f32 %v1661, 0.5
        %v1726 = vmul.f32 %v1662, 0.5
        %v1727 = vmul.f32 %v1663, 0.5
        %v1728 = vmul.f32 %v1664, 0.5
        %v1729 = vmul.f32 %v1665, 0.5
        %v1730 = vmul.f32 %v1666, 0.5
        %v1731 = vmul.f32 %v1667, 0.5
        %v1732 = vmul.f32 %v1668, 0.5
        %v1733 = vmul.f32 %v1669, 0.5
        %v1734 = vmul.f32 %v1670, 0.5
        %v1735 = vmul.f32 %v1671, 0.5
        %v1736 = vmul.f32 %v1672, 0.5
        %v1737 = vmul.f32 %v1673, 0.5
        %v1738 = vmul.f32 %v1674, 0.5
        %v1739 = vmul.f32 %v1675, 0.5
        %v1740 = vmul.f32 %v1676, 0.5
        %v1741 = vmul.f32 %v1677, 0.5
        %v1742 = vmul.f32 %v1678, 0.5
        %v1743 = vmul.f32 %v1679, 0.5
        %v1744 = vmul.f32 %v1680, 0.5
        %v1745 = vmul.f32 %v1681, 0.5
        %v1746 = vmul.f32 %v1682, 0.5
        %v1747 = vmul.f32 %v1683, 0.5
        %v1748 = vmul.f32 %v1684, 0.5
        %v1749 = vmul.f32 %v1685, 0.5
        %v1750 = vmul.f32 %v1686, 0.5
        %v1751 = vmul.f32 %v1687, 0.5
        %v1752 = vmul.f32 %v1688, 0.5
        %v1753 = vmul.f32 %v1689, 0.5
        %v1754 = vmul.f32 %v1690, 0.5
        %v1755 = vmul.f32 %v1691, 0.5
        %v1756 = vmul.f32 %v1692, 0.5
        %v1757 = vmul.f32 %v1693, 0.5
        %v1758 = vadd.f32 %v1694, 0.5
        %v1759 = vadd.f32 %v1695, 0.5
        %v1760 = vadd.f32 %v1696, 0.5
        %v1761 = vadd.f32 %v1697, 0.5
        %v1762 = vadd.f32 %v1698, 0.5
        %v1763 = vadd.f32 %v1699, 0.5
        %v1764 = vadd.f32 %v1700, 0.5
        %v1765 = vadd.f32 %v1701, 0.5
        %v1766 = vadd.f32 %v1702, 0.5
        %v1767 = vadd.f32 %v1703, 0.5
        %v1768 = vadd.f32 %v1704, 0.5
        %v1769 = vadd.f32 %v1705, 0.5
        %v1770 = vadd.f32 %v1706, 0.5
        %v1771 = vadd.f32 %v1707, 0.5
        %v1772 = vadd.f32 %v1708, 0.5
        %v1773 = vadd.f32 %v1709, 0.5
        %v1774 = vadd.f32 %v1710, 0.5
        %v1775 = vadd.f32 %v1711, 0.5
        %v1776 = vadd.f32 %v1712, 0.5
        %v1777 = vadd.f32 %v1713, 0.5
        %v1778 = vadd.f32 %v1714, 0.5
        %v1779 = vadd.f32 %v1715, 0.5
        %v1780 = vadd.f32 %v1716, 0.5
        %v1781 = vadd.f32 %v1717, 0.5
        %v1782 = vadd.f32 %v1718, 0.5
        %v1783 = vadd.f32 %v1719, 0.5
        %v1784 = vadd.f32 %v1720, 0.5
        %v1785 = vadd.f32 %v1721, 0.5
        %v1786 = vadd.f32 %v1722, 0.5
        %v1787 = vadd.f32 %v1723, 0.5
        %v1788 = vadd.f32 %v1724, 0.5
        %v1789 = vadd.f32 %v1725, 0.5
        %v1790 = vadd.f32 %v1726, 0.5
        %v1791 = vadd.f32 %v1727, 0.5
        %v1792 = vadd.f32 %v1728, 0.5
        %v1793 = vadd.f32 %v1729, 0.5
        %v1794 = vadd.f32 %v1730, 0.5
        %v1795 = vadd.f32 %v1731, 0.5
        %v1796 = vadd.f32 %v1732, 0.5
        %v1797 = vadd.f32 %v1733, 0.5
        %v1798 = vadd.f32 %v1734, 0.5
        %v1799 = vadd.f32 %v1735, 0.5
        %v1800 = vadd.f32 %v1736, 0.5
        %v1801 = vadd.f32 %v1737, 0.5
        %v1802 = vadd.f32 %v1738, 0.5
        %v1803 = vadd.f32 %v1739, 0.5
        %v1804 = vadd.f32 %v1740, 0.5
        %v1805 = vadd.f32 %v1741, 0.5
        %v1806 = vadd.f32 %v1742, 0.5
        %v1807 = vadd.f32 %v1743, 0.5
        %v1808 = vadd.f32 %v1744, 0.5
        %v1809 = vadd.f32 %v1745, 0.5
        %v1810 = vadd.f32 %v1746, 0.5
        %v1811 = vadd.f32 %v1747, 0.5
        %v1812 = vadd.f32 %v1748, 0.5
        %v1813 = vadd.f32 %v1749, 0.5
        %v1814 = vadd.f32 %v1750, 0.5
        %v1815 = vadd.f32 %v1751, 0.5
        %v1816 = vadd.f32 %v1752, 0.5
        %v1817 = vadd.f32 %v1753, 0.5
        %v1818 = vadd.f32 %v1754, 0.5
        %v1819 = vadd.f32 %v1755, 0.5
        %v1820 = vadd.f32 %v1756, 0.5
        %v1821 = vadd.f32 %v1757, 0.5
        %v1822 = vmul.f32 %v737, 0.5
        %v1823 = vmul.f32 %v743, 0.5
        %v1824 = vmul.f32 %v749, 0.5
        %v1825 = vmul.f32 %v755, 0.5
        %v1826 = vmul.f32 %v761, 0.5
        %v1827 = vmul.f32 %v767, 0.5
        %v1828 = vmul.f32 %v773, 0.5
        %v1829 = vmul.f32 %v779, 0.5
        %v1830 = vmul.f32 %v785, 0.5
        %v1831 = vmul.f32 %v791, 0.5
        %v1832 = vmul.f32 %v797, 0.5
        %v1833 = vmul.f32 %v803, 0.5
        %v1834 = vmul.f32 %v809, 0.5
        %v1835 = vmul.f32 %v815, 0.5
        %v1836 = vmul.f32 %v821, 0.5
        %v1837 = vmul.f32 %v827, 0.5
        %v1838 = vmul.f32 %v833, 0.5
        %v1839 = vmul.f32 %v839, 0.5
        %v1840 = vmul.f32 %v845, 0.5
        %v1841 = vmul.f32 %v851, 0.5
        %v1842 = vmul.f32 %v857, 0.5
        %v1843 = vmul.f32 %v863, 0.5
        %v1844 = vmul.f32 %v869, 0.5
        %v1845 = vmul.f32 %v875, 0.5
        %v1846 = vmul.f32 %v881, 0.5
        %v1847 = vmul.f32 %v887, 0.5
        %v1848 = vmul.f32 %v893, 0.5
        %v1849 = vmul.f32 %v899, 0.5
        %v1850 = vmul.f32 %v905, 0.5
        %v1851 = vmul.f32 %v911, 0.5
        %v1852 = vmul.f32 %v917, 0.5
        %v1853 = vmul.f32 %v923, 0.5
        %v1854 = vmul.f32 %v929, 0.5
        %v1855 = vmul.f32 %v935, 0.5
        %v1856 = vmul.f32 %v941, 0.5
        %v1857 = vmul.f32 %v947, 0.5
        %v1858 = vmul.f32 %v953, 0.5
        %v1859 = vmul.f32 %v959, 0.5
        %v1860 = vmul.f32 %v965, 0.5
        %v1861 = vmul.f32 %v971, 0.5
        %v1862 = vmul.f32 %v977, 0.5
        %v1863 = vmul.f32 %v983, 0.5
        %v1864 = vmul.f32 %v989, 0.5
        %v1865 = vmul.f32 %v995, 0.5
        %v1866 = vmul.f32 %v1001, 0.5
        %v1867 = vmul.f32 %v1007, 0.5
        %v1868 = vmul.f32 %v1013, 0.5
        %v1869 = vmul.f32 %v1019, 0.5
        %v1870 = vmul.f32 %v1025, 0.5
        %v1871 = vmul.f32 %v1031, 0.5
        %v1872 = vmul.f32 %v1037, 0.5
        %v1873 = vmul.f32 %v1043, 0.5
        %v1874 = vmul.f32 %v1049, 0.5
        %v1875 = vmul.f32 %v1055, 0.5
        %v1876 = vmul.f32 %v1061, 0.5
        %v1877 = vmul.f32 %v1067, 0.5
        %v1878 = vmul.f32 %v1073, 0.5
        %v1879 = vmul.f32 %v1079, 0.5
        %v1880 = vmul.f32 %v1085, 0.5
        %v1881 = vmul.f32 %v1091, 0.5
        %v1882 = vmul.f32 %v1097, 0.5
        %v1883 = vmul.f32 %v1103, 0.5
        %v1884 = vmul.f32 %v1109, 0.5
        %v1885 = vmul.f32 %v1115, 0.5
        %v1886 = vtanh.pop %v1822
        %v1887 = vtanh.pop %v1823
        %v1888 = vtanh.pop %v1824
        %v1889 = vtanh.pop %v1825
        %v1890 = vtanh.pop %v1826
        %v1891 = vtanh.pop %v1827
        %v1892 = vtanh.pop %v1828
        %v1893 = vtanh.pop %v1829
        %v1894 = vtanh.pop %v1830
        %v1895 = vtanh.pop %v1831
        %v1896 = vtanh.pop %v1832
        %v1897 = vtanh.pop %v1833
        %v1898 = vtanh.pop %v1834
        %v1899 = vtanh.pop %v1835
        %v1900 = vtanh.pop %v1836
        %v1901 = vtanh.pop %v1837
        %v1902 = vtanh.pop %v1838
        %v1903 = vtanh.pop %v1839
        %v1904 = vtanh.pop %v1840
        %v1905 = vtanh.pop %v1841
        %v1906 = vtanh.pop %v1842
        %v1907 = vtanh.pop %v1843
        %v1908 = vtanh.pop %v1844
        %v1909 = vtanh.pop %v1845
        %v1910 = vtanh.pop %v1846
        %v1911 = vtanh.pop %v1847
        %v1912 = vtanh.pop %v1848
        %v1913 = vtanh.pop %v1849
        %v1914 = vtanh.pop %v1850
        %v1915 = vtanh.pop %v1851
        %v1916 = vtanh.pop %v1852
        %v1917 = vtanh.pop %v1853
        %v1918 = vtanh.pop %v1854
        %v1919 = vtanh.pop %v1855
        %v1920 = vtanh.pop %v1856
        %v1921 = vtanh.pop %v1857
        %v1922 = vtanh.pop %v1858
        %v1923 = vtanh.pop %v1859
        %v1924 = vtanh.pop %v1860
        %v1925 = vtanh.pop %v1861
        %v1926 = vtanh.pop %v1862
        %v1927 = vtanh.pop %v1863
        %v1928 = vtanh.pop %v1864
        %v1929 = vtanh.pop %v1865
        %v1930 = vtanh.pop %v1866
        %v1931 = vtanh.pop %v1867
        %v1932 = vtanh.pop %v1868
        %v1933 = vtanh.pop %v1869
        %v1934 = vtanh.pop %v1870
        %v1935 = vtanh.pop %v1871
        %v1936 = vtanh.pop %v1872
        %v1937 = vtanh.pop %v1873
        %v1938 = vtanh.pop %v1874
        %v1939 = vtanh.pop %v1875
        %v1940 = vtanh.pop %v1876
        %v1941 = vtanh.pop %v1877
        %v1942 = vtanh.pop %v1878
        %v1943 = vtanh.pop %v1879
        %v1944 = vtanh.pop %v1880
        %v1945 = vtanh.pop %v1881
        %v1946 = vtanh.pop %v1882
        %v1947 = vtanh.pop %v1883
        %v1948 = vtanh.pop %v1884
        %v1949 = vtanh.pop %v1885
        %v1950 = vmul.f32 %v1886, 0.5
        %v1951 = vmul.f32 %v1887, 0.5
        %v1952 = vmul.f32 %v1888, 0.5
        %v1953 = vmul.f32 %v1889, 0.5
        %v1954 = vmul.f32 %v1890, 0.5
        %v1955 = vmul.f32 %v1891, 0.5
        %v1956 = vmul.f32 %v1892, 0.5
        %v1957 = vmul.f32 %v1893, 0.5
        %v1958 = vmul.f32 %v1894, 0.5
        %v1959 = vmul.f32 %v1895, 0.5
        %v1960 = vmul.f32 %v1896, 0.5
        %v1961 = vmul.f32 %v1897, 0.5
        %v1962 = vmul.f32 %v1898, 0.5
        %v1963 = vmul.f32 %v1899, 0.5
        %v1964 = vmul.f32 %v1900, 0.5
        %v1965 = vmul.f32 %v1901, 0.5
        %v1966 = vmul.f32 %v1902, 0.5
        %v1967 = vmul.f32 %v1903, 0.5
        %v1968 = vmul.f32 %v1904, 0.5
        %v1969 = vmul.f32 %v1905, 0.5
        %v1970 = vmul.f32 %v1906, 0.5
        %v1971 = vmul.f32 %v1907, 0.5
        %v1972 = vmul.f32 %v1908, 0.5
        %v1973 = vmul.f32 %v1909, 0.5
        %v1974 = vmul.f32 %v1910, 0.5
        %v1975 = vmul.f32 %v1911, 0.5
        %v1976 = vmul.f32 %v1912, 0.5
        %v1977 = vmul.f32 %v1913, 0.5
        %v1978 = vmul.f32 %v1914, 0.5
        %v1979 = vmul.f32 %v1915, 0.5
        %v1980 = vmul.f32 %v1916, 0.5
        %v1981 = vmul.f32 %v1917, 0.5
        %v1982 = vmul.f32 %v1918, 0.5
        %v1983 = vmul.f32 %v1919, 0.5
        %v1984 = vmul.f32 %v1920, 0.5
        %v1985 = vmul.f32 %v1921, 0.5
        %v1986 = vmul.f32 %v1922, 0.5
        %v1987 = vmul.f32 %v1923, 0.5
        %v1988 = vmul.f32 %v1924, 0.5
        %v1989 = vmul.f32 %v1925, 0.5
        %v1990 = vmul.f32 %v1926, 0.5
        %v1991 = vmul.f32 %v1927, 0.5
        %v1992 = vmul.f32 %v1928, 0.5
        %v1993 = vmul.f32 %v1929, 0.5
        %v1994 = vmul.f32 %v1930, 0.5
        %v1995 = vmul.f32 %v1931, 0.5
        %v1996 = vmul.f32 %v1932, 0.5
        %v1997 = vmul.f32 %v1933, 0.5
        %v1998 = vmul.f32 %v1934, 0.5
        %v1999 = vmul.f32 %v1935, 0.5
        %v2000 = vmul.f32 %v1936, 0.5
        %v2001 = vmul.f32 %v1937, 0.5
        %v2002 = vmul.f32 %v1938, 0.5
        %v2003 = vmul.f32 %v1939, 0.5
        %v2004 = vmul.f32 %v1940, 0.5
        %v2005 = vmul.f32 %v1941, 0.5
        %v2006 = vmul.f32 %v1942, 0.5
        %v2007 = vmul.f32 %v1943, 0.5
        %v2008 = vmul.f32 %v1944, 0.5
        %v2009 = vmul.f32 %v1945, 0.5
        %v2010 = vmul.f32 %v1946, 0.5
        %v2011 = vmul.f32 %v1947, 0.5
        %v2012 = vmul.f32 %v1948, 0.5
        %v2013 = vmul.f32 %v1949, 0.5
        %v2014 = vadd.f32 %v1950, 0.5
        %v2015 = vadd.f32 %v1951, 0.5
        %v2016 = vadd.f32 %v1952, 0.5
        %v2017 = vadd.f32 %v1953, 0.5
        %v2018 = vadd.f32 %v1954, 0.5
        %v2019 = vadd.f32 %v1955, 0.5
        %v2020 = vadd.f32 %v1956, 0.5
        %v2021 = vadd.f32 %v1957, 0.5
        %v2022 = vadd.f32 %v1958, 0.5
        %v2023 = vadd.f32 %v1959, 0.5
        %v2024 = vadd.f32 %v1960, 0.5
        %v2025 = vadd.f32 %v1961, 0.5
        %v2026 = vadd.f32 %v1962, 0.5
        %v2027 = vadd.f32 %v1963, 0.5
        %v2028 = vadd.f32 %v1964, 0.5
        %v2029 = vadd.f32 %v1965, 0.5
        %v2030 = vadd.f32 %v1966, 0.5
        %v2031 = vadd.f32 %v1967, 0.5
        %v2032 = vadd.f32 %v1968, 0.5
        %v2033 = vadd.f32 %v1969, 0.5
        %v2034 = vadd.f32 %v1970, 0.5
        %v2035 = vadd.f32 %v1971, 0.5
        %v2036 = vadd.f32 %v1972, 0.5
        %v2037 = vadd.f32 %v1973, 0.5
        %v2038 = vadd.f32 %v1974, 0.5
        %v2039 = vadd.f32 %v1975, 0.5
        %v2040 = vadd.f32 %v1976, 0.5
        %v2041 = vadd.f32 %v1977, 0.5
        %v2042 = vadd.f32 %v1978, 0.5
        %v2043 = vadd.f32 %v1979, 0.5
        %v2044 = vadd.f32 %v1980, 0.5
        %v2045 = vadd.f32 %v1981, 0.5
        %v2046 = vadd.f32 %v1982, 0.5
        %v2047 = vadd.f32 %v1983, 0.5
        %v2048 = vadd.f32 %v1984, 0.5
        %v2049 = vadd.f32 %v1985, 0.5
        %v2050 = vadd.f32 %v1986, 0.5
        %v2051 = vadd.f32 %v1987, 0.5
        %v2052 = vadd.f32 %v1988, 0.5
        %v2053 = vadd.f32 %v1989, 0.5
        %v2054 = vadd.f32 %v1990, 0.5
        %v2055 = vadd.f32 %v1991, 0.5
        %v2056 = vadd.f32 %v1992, 0.5
        %v2057 = vadd.f32 %v1993, 0.5
        %v2058 = vadd.f32 %v1994, 0.5
        %v2059 = vadd.f32 %v1995, 0.5
        %v2060 = vadd.f32 %v1996, 0.5
        %v2061 = vadd.f32 %v1997, 0.5
        %v2062 = vadd.f32 %v1998, 0.5
        %v2063 = vadd.f32 %v1999, 0.5
        %v2064 = vadd.f32 %v2000, 0.5
        %v2065 = vadd.f32 %v2001, 0.5
        %v2066 = vadd.f32 %v2002, 0.5
        %v2067 = vadd.f32 %v2003, 0.5
        %v2068 = vadd.f32 %v2004, 0.5
        %v2069 = vadd.f32 %v2005, 0.5
        %v2070 = vadd.f32 %v2006, 0.5
        %v2071 = vadd.f32 %v2007, 0.5
        %v2072 = vadd.f32 %v2008, 0.5
        %v2073 = vadd.f32 %v2009, 0.5
        %v2074 = vadd.f32 %v2010, 0.5
        %v2075 = vadd.f32 %v2011, 0.5
        %v2076 = vadd.f32 %v2012, 0.5
        %v2077 = vadd.f32 %v2013, 0.5
        %v2078 = vmul.f32 %v1184, 0.5
        %v2079 = vmul.f32 %v1190, 0.5
        %v2080 = vmul.f32 %v1196, 0.5
        %v2081 = vmul.f32 %v1202, 0.5
        %v2082 = vmul.f32 %v1208, 0.5
        %v2083 = vmul.f32 %v1214, 0.5
        %v2084 = vmul.f32 %v1220, 0.5
        %v2085 = vmul.f32 %v1226, 0.5
        %v2086 = vmul.f32 %v1232, 0.5
        %v2087 = vmul.f32 %v1238, 0.5
        %v2088 = vmul.f32 %v1244, 0.5
        %v2089 = vmul.f32 %v1250, 0.5
        %v2090 = vmul.f32 %v1256, 0.5
        %v2091 = vmul.f32 %v1262, 0.5
        %v2092 = vmul.f32 %v1268, 0.5
        %v2093 = vmul.f32 %v1274, 0.5
        %v2094 = vmul.f32 %v1280, 0.5
        %v2095 = vmul.f32 %v1286, 0.5
        %v2096 = vmul.f32 %v1292, 0.5
        %v2097 = vmul.f32 %v1298, 0.5
        %v2098 = vmul.f32 %v1304, 0.5
        %v2099 = vmul.f32 %v1310, 0.5
        %v2100 = vmul.f32 %v1316, 0.5
        %v2101 = vmul.f32 %v1322, 0.5
        %v2102 = vmul.f32 %v1328, 0.5
        %v2103 = vmul.f32 %v1334, 0.5
        %v2104 = vmul.f32 %v1340, 0.5
        %v2105 = vmul.f32 %v1346, 0.5
        %v2106 = vmul.f32 %v1352, 0.5
        %v2107 = vmul.f32 %v1358, 0.5
        %v2108 = vmul.f32 %v1364, 0.5
        %v2109 = vmul.f32 %v1370, 0.5
        %v2110 = vmul.f32 %v1376, 0.5
        %v2111 = vmul.f32 %v1382, 0.5
        %v2112 = vmul.f32 %v1388, 0.5
        %v2113 = vmul.f32 %v1394, 0.5
        %v2114 = vmul.f32 %v1400, 0.5
        %v2115 = vmul.f32 %v1406, 0.5
        %v2116 = vmul.f32 %v1412, 0.5
        %v2117 = vmul.f32 %v1418, 0.5
        %v2118 = vmul.f32 %v1424, 0.5
        %v2119 = vmul.f32 %v1430, 0.5
        %v2120 = vmul.f32 %v1436, 0.5
        %v2121 = vmul.f32 %v1442, 0.5
        %v2122 = vmul.f32 %v1448, 0.5
        %v2123 = vmul.f32 %v1454, 0.5
        %v2124 = vmul.f32 %v1460, 0.5
        %v2125 = vmul.f32 %v1466, 0.5
        %v2126 = vmul.f32 %v1472, 0.5
        %v2127 = vmul.f32 %v1478, 0.5
        %v2128 = vmul.f32 %v1484, 0.5
        %v2129 = vmul.f32 %v1490, 0.5
        %v2130 = vmul.f32 %v1496, 0.5
        %v2131 = vmul.f32 %v1502, 0.5
        %v2132 = vmul.f32 %v1508, 0.5
        %v2133 = vmul.f32 %v1514, 0.5
        %v2134 = vmul.f32 %v1520, 0.5
        %v2135 = vmul.f32 %v1526, 0.5
        %v2136 = vmul.f32 %v1532, 0.5
        %v2137 = vmul.f32 %v1538, 0.5
        %v2138 = vmul.f32 %v1544, 0.5
        %v2139 = vmul.f32 %v1550, 0.5
        %v2140 = vmul.f32 %v1556, 0.5
        %v2141 = vmul.f32 %v1562, 0.5
        %v2142 = vtanh.pop %v2078
        %v2143 = vtanh.pop %v2079
        %v2144 = vtanh.pop %v2080
        %v2145 = vtanh.pop %v2081
        %v2146 = vtanh.pop %v2082
        %v2147 = vtanh.pop %v2083
        %v2148 = vtanh.pop %v2084
        %v2149 = vtanh.pop %v2085
        %v2150 = vtanh.pop %v2086
        %v2151 = vtanh.pop %v2087
        %v2152 = vtanh.pop %v2088
        %v2153 = vtanh.pop %v2089
        %v2154 = vtanh.pop %v2090
        %v2155 = vtanh.pop %v2091
        %v2156 = vtanh.pop %v2092
        %v2157 = vtanh.pop %v2093
        %v2158 = vtanh.pop %v2094
        %v2159 = vtanh.pop %v2095
        %v2160 = vtanh.pop %v2096
        %v2161 = vtanh.pop %v2097
        %v2162 = vtanh.pop %v2098
        %v2163 = vtanh.pop %v2099
        %v2164 = vtanh.pop %v2100
        %v2165 = vtanh.pop %v2101
        %v2166 = vtanh.pop %v2102
        %v2167 = vtanh.pop %v2103
        %v2168 = vtanh.pop %v2104
        %v2169 = vtanh.pop %v2105
        %v2170 = vtanh.pop %v2106
        %v2171 = vtanh.pop %v2107
        %v2172 = vtanh.pop %v2108
        %v2173 = vtanh.pop %v2109
        %v2174 = vtanh.pop %v2110
        %v2175 = vtanh.pop %v2111
        %v2176 = vtanh.pop %v2112
        %v2177 = vtanh.pop %v2113
        %v2178 = vtanh.pop %v2114
        %v2179 = vtanh.pop %v2115
        %v2180 = vtanh.pop %v2116
        %v2181 = vtanh.pop %v2117
        %v2182 = vtanh.pop %v2118
        %v2183 = vtanh.pop %v2119
        %v2184 = vtanh.pop %v2120
        %v2185 = vtanh.pop %v2121
        %v2186 = vtanh.pop %v2122
        %v2187 = vtanh.pop %v2123
        %v2188 = vtanh.pop %v2124
        %v2189 = vtanh.pop %v2125
        %v2190 = vtanh.pop %v2126
        %v2191 = vtanh.pop %v2127
        %v2192 = vtanh.pop %v2128
        %v2193 = vtanh.pop %v2129
        %v2194 = vtanh.pop %v2130
        %v2195 = vtanh.pop %v2131
        %v2196 = vtanh.pop %v2132
        %v2197 = vtanh.pop %v2133
        %v2198 = vtanh.pop %v2134
        %v2199 = vtanh.pop %v2135
        %v2200 = vtanh.pop %v2136
        %v2201 = vtanh.pop %v2137
        %v2202 = vtanh.pop %v2138
        %v2203 = vtanh.pop %v2139
        %v2204 = vtanh.pop %v2140
        %v2205 = vtanh.pop %v2141
        %v2206 = vmul.f32 %v2142, 0.5
        %v2207 = vmul.f32 %v2143, 0.5
        %v2208 = vmul.f32 %v2144, 0.5
        %v2209 = vmul.f32 %v2145, 0.5
        %v2210 = vmul.f32 %v2146, 0.5
        %v2211 = vmul.f32 %v2147, 0.5
        %v2212 = vmul.f32 %v2148, 0.5
        %v2213 = vmul.f32 %v2149, 0.5
        %v2214 = vmul.f32 %v2150, 0.5
        %v2215 = vmul.f32 %v2151, 0.5
        %v2216 = vmul.f32 %v2152, 0.5
        %v2217 = vmul.f32 %v2153, 0.5
        %v2218 = vmul.f32 %v2154, 0.5
        %v2219 = vmul.f32 %v2155, 0.5
        %v2220 = vmul.f32 %v2156, 0.5
        %v2221 = vmul.f32 %v2157, 0.5
        %v2222 = vmul.f32 %v2158, 0.5
        %v2223 = vmul.f32 %v2159, 0.5
        %v2224 = vmul.f32 %v2160, 0.5
        %v2225 = vmul.f32 %v2161, 0.5
        %v2226 = vmul.f32 %v2162, 0.5
        %v2227 = vmul.f32 %v2163, 0.5
        %v2228 = vmul.f32 %v2164, 0.5
        %v2229 = vmul.f32 %v2165, 0.5
        %v2230 = vmul.f32 %v2166, 0.5
        %v2231 = vmul.f32 %v2167, 0.5
        %v2232 = vmul.f32 %v2168, 0.5
        %v2233 = vmul.f32 %v2169, 0.5
        %v2234 = vmul.f32 %v2170, 0.5
        %v2235 = vmul.f32 %v2171, 0.5
        %v2236 = vmul.f32 %v2172, 0.5
        %v2237 = vmul.f32 %v2173, 0.5
        %v2238 = vmul.f32 %v2174, 0.5
        %v2239 = vmul.f32 %v2175, 0.5
        %v2240 = vmul.f32 %v2176, 0.5
        %v2241 = vmul.f32 %v2177, 0.5
        %v2242 = vmul.f32 %v2178, 0.5
        %v2243 = vmul.f32 %v2179, 0.5
        %v2244 = vmul.f32 %v2180, 0.5
        %v2245 = vmul.f32 %v2181, 0.5
        %v2246 = vmul.f32 %v2182, 0.5
        %v2247 = vmul.f32 %v2183, 0.5
        %v2248 = vmul.f32 %v2184, 0.5
        %v2249 = vmul.f32 %v2185, 0.5
        %v2250 = vmul.f32 %v2186, 0.5
        %v2251 = vmul.f32 %v2187, 0.5
        %v2252 = vmul.f32 %v2188, 0.5
        %v2253 = vmul.f32 %v2189, 0.5
        %v2254 = vmul.f32 %v2190, 0.5
        %v2255 = vmul.f32 %v2191, 0.5
        %v2256 = vmul.f32 %v2192, 0.5
        %v2257 = vmul.f32 %v2193, 0.5
        %v2258 = vmul.f32 %v2194, 0.5
        %v2259 = vmul.f32 %v2195, 0.5
        %v2260 = vmul.f32 %v2196, 0.5
        %v2261 = vmul.f32 %v2197, 0.5
        %v2262 = vmul.f32 %v2198, 0.5
        %v2263 = vmul.f32 %v2199, 0.5
        %v2264 = vmul.f32 %v2200, 0.5
        %v2265 = vmul.f32 %v2201, 0.5
        %v2266 = vmul.f32 %v2202, 0.5
        %v2267 = vmul.f32 %v2203, 0.5
        %v2268 = vmul.f32 %v2204, 0.5
        %v2269 = vmul.f32 %v2205, 0.5
        %v2270 = vadd.f32 %v2206, 0.5
        %v2271 = vadd.f32 %v2207, 0.5
        %v2272 = vadd.f32 %v2208, 0.5
        %v2273 = vadd.f32 %v2209, 0.5
        %v2274 = vadd.f32 %v2210, 0.5
        %v2275 = vadd.f32 %v2211, 0.5
        %v2276 = vadd.f32 %v2212, 0.5
        %v2277 = vadd.f32 %v2213, 0.5
        %v2278 = vadd.f32 %v2214, 0.5
        %v2279 = vadd.f32 %v2215, 0.5
        %v2280 = vadd.f32 %v2216, 0.5
        %v2281 = vadd.f32 %v2217, 0.5
        %v2282 = vadd.f32 %v2218, 0.5
        %v2283 = vadd.f32 %v2219, 0.5
        %v2284 = vadd.f32 %v2220, 0.5
        %v2285 = vadd.f32 %v2221, 0.5
        %v2286 = vadd.f32 %v2222, 0.5
        %v2287 = vadd.f32 %v2223, 0.5
        %v2288 = vadd.f32 %v2224, 0.5
        %v2289 = vadd.f32 %v2225, 0.5
        %v2290 = vadd.f32 %v2226, 0.5
        %v2291 = vadd.f32 %v2227, 0.5
        %v2292 = vadd.f32 %v2228, 0.5
        %v2293 = vadd.f32 %v2229, 0.5
        %v2294 = vadd.f32 %v2230, 0.5
        %v2295 = vadd.f32 %v2231, 0.5
        %v2296 = vadd.f32 %v2232, 0.5
        %v2297 = vadd.f32 %v2233, 0.5
        %v2298 = vadd.f32 %v2234, 0.5
        %v2299 = vadd.f32 %v2235, 0.5
        %v2300 = vadd.f32 %v2236, 0.5
        %v2301 = vadd.f32 %v2237, 0.5
        %v2302 = vadd.f32 %v2238, 0.5
        %v2303 = vadd.f32 %v2239, 0.5
        %v2304 = vadd.f32 %v2240, 0.5
        %v2305 = vadd.f32 %v2241, 0.5
        %v2306 = vadd.f32 %v2242, 0.5
        %v2307 = vadd.f32 %v2243, 0.5
        %v2308 = vadd.f32 %v2244, 0.5
        %v2309 = vadd.f32 %v2245, 0.5
        %v2310 = vadd.f32 %v2246, 0.5
        %v2311 = vadd.f32 %v2247, 0.5
        %v2312 = vadd.f32 %v2248, 0.5
        %v2313 = vadd.f32 %v2249, 0.5
        %v2314 = vadd.f32 %v2250, 0.5
        %v2315 = vadd.f32 %v2251, 0.5
        %v2316 = vadd.f32 %v2252, 0.5
        %v2317 = vadd.f32 %v2253, 0.5
        %v2318 = vadd.f32 %v2254, 0.5
        %v2319 = vadd.f32 %v2255, 0.5
        %v2320 = vadd.f32 %v2256, 0.5
        %v2321 = vadd.f32 %v2257, 0.5
        %v2322 = vadd.f32 %v2258, 0.5
        %v2323 = vadd.f32 %v2259, 0.5
        %v2324 = vadd.f32 %v2260, 0.5
        %v2325 = vadd.f32 %v2261, 0.5
        %v2326 = vadd.f32 %v2262, 0.5
        %v2327 = vadd.f32 %v2263, 0.5
        %v2328 = vadd.f32 %v2264, 0.5
        %v2329 = vadd.f32 %v2265, 0.5
        %v2330 = vadd.f32 %v2266, 0.5
        %v2331 = vadd.f32 %v2267, 0.5
        %v2332 = vadd.f32 %v2268, 0.5
        %v2333 = vadd.f32 %v2269, 0.5
        %v2334 = vtanh.pop %v1186
        %v2335 = vtanh.pop %v1192
        %v2336 = vtanh.pop %v1198
        %v2337 = vtanh.pop %v1204
        %v2338 = vtanh.pop %v1210
        %v2339 = vtanh.pop %v1216
        %v2340 = vtanh.pop %v1222
        %v2341 = vtanh.pop %v1228
        %v2342 = vtanh.pop %v1234
        %v2343 = vtanh.pop %v1240
        %v2344 = vtanh.pop %v1246
        %v2345 = vtanh.pop %v1252
        %v2346 = vtanh.pop %v1258
        %v2347 = vtanh.pop %v1264
        %v2348 = vtanh.pop %v1270
        %v2349 = vtanh.pop %v1276
        %v2350 = vtanh.pop %v1282
        %v2351 = vtanh.pop %v1288
        %v2352 = vtanh.pop %v1294
        %v2353 = vtanh.pop %v1300
        %v2354 = vtanh.pop %v1306
        %v2355 = vtanh.pop %v1312
        %v2356 = vtanh.pop %v1318
        %v2357 = vtanh.pop %v1324
        %v2358 = vtanh.pop %v1330
        %v2359 = vtanh.pop %v1336
        %v2360 = vtanh.pop %v1342
        %v2361 = vtanh.pop %v1348
        %v2362 = vtanh.pop %v1354
        %v2363 = vtanh.pop %v1360
        %v2364 = vtanh.pop %v1366
        %v2365 = vtanh.pop %v1372
        %v2366 = vtanh.pop %v1378
        %v2367 = vtanh.pop %v1384
        %v2368 = vtanh.pop %v1390
        %v2369 = vtanh.pop %v1396
        %v2370 = vtanh.pop %v1402
        %v2371 = vtanh.pop %v1408
        %v2372 = vtanh.pop %v1414
        %v2373 = vtanh.pop %v1420
        %v2374 = vtanh.pop %v1426
        %v2375 = vtanh.pop %v1432
        %v2376 = vtanh.pop %v1438
        %v2377 = vtanh.pop %v1444
        %v2378 = vtanh.pop %v1450
        %v2379 = vtanh.pop %v1456
        %v2380 = vtanh.pop %v1462
        %v2381 = vtanh.pop %v1468
        %v2382 = vtanh.pop %v1474
        %v2383 = vtanh.pop %v1480
        %v2384 = vtanh.pop %v1486
        %v2385 = vtanh.pop %v1492
        %v2386 = vtanh.pop %v1498
        %v2387 = vtanh.pop %v1504
        %v2388 = vtanh.pop %v1510
        %v2389 = vtanh.pop %v1516
        %v2390 = vtanh.pop %v1522
        %v2391 = vtanh.pop %v1528
        %v2392 = vtanh.pop %v1534
        %v2393 = vtanh.pop %v1540
        %v2394 = vtanh.pop %v1546
        %v2395 = vtanh.pop %v1552
        %v2396 = vtanh.pop %v1558
        %v2397 = vtanh.pop %v1564
        %v2398 = vld [vmem:[#allocation8] sm:$0xff]
        %v2399 = vld [vmem:[#allocation8 + $0x8] sm:$0xff]
        %v2400 = vld [vmem:[#allocation8 + $0x10] sm:$0xff]
        %v2401 = vld [vmem:[#allocation8 + $0x18] sm:$0xff]
        %v2402 = vld [vmem:[#allocation8 + $0x20] sm:$0xff]
        %v2403 = vld [vmem:[#allocation8 + $0x28] sm:$0xff]
        %v2404 = vld [vmem:[#allocation8 + $0x30] sm:$0xff]
        %v2405 = vld [vmem:[#allocation8 + $0x38] sm:$0xff]
        %v2406 = vld [vmem:[#allocation8 + $0x40] sm:$0xff]
        %v2407 = vld [vmem:[#allocation8 + $0x48] sm:$0xff]
        %v2408 = vld [vmem:[#allocation8 + $0x50] sm:$0xff]
        %v2409 = vld [vmem:[#allocation8 + $0x58] sm:$0xff]
        %v2410 = vld [vmem:[#allocation8 + $0x60] sm:$0xff]
        %v2411 = vld [vmem:[#allocation8 + $0x68] sm:$0xff]
        %v2412 = vld [vmem:[#allocation8 + $0x70] sm:$0xff]
        %v2413 = vld [vmem:[#allocation8 + $0x78] sm:$0xff]
        %v2414 = vld [vmem:[%s5] sm:$0x1]
        %v2416 = vlaneseq
        %v2417 = vshrl.u32 %v2416, 7
        %v2418 = vsub.s32 0, %v2417
        %v2419 = vrot.slane %v2414, %v2418
        %2421 = vmatprep.subr.mxu0 0.0
        %2422 = vmatpush1.msra.mxu0 %v2398
        %2423 = vmatprep.subr.mxu0 0.0
        %2424 = vmatpush1.msra.mxu0 %v2399
        %2425 = vmatprep.subr.mxu0 0.0
        %2426 = vmatpush1.msra.mxu0 %v2400
        %2427 = vmatprep.subr.mxu0 0.0
        %2428 = vmatpush1.msra.mxu0 %v2401
        %2429 = vmatprep.subr.mxu0 0.0
        %2430 = vmatpush1.msra.mxu0 %v2402
        %2431 = vmatprep.subr.mxu0 0.0
        %2432 = vmatpush1.msra.mxu0 %v2403
        %2433 = vmatprep.subr.mxu0 0.0
        %2434 = vmatpush1.msra.mxu0 %v2404
        %2435 = vmatprep.subr.mxu0 0.0
        %2436 = vmatpush1.msra.mxu0 %v2405
        %2437 = vmatprep.subr.mxu0 0.0
        %2438 = vmatpush1.msra.mxu0 %v2406
        %2439 = vmatprep.subr.mxu0 0.0
        %2440 = vmatpush1.msra.mxu0 %v2407
        %2441 = vmatprep.subr.mxu0 0.0
        %2442 = vmatpush1.msra.mxu0 %v2408
        %2443 = vmatprep.subr.mxu0 0.0
        %2444 = vmatpush1.msra.mxu0 %v2409
        %2445 = vmatprep.subr.mxu0 0.0
        %2446 = vmatpush1.msra.mxu0 %v2410
        %2447 = vmatprep.subr.mxu0 0.0
        %2448 = vmatpush1.msra.mxu0 %v2411
        %2449 = vmatprep.subr.mxu0 0.0
        %2450 = vmatpush1.msra.mxu0 %v2412
        %2451 = vmatprep.subr.mxu0 0.0
        %2452 = vmatpush1.msra.mxu0 %v2413
        %2453 = vmatprep.subr.mxu0 0.0
        %2454 = vmatpush1.msra.mxu0 0.0
        %2455 = vmatprep.subr.mxu0 0.0
        %2456 = vmatpush1.msra.mxu0 0.0
        %2457 = vmatprep.subr.mxu0 0.0
        %2458 = vmatpush1.msra.mxu0 0.0
        %2459 = vmatprep.subr.mxu0 0.0
        %2460 = vmatpush1.msra.mxu0 0.0
        %2461 = vmatprep.subr.mxu0 0.0
        %2462 = vmatpush1.msra.mxu0 0.0
        %2463 = vmatprep.subr.mxu0 0.0
        %2464 = vmatpush1.msra.mxu0 0.0
        %2465 = vmatprep.subr.mxu0 0.0
        %2466 = vmatpush1.msra.mxu0 0.0
        %2467 = vmatprep.subr.mxu0 0.0
        %2468 = vmatpush1.msra.mxu0 0.0
        %2469 = vmatprep.subr.mxu0 0.0
        %2470 = vmatpush1.msra.mxu0 0.0
        %2471 = vmatprep.subr.mxu0 0.0
        %2472 = vmatpush1.msra.mxu0 0.0
        %2473 = vmatprep.subr.mxu0 0.0
        %2474 = vmatpush1.msra.mxu0 0.0
        %2475 = vmatprep.subr.mxu0 0.0
        %2476 = vmatpush1.msra.mxu0 0.0
        %2477 = vmatprep.subr.mxu0 0.0
        %2478 = vmatpush1.msra.mxu0 0.0
        %2479 = vmatprep.subr.mxu0 0.0
        %2480 = vmatpush1.msra.mxu0 0.0
        %2481 = vmatprep.subr.mxu0 0.0
        %2482 = vmatpush1.msra.mxu0 0.0
        %2483 = vmatprep.subr.mxu0 0.0
        %2484 = vmatpush1.msra.mxu0 0.0
        %2485 = vmatprep.mubr.f32.mxu0 0.0
        %2486 = vmatmul.mubr.f32.gmra.mrb[0].mxu0 %v1758
        %v2487 = vpop.f32.mrb[0].mxu0
        %v2488 = vadd.f32 %v2419, %v2487
        %v2489 = vpop.f32.mrb[0].mxu0
        %2490 = vmatprep.mubr.f32.mxu0 0.0
        %2491 = vmatmul.mubr.f32.gmra.mrb[0].mxu0 %v1759
        %v2492 = vpop.f32.mrb[0].mxu0
        %v2493 = vadd.f32 %v2419, %v2492
        %v2494 = vpop.f32.mrb[0].mxu0
        %2495 = vmatprep.mubr.f32.mxu0 0.0
        %2496 = vmatmul.mubr.f32.gmra.mrb[0].mxu0 %v1760
        %v2497 = vpop.f32.mrb[0].mxu0
        %v2498 = vadd.f32 %v2419, %v2497
        %v2499 = vpop.f32.mrb[0].mxu0
        %2500 = vmatprep.mubr.f32.mxu0 0.0
        %2501 = vmatmul.mubr.f32.gmra.mrb[0].mxu0 %v1761
        %v2502 = vpop.f32.mrb[0].mxu0
        %v2503 = vadd.f32 %v2419, %v2502
        %v2504 = vpop.f32.mrb[0].mxu0
        %2505 = vmatprep.mubr.f32.mxu0 0.0
        %2506 = vmatmul.mubr.f32.gmra.mrb[0].mxu0 %v1762
        %v2507 = vpop.f32.mrb[0].mxu0
        %v2508 = vadd.f32 %v2419, %v2507
        %v2509 = vpop.f32.mrb[0].mxu0
        %2510 = vmatprep.mubr.f32.mxu0 0.0
        %2511 = vmatmul.mubr.f32.gmra.mrb[0].mxu0 %v1763
        %v2512 = vpop.f32.mrb[0].mxu0
        %v2513 = vadd.f32 %v2419, %v2512
        %v2514 = vpop.f32.mrb[0].mxu0
        %2515 = vmatprep.mubr.f32.mxu0 0.0
        %2516 = vmatmul.mubr.f32.gmra.mrb[0].mxu0 %v1764
        %v2517 = vpop.f32.mrb[0].mxu0
        %v2518 = vadd.f32 %v2419, %v2517
        %v2519 = vpop.f32.mrb[0].mxu0
        %2520 = vmatprep.mubr.f32.mxu0 0.0
        %2521 = vmatmul.mubr.f32.gmra.mrb[0].mxu0 %v1765
        %v2522 = vpop.f32.mrb[0].mxu0
        %v2523 = vadd.f32 %v2419, %v2522
        %v2524 = vpop.f32.mrb[0].mxu0
        %2525 = vmatprep.mubr.f32.mxu0 0.0
        %2526 = vmatmul.mubr.f32.gmra.mrb[0].mxu0 %v1766
        %v2527 = vpop.f32.mrb[0].mxu0
        %v2528 = vadd.f32 %v2419, %v2527
        %v2529 = vpop.f32.mrb[0].mxu0
        %2530 = vmatprep.mubr.f32.mxu0 0.0
        %2531 = vmatmul.mubr.f32.gmra.mrb[0].mxu0 %v1767
        %v2532 = vpop.f32.mrb[0].mxu0
        %v2533 = vadd.f32 %v2419, %v2532
        %v2534 = vpop.f32.mrb[0].mxu0
        %2535 = vmatprep.mubr.f32.mxu0 0.0
        %2536 = vmatmul.mubr.f32.gmra.mrb[0].mxu0 %v1768
        %v2537 = vpop.f32.mrb[0].mxu0
        %v2538 = vadd.f32 %v2419, %v2537
        %v2539 = vpop.f32.mrb[0].mxu0
        %2540 = vmatprep.mubr.f32.mxu0 0.0
        %2541 = vmatmul.mubr.f32.gmra.mrb[0].mxu0 %v1769
        %v2542 = vpop.f32.mrb[0].mxu0
        %v2543 = vadd.f32 %v2419, %v2542
        %v2544 = vpop.f32.mrb[0].mxu0
        %2545 = vmatprep.mubr.f32.mxu0 0.0
        %2546 = vmatmul.mubr.f32.gmra.mrb[0].mxu0 %v1770
        %v2547 = vpop.f32.mrb[0].mxu0
        %v2548 = vadd.f32 %v2419, %v2547
        %v2549 = vpop.f32.mrb[0].mxu0
        %2550 = vmatprep.mubr.f32.mxu0 0.0
        %2551 = vmatmul.mubr.f32.gmra.mrb[0].mxu0 %v1771
        %v2552 = vpop.f32.mrb[0].mxu0
        %v2553 = vadd.f32 %v2419, %v2552
        %v2554 = vpop.f32.mrb[0].mxu0
        %2555 = vmatprep.mubr.f32.mxu0 0.0
        %2556 = vmatmul.mubr.f32.gmra.mrb[0].mxu0 %v1772
        %v2557 = vpop.f32.mrb[0].mxu0
        %v2558 = vadd.f32 %v2419, %v2557
        %v2559 = vpop.f32.mrb[0].mxu0
        %2560 = vmatprep.mubr.f32.mxu0 0.0
        %2561 = vmatmul.mubr.f32.gmra.mrb[0].mxu0 %v1773
        %v2562 = vpop.f32.mrb[0].mxu0
        %v2563 = vadd.f32 %v2419, %v2562
        %v2564 = vpop.f32.mrb[0].mxu0
        %2565 = vmatprep.mubr.f32.mxu0 0.0
        %2566 = vmatmul.mubr.f32.gmra.mrb[0].mxu0 %v1774
        %v2567 = vpop.f32.mrb[0].mxu0
        %v2568 = vadd.f32 %v2419, %v2567
        %v2569 = vpop.f32.mrb[0].mxu0
        %2570 = vmatprep.mubr.f32.mxu0 0.0
        %2571 = vmatmul.mubr.f32.gmra.mrb[0].mxu0 %v1775
        %v2572 = vpop.f32.mrb[0].mxu0
        %v2573 = vadd.f32 %v2419, %v2572
        %v2574 = vpop.f32.mrb[0].mxu0
        %2575 = vmatprep.mubr.f32.mxu0 0.0
        %2576 = vmatmul.mubr.f32.gmra.mrb[0].mxu0 %v1776
        %v2577 = vpop.f32.mrb[0].mxu0
        %v2578 = vadd.f32 %v2419, %v2577
        %v2579 = vpop.f32.mrb[0].mxu0
        %2580 = vmatprep.mubr.f32.mxu0 0.0
        %2581 = vmatmul.mubr.f32.gmra.mrb[0].mxu0 %v1777
        %v2582 = vpop.f32.mrb[0].mxu0
        %v2583 = vadd.f32 %v2419, %v2582
        %v2584 = vpop.f32.mrb[0].mxu0
        %2585 = vmatprep.mubr.f32.mxu0 0.0
        %2586 = vmatmul.mubr.f32.gmra.mrb[0].mxu0 %v1778
        %v2587 = vpop.f32.mrb[0].mxu0
        %v2588 = vadd.f32 %v2419, %v2587
        %v2589 = vpop.f32.mrb[0].mxu0
        %2590 = vmatprep.mubr.f32.mxu0 0.0
        %2591 = vmatmul.mubr.f32.gmra.mrb[0].mxu0 %v1779
        %v2592 = vpop.f32.mrb[0].mxu0
        %v2593 = vadd.f32 %v2419, %v2592
        %v2594 = vpop.f32.mrb[0].mxu0
        %2595 = vmatprep.mubr.f32.mxu0 0.0
        %2596 = vmatmul.mubr.f32.gmra.mrb[0].mxu0 %v1780
        %v2597 = vpop.f32.mrb[0].mxu0
        %v2598 = vadd.f32 %v2419, %v2597
        %v2599 = vpop.f32.mrb[0].mxu0
        %2600 = vmatprep.mubr.f32.mxu0 0.0
        %2601 = vmatmul.mubr.f32.gmra.mrb[0].mxu0 %v1781
        %v2602 = vpop.f32.mrb[0].mxu0
        %v2603 = vadd.f32 %v2419, %v2602
        %v2604 = vpop.f32.mrb[0].mxu0
        %2605 = vmatprep.mubr.f32.mxu0 0.0
        %2606 = vmatmul.mubr.f32.gmra.mrb[0].mxu0 %v1782
        %v2607 = vpop.f32.mrb[0].mxu0
        %v2608 = vadd.f32 %v2419, %v2607
        %v2609 = vpop.f32.mrb[0].mxu0
        %2610 = vmatprep.mubr.f32.mxu0 0.0
        %2611 = vmatmul.mubr.f32.gmra.mrb[0].mxu0 %v1783
        %v2612 = vpop.f32.mrb[0].mxu0
        %v2613 = vadd.f32 %v2419, %v2612
        %v2614 = vpop.f32.mrb[0].mxu0
        %2615 = vmatprep.mubr.f32.mxu0 0.0
        %2616 = vmatmul.mubr.f32.gmra.mrb[0].mxu0 %v1784
        %v2617 = vpop.f32.mrb[0].mxu0
        %v2618 = vadd.f32 %v2419, %v2617
        %v2619 = vpop.f32.mrb[0].mxu0
        %2620 = vmatprep.mubr.f32.mxu0 0.0
        %2621 = vmatmul.mubr.f32.gmra.mrb[0].mxu0 %v1785
        %v2622 = vpop.f32.mrb[0].mxu0
        %v2623 = vadd.f32 %v2419, %v2622
        %v2624 = vpop.f32.mrb[0].mxu0
        %2625 = vmatprep.mubr.f32.mxu0 0.0
        %2626 = vmatmul.mubr.f32.gmra.mrb[0].mxu0 %v1786
        %v2627 = vpop.f32.mrb[0].mxu0
        %v2628 = vadd.f32 %v2419, %v2627
        %v2629 = vpop.f32.mrb[0].mxu0
        %2630 = vmatprep.mubr.f32.mxu0 0.0
        %2631 = vmatmul.mubr.f32.gmra.mrb[0].mxu0 %v1787
        %v2632 = vpop.f32.mrb[0].mxu0
        %v2633 = vadd.f32 %v2419, %v2632
        %v2634 = vpop.f32.mrb[0].mxu0
        %2635 = vmatprep.mubr.f32.mxu0 0.0
        %2636 = vmatmul.mubr.f32.gmra.mrb[0].mxu0 %v1788
        %v2637 = vpop.f32.mrb[0].mxu0
        %v2638 = vadd.f32 %v2419, %v2637
        %v2639 = vpop.f32.mrb[0].mxu0
        %2640 = vmatprep.mubr.f32.mxu0 0.0
        %2641 = vmatmul.mubr.f32.gmra.mrb[0].mxu0 %v1789
        %v2642 = vpop.f32.mrb[0].mxu0
        %v2643 = vadd.f32 %v2419, %v2642
        %v2644 = vpop.f32.mrb[0].mxu0
        %2645 = vmatprep.mubr.f32.mxu0 0.0
        %2646 = vmatmul.mubr.f32.gmra.mrb[0].mxu0 %v1790
        %v2647 = vpop.f32.mrb[0].mxu0
        %v2648 = vadd.f32 %v2419, %v2647
        %v2649 = vpop.f32.mrb[0].mxu0
        %2650 = vmatprep.mubr.f32.mxu0 0.0
        %2651 = vmatmul.mubr.f32.gmra.mrb[0].mxu0 %v1791
        %v2652 = vpop.f32.mrb[0].mxu0
        %v2653 = vadd.f32 %v2419, %v2652
        %v2654 = vpop.f32.mrb[0].mxu0
        %2655 = vmatprep.mubr.f32.mxu0 0.0
        %2656 = vmatmul.mubr.f32.gmra.mrb[0].mxu0 %v1792
        %v2657 = vpop.f32.mrb[0].mxu0
        %v2658 = vadd.f32 %v2419, %v2657
        %v2659 = vpop.f32.mrb[0].mxu0
        %2660 = vmatprep.mubr.f32.mxu0 0.0
        %2661 = vmatmul.mubr.f32.gmra.mrb[0].mxu0 %v1793
        %v2662 = vpop.f32.mrb[0].mxu0
        %v2663 = vadd.f32 %v2419, %v2662
        %v2664 = vpop.f32.mrb[0].mxu0
        %2665 = vmatprep.mubr.f32.mxu0 0.0
        %2666 = vmatmul.mubr.f32.gmra.mrb[0].mxu0 %v1794
        %v2667 = vpop.f32.mrb[0].mxu0
        %v2668 = vadd.f32 %v2419, %v2667
        %v2669 = vpop.f32.mrb[0].mxu0
        %2670 = vmatprep.mubr.f32.mxu0 0.0
        %2671 = vmatmul.mubr.f32.gmra.mrb[0].mxu0 %v1795
        %v2672 = vpop.f32.mrb[0].mxu0
        %v2673 = vadd.f32 %v2419, %v2672
        %v2674 = vpop.f32.mrb[0].mxu0
        %2675 = vmatprep.mubr.f32.mxu0 0.0
        %2676 = vmatmul.mubr.f32.gmra.mrb[0].mxu0 %v1796
        %v2677 = vpop.f32.mrb[0].mxu0
        %v2678 = vadd.f32 %v2419, %v2677
        %v2679 = vpop.f32.mrb[0].mxu0
        %2680 = vmatprep.mubr.f32.mxu0 0.0
        %2681 = vmatmul.mubr.f32.gmra.mrb[0].mxu0 %v1797
        %v2682 = vpop.f32.mrb[0].mxu0
        %v2683 = vadd.f32 %v2419, %v2682
        %v2684 = vpop.f32.mrb[0].mxu0
        %2685 = vmatprep.mubr.f32.mxu0 0.0
        %2686 = vmatmul.mubr.f32.gmra.mrb[0].mxu0 %v1798
        %v2687 = vpop.f32.mrb[0].mxu0
        %v2688 = vadd.f32 %v2419, %v2687
        %v2689 = vpop.f32.mrb[0].mxu0
        %2690 = vmatprep.mubr.f32.mxu0 0.0
        %2691 = vmatmul.mubr.f32.gmra.mrb[0].mxu0 %v1799
        %v2692 = vpop.f32.mrb[0].mxu0
        %v2693 = vadd.f32 %v2419, %v2692
        %v2694 = vpop.f32.mrb[0].mxu0
        %2695 = vmatprep.mubr.f32.mxu0 0.0
        %2696 = vmatmul.mubr.f32.gmra.mrb[0].mxu0 %v1800
        %v2697 = vpop.f32.mrb[0].mxu0
        %v2698 = vadd.f32 %v2419, %v2697
        %v2699 = vpop.f32.mrb[0].mxu0
        %2700 = vmatprep.mubr.f32.mxu0 0.0
        %2701 = vmatmul.mubr.f32.gmra.mrb[0].mxu0 %v1801
        %v2702 = vpop.f32.mrb[0].mxu0
        %v2703 = vadd.f32 %v2419, %v2702
        %v2704 = vpop.f32.mrb[0].mxu0
        %2705 = vmatprep.mubr.f32.mxu0 0.0
        %2706 = vmatmul.mubr.f32.gmra.mrb[0].mxu0 %v1802
        %v2707 = vpop.f32.mrb[0].mxu0
        %v2708 = vadd.f32 %v2419, %v2707
        %v2709 = vpop.f32.mrb[0].mxu0
        %2710 = vmatprep.mubr.f32.mxu0 0.0
        %2711 = vmatmul.mubr.f32.gmra.mrb[0].mxu0 %v1803
        %v2712 = vpop.f32.mrb[0].mxu0
        %v2713 = vadd.f32 %v2419, %v2712
        %v2714 = vpop.f32.mrb[0].mxu0
        %2715 = vmatprep.mubr.f32.mxu0 0.0
        %2716 = vmatmul.mubr.f32.gmra.mrb[0].mxu0 %v1804
        %v2717 = vpop.f32.mrb[0].mxu0
        %v2718 = vadd.f32 %v2419, %v2717
        %v2719 = vpop.f32.mrb[0].mxu0
        %2720 = vmatprep.mubr.f32.mxu0 0.0
        %2721 = vmatmul.mubr.f32.gmra.mrb[0].mxu0 %v1805
        %v2722 = vpop.f32.mrb[0].mxu0
        %v2723 = vadd.f32 %v2419, %v2722
        %v2724 = vpop.f32.mrb[0].mxu0
        %2725 = vmatprep.mubr.f32.mxu0 0.0
        %2726 = vmatmul.mubr.f32.gmra.mrb[0].mxu0 %v1806
        %v2727 = vpop.f32.mrb[0].mxu0
        %v2728 = vadd.f32 %v2419, %v2727
        %v2729 = vpop.f32.mrb[0].mxu0
        %2730 = vmatprep.mubr.f32.mxu0 0.0
        %2731 = vmatmul.mubr.f32.gmra.mrb[0].mxu0 %v1807
        %v2732 = vpop.f32.mrb[0].mxu0
        %v2733 = vadd.f32 %v2419, %v2732
        %v2734 = vpop.f32.mrb[0].mxu0
        %2735 = vmatprep.mubr.f32.mxu0 0.0
        %2736 = vmatmul.mubr.f32.gmra.mrb[0].mxu0 %v1808
        %v2737 = vpop.f32.mrb[0].mxu0
        %v2738 = vadd.f32 %v2419, %v2737
        %v2739 = vpop.f32.mrb[0].mxu0
        %2740 = vmatprep.mubr.f32.mxu0 0.0
        %2741 = vmatmul.mubr.f32.gmra.mrb[0].mxu0 %v1809
        %v2742 = vpop.f32.mrb[0].mxu0
        %v2743 = vadd.f32 %v2419, %v2742
        %v2744 = vpop.f32.mrb[0].mxu0
        %2745 = vmatprep.mubr.f32.mxu0 0.0
        %2746 = vmatmul.mubr.f32.gmra.mrb[0].mxu0 %v1810
        %v2747 = vpop.f32.mrb[0].mxu0
        %v2748 = vadd.f32 %v2419, %v2747
        %v2749 = vpop.f32.mrb[0].mxu0
        %2750 = vmatprep.mubr.f32.mxu0 0.0
        %2751 = vmatmul.mubr.f32.gmra.mrb[0].mxu0 %v1811
        %v2752 = vpop.f32.mrb[0].mxu0
        %v2753 = vadd.f32 %v2419, %v2752
        %v2754 = vpop.f32.mrb[0].mxu0
        %2755 = vmatprep.mubr.f32.mxu0 0.0
        %2756 = vmatmul.mubr.f32.gmra.mrb[0].mxu0 %v1812
        %v2757 = vpop.f32.mrb[0].mxu0
        %v2758 = vadd.f32 %v2419, %v2757
        %v2759 = vpop.f32.mrb[0].mxu0
        %2760 = vmatprep.mubr.f32.mxu0 0.0
        %2761 = vmatmul.mubr.f32.gmra.mrb[0].mxu0 %v1813
        %v2762 = vpop.f32.mrb[0].mxu0
        %v2763 = vadd.f32 %v2419, %v2762
        %v2764 = vpop.f32.mrb[0].mxu0
        %2765 = vmatprep.mubr.f32.mxu0 0.0
        %2766 = vmatmul.mubr.f32.gmra.mrb[0].mxu0 %v1814
        %v2767 = vpop.f32.mrb[0].mxu0
        %v2768 = vadd.f32 %v2419, %v2767
        %v2769 = vpop.f32.mrb[0].mxu0
        %2770 = vmatprep.mubr.f32.mxu0 0.0
        %2771 = vmatmul.mubr.f32.gmra.mrb[0].mxu0 %v1815
        %v2772 = vpop.f32.mrb[0].mxu0
        %v2773 = vadd.f32 %v2419, %v2772
        %v2774 = vpop.f32.mrb[0].mxu0
        %2775 = vmatprep.mubr.f32.mxu0 0.0
        %2776 = vmatmul.mubr.f32.gmra.mrb[0].mxu0 %v1816
        %v2777 = vpop.f32.mrb[0].mxu0
        %v2778 = vadd.f32 %v2419, %v2777
        %v2779 = vpop.f32.mrb[0].mxu0
        %2780 = vmatprep.mubr.f32.mxu0 0.0
        %2781 = vmatmul.mubr.f32.gmra.mrb[0].mxu0 %v1817
        %v2782 = vpop.f32.mrb[0].mxu0
        %v2783 = vadd.f32 %v2419, %v2782
        %v2784 = vpop.f32.mrb[0].mxu0
        %2785 = vmatprep.mubr.f32.mxu0 0.0
        %2786 = vmatmul.mubr.f32.gmra.mrb[0].mxu0 %v1818
        %v2787 = vpop.f32.mrb[0].mxu0
        %v2788 = vadd.f32 %v2419, %v2787
        %v2789 = vpop.f32.mrb[0].mxu0
        %2790 = vmatprep.mubr.f32.mxu0 0.0
        %2791 = vmatmul.mubr.f32.gmra.mrb[0].mxu0 %v1819
        %v2792 = vpop.f32.mrb[0].mxu0
        %v2793 = vadd.f32 %v2419, %v2792
        %v2794 = vpop.f32.mrb[0].mxu0
        %2795 = vmatprep.mubr.f32.mxu0 0.0
        %2796 = vmatmul.mubr.f32.gmra.mrb[0].mxu0 %v1820
        %v2797 = vpop.f32.mrb[0].mxu0
        %v2798 = vadd.f32 %v2419, %v2797
        %v2799 = vpop.f32.mrb[0].mxu0
        %2800 = vmatprep.mubr.f32.mxu0 0.0
        %2801 = vmatmul.mubr.f32.gmra.mrb[0].mxu0 %v1821
        %v2802 = vpop.f32.mrb[0].mxu0
        %v2803 = vadd.f32 %v2419, %v2802
        %v2804 = vpop.f32.mrb[0].mxu0
        %2805 = vdwg.mxu0
        %s2806 = scalar_lea.vmem [#allocation8], 128
        %v2807 = vld [vmem:[%s2806] sm:$0xff]
        %v2808 = vld [vmem:[%s2806 + $0x8] sm:$0xff]
        %v2809 = vld [vmem:[%s2806 + $0x10] sm:$0xff]
        %v2810 = vld [vmem:[%s2806 + $0x18] sm:$0xff]
        %v2811 = vld [vmem:[%s2806 + $0x20] sm:$0xff]
        %v2812 = vld [vmem:[%s2806 + $0x28] sm:$0xff]
        %v2813 = vld [vmem:[%s2806 + $0x30] sm:$0xff]
        %v2814 = vld [vmem:[%s2806 + $0x38] sm:$0xff]
        %v2815 = vld [vmem:[%s2806 + $0x40] sm:$0xff]
        %v2816 = vld [vmem:[%s2806 + $0x48] sm:$0xff]
        %v2817 = vld [vmem:[%s2806 + $0x50] sm:$0xff]
        %v2818 = vld [vmem:[%s2806 + $0x58] sm:$0xff]
        %v2819 = vld [vmem:[%s2806 + $0x60] sm:$0xff]
        %v2820 = vld [vmem:[%s2806 + $0x68] sm:$0xff]
        %v2821 = vld [vmem:[%s2806 + $0x70] sm:$0xff]
        %v2822 = vld [vmem:[%s2806 + $0x78] sm:$0xff]
        %s2823 = scalar_lea.vmem %s5, 1
        %v2824 = vld [vmem:[%s2823] sm:$0x1]
        %v2826 = vlaneseq
        %v2827 = vshrl.u32 %v2826, 7
        %v2828 = vsub.s32 0, %v2827
        %v2829 = vrot.slane %v2824, %v2828
        %2831 = vmatprep.subr.mxu0 0.0
        %2832 = vmatpush1.msra.mxu0 %v2807
        %2833 = vmatprep.subr.mxu0 0.0
        %2834 = vmatpush1.msra.mxu0 %v2808
        %2835 = vmatprep.subr.mxu0 0.0
        %2836 = vmatpush1.msra.mxu0 %v2809
        %2837 = vmatprep.subr.mxu0 0.0
        %2838 = vmatpush1.msra.mxu0 %v2810
        %2839 = vmatprep.subr.mxu0 0.0
        %2840 = vmatpush1.msra.mxu0 %v2811
        %2841 = vmatprep.subr.mxu0 0.0
        %2842 = vmatpush1.msra.mxu0 %v2812
        %2843 = vmatprep.subr.mxu0 0.0
        %2844 = vmatpush1.msra.mxu0 %v2813
        %2845 = vmatprep.subr.mxu0 0.0
        %2846 = vmatpush1.msra.mxu0 %v2814
        %2847 = vmatprep.subr.mxu0 0.0
        %2848 = vmatpush1.msra.mxu0 %v2815
        %2849 = vmatprep.subr.mxu0 0.0
        %2850 = vmatpush1.msra.mxu0 %v2816
        %2851 = vmatprep.subr.mxu0 0.0
        %2852 = vmatpush1.msra.mxu0 %v2817
        %2853 = vmatprep.subr.mxu0 0.0
        %2854 = vmatpush1.msra.mxu0 %v2818
        %2855 = vmatprep.subr.mxu0 0.0
        %2856 = vmatpush1.msra.mxu0 %v2819
        %2857 = vmatprep.subr.mxu0 0.0
        %2858 = vmatpush1.msra.mxu0 %v2820
        %2859 = vmatprep.subr.mxu0 0.0
        %2860 = vmatpush1.msra.mxu0 %v2821
        %2861 = vmatprep.subr.mxu0 0.0
        %2862 = vmatpush1.msra.mxu0 %v2822
        %2863 = vmatprep.subr.mxu0 0.0
        %2864 = vmatpush1.msra.mxu0 0.0
        %2865 = vmatprep.subr.mxu0 0.0
        %2866 = vmatpush1.msra.mxu0 0.0
        %2867 = vmatprep.subr.mxu0 0.0
        %2868 = vmatpush1.msra.mxu0 0.0
        %2869 = vmatprep.subr.mxu0 0.0
        %2870 = vmatpush1.msra.mxu0 0.0
        %2871 = vmatprep.subr.mxu0 0.0
        %2872 = vmatpush1.msra.mxu0 0.0
        %2873 = vmatprep.subr.mxu0 0.0
        %2874 = vmatpush1.msra.mxu0 0.0
        %2875 = vmatprep.subr.mxu0 0.0
        %2876 = vmatpush1.msra.mxu0 0.0
        %2877 = vmatprep.subr.mxu0 0.0
        %2878 = vmatpush1.msra.mxu0 0.0
        %2879 = vmatprep.subr.mxu0 0.0
        %2880 = vmatpush1.msra.mxu0 0.0
        %2881 = vmatprep.subr.mxu0 0.0
        %2882 = vmatpush1.msra.mxu0 0.0
        %2883 = vmatprep.subr.mxu0 0.0
        %2884 = vmatpush1.msra.mxu0 0.0
        %2885 = vmatprep.subr.mxu0 0.0
        %2886 = vmatpush1.msra.mxu0 0.0
        %2887 = vmatprep.subr.mxu0 0.0
        %2888 = vmatpush1.msra.mxu0 0.0
        %2889 = vmatprep.subr.mxu0 0.0
        %2890 = vmatpush1.msra.mxu0 0.0
        %2891 = vmatprep.subr.mxu0 0.0
        %2892 = vmatpush1.msra.mxu0 0.0
        %2893 = vmatprep.subr.mxu0 0.0
        %2894 = vmatpush1.msra.mxu0 0.0
        %2895 = vmatprep.mubr.f32.mxu0 0.0
        %2896 = vmatmul.mubr.f32.gmra.mrb[0].mxu0 %v2014
        %v2897 = vpop.f32.mrb[0].mxu0
        %v2898 = vadd.f32 %v2829, %v2897
        %v2899 = vpop.f32.mrb[0].mxu0
        %2900 = vmatprep.mubr.f32.mxu0 0.0
        %2901 = vmatmul.mubr.f32.gmra.mrb[0].mxu0 %v2015
        %v2902 = vpop.f32.mrb[0].mxu0
        %v2903 = vadd.f32 %v2829, %v2902
        %v2904 = vpop.f32.mrb[0].mxu0
        %2905 = vmatprep.mubr.f32.mxu0 0.0
        %2906 = vmatmul.mubr.f32.gmra.mrb[0].mxu0 %v2016
        %v2907 = vpop.f32.mrb[0].mxu0
        %v2908 = vadd.f32 %v2829, %v2907
        %v2909 = vpop.f32.mrb[0].mxu0
        %2910 = vmatprep.mubr.f32.mxu0 0.0
        %2911 = vmatmul.mubr.f32.gmra.mrb[0].mxu0 %v2017
        %v2912 = vpop.f32.mrb[0].mxu0
        %v2913 = vadd.f32 %v2829, %v2912
        %v2914 = vpop.f32.mrb[0].mxu0
        %2915 = vmatprep.mubr.f32.mxu0 0.0
        %2916 = vmatmul.mubr.f32.gmra.mrb[0].mxu0 %v2018
        %v2917 = vpop.f32.mrb[0].mxu0
        %v2918 = vadd.f32 %v2829, %v2917
        %v2919 = vpop.f32.mrb[0].mxu0
        %2920 = vmatprep.mubr.f32.mxu0 0.0
        %2921 = vmatmul.mubr.f32.gmra.mrb[0].mxu0 %v2019
        %v2922 = vpop.f32.mrb[0].mxu0
        %v2923 = vadd.f32 %v2829, %v2922
        %v2924 = vpop.f32.mrb[0].mxu0
        %2925 = vmatprep.mubr.f32.mxu0 0.0
        %2926 = vmatmul.mubr.f32.gmra.mrb[0].mxu0 %v2020
        %v2927 = vpop.f32.mrb[0].mxu0
        %v2928 = vadd.f32 %v2829, %v2927
        %v2929 = vpop.f32.mrb[0].mxu0
        %2930 = vmatprep.mubr.f32.mxu0 0.0
        %2931 = vmatmul.mubr.f32.gmra.mrb[0].mxu0 %v2021
        %v2932 = vpop.f32.mrb[0].mxu0
        %v2933 = vadd.f32 %v2829, %v2932
        %v2934 = vpop.f32.mrb[0].mxu0
        %2935 = vmatprep.mubr.f32.mxu0 0.0
        %2936 = vmatmul.mubr.f32.gmra.mrb[0].mxu0 %v2022
        %v2937 = vpop.f32.mrb[0].mxu0
        %v2938 = vadd.f32 %v2829, %v2937
        %v2939 = vpop.f32.mrb[0].mxu0
        %2940 = vmatprep.mubr.f32.mxu0 0.0
        %2941 = vmatmul.mubr.f32.gmra.mrb[0].mxu0 %v2023
        %v2942 = vpop.f32.mrb[0].mxu0
        %v2943 = vadd.f32 %v2829, %v2942
        %v2944 = vpop.f32.mrb[0].mxu0
        %2945 = vmatprep.mubr.f32.mxu0 0.0
        %2946 = vmatmul.mubr.f32.gmra.mrb[0].mxu0 %v2024
        %v2947 = vpop.f32.mrb[0].mxu0
        %v2948 = vadd.f32 %v2829, %v2947
        %v2949 = vpop.f32.mrb[0].mxu0
        %2950 = vmatprep.mubr.f32.mxu0 0.0
        %2951 = vmatmul.mubr.f32.gmra.mrb[0].mxu0 %v2025
        %v2952 = vpop.f32.mrb[0].mxu0
        %v2953 = vadd.f32 %v2829, %v2952
        %v2954 = vpop.f32.mrb[0].mxu0
        %2955 = vmatprep.mubr.f32.mxu0 0.0
        %2956 = vmatmul.mubr.f32.gmra.mrb[0].mxu0 %v2026
        %v2957 = vpop.f32.mrb[0].mxu0
        %v2958 = vadd.f32 %v2829, %v2957
        %v2959 = vpop.f32.mrb[0].mxu0
        %2960 = vmatprep.mubr.f32.mxu0 0.0
        %2961 = vmatmul.mubr.f32.gmra.mrb[0].mxu0 %v2027
        %v2962 = vpop.f32.mrb[0].mxu0
        %v2963 = vadd.f32 %v2829, %v2962
        %v2964 = vpop.f32.mrb[0].mxu0
        %2965 = vmatprep.mubr.f32.mxu0 0.0
        %2966 = vmatmul.mubr.f32.gmra.mrb[0].mxu0 %v2028
        %v2967 = vpop.f32.mrb[0].mxu0
        %v2968 = vadd.f32 %v2829, %v2967
        %v2969 = vpop.f32.mrb[0].mxu0
        %2970 = vmatprep.mubr.f32.mxu0 0.0
        %2971 = vmatmul.mubr.f32.gmra.mrb[0].mxu0 %v2029
        %v2972 = vpop.f32.mrb[0].mxu0
        %v2973 = vadd.f32 %v2829, %v2972
        %v2974 = vpop.f32.mrb[0].mxu0
        %2975 = vmatprep.mubr.f32.mxu0 0.0
        %2976 = vmatmul.mubr.f32.gmra.mrb[0].mxu0 %v2030
        %v2977 = vpop.f32.mrb[0].mxu0
        %v2978 = vadd.f32 %v2829, %v2977
        %v2979 = vpop.f32.mrb[0].mxu0
        %2980 = vmatprep.mubr.f32.mxu0 0.0
        %2981 = vmatmul.mubr.f32.gmra.mrb[0].mxu0 %v2031
        %v2982 = vpop.f32.mrb[0].mxu0
        %v2983 = vadd.f32 %v2829, %v2982
        %v2984 = vpop.f32.mrb[0].mxu0
        %2985 = vmatprep.mubr.f32.mxu0 0.0
        %2986 = vmatmul.mubr.f32.gmra.mrb[0].mxu0 %v2032
        %v2987 = vpop.f32.mrb[0].mxu0
        %v2988 = vadd.f32 %v2829, %v2987
        %v2989 = vpop.f32.mrb[0].mxu0
        %2990 = vmatprep.mubr.f32.mxu0 0.0
        %2991 = vmatmul.mubr.f32.gmra.mrb[0].mxu0 %v2033
        %v2992 = vpop.f32.mrb[0].mxu0
        %v2993 = vadd.f32 %v2829, %v2992
        %v2994 = vpop.f32.mrb[0].mxu0
        %2995 = vmatprep.mubr.f32.mxu0 0.0
        %2996 = vmatmul.mubr.f32.gmra.mrb[0].mxu0 %v2034
        %v2997 = vpop.f32.mrb[0].mxu0
        %v2998 = vadd.f32 %v2829, %v2997
        %v2999 = vpop.f32.mrb[0].mxu0
        %3000 = vmatprep.mubr.f32.mxu0 0.0
        %3001 = vmatmul.mubr.f32.gmra.mrb[0].mxu0 %v2035
        %v3002 = vpop.f32.mrb[0].mxu0
        %v3003 = vadd.f32 %v2829, %v3002
        %v3004 = vpop.f32.mrb[0].mxu0
        %3005 = vmatprep.mubr.f32.mxu0 0.0
        %3006 = vmatmul.mubr.f32.gmra.mrb[0].mxu0 %v2036
        %v3007 = vpop.f32.mrb[0].mxu0
        %v3008 = vadd.f32 %v2829, %v3007
        %v3009 = vpop.f32.mrb[0].mxu0
        %3010 = vmatprep.mubr.f32.mxu0 0.0
        %3011 = vmatmul.mubr.f32.gmra.mrb[0].mxu0 %v2037
        %v3012 = vpop.f32.mrb[0].mxu0
        %v3013 = vadd.f32 %v2829, %v3012
        %v3014 = vpop.f32.mrb[0].mxu0
        %3015 = vmatprep.mubr.f32.mxu0 0.0
        %3016 = vmatmul.mubr.f32.gmra.mrb[0].mxu0 %v2038
        %v3017 = vpop.f32.mrb[0].mxu0
        %v3018 = vadd.f32 %v2829, %v3017
        %v3019 = vpop.f32.mrb[0].mxu0
        %3020 = vmatprep.mubr.f32.mxu0 0.0
        %3021 = vmatmul.mubr.f32.gmra.mrb[0].mxu0 %v2039
        %v3022 = vpop.f32.mrb[0].mxu0
        %v3023 = vadd.f32 %v2829, %v3022
        %v3024 = vpop.f32.mrb[0].mxu0
        %3025 = vmatprep.mubr.f32.mxu0 0.0
        %3026 = vmatmul.mubr.f32.gmra.mrb[0].mxu0 %v2040
        %v3027 = vpop.f32.mrb[0].mxu0
        %v3028 = vadd.f32 %v2829, %v3027
        %v3029 = vpop.f32.mrb[0].mxu0
        %3030 = vmatprep.mubr.f32.mxu0 0.0
        %3031 = vmatmul.mubr.f32.gmra.mrb[0].mxu0 %v2041
        %v3032 = vpop.f32.mrb[0].mxu0
        %v3033 = vadd.f32 %v2829, %v3032
        %v3034 = vpop.f32.mrb[0].mxu0
        %3035 = vmatprep.mubr.f32.mxu0 0.0
        %3036 = vmatmul.mubr.f32.gmra.mrb[0].mxu0 %v2042
        %v3037 = vpop.f32.mrb[0].mxu0
        %v3038 = vadd.f32 %v2829, %v3037
        %v3039 = vpop.f32.mrb[0].mxu0
        %3040 = vmatprep.mubr.f32.mxu0 0.0
        %3041 = vmatmul.mubr.f32.gmra.mrb[0].mxu0 %v2043
        %v3042 = vpop.f32.mrb[0].mxu0
        %v3043 = vadd.f32 %v2829, %v3042
        %v3044 = vpop.f32.mrb[0].mxu0
        %3045 = vmatprep.mubr.f32.mxu0 0.0
        %3046 = vmatmul.mubr.f32.gmra.mrb[0].mxu0 %v2044
        %v3047 = vpop.f32.mrb[0].mxu0
        %v3048 = vadd.f32 %v2829, %v3047
        %v3049 = vpop.f32.mrb[0].mxu0
        %3050 = vmatprep.mubr.f32.mxu0 0.0
        %3051 = vmatmul.mubr.f32.gmra.mrb[0].mxu0 %v2045
        %v3052 = vpop.f32.mrb[0].mxu0
        %v3053 = vadd.f32 %v2829, %v3052
        %v3054 = vpop.f32.mrb[0].mxu0
        %3055 = vmatprep.mubr.f32.mxu0 0.0
        %3056 = vmatmul.mubr.f32.gmra.mrb[0].mxu0 %v2046
        %v3057 = vpop.f32.mrb[0].mxu0
        %v3058 = vadd.f32 %v2829, %v3057
        %v3059 = vpop.f32.mrb[0].mxu0
        %3060 = vmatprep.mubr.f32.mxu0 0.0
        %3061 = vmatmul.mubr.f32.gmra.mrb[0].mxu0 %v2047
        %v3062 = vpop.f32.mrb[0].mxu0
        %v3063 = vadd.f32 %v2829, %v3062
        %v3064 = vpop.f32.mrb[0].mxu0
        %3065 = vmatprep.mubr.f32.mxu0 0.0
        %3066 = vmatmul.mubr.f32.gmra.mrb[0].mxu0 %v2048
        %v3067 = vpop.f32.mrb[0].mxu0
        %v3068 = vadd.f32 %v2829, %v3067
        %v3069 = vpop.f32.mrb[0].mxu0
        %3070 = vmatprep.mubr.f32.mxu0 0.0
        %3071 = vmatmul.mubr.f32.gmra.mrb[0].mxu0 %v2049
        %v3072 = vpop.f32.mrb[0].mxu0
        %v3073 = vadd.f32 %v2829, %v3072
        %v3074 = vpop.f32.mrb[0].mxu0
        %3075 = vmatprep.mubr.f32.mxu0 0.0
        %3076 = vmatmul.mubr.f32.gmra.mrb[0].mxu0 %v2050
        %v3077 = vpop.f32.mrb[0].mxu0
        %v3078 = vadd.f32 %v2829, %v3077
        %v3079 = vpop.f32.mrb[0].mxu0
        %3080 = vmatprep.mubr.f32.mxu0 0.0
        %3081 = vmatmul.mubr.f32.gmra.mrb[0].mxu0 %v2051
        %v3082 = vpop.f32.mrb[0].mxu0
        %v3083 = vadd.f32 %v2829, %v3082
        %v3084 = vpop.f32.mrb[0].mxu0
        %3085 = vmatprep.mubr.f32.mxu0 0.0
        %3086 = vmatmul.mubr.f32.gmra.mrb[0].mxu0 %v2052
        %v3087 = vpop.f32.mrb[0].mxu0
        %v3088 = vadd.f32 %v2829, %v3087
        %v3089 = vpop.f32.mrb[0].mxu0
        %3090 = vmatprep.mubr.f32.mxu0 0.0
        %3091 = vmatmul.mubr.f32.gmra.mrb[0].mxu0 %v2053
        %v3092 = vpop.f32.mrb[0].mxu0
        %v3093 = vadd.f32 %v2829, %v3092
        %v3094 = vpop.f32.mrb[0].mxu0
        %3095 = vmatprep.mubr.f32.mxu0 0.0
        %3096 = vmatmul.mubr.f32.gmra.mrb[0].mxu0 %v2054
        %v3097 = vpop.f32.mrb[0].mxu0
        %v3098 = vadd.f32 %v2829, %v3097
        %v3099 = vpop.f32.mrb[0].mxu0
        %3100 = vmatprep.mubr.f32.mxu0 0.0
        %3101 = vmatmul.mubr.f32.gmra.mrb[0].mxu0 %v2055
        %v3102 = vpop.f32.mrb[0].mxu0
        %v3103 = vadd.f32 %v2829, %v3102
        %v3104 = vpop.f32.mrb[0].mxu0
        %3105 = vmatprep.mubr.f32.mxu0 0.0
        %3106 = vmatmul.mubr.f32.gmra.mrb[0].mxu0 %v2056
        %v3107 = vpop.f32.mrb[0].mxu0
        %v3108 = vadd.f32 %v2829, %v3107
        %v3109 = vpop.f32.mrb[0].mxu0
        %3110 = vmatprep.mubr.f32.mxu0 0.0
        %3111 = vmatmul.mubr.f32.gmra.mrb[0].mxu0 %v2057
        %v3112 = vpop.f32.mrb[0].mxu0
        %v3113 = vadd.f32 %v2829, %v3112
        %v3114 = vpop.f32.mrb[0].mxu0
        %3115 = vmatprep.mubr.f32.mxu0 0.0
        %3116 = vmatmul.mubr.f32.gmra.mrb[0].mxu0 %v2058
        %v3117 = vpop.f32.mrb[0].mxu0
        %v3118 = vadd.f32 %v2829, %v3117
        %v3119 = vpop.f32.mrb[0].mxu0
        %3120 = vmatprep.mubr.f32.mxu0 0.0
        %3121 = vmatmul.mubr.f32.gmra.mrb[0].mxu0 %v2059
        %v3122 = vpop.f32.mrb[0].mxu0
        %v3123 = vadd.f32 %v2829, %v3122
        %v3124 = vpop.f32.mrb[0].mxu0
        %3125 = vmatprep.mubr.f32.mxu0 0.0
        %3126 = vmatmul.mubr.f32.gmra.mrb[0].mxu0 %v2060
        %v3127 = vpop.f32.mrb[0].mxu0
        %v3128 = vadd.f32 %v2829, %v3127
        %v3129 = vpop.f32.mrb[0].mxu0
        %3130 = vmatprep.mubr.f32.mxu0 0.0
        %3131 = vmatmul.mubr.f32.gmra.mrb[0].mxu0 %v2061
        %v3132 = vpop.f32.mrb[0].mxu0
        %v3133 = vadd.f32 %v2829, %v3132
        %v3134 = vpop.f32.mrb[0].mxu0
        %3135 = vmatprep.mubr.f32.mxu0 0.0
        %3136 = vmatmul.mubr.f32.gmra.mrb[0].mxu0 %v2062
        %v3137 = vpop.f32.mrb[0].mxu0
        %v3138 = vadd.f32 %v2829, %v3137
        %v3139 = vpop.f32.mrb[0].mxu0
        %3140 = vmatprep.mubr.f32.mxu0 0.0
        %3141 = vmatmul.mubr.f32.gmra.mrb[0].mxu0 %v2063
        %v3142 = vpop.f32.mrb[0].mxu0
        %v3143 = vadd.f32 %v2829, %v3142
        %v3144 = vpop.f32.mrb[0].mxu0
        %3145 = vmatprep.mubr.f32.mxu0 0.0
        %3146 = vmatmul.mubr.f32.gmra.mrb[0].mxu0 %v2064
        %v3147 = vpop.f32.mrb[0].mxu0
        %v3148 = vadd.f32 %v2829, %v3147
        %v3149 = vpop.f32.mrb[0].mxu0
        %3150 = vmatprep.mubr.f32.mxu0 0.0
        %3151 = vmatmul.mubr.f32.gmra.mrb[0].mxu0 %v2065
        %v3152 = vpop.f32.mrb[0].mxu0
        %v3153 = vadd.f32 %v2829, %v3152
        %v3154 = vpop.f32.mrb[0].mxu0
        %3155 = vmatprep.mubr.f32.mxu0 0.0
        %3156 = vmatmul.mubr.f32.gmra.mrb[0].mxu0 %v2066
        %v3157 = vpop.f32.mrb[0].mxu0
        %v3158 = vadd.f32 %v2829, %v3157
        %v3159 = vpop.f32.mrb[0].mxu0
        %3160 = vmatprep.mubr.f32.mxu0 0.0
        %3161 = vmatmul.mubr.f32.gmra.mrb[0].mxu0 %v2067
        %v3162 = vpop.f32.mrb[0].mxu0
        %v3163 = vadd.f32 %v2829, %v3162
        %v3164 = vpop.f32.mrb[0].mxu0
        %3165 = vmatprep.mubr.f32.mxu0 0.0
        %3166 = vmatmul.mubr.f32.gmra.mrb[0].mxu0 %v2068
        %v3167 = vpop.f32.mrb[0].mxu0
        %v3168 = vadd.f32 %v2829, %v3167
        %v3169 = vpop.f32.mrb[0].mxu0
        %3170 = vmatprep.mubr.f32.mxu0 0.0
        %3171 = vmatmul.mubr.f32.gmra.mrb[0].mxu0 %v2069
        %v3172 = vpop.f32.mrb[0].mxu0
        %v3173 = vadd.f32 %v2829, %v3172
        %v3174 = vpop.f32.mrb[0].mxu0
        %3175 = vmatprep.mubr.f32.mxu0 0.0
        %3176 = vmatmul.mubr.f32.gmra.mrb[0].mxu0 %v2070
        %v3177 = vpop.f32.mrb[0].mxu0
        %v3178 = vadd.f32 %v2829, %v3177
        %v3179 = vpop.f32.mrb[0].mxu0
        %3180 = vmatprep.mubr.f32.mxu0 0.0
        %3181 = vmatmul.mubr.f32.gmra.mrb[0].mxu0 %v2071
        %v3182 = vpop.f32.mrb[0].mxu0
        %v3183 = vadd.f32 %v2829, %v3182
        %v3184 = vpop.f32.mrb[0].mxu0
        %3185 = vmatprep.mubr.f32.mxu0 0.0
        %3186 = vmatmul.mubr.f32.gmra.mrb[0].mxu0 %v2072
        %v3187 = vpop.f32.mrb[0].mxu0
        %v3188 = vadd.f32 %v2829, %v3187
        %v3189 = vpop.f32.mrb[0].mxu0
        %3190 = vmatprep.mubr.f32.mxu0 0.0
        %3191 = vmatmul.mubr.f32.gmra.mrb[0].mxu0 %v2073
        %v3192 = vpop.f32.mrb[0].mxu0
        %v3193 = vadd.f32 %v2829, %v3192
        %v3194 = vpop.f32.mrb[0].mxu0
        %3195 = vmatprep.mubr.f32.mxu0 0.0
        %3196 = vmatmul.mubr.f32.gmra.mrb[0].mxu0 %v2074
        %v3197 = vpop.f32.mrb[0].mxu0
        %v3198 = vadd.f32 %v2829, %v3197
        %v3199 = vpop.f32.mrb[0].mxu0
        %3200 = vmatprep.mubr.f32.mxu0 0.0
        %3201 = vmatmul.mubr.f32.gmra.mrb[0].mxu0 %v2075
        %v3202 = vpop.f32.mrb[0].mxu0
        %v3203 = vadd.f32 %v2829, %v3202
        %v3204 = vpop.f32.mrb[0].mxu0
        %3205 = vmatprep.mubr.f32.mxu0 0.0
        %3206 = vmatmul.mubr.f32.gmra.mrb[0].mxu0 %v2076
        %v3207 = vpop.f32.mrb[0].mxu0
        %v3208 = vadd.f32 %v2829, %v3207
        %v3209 = vpop.f32.mrb[0].mxu0
        %3210 = vmatprep.mubr.f32.mxu0 0.0
        %3211 = vmatmul.mubr.f32.gmra.mrb[0].mxu0 %v2077
        %v3212 = vpop.f32.mrb[0].mxu0
        %v3213 = vadd.f32 %v2829, %v3212
        %v3214 = vpop.f32.mrb[0].mxu0
        %3215 = vdwg.mxu0
        %s3216 = scalar_lea.vmem [#allocation8], 256
        %v3217 = vld [vmem:[%s3216] sm:$0xff]
        %v3218 = vld [vmem:[%s3216 + $0x8] sm:$0xff]
        %v3219 = vld [vmem:[%s3216 + $0x10] sm:$0xff]
        %v3220 = vld [vmem:[%s3216 + $0x18] sm:$0xff]
        %v3221 = vld [vmem:[%s3216 + $0x20] sm:$0xff]
        %v3222 = vld [vmem:[%s3216 + $0x28] sm:$0xff]
        %v3223 = vld [vmem:[%s3216 + $0x30] sm:$0xff]
        %v3224 = vld [vmem:[%s3216 + $0x38] sm:$0xff]
        %v3225 = vld [vmem:[%s3216 + $0x40] sm:$0xff]
        %v3226 = vld [vmem:[%s3216 + $0x48] sm:$0xff]
        %v3227 = vld [vmem:[%s3216 + $0x50] sm:$0xff]
        %v3228 = vld [vmem:[%s3216 + $0x58] sm:$0xff]
        %v3229 = vld [vmem:[%s3216 + $0x60] sm:$0xff]
        %v3230 = vld [vmem:[%s3216 + $0x68] sm:$0xff]
        %v3231 = vld [vmem:[%s3216 + $0x70] sm:$0xff]
        %v3232 = vld [vmem:[%s3216 + $0x78] sm:$0xff]
        %s3233 = scalar_lea.vmem %s5, 2
        %v3234 = vld [vmem:[%s3233] sm:$0x1]
        %v3236 = vlaneseq
        %v3237 = vshrl.u32 %v3236, 7
        %v3238 = vsub.s32 0, %v3237
        %v3239 = vrot.slane %v3234, %v3238
        %3241 = vmatprep.subr.mxu0 0.0
        %3242 = vmatpush1.msra.mxu0 %v3217
        %3243 = vmatprep.subr.mxu0 0.0
        %3244 = vmatpush1.msra.mxu0 %v3218
        %3245 = vmatprep.subr.mxu0 0.0
        %3246 = vmatpush1.msra.mxu0 %v3219
        %3247 = vmatprep.subr.mxu0 0.0
        %3248 = vmatpush1.msra.mxu0 %v3220
        %3249 = vmatprep.subr.mxu0 0.0
        %3250 = vmatpush1.msra.mxu0 %v3221
        %3251 = vmatprep.subr.mxu0 0.0
        %3252 = vmatpush1.msra.mxu0 %v3222
        %3253 = vmatprep.subr.mxu0 0.0
        %3254 = vmatpush1.msra.mxu0 %v3223
        %3255 = vmatprep.subr.mxu0 0.0
        %3256 = vmatpush1.msra.mxu0 %v3224
        %3257 = vmatprep.subr.mxu0 0.0
        %3258 = vmatpush1.msra.mxu0 %v3225
        %3259 = vmatprep.subr.mxu0 0.0
        %3260 = vmatpush1.msra.mxu0 %v3226
        %3261 = vmatprep.subr.mxu0 0.0
        %3262 = vmatpush1.msra.mxu0 %v3227
        %3263 = vmatprep.subr.mxu0 0.0
        %3264 = vmatpush1.msra.mxu0 %v3228
        %3265 = vmatprep.subr.mxu0 0.0
        %3266 = vmatpush1.msra.mxu0 %v3229
        %3267 = vmatprep.subr.mxu0 0.0
        %3268 = vmatpush1.msra.mxu0 %v3230
        %3269 = vmatprep.subr.mxu0 0.0
        %3270 = vmatpush1.msra.mxu0 %v3231
        %3271 = vmatprep.subr.mxu0 0.0
        %3272 = vmatpush1.msra.mxu0 %v3232
        %3273 = vmatprep.subr.mxu0 0.0
        %3274 = vmatpush1.msra.mxu0 0.0
        %3275 = vmatprep.subr.mxu0 0.0
        %3276 = vmatpush1.msra.mxu0 0.0
        %3277 = vmatprep.subr.mxu0 0.0
        %3278 = vmatpush1.msra.mxu0 0.0
        %3279 = vmatprep.subr.mxu0 0.0
        %3280 = vmatpush1.msra.mxu0 0.0
        %3281 = vmatprep.subr.mxu0 0.0
        %3282 = vmatpush1.msra.mxu0 0.0
        %3283 = vmatprep.subr.mxu0 0.0
        %3284 = vmatpush1.msra.mxu0 0.0
        %3285 = vmatprep.subr.mxu0 0.0
        %3286 = vmatpush1.msra.mxu0 0.0
        %3287 = vmatprep.subr.mxu0 0.0
        %3288 = vmatpush1.msra.mxu0 0.0
        %3289 = vmatprep.subr.mxu0 0.0
        %3290 = vmatpush1.msra.mxu0 0.0
        %3291 = vmatprep.subr.mxu0 0.0
        %3292 = vmatpush1.msra.mxu0 0.0
        %3293 = vmatprep.subr.mxu0 0.0
        %3294 = vmatpush1.msra.mxu0 0.0
        %3295 = vmatprep.subr.mxu0 0.0
        %3296 = vmatpush1.msra.mxu0 0.0
        %3297 = vmatprep.subr.mxu0 0.0
        %3298 = vmatpush1.msra.mxu0 0.0
        %3299 = vmatprep.subr.mxu0 0.0
        %3300 = vmatpush1.msra.mxu0 0.0
        %3301 = vmatprep.subr.mxu0 0.0
        %3302 = vmatpush1.msra.mxu0 0.0
        %3303 = vmatprep.subr.mxu0 0.0
        %3304 = vmatpush1.msra.mxu0 0.0
        %3305 = vmatprep.mubr.f32.mxu0 0.0
        %3306 = vmatmul.mubr.f32.gmra.mrb[0].mxu0 %v2270
        %v3307 = vpop.f32.mrb[0].mxu0
        %v3308 = vadd.f32 %v3239, %v3307
        %v3309 = vpop.f32.mrb[0].mxu0
        %3310 = vmatprep.mubr.f32.mxu0 0.0
        %3311 = vmatmul.mubr.f32.gmra.mrb[0].mxu0 %v2271
        %v3312 = vpop.f32.mrb[0].mxu0
        %v3313 = vadd.f32 %v3239, %v3312
        %v3314 = vpop.f32.mrb[0].mxu0
        %3315 = vmatprep.mubr.f32.mxu0 0.0
        %3316 = vmatmul.mubr.f32.gmra.mrb[0].mxu0 %v2272
        %v3317 = vpop.f32.mrb[0].mxu0
        %v3318 = vadd.f32 %v3239, %v3317
        %v3319 = vpop.f32.mrb[0].mxu0
        %3320 = vmatprep.mubr.f32.mxu0 0.0
        %3321 = vmatmul.mubr.f32.gmra.mrb[0].mxu0 %v2273
        %v3322 = vpop.f32.mrb[0].mxu0
        %v3323 = vadd.f32 %v3239, %v3322
        %v3324 = vpop.f32.mrb[0].mxu0
        %3325 = vmatprep.mubr.f32.mxu0 0.0
        %3326 = vmatmul.mubr.f32.gmra.mrb[0].mxu0 %v2274
        %v3327 = vpop.f32.mrb[0].mxu0
        %v3328 = vadd.f32 %v3239, %v3327
        %v3329 = vpop.f32.mrb[0].mxu0
        %3330 = vmatprep.mubr.f32.mxu0 0.0
        %3331 = vmatmul.mubr.f32.gmra.mrb[0].mxu0 %v2275
        %v3332 = vpop.f32.mrb[0].mxu0
        %v3333 = vadd.f32 %v3239, %v3332
        %v3334 = vpop.f32.mrb[0].mxu0
        %3335 = vmatprep.mubr.f32.mxu0 0.0
        %3336 = vmatmul.mubr.f32.gmra.mrb[0].mxu0 %v2276
        %v3337 = vpop.f32.mrb[0].mxu0
        %v3338 = vadd.f32 %v3239, %v3337
        %v3339 = vpop.f32.mrb[0].mxu0
        %3340 = vmatprep.mubr.f32.mxu0 0.0
        %3341 = vmatmul.mubr.f32.gmra.mrb[0].mxu0 %v2277
        %v3342 = vpop.f32.mrb[0].mxu0
        %v3343 = vadd.f32 %v3239, %v3342
        %v3344 = vpop.f32.mrb[0].mxu0
        %3345 = vmatprep.mubr.f32.mxu0 0.0
        %3346 = vmatmul.mubr.f32.gmra.mrb[0].mxu0 %v2278
        %v3347 = vpop.f32.mrb[0].mxu0
        %v3348 = vadd.f32 %v3239, %v3347
        %v3349 = vpop.f32.mrb[0].mxu0
        %3350 = vmatprep.mubr.f32.mxu0 0.0
        %3351 = vmatmul.mubr.f32.gmra.mrb[0].mxu0 %v2279
        %v3352 = vpop.f32.mrb[0].mxu0
        %v3353 = vadd.f32 %v3239, %v3352
        %v3354 = vpop.f32.mrb[0].mxu0
        %3355 = vmatprep.mubr.f32.mxu0 0.0
        %3356 = vmatmul.mubr.f32.gmra.mrb[0].mxu0 %v2280
        %v3357 = vpop.f32.mrb[0].mxu0
        %v3358 = vadd.f32 %v3239, %v3357
        %v3359 = vpop.f32.mrb[0].mxu0
        %3360 = vmatprep.mubr.f32.mxu0 0.0
        %3361 = vmatmul.mubr.f32.gmra.mrb[0].mxu0 %v2281
        %v3362 = vpop.f32.mrb[0].mxu0
        %v3363 = vadd.f32 %v3239, %v3362
        %v3364 = vpop.f32.mrb[0].mxu0
        %3365 = vmatprep.mubr.f32.mxu0 0.0
        %3366 = vmatmul.mubr.f32.gmra.mrb[0].mxu0 %v2282
        %v3367 = vpop.f32.mrb[0].mxu0
        %v3368 = vadd.f32 %v3239, %v3367
        %v3369 = vpop.f32.mrb[0].mxu0
        %3370 = vmatprep.mubr.f32.mxu0 0.0
        %3371 = vmatmul.mubr.f32.gmra.mrb[0].mxu0 %v2283
        %v3372 = vpop.f32.mrb[0].mxu0
        %v3373 = vadd.f32 %v3239, %v3372
        %v3374 = vpop.f32.mrb[0].mxu0
        %3375 = vmatprep.mubr.f32.mxu0 0.0
        %3376 = vmatmul.mubr.f32.gmra.mrb[0].mxu0 %v2284
        %v3377 = vpop.f32.mrb[0].mxu0
        %v3378 = vadd.f32 %v3239, %v3377
        %v3379 = vpop.f32.mrb[0].mxu0
        %3380 = vmatprep.mubr.f32.mxu0 0.0
        %3381 = vmatmul.mubr.f32.gmra.mrb[0].mxu0 %v2285
        %v3382 = vpop.f32.mrb[0].mxu0
        %v3383 = vadd.f32 %v3239, %v3382
        %v3384 = vpop.f32.mrb[0].mxu0
        %3385 = vmatprep.mubr.f32.mxu0 0.0
        %3386 = vmatmul.mubr.f32.gmra.mrb[0].mxu0 %v2286
        %v3387 = vpop.f32.mrb[0].mxu0
        %v3388 = vadd.f32 %v3239, %v3387
        %v3389 = vpop.f32.mrb[0].mxu0
        %3390 = vmatprep.mubr.f32.mxu0 0.0
        %3391 = vmatmul.mubr.f32.gmra.mrb[0].mxu0 %v2287
        %v3392 = vpop.f32.mrb[0].mxu0
        %v3393 = vadd.f32 %v3239, %v3392
        %v3394 = vpop.f32.mrb[0].mxu0
        %3395 = vmatprep.mubr.f32.mxu0 0.0
        %3396 = vmatmul.mubr.f32.gmra.mrb[0].mxu0 %v2288
        %v3397 = vpop.f32.mrb[0].mxu0
        %v3398 = vadd.f32 %v3239, %v3397
        %v3399 = vpop.f32.mrb[0].mxu0
        %3400 = vmatprep.mubr.f32.mxu0 0.0
        %3401 = vmatmul.mubr.f32.gmra.mrb[0].mxu0 %v2289
        %v3402 = vpop.f32.mrb[0].mxu0
        %v3403 = vadd.f32 %v3239, %v3402
        %v3404 = vpop.f32.mrb[0].mxu0
        %3405 = vmatprep.mubr.f32.mxu0 0.0
        %3406 = vmatmul.mubr.f32.gmra.mrb[0].mxu0 %v2290
        %v3407 = vpop.f32.mrb[0].mxu0
        %v3408 = vadd.f32 %v3239, %v3407
        %v3409 = vpop.f32.mrb[0].mxu0
        %3410 = vmatprep.mubr.f32.mxu0 0.0
        %3411 = vmatmul.mubr.f32.gmra.mrb[0].mxu0 %v2291
        %v3412 = vpop.f32.mrb[0].mxu0
        %v3413 = vadd.f32 %v3239, %v3412
        %v3414 = vpop.f32.mrb[0].mxu0
        %3415 = vmatprep.mubr.f32.mxu0 0.0
        %3416 = vmatmul.mubr.f32.gmra.mrb[0].mxu0 %v2292
        %v3417 = vpop.f32.mrb[0].mxu0
        %v3418 = vadd.f32 %v3239, %v3417
        %v3419 = vpop.f32.mrb[0].mxu0
        %3420 = vmatprep.mubr.f32.mxu0 0.0
        %3421 = vmatmul.mubr.f32.gmra.mrb[0].mxu0 %v2293
        %v3422 = vpop.f32.mrb[0].mxu0
        %v3423 = vadd.f32 %v3239, %v3422
        %v3424 = vpop.f32.mrb[0].mxu0
        %3425 = vmatprep.mubr.f32.mxu0 0.0
        %3426 = vmatmul.mubr.f32.gmra.mrb[0].mxu0 %v2294
        %v3427 = vpop.f32.mrb[0].mxu0
        %v3428 = vadd.f32 %v3239, %v3427
        %v3429 = vpop.f32.mrb[0].mxu0
        %3430 = vmatprep.mubr.f32.mxu0 0.0
        %3431 = vmatmul.mubr.f32.gmra.mrb[0].mxu0 %v2295
        %v3432 = vpop.f32.mrb[0].mxu0
        %v3433 = vadd.f32 %v3239, %v3432
        %v3434 = vpop.f32.mrb[0].mxu0
        %3435 = vmatprep.mubr.f32.mxu0 0.0
        %3436 = vmatmul.mubr.f32.gmra.mrb[0].mxu0 %v2296
        %v3437 = vpop.f32.mrb[0].mxu0
        %v3438 = vadd.f32 %v3239, %v3437
        %v3439 = vpop.f32.mrb[0].mxu0
        %3440 = vmatprep.mubr.f32.mxu0 0.0
        %3441 = vmatmul.mubr.f32.gmra.mrb[0].mxu0 %v2297
        %v3442 = vpop.f32.mrb[0].mxu0
        %v3443 = vadd.f32 %v3239, %v3442
        %v3444 = vpop.f32.mrb[0].mxu0
        %3445 = vmatprep.mubr.f32.mxu0 0.0
        %3446 = vmatmul.mubr.f32.gmra.mrb[0].mxu0 %v2298
        %v3447 = vpop.f32.mrb[0].mxu0
        %v3448 = vadd.f32 %v3239, %v3447
        %v3449 = vpop.f32.mrb[0].mxu0
        %3450 = vmatprep.mubr.f32.mxu0 0.0
        %3451 = vmatmul.mubr.f32.gmra.mrb[0].mxu0 %v2299
        %v3452 = vpop.f32.mrb[0].mxu0
        %v3453 = vadd.f32 %v3239, %v3452
        %v3454 = vpop.f32.mrb[0].mxu0
        %3455 = vmatprep.mubr.f32.mxu0 0.0
        %3456 = vmatmul.mubr.f32.gmra.mrb[0].mxu0 %v2300
        %v3457 = vpop.f32.mrb[0].mxu0
        %v3458 = vadd.f32 %v3239, %v3457
        %v3459 = vpop.f32.mrb[0].mxu0
        %3460 = vmatprep.mubr.f32.mxu0 0.0
        %3461 = vmatmul.mubr.f32.gmra.mrb[0].mxu0 %v2301
        %v3462 = vpop.f32.mrb[0].mxu0
        %v3463 = vadd.f32 %v3239, %v3462
        %v3464 = vpop.f32.mrb[0].mxu0
        %3465 = vmatprep.mubr.f32.mxu0 0.0
        %3466 = vmatmul.mubr.f32.gmra.mrb[0].mxu0 %v2302
        %v3467 = vpop.f32.mrb[0].mxu0
        %v3468 = vadd.f32 %v3239, %v3467
        %v3469 = vpop.f32.mrb[0].mxu0
        %3470 = vmatprep.mubr.f32.mxu0 0.0
        %3471 = vmatmul.mubr.f32.gmra.mrb[0].mxu0 %v2303
        %v3472 = vpop.f32.mrb[0].mxu0
        %v3473 = vadd.f32 %v3239, %v3472
        %v3474 = vpop.f32.mrb[0].mxu0
        %3475 = vmatprep.mubr.f32.mxu0 0.0
        %3476 = vmatmul.mubr.f32.gmra.mrb[0].mxu0 %v2304
        %v3477 = vpop.f32.mrb[0].mxu0
        %v3478 = vadd.f32 %v3239, %v3477
        %v3479 = vpop.f32.mrb[0].mxu0
        %3480 = vmatprep.mubr.f32.mxu0 0.0
        %3481 = vmatmul.mubr.f32.gmra.mrb[0].mxu0 %v2305
        %v3482 = vpop.f32.mrb[0].mxu0
        %v3483 = vadd.f32 %v3239, %v3482
        %v3484 = vpop.f32.mrb[0].mxu0
        %3485 = vmatprep.mubr.f32.mxu0 0.0
        %3486 = vmatmul.mubr.f32.gmra.mrb[0].mxu0 %v2306
        %v3487 = vpop.f32.mrb[0].mxu0
        %v3488 = vadd.f32 %v3239, %v3487
        %v3489 = vpop.f32.mrb[0].mxu0
        %3490 = vmatprep.mubr.f32.mxu0 0.0
        %3491 = vmatmul.mubr.f32.gmra.mrb[0].mxu0 %v2307
        %v3492 = vpop.f32.mrb[0].mxu0
        %v3493 = vadd.f32 %v3239, %v3492
        %v3494 = vpop.f32.mrb[0].mxu0
        %3495 = vmatprep.mubr.f32.mxu0 0.0
        %3496 = vmatmul.mubr.f32.gmra.mrb[0].mxu0 %v2308
        %v3497 = vpop.f32.mrb[0].mxu0
        %v3498 = vadd.f32 %v3239, %v3497
        %v3499 = vpop.f32.mrb[0].mxu0
        %3500 = vmatprep.mubr.f32.mxu0 0.0
        %3501 = vmatmul.mubr.f32.gmra.mrb[0].mxu0 %v2309
        %v3502 = vpop.f32.mrb[0].mxu0
        %v3503 = vadd.f32 %v3239, %v3502
        %v3504 = vpop.f32.mrb[0].mxu0
        %3505 = vmatprep.mubr.f32.mxu0 0.0
        %3506 = vmatmul.mubr.f32.gmra.mrb[0].mxu0 %v2310
        %v3507 = vpop.f32.mrb[0].mxu0
        %v3508 = vadd.f32 %v3239, %v3507
        %v3509 = vpop.f32.mrb[0].mxu0
        %3510 = vmatprep.mubr.f32.mxu0 0.0
        %3511 = vmatmul.mubr.f32.gmra.mrb[0].mxu0 %v2311
        %v3512 = vpop.f32.mrb[0].mxu0
        %v3513 = vadd.f32 %v3239, %v3512
        %v3514 = vpop.f32.mrb[0].mxu0
        %3515 = vmatprep.mubr.f32.mxu0 0.0
        %3516 = vmatmul.mubr.f32.gmra.mrb[0].mxu0 %v2312
        %v3517 = vpop.f32.mrb[0].mxu0
        %v3518 = vadd.f32 %v3239, %v3517
        %v3519 = vpop.f32.mrb[0].mxu0
        %3520 = vmatprep.mubr.f32.mxu0 0.0
        %3521 = vmatmul.mubr.f32.gmra.mrb[0].mxu0 %v2313
        %v3522 = vpop.f32.mrb[0].mxu0
        %v3523 = vadd.f32 %v3239, %v3522
        %v3524 = vpop.f32.mrb[0].mxu0
        %3525 = vmatprep.mubr.f32.mxu0 0.0
        %3526 = vmatmul.mubr.f32.gmra.mrb[0].mxu0 %v2314
        %v3527 = vpop.f32.mrb[0].mxu0
        %v3528 = vadd.f32 %v3239, %v3527
        %v3529 = vpop.f32.mrb[0].mxu0
        %3530 = vmatprep.mubr.f32.mxu0 0.0
        %3531 = vmatmul.mubr.f32.gmra.mrb[0].mxu0 %v2315
        %v3532 = vpop.f32.mrb[0].mxu0
        %v3533 = vadd.f32 %v3239, %v3532
        %v3534 = vpop.f32.mrb[0].mxu0
        %3535 = vmatprep.mubr.f32.mxu0 0.0
        %3536 = vmatmul.mubr.f32.gmra.mrb[0].mxu0 %v2316
        %v3537 = vpop.f32.mrb[0].mxu0
        %v3538 = vadd.f32 %v3239, %v3537
        %v3539 = vpop.f32.mrb[0].mxu0
        %3540 = vmatprep.mubr.f32.mxu0 0.0
        %3541 = vmatmul.mubr.f32.gmra.mrb[0].mxu0 %v2317
        %v3542 = vpop.f32.mrb[0].mxu0
        %v3543 = vadd.f32 %v3239, %v3542
        %v3544 = vpop.f32.mrb[0].mxu0
        %3545 = vmatprep.mubr.f32.mxu0 0.0
        %3546 = vmatmul.mubr.f32.gmra.mrb[0].mxu0 %v2318
        %v3547 = vpop.f32.mrb[0].mxu0
        %v3548 = vadd.f32 %v3239, %v3547
        %v3549 = vpop.f32.mrb[0].mxu0
        %3550 = vmatprep.mubr.f32.mxu0 0.0
        %3551 = vmatmul.mubr.f32.gmra.mrb[0].mxu0 %v2319
        %v3552 = vpop.f32.mrb[0].mxu0
        %v3553 = vadd.f32 %v3239, %v3552
        %v3554 = vpop.f32.mrb[0].mxu0
        %3555 = vmatprep.mubr.f32.mxu0 0.0
        %3556 = vmatmul.mubr.f32.gmra.mrb[0].mxu0 %v2320
        %v3557 = vpop.f32.mrb[0].mxu0
        %v3558 = vadd.f32 %v3239, %v3557
        %v3559 = vpop.f32.mrb[0].mxu0
        %3560 = vmatprep.mubr.f32.mxu0 0.0
        %3561 = vmatmul.mubr.f32.gmra.mrb[0].mxu0 %v2321
        %v3562 = vpop.f32.mrb[0].mxu0
        %v3563 = vadd.f32 %v3239, %v3562
        %v3564 = vpop.f32.mrb[0].mxu0
        %3565 = vmatprep.mubr.f32.mxu0 0.0
        %3566 = vmatmul.mubr.f32.gmra.mrb[0].mxu0 %v2322
        %v3567 = vpop.f32.mrb[0].mxu0
        %v3568 = vadd.f32 %v3239, %v3567
        %v3569 = vpop.f32.mrb[0].mxu0
        %3570 = vmatprep.mubr.f32.mxu0 0.0
        %3571 = vmatmul.mubr.f32.gmra.mrb[0].mxu0 %v2323
        %v3572 = vpop.f32.mrb[0].mxu0
        %v3573 = vadd.f32 %v3239, %v3572
        %v3574 = vpop.f32.mrb[0].mxu0
        %3575 = vmatprep.mubr.f32.mxu0 0.0
        %3576 = vmatmul.mubr.f32.gmra.mrb[0].mxu0 %v2324
        %v3577 = vpop.f32.mrb[0].mxu0
        %v3578 = vadd.f32 %v3239, %v3577
        %v3579 = vpop.f32.mrb[0].mxu0
        %3580 = vmatprep.mubr.f32.mxu0 0.0
        %3581 = vmatmul.mubr.f32.gmra.mrb[0].mxu0 %v2325
        %v3582 = vpop.f32.mrb[0].mxu0
        %v3583 = vadd.f32 %v3239, %v3582
        %v3584 = vpop.f32.mrb[0].mxu0
        %3585 = vmatprep.mubr.f32.mxu0 0.0
        %3586 = vmatmul.mubr.f32.gmra.mrb[0].mxu0 %v2326
        %v3587 = vpop.f32.mrb[0].mxu0
        %v3588 = vadd.f32 %v3239, %v3587
        %v3589 = vpop.f32.mrb[0].mxu0
        %3590 = vmatprep.mubr.f32.mxu0 0.0
        %3591 = vmatmul.mubr.f32.gmra.mrb[0].mxu0 %v2327
        %v3592 = vpop.f32.mrb[0].mxu0
        %v3593 = vadd.f32 %v3239, %v3592
        %v3594 = vpop.f32.mrb[0].mxu0
        %3595 = vmatprep.mubr.f32.mxu0 0.0
        %3596 = vmatmul.mubr.f32.gmra.mrb[0].mxu0 %v2328
        %v3597 = vpop.f32.mrb[0].mxu0
        %v3598 = vadd.f32 %v3239, %v3597
        %v3599 = vpop.f32.mrb[0].mxu0
        %3600 = vmatprep.mubr.f32.mxu0 0.0
        %3601 = vmatmul.mubr.f32.gmra.mrb[0].mxu0 %v2329
        %v3602 = vpop.f32.mrb[0].mxu0
        %v3603 = vadd.f32 %v3239, %v3602
        %v3604 = vpop.f32.mrb[0].mxu0
        %3605 = vmatprep.mubr.f32.mxu0 0.0
        %3606 = vmatmul.mubr.f32.gmra.mrb[0].mxu0 %v2330
        %v3607 = vpop.f32.mrb[0].mxu0
        %v3608 = vadd.f32 %v3239, %v3607
        %v3609 = vpop.f32.mrb[0].mxu0
        %3610 = vmatprep.mubr.f32.mxu0 0.0
        %3611 = vmatmul.mubr.f32.gmra.mrb[0].mxu0 %v2331
        %v3612 = vpop.f32.mrb[0].mxu0
        %v3613 = vadd.f32 %v3239, %v3612
        %v3614 = vpop.f32.mrb[0].mxu0
        %3615 = vmatprep.mubr.f32.mxu0 0.0
        %3616 = vmatmul.mubr.f32.gmra.mrb[0].mxu0 %v2332
        %v3617 = vpop.f32.mrb[0].mxu0
        %v3618 = vadd.f32 %v3239, %v3617
        %v3619 = vpop.f32.mrb[0].mxu0
        %3620 = vmatprep.mubr.f32.mxu0 0.0
        %3621 = vmatmul.mubr.f32.gmra.mrb[0].mxu0 %v2333
        %v3622 = vpop.f32.mrb[0].mxu0
        %v3623 = vadd.f32 %v3239, %v3622
        %v3624 = vpop.f32.mrb[0].mxu0
        %3625 = vdwg.mxu0
        %s3626 = scalar_lea.vmem [#allocation8], 384
        %v3627 = vld [vmem:[%s3626] sm:$0xff]
        %v3628 = vld [vmem:[%s3626 + $0x8] sm:$0xff]
        %v3629 = vld [vmem:[%s3626 + $0x10] sm:$0xff]
        %v3630 = vld [vmem:[%s3626 + $0x18] sm:$0xff]
        %v3631 = vld [vmem:[%s3626 + $0x20] sm:$0xff]
        %v3632 = vld [vmem:[%s3626 + $0x28] sm:$0xff]
        %v3633 = vld [vmem:[%s3626 + $0x30] sm:$0xff]
        %v3634 = vld [vmem:[%s3626 + $0x38] sm:$0xff]
        %v3635 = vld [vmem:[%s3626 + $0x40] sm:$0xff]
        %v3636 = vld [vmem:[%s3626 + $0x48] sm:$0xff]
        %v3637 = vld [vmem:[%s3626 + $0x50] sm:$0xff]
        %v3638 = vld [vmem:[%s3626 + $0x58] sm:$0xff]
        %v3639 = vld [vmem:[%s3626 + $0x60] sm:$0xff]
        %v3640 = vld [vmem:[%s3626 + $0x68] sm:$0xff]
        %v3641 = vld [vmem:[%s3626 + $0x70] sm:$0xff]
        %v3642 = vld [vmem:[%s3626 + $0x78] sm:$0xff]
        %s3643 = scalar_lea.vmem %s5, 3
        %v3644 = vld [vmem:[%s3643] sm:$0x1]
        %v3646 = vlaneseq
        %v3647 = vshrl.u32 %v3646, 7
        %v3648 = vsub.s32 0, %v3647
        %v3649 = vrot.slane %v3644, %v3648
        %3651 = vmatprep.subr.mxu0 0.0
        %3652 = vmatpush1.msra.mxu0 %v3627
        %3653 = vmatprep.subr.mxu0 0.0
        %3654 = vmatpush1.msra.mxu0 %v3628
        %3655 = vmatprep.subr.mxu0 0.0
        %3656 = vmatpush1.msra.mxu0 %v3629
        %3657 = vmatprep.subr.mxu0 0.0
        %3658 = vmatpush1.msra.mxu0 %v3630
        %3659 = vmatprep.subr.mxu0 0.0
        %3660 = vmatpush1.msra.mxu0 %v3631
        %3661 = vmatprep.subr.mxu0 0.0
        %3662 = vmatpush1.msra.mxu0 %v3632
        %3663 = vmatprep.subr.mxu0 0.0
        %3664 = vmatpush1.msra.mxu0 %v3633
        %3665 = vmatprep.subr.mxu0 0.0
        %3666 = vmatpush1.msra.mxu0 %v3634
        %3667 = vmatprep.subr.mxu0 0.0
        %3668 = vmatpush1.msra.mxu0 %v3635
        %3669 = vmatprep.subr.mxu0 0.0
        %3670 = vmatpush1.msra.mxu0 %v3636
        %3671 = vmatprep.subr.mxu0 0.0
        %3672 = vmatpush1.msra.mxu0 %v3637
        %3673 = vmatprep.subr.mxu0 0.0
        %3674 = vmatpush1.msra.mxu0 %v3638
        %3675 = vmatprep.subr.mxu0 0.0
        %3676 = vmatpush1.msra.mxu0 %v3639
        %3677 = vmatprep.subr.mxu0 0.0
        %3678 = vmatpush1.msra.mxu0 %v3640
        %3679 = vmatprep.subr.mxu0 0.0
        %3680 = vmatpush1.msra.mxu0 %v3641
        %3681 = vmatprep.subr.mxu0 0.0
        %3682 = vmatpush1.msra.mxu0 %v3642
        %3683 = vmatprep.subr.mxu0 0.0
        %3684 = vmatpush1.msra.mxu0 0.0
        %3685 = vmatprep.subr.mxu0 0.0
        %3686 = vmatpush1.msra.mxu0 0.0
        %3687 = vmatprep.subr.mxu0 0.0
        %3688 = vmatpush1.msra.mxu0 0.0
        %3689 = vmatprep.subr.mxu0 0.0
        %3690 = vmatpush1.msra.mxu0 0.0
        %3691 = vmatprep.subr.mxu0 0.0
        %3692 = vmatpush1.msra.mxu0 0.0
        %3693 = vmatprep.subr.mxu0 0.0
        %3694 = vmatpush1.msra.mxu0 0.0
        %3695 = vmatprep.subr.mxu0 0.0
        %3696 = vmatpush1.msra.mxu0 0.0
        %3697 = vmatprep.subr.mxu0 0.0
        %3698 = vmatpush1.msra.mxu0 0.0
        %3699 = vmatprep.subr.mxu0 0.0
        %3700 = vmatpush1.msra.mxu0 0.0
        %3701 = vmatprep.subr.mxu0 0.0
        %3702 = vmatpush1.msra.mxu0 0.0
        %3703 = vmatprep.subr.mxu0 0.0
        %3704 = vmatpush1.msra.mxu0 0.0
        %3705 = vmatprep.subr.mxu0 0.0
        %3706 = vmatpush1.msra.mxu0 0.0
        %3707 = vmatprep.subr.mxu0 0.0
        %3708 = vmatpush1.msra.mxu0 0.0
        %3709 = vmatprep.subr.mxu0 0.0
        %3710 = vmatpush1.msra.mxu0 0.0
        %3711 = vmatprep.subr.mxu0 0.0
        %3712 = vmatpush1.msra.mxu0 0.0
        %3713 = vmatprep.subr.mxu0 0.0
        %3714 = vmatpush1.msra.mxu0 0.0
        %3715 = vmatprep.mubr.f32.mxu0 0.0
        %3716 = vmatmul.mubr.f32.gmra.mrb[0].mxu0 %v2334
        %v3717 = vpop.f32.mrb[0].mxu0
        %v3718 = vadd.f32 %v3649, %v3717
        %v3719 = vpop.f32.mrb[0].mxu0
        %3720 = vmatprep.mubr.f32.mxu0 0.0
        %3721 = vmatmul.mubr.f32.gmra.mrb[0].mxu0 %v2335
        %v3722 = vpop.f32.mrb[0].mxu0
        %v3723 = vadd.f32 %v3649, %v3722
        %v3724 = vpop.f32.mrb[0].mxu0
        %3725 = vmatprep.mubr.f32.mxu0 0.0
        %3726 = vmatmul.mubr.f32.gmra.mrb[0].mxu0 %v2336
        %v3727 = vpop.f32.mrb[0].mxu0
        %v3728 = vadd.f32 %v3649, %v3727
        %v3729 = vpop.f32.mrb[0].mxu0
        %3730 = vmatprep.mubr.f32.mxu0 0.0
        %3731 = vmatmul.mubr.f32.gmra.mrb[0].mxu0 %v2337
        %v3732 = vpop.f32.mrb[0].mxu0
        %v3733 = vadd.f32 %v3649, %v3732
        %v3734 = vpop.f32.mrb[0].mxu0
        %3735 = vmatprep.mubr.f32.mxu0 0.0
        %3736 = vmatmul.mubr.f32.gmra.mrb[0].mxu0 %v2338
        %v3737 = vpop.f32.mrb[0].mxu0
        %v3738 = vadd.f32 %v3649, %v3737
        %v3739 = vpop.f32.mrb[0].mxu0
        %3740 = vmatprep.mubr.f32.mxu0 0.0
        %3741 = vmatmul.mubr.f32.gmra.mrb[0].mxu0 %v2339
        %v3742 = vpop.f32.mrb[0].mxu0
        %v3743 = vadd.f32 %v3649, %v3742
        %v3744 = vpop.f32.mrb[0].mxu0
        %3745 = vmatprep.mubr.f32.mxu0 0.0
        %3746 = vmatmul.mubr.f32.gmra.mrb[0].mxu0 %v2340
        %v3747 = vpop.f32.mrb[0].mxu0
        %v3748 = vadd.f32 %v3649, %v3747
        %v3749 = vpop.f32.mrb[0].mxu0
        %3750 = vmatprep.mubr.f32.mxu0 0.0
        %3751 = vmatmul.mubr.f32.gmra.mrb[0].mxu0 %v2341
        %v3752 = vpop.f32.mrb[0].mxu0
        %v3753 = vadd.f32 %v3649, %v3752
        %v3754 = vpop.f32.mrb[0].mxu0
        %3755 = vmatprep.mubr.f32.mxu0 0.0
        %3756 = vmatmul.mubr.f32.gmra.mrb[0].mxu0 %v2342
        %v3757 = vpop.f32.mrb[0].mxu0
        %v3758 = vadd.f32 %v3649, %v3757
        %v3759 = vpop.f32.mrb[0].mxu0
        %3760 = vmatprep.mubr.f32.mxu0 0.0
        %3761 = vmatmul.mubr.f32.gmra.mrb[0].mxu0 %v2343
        %v3762 = vpop.f32.mrb[0].mxu0
        %v3763 = vadd.f32 %v3649, %v3762
        %v3764 = vpop.f32.mrb[0].mxu0
        %3765 = vmatprep.mubr.f32.mxu0 0.0
        %3766 = vmatmul.mubr.f32.gmra.mrb[0].mxu0 %v2344
        %v3767 = vpop.f32.mrb[0].mxu0
        %v3768 = vadd.f32 %v3649, %v3767
        %v3769 = vpop.f32.mrb[0].mxu0
        %3770 = vmatprep.mubr.f32.mxu0 0.0
        %3771 = vmatmul.mubr.f32.gmra.mrb[0].mxu0 %v2345
        %v3772 = vpop.f32.mrb[0].mxu0
        %v3773 = vadd.f32 %v3649, %v3772
        %v3774 = vpop.f32.mrb[0].mxu0
        %3775 = vmatprep.mubr.f32.mxu0 0.0
        %3776 = vmatmul.mubr.f32.gmra.mrb[0].mxu0 %v2346
        %v3777 = vpop.f32.mrb[0].mxu0
        %v3778 = vadd.f32 %v3649, %v3777
        %v3779 = vpop.f32.mrb[0].mxu0
        %3780 = vmatprep.mubr.f32.mxu0 0.0
        %3781 = vmatmul.mubr.f32.gmra.mrb[0].mxu0 %v2347
        %v3782 = vpop.f32.mrb[0].mxu0
        %v3783 = vadd.f32 %v3649, %v3782
        %v3784 = vpop.f32.mrb[0].mxu0
        %3785 = vmatprep.mubr.f32.mxu0 0.0
        %3786 = vmatmul.mubr.f32.gmra.mrb[0].mxu0 %v2348
        %v3787 = vpop.f32.mrb[0].mxu0
        %v3788 = vadd.f32 %v3649, %v3787
        %v3789 = vpop.f32.mrb[0].mxu0
        %3790 = vmatprep.mubr.f32.mxu0 0.0
        %3791 = vmatmul.mubr.f32.gmra.mrb[0].mxu0 %v2349
        %v3792 = vpop.f32.mrb[0].mxu0
        %v3793 = vadd.f32 %v3649, %v3792
        %v3794 = vpop.f32.mrb[0].mxu0
        %3795 = vmatprep.mubr.f32.mxu0 0.0
        %3796 = vmatmul.mubr.f32.gmra.mrb[0].mxu0 %v2350
        %v3797 = vpop.f32.mrb[0].mxu0
        %v3798 = vadd.f32 %v3649, %v3797
        %v3799 = vpop.f32.mrb[0].mxu0
        %3800 = vmatprep.mubr.f32.mxu0 0.0
        %3801 = vmatmul.mubr.f32.gmra.mrb[0].mxu0 %v2351
        %v3802 = vpop.f32.mrb[0].mxu0
        %v3803 = vadd.f32 %v3649, %v3802
        %v3804 = vpop.f32.mrb[0].mxu0
        %3805 = vmatprep.mubr.f32.mxu0 0.0
        %3806 = vmatmul.mubr.f32.gmra.mrb[0].mxu0 %v2352
        %v3807 = vpop.f32.mrb[0].mxu0
        %v3808 = vadd.f32 %v3649, %v3807
        %v3809 = vpop.f32.mrb[0].mxu0
        %3810 = vmatprep.mubr.f32.mxu0 0.0
        %3811 = vmatmul.mubr.f32.gmra.mrb[0].mxu0 %v2353
        %v3812 = vpop.f32.mrb[0].mxu0
        %v3813 = vadd.f32 %v3649, %v3812
        %v3814 = vpop.f32.mrb[0].mxu0
        %3815 = vmatprep.mubr.f32.mxu0 0.0
        %3816 = vmatmul.mubr.f32.gmra.mrb[0].mxu0 %v2354
        %v3817 = vpop.f32.mrb[0].mxu0
        %v3818 = vadd.f32 %v3649, %v3817
        %v3819 = vpop.f32.mrb[0].mxu0
        %3820 = vmatprep.mubr.f32.mxu0 0.0
        %3821 = vmatmul.mubr.f32.gmra.mrb[0].mxu0 %v2355
        %v3822 = vpop.f32.mrb[0].mxu0
        %v3823 = vadd.f32 %v3649, %v3822
        %v3824 = vpop.f32.mrb[0].mxu0
        %3825 = vmatprep.mubr.f32.mxu0 0.0
        %3826 = vmatmul.mubr.f32.gmra.mrb[0].mxu0 %v2356
        %v3827 = vpop.f32.mrb[0].mxu0
        %v3828 = vadd.f32 %v3649, %v3827
        %v3829 = vpop.f32.mrb[0].mxu0
        %3830 = vmatprep.mubr.f32.mxu0 0.0
        %3831 = vmatmul.mubr.f32.gmra.mrb[0].mxu0 %v2357
        %v3832 = vpop.f32.mrb[0].mxu0
        %v3833 = vadd.f32 %v3649, %v3832
        %v3834 = vpop.f32.mrb[0].mxu0
        %3835 = vmatprep.mubr.f32.mxu0 0.0
        %3836 = vmatmul.mubr.f32.gmra.mrb[0].mxu0 %v2358
        %v3837 = vpop.f32.mrb[0].mxu0
        %v3838 = vadd.f32 %v3649, %v3837
        %v3839 = vpop.f32.mrb[0].mxu0
        %3840 = vmatprep.mubr.f32.mxu0 0.0
        %3841 = vmatmul.mubr.f32.gmra.mrb[0].mxu0 %v2359
        %v3842 = vpop.f32.mrb[0].mxu0
        %v3843 = vadd.f32 %v3649, %v3842
        %v3844 = vpop.f32.mrb[0].mxu0
        %3845 = vmatprep.mubr.f32.mxu0 0.0
        %3846 = vmatmul.mubr.f32.gmra.mrb[0].mxu0 %v2360
        %v3847 = vpop.f32.mrb[0].mxu0
        %v3848 = vadd.f32 %v3649, %v3847
        %v3849 = vpop.f32.mrb[0].mxu0
        %3850 = vmatprep.mubr.f32.mxu0 0.0
        %3851 = vmatmul.mubr.f32.gmra.mrb[0].mxu0 %v2361
        %v3852 = vpop.f32.mrb[0].mxu0
        %v3853 = vadd.f32 %v3649, %v3852
        %v3854 = vpop.f32.mrb[0].mxu0
        %3855 = vmatprep.mubr.f32.mxu0 0.0
        %3856 = vmatmul.mubr.f32.gmra.mrb[0].mxu0 %v2362
        %v3857 = vpop.f32.mrb[0].mxu0
        %v3858 = vadd.f32 %v3649, %v3857
        %v3859 = vpop.f32.mrb[0].mxu0
        %3860 = vmatprep.mubr.f32.mxu0 0.0
        %3861 = vmatmul.mubr.f32.gmra.mrb[0].mxu0 %v2363
        %v3862 = vpop.f32.mrb[0].mxu0
        %v3863 = vadd.f32 %v3649, %v3862
        %v3864 = vpop.f32.mrb[0].mxu0
        %3865 = vmatprep.mubr.f32.mxu0 0.0
        %3866 = vmatmul.mubr.f32.gmra.mrb[0].mxu0 %v2364
        %v3867 = vpop.f32.mrb[0].mxu0
        %v3868 = vadd.f32 %v3649, %v3867
        %v3869 = vpop.f32.mrb[0].mxu0
        %3870 = vmatprep.mubr.f32.mxu0 0.0
        %3871 = vmatmul.mubr.f32.gmra.mrb[0].mxu0 %v2365
        %v3872 = vpop.f32.mrb[0].mxu0
        %v3873 = vadd.f32 %v3649, %v3872
        %v3874 = vpop.f32.mrb[0].mxu0
        %3875 = vmatprep.mubr.f32.mxu0 0.0
        %3876 = vmatmul.mubr.f32.gmra.mrb[0].mxu0 %v2366
        %v3877 = vpop.f32.mrb[0].mxu0
        %v3878 = vadd.f32 %v3649, %v3877
        %v3879 = vpop.f32.mrb[0].mxu0
        %3880 = vmatprep.mubr.f32.mxu0 0.0
        %3881 = vmatmul.mubr.f32.gmra.mrb[0].mxu0 %v2367
        %v3882 = vpop.f32.mrb[0].mxu0
        %v3883 = vadd.f32 %v3649, %v3882
        %v3884 = vpop.f32.mrb[0].mxu0
        %3885 = vmatprep.mubr.f32.mxu0 0.0
        %3886 = vmatmul.mubr.f32.gmra.mrb[0].mxu0 %v2368
        %v3887 = vpop.f32.mrb[0].mxu0
        %v3888 = vadd.f32 %v3649, %v3887
        %v3889 = vpop.f32.mrb[0].mxu0
        %3890 = vmatprep.mubr.f32.mxu0 0.0
        %3891 = vmatmul.mubr.f32.gmra.mrb[0].mxu0 %v2369
        %v3892 = vpop.f32.mrb[0].mxu0
        %v3893 = vadd.f32 %v3649, %v3892
        %v3894 = vpop.f32.mrb[0].mxu0
        %3895 = vmatprep.mubr.f32.mxu0 0.0
        %3896 = vmatmul.mubr.f32.gmra.mrb[0].mxu0 %v2370
        %v3897 = vpop.f32.mrb[0].mxu0
        %v3898 = vadd.f32 %v3649, %v3897
        %v3899 = vpop.f32.mrb[0].mxu0
        %3900 = vmatprep.mubr.f32.mxu0 0.0
        %3901 = vmatmul.mubr.f32.gmra.mrb[0].mxu0 %v2371
        %v3902 = vpop.f32.mrb[0].mxu0
        %v3903 = vadd.f32 %v3649, %v3902
        %v3904 = vpop.f32.mrb[0].mxu0
        %3905 = vmatprep.mubr.f32.mxu0 0.0
        %3906 = vmatmul.mubr.f32.gmra.mrb[0].mxu0 %v2372
        %v3907 = vpop.f32.mrb[0].mxu0
        %v3908 = vadd.f32 %v3649, %v3907
        %v3909 = vpop.f32.mrb[0].mxu0
        %3910 = vmatprep.mubr.f32.mxu0 0.0
        %3911 = vmatmul.mubr.f32.gmra.mrb[0].mxu0 %v2373
        %v3912 = vpop.f32.mrb[0].mxu0
        %v3913 = vadd.f32 %v3649, %v3912
        %v3914 = vpop.f32.mrb[0].mxu0
        %3915 = vmatprep.mubr.f32.mxu0 0.0
        %3916 = vmatmul.mubr.f32.gmra.mrb[0].mxu0 %v2374
        %v3917 = vpop.f32.mrb[0].mxu0
        %v3918 = vadd.f32 %v3649, %v3917
        %v3919 = vpop.f32.mrb[0].mxu0
        %3920 = vmatprep.mubr.f32.mxu0 0.0
        %3921 = vmatmul.mubr.f32.gmra.mrb[0].mxu0 %v2375
        %v3922 = vpop.f32.mrb[0].mxu0
        %v3923 = vadd.f32 %v3649, %v3922
        %v3924 = vpop.f32.mrb[0].mxu0
        %3925 = vmatprep.mubr.f32.mxu0 0.0
        %3926 = vmatmul.mubr.f32.gmra.mrb[0].mxu0 %v2376
        %v3927 = vpop.f32.mrb[0].mxu0
        %v3928 = vadd.f32 %v3649, %v3927
        %v3929 = vpop.f32.mrb[0].mxu0
        %3930 = vmatprep.mubr.f32.mxu0 0.0
        %3931 = vmatmul.mubr.f32.gmra.mrb[0].mxu0 %v2377
        %v3932 = vpop.f32.mrb[0].mxu0
        %v3933 = vadd.f32 %v3649, %v3932
        %v3934 = vpop.f32.mrb[0].mxu0
        %3935 = vmatprep.mubr.f32.mxu0 0.0
        %3936 = vmatmul.mubr.f32.gmra.mrb[0].mxu0 %v2378
        %v3937 = vpop.f32.mrb[0].mxu0
        %v3938 = vadd.f32 %v3649, %v3937
        %v3939 = vpop.f32.mrb[0].mxu0
        %3940 = vmatprep.mubr.f32.mxu0 0.0
        %3941 = vmatmul.mubr.f32.gmra.mrb[0].mxu0 %v2379
        %v3942 = vpop.f32.mrb[0].mxu0
        %v3943 = vadd.f32 %v3649, %v3942
        %v3944 = vpop.f32.mrb[0].mxu0
        %3945 = vmatprep.mubr.f32.mxu0 0.0
        %3946 = vmatmul.mubr.f32.gmra.mrb[0].mxu0 %v2380
        %v3947 = vpop.f32.mrb[0].mxu0
        %v3948 = vadd.f32 %v3649, %v3947
        %v3949 = vpop.f32.mrb[0].mxu0
        %3950 = vmatprep.mubr.f32.mxu0 0.0
        %3951 = vmatmul.mubr.f32.gmra.mrb[0].mxu0 %v2381
        %v3952 = vpop.f32.mrb[0].mxu0
        %v3953 = vadd.f32 %v3649, %v3952
        %v3954 = vpop.f32.mrb[0].mxu0
        %3955 = vmatprep.mubr.f32.mxu0 0.0
        %3956 = vmatmul.mubr.f32.gmra.mrb[0].mxu0 %v2382
        %v3957 = vpop.f32.mrb[0].mxu0
        %v3958 = vadd.f32 %v3649, %v3957
        %v3959 = vpop.f32.mrb[0].mxu0
        %3960 = vmatprep.mubr.f32.mxu0 0.0
        %3961 = vmatmul.mubr.f32.gmra.mrb[0].mxu0 %v2383
        %v3962 = vpop.f32.mrb[0].mxu0
        %v3963 = vadd.f32 %v3649, %v3962
        %v3964 = vpop.f32.mrb[0].mxu0
        %3965 = vmatprep.mubr.f32.mxu0 0.0
        %3966 = vmatmul.mubr.f32.gmra.mrb[0].mxu0 %v2384
        %v3967 = vpop.f32.mrb[0].mxu0
        %v3968 = vadd.f32 %v3649, %v3967
        %v3969 = vpop.f32.mrb[0].mxu0
        %3970 = vmatprep.mubr.f32.mxu0 0.0
        %3971 = vmatmul.mubr.f32.gmra.mrb[0].mxu0 %v2385
        %v3972 = vpop.f32.mrb[0].mxu0
        %v3973 = vadd.f32 %v3649, %v3972
        %v3974 = vpop.f32.mrb[0].mxu0
        %3975 = vmatprep.mubr.f32.mxu0 0.0
        %3976 = vmatmul.mubr.f32.gmra.mrb[0].mxu0 %v2386
        %v3977 = vpop.f32.mrb[0].mxu0
        %v3978 = vadd.f32 %v3649, %v3977
        %v3979 = vpop.f32.mrb[0].mxu0
        %3980 = vmatprep.mubr.f32.mxu0 0.0
        %3981 = vmatmul.mubr.f32.gmra.mrb[0].mxu0 %v2387
        %v3982 = vpop.f32.mrb[0].mxu0
        %v3983 = vadd.f32 %v3649, %v3982
        %v3984 = vpop.f32.mrb[0].mxu0
        %3985 = vmatprep.mubr.f32.mxu0 0.0
        %3986 = vmatmul.mubr.f32.gmra.mrb[0].mxu0 %v2388
        %v3987 = vpop.f32.mrb[0].mxu0
        %v3988 = vadd.f32 %v3649, %v3987
        %v3989 = vpop.f32.mrb[0].mxu0
        %3990 = vmatprep.mubr.f32.mxu0 0.0
        %3991 = vmatmul.mubr.f32.gmra.mrb[0].mxu0 %v2389
        %v3992 = vpop.f32.mrb[0].mxu0
        %v3993 = vadd.f32 %v3649, %v3992
        %v3994 = vpop.f32.mrb[0].mxu0
        %3995 = vmatprep.mubr.f32.mxu0 0.0
        %3996 = vmatmul.mubr.f32.gmra.mrb[0].mxu0 %v2390
        %v3997 = vpop.f32.mrb[0].mxu0
        %v3998 = vadd.f32 %v3649, %v3997
        %v3999 = vpop.f32.mrb[0].mxu0
        %4000 = vmatprep.mubr.f32.mxu0 0.0
        %4001 = vmatmul.mubr.f32.gmra.mrb[0].mxu0 %v2391
        %v4002 = vpop.f32.mrb[0].mxu0
        %v4003 = vadd.f32 %v3649, %v4002
        %v4004 = vpop.f32.mrb[0].mxu0
        %4005 = vmatprep.mubr.f32.mxu0 0.0
        %4006 = vmatmul.mubr.f32.gmra.mrb[0].mxu0 %v2392
        %v4007 = vpop.f32.mrb[0].mxu0
        %v4008 = vadd.f32 %v3649, %v4007
        %v4009 = vpop.f32.mrb[0].mxu0
        %4010 = vmatprep.mubr.f32.mxu0 0.0
        %4011 = vmatmul.mubr.f32.gmra.mrb[0].mxu0 %v2393
        %v4012 = vpop.f32.mrb[0].mxu0
        %v4013 = vadd.f32 %v3649, %v4012
        %v4014 = vpop.f32.mrb[0].mxu0
        %4015 = vmatprep.mubr.f32.mxu0 0.0
        %4016 = vmatmul.mubr.f32.gmra.mrb[0].mxu0 %v2394
        %v4017 = vpop.f32.mrb[0].mxu0
        %v4018 = vadd.f32 %v3649, %v4017
        %v4019 = vpop.f32.mrb[0].mxu0
        %4020 = vmatprep.mubr.f32.mxu0 0.0
        %4021 = vmatmul.mubr.f32.gmra.mrb[0].mxu0 %v2395
        %v4022 = vpop.f32.mrb[0].mxu0
        %v4023 = vadd.f32 %v3649, %v4022
        %v4024 = vpop.f32.mrb[0].mxu0
        %4025 = vmatprep.mubr.f32.mxu0 0.0
        %4026 = vmatmul.mubr.f32.gmra.mrb[0].mxu0 %v2396
        %v4027 = vpop.f32.mrb[0].mxu0
        %v4028 = vadd.f32 %v3649, %v4027
        %v4029 = vpop.f32.mrb[0].mxu0
        %4030 = vmatprep.mubr.f32.mxu0 0.0
        %4031 = vmatmul.mubr.f32.gmra.mrb[0].mxu0 %v2397
        %v4032 = vpop.f32.mrb[0].mxu0
        %v4033 = vadd.f32 %v3649, %v4032
        %v4034 = vpop.f32.mrb[0].mxu0
        %4035 = vdwg.mxu0
        %v4036 = vmul.f32 %v2488, 0.5
        %v4037 = vmul.f32 %v2493, 0.5
        %v4038 = vmul.f32 %v2498, 0.5
        %v4039 = vmul.f32 %v2503, 0.5
        %v4040 = vmul.f32 %v2508, 0.5
        %v4041 = vmul.f32 %v2513, 0.5
        %v4042 = vmul.f32 %v2518, 0.5
        %v4043 = vmul.f32 %v2523, 0.5
        %v4044 = vmul.f32 %v2528, 0.5
        %v4045 = vmul.f32 %v2533, 0.5
        %v4046 = vmul.f32 %v2538, 0.5
        %v4047 = vmul.f32 %v2543, 0.5
        %v4048 = vmul.f32 %v2548, 0.5
        %v4049 = vmul.f32 %v2553, 0.5
        %v4050 = vmul.f32 %v2558, 0.5
        %v4051 = vmul.f32 %v2563, 0.5
        %v4052 = vmul.f32 %v2568, 0.5
        %v4053 = vmul.f32 %v2573, 0.5
        %v4054 = vmul.f32 %v2578, 0.5
        %v4055 = vmul.f32 %v2583, 0.5
        %v4056 = vmul.f32 %v2588, 0.5
        %v4057 = vmul.f32 %v2593, 0.5
        %v4058 = vmul.f32 %v2598, 0.5
        %v4059 = vmul.f32 %v2603, 0.5
        %v4060 = vmul.f32 %v2608, 0.5
        %v4061 = vmul.f32 %v2613, 0.5
        %v4062 = vmul.f32 %v2618, 0.5
        %v4063 = vmul.f32 %v2623, 0.5
        %v4064 = vmul.f32 %v2628, 0.5
        %v4065 = vmul.f32 %v2633, 0.5
        %v4066 = vmul.f32 %v2638, 0.5
        %v4067 = vmul.f32 %v2643, 0.5
        %v4068 = vmul.f32 %v2648, 0.5
        %v4069 = vmul.f32 %v2653, 0.5
        %v4070 = vmul.f32 %v2658, 0.5
        %v4071 = vmul.f32 %v2663, 0.5
        %v4072 = vmul.f32 %v2668, 0.5
        %v4073 = vmul.f32 %v2673, 0.5
        %v4074 = vmul.f32 %v2678, 0.5
        %v4075 = vmul.f32 %v2683, 0.5
        %v4076 = vmul.f32 %v2688, 0.5
        %v4077 = vmul.f32 %v2693, 0.5
        %v4078 = vmul.f32 %v2698, 0.5
        %v4079 = vmul.f32 %v2703, 0.5
        %v4080 = vmul.f32 %v2708, 0.5
        %v4081 = vmul.f32 %v2713, 0.5
        %v4082 = vmul.f32 %v2718, 0.5
        %v4083 = vmul.f32 %v2723, 0.5
        %v4084 = vmul.f32 %v2728, 0.5
        %v4085 = vmul.f32 %v2733, 0.5
        %v4086 = vmul.f32 %v2738, 0.5
        %v4087 = vmul.f32 %v2743, 0.5
        %v4088 = vmul.f32 %v2748, 0.5
        %v4089 = vmul.f32 %v2753, 0.5
        %v4090 = vmul.f32 %v2758, 0.5
        %v4091 = vmul.f32 %v2763, 0.5
        %v4092 = vmul.f32 %v2768, 0.5
        %v4093 = vmul.f32 %v2773, 0.5
        %v4094 = vmul.f32 %v2778, 0.5
        %v4095 = vmul.f32 %v2783, 0.5
        %v4096 = vmul.f32 %v2788, 0.5
        %v4097 = vmul.f32 %v2793, 0.5
        %v4098 = vmul.f32 %v2798, 0.5
        %v4099 = vmul.f32 %v2803, 0.5
        %v4100 = vtanh.pop %v4036
        %v4101 = vtanh.pop %v4037
        %v4102 = vtanh.pop %v4038
        %v4103 = vtanh.pop %v4039
        %v4104 = vtanh.pop %v4040
        %v4105 = vtanh.pop %v4041
        %v4106 = vtanh.pop %v4042
        %v4107 = vtanh.pop %v4043
        %v4108 = vtanh.pop %v4044
        %v4109 = vtanh.pop %v4045
        %v4110 = vtanh.pop %v4046
        %v4111 = vtanh.pop %v4047
        %v4112 = vtanh.pop %v4048
        %v4113 = vtanh.pop %v4049
        %v4114 = vtanh.pop %v4050
        %v4115 = vtanh.pop %v4051
        %v4116 = vtanh.pop %v4052
        %v4117 = vtanh.pop %v4053
        %v4118 = vtanh.pop %v4054
        %v4119 = vtanh.pop %v4055
        %v4120 = vtanh.pop %v4056
        %v4121 = vtanh.pop %v4057
        %v4122 = vtanh.pop %v4058
        %v4123 = vtanh.pop %v4059
        %v4124 = vtanh.pop %v4060
        %v4125 = vtanh.pop %v4061
        %v4126 = vtanh.pop %v4062
        %v4127 = vtanh.pop %v4063
        %v4128 = vtanh.pop %v4064
        %v4129 = vtanh.pop %v4065
        %v4130 = vtanh.pop %v4066
        %v4131 = vtanh.pop %v4067
        %v4132 = vtanh.pop %v4068
        %v4133 = vtanh.pop %v4069
        %v4134 = vtanh.pop %v4070
        %v4135 = vtanh.pop %v4071
        %v4136 = vtanh.pop %v4072
        %v4137 = vtanh.pop %v4073
        %v4138 = vtanh.pop %v4074
        %v4139 = vtanh.pop %v4075
        %v4140 = vtanh.pop %v4076
        %v4141 = vtanh.pop %v4077
        %v4142 = vtanh.pop %v4078
        %v4143 = vtanh.pop %v4079
        %v4144 = vtanh.pop %v4080
        %v4145 = vtanh.pop %v4081
        %v4146 = vtanh.pop %v4082
        %v4147 = vtanh.pop %v4083
        %v4148 = vtanh.pop %v4084
        %v4149 = vtanh.pop %v4085
        %v4150 = vtanh.pop %v4086
        %v4151 = vtanh.pop %v4087
        %v4152 = vtanh.pop %v4088
        %v4153 = vtanh.pop %v4089
        %v4154 = vtanh.pop %v4090
        %v4155 = vtanh.pop %v4091
        %v4156 = vtanh.pop %v4092
        %v4157 = vtanh.pop %v4093
        %v4158 = vtanh.pop %v4094
        %v4159 = vtanh.pop %v4095
        %v4160 = vtanh.pop %v4096
        %v4161 = vtanh.pop %v4097
        %v4162 = vtanh.pop %v4098
        %v4163 = vtanh.pop %v4099
        %v4164 = vmul.f32 %v4100, 0.5
        %v4165 = vmul.f32 %v4101, 0.5
        %v4166 = vmul.f32 %v4102, 0.5
        %v4167 = vmul.f32 %v4103, 0.5
        %v4168 = vmul.f32 %v4104, 0.5
        %v4169 = vmul.f32 %v4105, 0.5
        %v4170 = vmul.f32 %v4106, 0.5
        %v4171 = vmul.f32 %v4107, 0.5
        %v4172 = vmul.f32 %v4108, 0.5
        %v4173 = vmul.f32 %v4109, 0.5
        %v4174 = vmul.f32 %v4110, 0.5
        %v4175 = vmul.f32 %v4111, 0.5
        %v4176 = vmul.f32 %v4112, 0.5
        %v4177 = vmul.f32 %v4113, 0.5
        %v4178 = vmul.f32 %v4114, 0.5
        %v4179 = vmul.f32 %v4115, 0.5
        %v4180 = vmul.f32 %v4116, 0.5
        %v4181 = vmul.f32 %v4117, 0.5
        %v4182 = vmul.f32 %v4118, 0.5
        %v4183 = vmul.f32 %v4119, 0.5
        %v4184 = vmul.f32 %v4120, 0.5
        %v4185 = vmul.f32 %v4121, 0.5
        %v4186 = vmul.f32 %v4122, 0.5
        %v4187 = vmul.f32 %v4123, 0.5
        %v4188 = vmul.f32 %v4124, 0.5
        %v4189 = vmul.f32 %v4125, 0.5
        %v4190 = vmul.f32 %v4126, 0.5
        %v4191 = vmul.f32 %v4127, 0.5
        %v4192 = vmul.f32 %v4128, 0.5
        %v4193 = vmul.f32 %v4129, 0.5
        %v4194 = vmul.f32 %v4130, 0.5
        %v4195 = vmul.f32 %v4131, 0.5
        %v4196 = vmul.f32 %v4132, 0.5
        %v4197 = vmul.f32 %v4133, 0.5
        %v4198 = vmul.f32 %v4134, 0.5
        %v4199 = vmul.f32 %v4135, 0.5
        %v4200 = vmul.f32 %v4136, 0.5
        %v4201 = vmul.f32 %v4137, 0.5
        %v4202 = vmul.f32 %v4138, 0.5
        %v4203 = vmul.f32 %v4139, 0.5
        %v4204 = vmul.f32 %v4140, 0.5
        %v4205 = vmul.f32 %v4141, 0.5
        %v4206 = vmul.f32 %v4142, 0.5
        %v4207 = vmul.f32 %v4143, 0.5
        %v4208 = vmul.f32 %v4144, 0.5
        %v4209 = vmul.f32 %v4145, 0.5
        %v4210 = vmul.f32 %v4146, 0.5
        %v4211 = vmul.f32 %v4147, 0.5
        %v4212 = vmul.f32 %v4148, 0.5
        %v4213 = vmul.f32 %v4149, 0.5
        %v4214 = vmul.f32 %v4150, 0.5
        %v4215 = vmul.f32 %v4151, 0.5
        %v4216 = vmul.f32 %v4152, 0.5
        %v4217 = vmul.f32 %v4153, 0.5
        %v4218 = vmul.f32 %v4154, 0.5
        %v4219 = vmul.f32 %v4155, 0.5
        %v4220 = vmul.f32 %v4156, 0.5
        %v4221 = vmul.f32 %v4157, 0.5
        %v4222 = vmul.f32 %v4158, 0.5
        %v4223 = vmul.f32 %v4159, 0.5
        %v4224 = vmul.f32 %v4160, 0.5
        %v4225 = vmul.f32 %v4161, 0.5
        %v4226 = vmul.f32 %v4162, 0.5
        %v4227 = vmul.f32 %v4163, 0.5
        %v4228 = vadd.f32 %v4164, 0.5
        %v4229 = vadd.f32 %v4165, 0.5
        %v4230 = vadd.f32 %v4166, 0.5
        %v4231 = vadd.f32 %v4167, 0.5
        %v4232 = vadd.f32 %v4168, 0.5
        %v4233 = vadd.f32 %v4169, 0.5
        %v4234 = vadd.f32 %v4170, 0.5
        %v4235 = vadd.f32 %v4171, 0.5
        %v4236 = vadd.f32 %v4172, 0.5
        %v4237 = vadd.f32 %v4173, 0.5
        %v4238 = vadd.f32 %v4174, 0.5
        %v4239 = vadd.f32 %v4175, 0.5
        %v4240 = vadd.f32 %v4176, 0.5
        %v4241 = vadd.f32 %v4177, 0.5
        %v4242 = vadd.f32 %v4178, 0.5
        %v4243 = vadd.f32 %v4179, 0.5
        %v4244 = vadd.f32 %v4180, 0.5
        %v4245 = vadd.f32 %v4181, 0.5
        %v4246 = vadd.f32 %v4182, 0.5
        %v4247 = vadd.f32 %v4183, 0.5
        %v4248 = vadd.f32 %v4184, 0.5
        %v4249 = vadd.f32 %v4185, 0.5
        %v4250 = vadd.f32 %v4186, 0.5
        %v4251 = vadd.f32 %v4187, 0.5
        %v4252 = vadd.f32 %v4188, 0.5
        %v4253 = vadd.f32 %v4189, 0.5
        %v4254 = vadd.f32 %v4190, 0.5
        %v4255 = vadd.f32 %v4191, 0.5
        %v4256 = vadd.f32 %v4192, 0.5
        %v4257 = vadd.f32 %v4193, 0.5
        %v4258 = vadd.f32 %v4194, 0.5
        %v4259 = vadd.f32 %v4195, 0.5
        %v4260 = vadd.f32 %v4196, 0.5
        %v4261 = vadd.f32 %v4197, 0.5
        %v4262 = vadd.f32 %v4198, 0.5
        %v4263 = vadd.f32 %v4199, 0.5
        %v4264 = vadd.f32 %v4200, 0.5
        %v4265 = vadd.f32 %v4201, 0.5
        %v4266 = vadd.f32 %v4202, 0.5
        %v4267 = vadd.f32 %v4203, 0.5
        %v4268 = vadd.f32 %v4204, 0.5
        %v4269 = vadd.f32 %v4205, 0.5
        %v4270 = vadd.f32 %v4206, 0.5
        %v4271 = vadd.f32 %v4207, 0.5
        %v4272 = vadd.f32 %v4208, 0.5
        %v4273 = vadd.f32 %v4209, 0.5
        %v4274 = vadd.f32 %v4210, 0.5
        %v4275 = vadd.f32 %v4211, 0.5
        %v4276 = vadd.f32 %v4212, 0.5
        %v4277 = vadd.f32 %v4213, 0.5
        %v4278 = vadd.f32 %v4214, 0.5
        %v4279 = vadd.f32 %v4215, 0.5
        %v4280 = vadd.f32 %v4216, 0.5
        %v4281 = vadd.f32 %v4217, 0.5
        %v4282 = vadd.f32 %v4218, 0.5
        %v4283 = vadd.f32 %v4219, 0.5
        %v4284 = vadd.f32 %v4220, 0.5
        %v4285 = vadd.f32 %v4221, 0.5
        %v4286 = vadd.f32 %v4222, 0.5
        %v4287 = vadd.f32 %v4223, 0.5
        %v4288 = vadd.f32 %v4224, 0.5
        %v4289 = vadd.f32 %v4225, 0.5
        %v4290 = vadd.f32 %v4226, 0.5
        %v4291 = vadd.f32 %v4227, 0.5
        %v4292 = vmul.f32 %v2898, 0.5
        %v4293 = vmul.f32 %v2903, 0.5
        %v4294 = vmul.f32 %v2908, 0.5
        %v4295 = vmul.f32 %v2913, 0.5
        %v4296 = vmul.f32 %v2918, 0.5
        %v4297 = vmul.f32 %v2923, 0.5
        %v4298 = vmul.f32 %v2928, 0.5
        %v4299 = vmul.f32 %v2933, 0.5
        %v4300 = vmul.f32 %v2938, 0.5
        %v4301 = vmul.f32 %v2943, 0.5
        %v4302 = vmul.f32 %v2948, 0.5
        %v4303 = vmul.f32 %v2953, 0.5
        %v4304 = vmul.f32 %v2958, 0.5
        %v4305 = vmul.f32 %v2963, 0.5
        %v4306 = vmul.f32 %v2968, 0.5
        %v4307 = vmul.f32 %v2973, 0.5
        %v4308 = vmul.f32 %v2978, 0.5
        %v4309 = vmul.f32 %v2983, 0.5
        %v4310 = vmul.f32 %v2988, 0.5
        %v4311 = vmul.f32 %v2993, 0.5
        %v4312 = vmul.f32 %v2998, 0.5
        %v4313 = vmul.f32 %v3003, 0.5
        %v4314 = vmul.f32 %v3008, 0.5
        %v4315 = vmul.f32 %v3013, 0.5
        %v4316 = vmul.f32 %v3018, 0.5
        %v4317 = vmul.f32 %v3023, 0.5
        %v4318 = vmul.f32 %v3028, 0.5
        %v4319 = vmul.f32 %v3033, 0.5
        %v4320 = vmul.f32 %v3038, 0.5
        %v4321 = vmul.f32 %v3043, 0.5
        %v4322 = vmul.f32 %v3048, 0.5
        %v4323 = vmul.f32 %v3053, 0.5
        %v4324 = vmul.f32 %v3058, 0.5
        %v4325 = vmul.f32 %v3063, 0.5
        %v4326 = vmul.f32 %v3068, 0.5
        %v4327 = vmul.f32 %v3073, 0.5
        %v4328 = vmul.f32 %v3078, 0.5
        %v4329 = vmul.f32 %v3083, 0.5
        %v4330 = vmul.f32 %v3088, 0.5
        %v4331 = vmul.f32 %v3093, 0.5
        %v4332 = vmul.f32 %v3098, 0.5
        %v4333 = vmul.f32 %v3103, 0.5
        %v4334 = vmul.f32 %v3108, 0.5
        %v4335 = vmul.f32 %v3113, 0.5
        %v4336 = vmul.f32 %v3118, 0.5
        %v4337 = vmul.f32 %v3123, 0.5
        %v4338 = vmul.f32 %v3128, 0.5
        %v4339 = vmul.f32 %v3133, 0.5
        %v4340 = vmul.f32 %v3138, 0.5
        %v4341 = vmul.f32 %v3143, 0.5
        %v4342 = vmul.f32 %v3148, 0.5
        %v4343 = vmul.f32 %v3153, 0.5
        %v4344 = vmul.f32 %v3158, 0.5
        %v4345 = vmul.f32 %v3163, 0.5
        %v4346 = vmul.f32 %v3168, 0.5
        %v4347 = vmul.f32 %v3173, 0.5
        %v4348 = vmul.f32 %v3178, 0.5
        %v4349 = vmul.f32 %v3183, 0.5
        %v4350 = vmul.f32 %v3188, 0.5
        %v4351 = vmul.f32 %v3193, 0.5
        %v4352 = vmul.f32 %v3198, 0.5
        %v4353 = vmul.f32 %v3203, 0.5
        %v4354 = vmul.f32 %v3208, 0.5
        %v4355 = vmul.f32 %v3213, 0.5
        %v4356 = vtanh.pop %v4292
        %v4357 = vtanh.pop %v4293
        %v4358 = vtanh.pop %v4294
        %v4359 = vtanh.pop %v4295
        %v4360 = vtanh.pop %v4296
        %v4361 = vtanh.pop %v4297
        %v4362 = vtanh.pop %v4298
        %v4363 = vtanh.pop %v4299
        %v4364 = vtanh.pop %v4300
        %v4365 = vtanh.pop %v4301
        %v4366 = vtanh.pop %v4302
        %v4367 = vtanh.pop %v4303
        %v4368 = vtanh.pop %v4304
        %v4369 = vtanh.pop %v4305
        %v4370 = vtanh.pop %v4306
        %v4371 = vtanh.pop %v4307
        %v4372 = vtanh.pop %v4308
        %v4373 = vtanh.pop %v4309
        %v4374 = vtanh.pop %v4310
        %v4375 = vtanh.pop %v4311
        %v4376 = vtanh.pop %v4312
        %v4377 = vtanh.pop %v4313
        %v4378 = vtanh.pop %v4314
        %v4379 = vtanh.pop %v4315
        %v4380 = vtanh.pop %v4316
        %v4381 = vtanh.pop %v4317
        %v4382 = vtanh.pop %v4318
        %v4383 = vtanh.pop %v4319
        %v4384 = vtanh.pop %v4320
        %v4385 = vtanh.pop %v4321
        %v4386 = vtanh.pop %v4322
        %v4387 = vtanh.pop %v4323
        %v4388 = vtanh.pop %v4324
        %v4389 = vtanh.pop %v4325
        %v4390 = vtanh.pop %v4326
        %v4391 = vtanh.pop %v4327
        %v4392 = vtanh.pop %v4328
        %v4393 = vtanh.pop %v4329
        %v4394 = vtanh.pop %v4330
        %v4395 = vtanh.pop %v4331
        %v4396 = vtanh.pop %v4332
        %v4397 = vtanh.pop %v4333
        %v4398 = vtanh.pop %v4334
        %v4399 = vtanh.pop %v4335
        %v4400 = vtanh.pop %v4336
        %v4401 = vtanh.pop %v4337
        %v4402 = vtanh.pop %v4338
        %v4403 = vtanh.pop %v4339
        %v4404 = vtanh.pop %v4340
        %v4405 = vtanh.pop %v4341
        %v4406 = vtanh.pop %v4342
        %v4407 = vtanh.pop %v4343
        %v4408 = vtanh.pop %v4344
        %v4409 = vtanh.pop %v4345
        %v4410 = vtanh.pop %v4346
        %v4411 = vtanh.pop %v4347
        %v4412 = vtanh.pop %v4348
        %v4413 = vtanh.pop %v4349
        %v4414 = vtanh.pop %v4350
        %v4415 = vtanh.pop %v4351
        %v4416 = vtanh.pop %v4352
        %v4417 = vtanh.pop %v4353
        %v4418 = vtanh.pop %v4354
        %v4419 = vtanh.pop %v4355
        %v4420 = vmul.f32 %v4356, 0.5
        %v4421 = vmul.f32 %v4357, 0.5
        %v4422 = vmul.f32 %v4358, 0.5
        %v4423 = vmul.f32 %v4359, 0.5
        %v4424 = vmul.f32 %v4360, 0.5
        %v4425 = vmul.f32 %v4361, 0.5
        %v4426 = vmul.f32 %v4362, 0.5
        %v4427 = vmul.f32 %v4363, 0.5
        %v4428 = vmul.f32 %v4364, 0.5
        %v4429 = vmul.f32 %v4365, 0.5
        %v4430 = vmul.f32 %v4366, 0.5
        %v4431 = vmul.f32 %v4367, 0.5
        %v4432 = vmul.f32 %v4368, 0.5
        %v4433 = vmul.f32 %v4369, 0.5
        %v4434 = vmul.f32 %v4370, 0.5
        %v4435 = vmul.f32 %v4371, 0.5
        %v4436 = vmul.f32 %v4372, 0.5
        %v4437 = vmul.f32 %v4373, 0.5
        %v4438 = vmul.f32 %v4374, 0.5
        %v4439 = vmul.f32 %v4375, 0.5
        %v4440 = vmul.f32 %v4376, 0.5
        %v4441 = vmul.f32 %v4377, 0.5
        %v4442 = vmul.f32 %v4378, 0.5
        %v4443 = vmul.f32 %v4379, 0.5
        %v4444 = vmul.f32 %v4380, 0.5
        %v4445 = vmul.f32 %v4381, 0.5
        %v4446 = vmul.f32 %v4382, 0.5
        %v4447 = vmul.f32 %v4383, 0.5
        %v4448 = vmul.f32 %v4384, 0.5
        %v4449 = vmul.f32 %v4385, 0.5
        %v4450 = vmul.f32 %v4386, 0.5
        %v4451 = vmul.f32 %v4387, 0.5
        %v4452 = vmul.f32 %v4388, 0.5
        %v4453 = vmul.f32 %v4389, 0.5
        %v4454 = vmul.f32 %v4390, 0.5
        %v4455 = vmul.f32 %v4391, 0.5
        %v4456 = vmul.f32 %v4392, 0.5
        %v4457 = vmul.f32 %v4393, 0.5
        %v4458 = vmul.f32 %v4394, 0.5
        %v4459 = vmul.f32 %v4395, 0.5
        %v4460 = vmul.f32 %v4396, 0.5
        %v4461 = vmul.f32 %v4397, 0.5
        %v4462 = vmul.f32 %v4398, 0.5
        %v4463 = vmul.f32 %v4399, 0.5
        %v4464 = vmul.f32 %v4400, 0.5
        %v4465 = vmul.f32 %v4401, 0.5
        %v4466 = vmul.f32 %v4402, 0.5
        %v4467 = vmul.f32 %v4403, 0.5
        %v4468 = vmul.f32 %v4404, 0.5
        %v4469 = vmul.f32 %v4405, 0.5
        %v4470 = vmul.f32 %v4406, 0.5
        %v4471 = vmul.f32 %v4407, 0.5
        %v4472 = vmul.f32 %v4408, 0.5
        %v4473 = vmul.f32 %v4409, 0.5
        %v4474 = vmul.f32 %v4410, 0.5
        %v4475 = vmul.f32 %v4411, 0.5
        %v4476 = vmul.f32 %v4412, 0.5
        %v4477 = vmul.f32 %v4413, 0.5
        %v4478 = vmul.f32 %v4414, 0.5
        %v4479 = vmul.f32 %v4415, 0.5
        %v4480 = vmul.f32 %v4416, 0.5
        %v4481 = vmul.f32 %v4417, 0.5
        %v4482 = vmul.f32 %v4418, 0.5
        %v4483 = vmul.f32 %v4419, 0.5
        %v4484 = vadd.f32 %v4420, 0.5
        %v4485 = vadd.f32 %v4421, 0.5
        %v4486 = vadd.f32 %v4422, 0.5
        %v4487 = vadd.f32 %v4423, 0.5
        %v4488 = vadd.f32 %v4424, 0.5
        %v4489 = vadd.f32 %v4425, 0.5
        %v4490 = vadd.f32 %v4426, 0.5
        %v4491 = vadd.f32 %v4427, 0.5
        %v4492 = vadd.f32 %v4428, 0.5
        %v4493 = vadd.f32 %v4429, 0.5
        %v4494 = vadd.f32 %v4430, 0.5
        %v4495 = vadd.f32 %v4431, 0.5
        %v4496 = vadd.f32 %v4432, 0.5
        %v4497 = vadd.f32 %v4433, 0.5
        %v4498 = vadd.f32 %v4434, 0.5
        %v4499 = vadd.f32 %v4435, 0.5
        %v4500 = vadd.f32 %v4436, 0.5
        %v4501 = vadd.f32 %v4437, 0.5
        %v4502 = vadd.f32 %v4438, 0.5
        %v4503 = vadd.f32 %v4439, 0.5
        %v4504 = vadd.f32 %v4440, 0.5
        %v4505 = vadd.f32 %v4441, 0.5
        %v4506 = vadd.f32 %v4442, 0.5
        %v4507 = vadd.f32 %v4443, 0.5
        %v4508 = vadd.f32 %v4444, 0.5
        %v4509 = vadd.f32 %v4445, 0.5
        %v4510 = vadd.f32 %v4446, 0.5
        %v4511 = vadd.f32 %v4447, 0.5
        %v4512 = vadd.f32 %v4448, 0.5
        %v4513 = vadd.f32 %v4449, 0.5
        %v4514 = vadd.f32 %v4450, 0.5
        %v4515 = vadd.f32 %v4451, 0.5
        %v4516 = vadd.f32 %v4452, 0.5
        %v4517 = vadd.f32 %v4453, 0.5
        %v4518 = vadd.f32 %v4454, 0.5
        %v4519 = vadd.f32 %v4455, 0.5
        %v4520 = vadd.f32 %v4456, 0.5
        %v4521 = vadd.f32 %v4457, 0.5
        %v4522 = vadd.f32 %v4458, 0.5
        %v4523 = vadd.f32 %v4459, 0.5
        %v4524 = vadd.f32 %v4460, 0.5
        %v4525 = vadd.f32 %v4461, 0.5
        %v4526 = vadd.f32 %v4462, 0.5
        %v4527 = vadd.f32 %v4463, 0.5
        %v4528 = vadd.f32 %v4464, 0.5
        %v4529 = vadd.f32 %v4465, 0.5
        %v4530 = vadd.f32 %v4466, 0.5
        %v4531 = vadd.f32 %v4467, 0.5
        %v4532 = vadd.f32 %v4468, 0.5
        %v4533 = vadd.f32 %v4469, 0.5
        %v4534 = vadd.f32 %v4470, 0.5
        %v4535 = vadd.f32 %v4471, 0.5
        %v4536 = vadd.f32 %v4472, 0.5
        %v4537 = vadd.f32 %v4473, 0.5
        %v4538 = vadd.f32 %v4474, 0.5
        %v4539 = vadd.f32 %v4475, 0.5
        %v4540 = vadd.f32 %v4476, 0.5
        %v4541 = vadd.f32 %v4477, 0.5
        %v4542 = vadd.f32 %v4478, 0.5
        %v4543 = vadd.f32 %v4479, 0.5
        %v4544 = vadd.f32 %v4480, 0.5
        %v4545 = vadd.f32 %v4481, 0.5
        %v4546 = vadd.f32 %v4482, 0.5
        %v4547 = vadd.f32 %v4483, 0.5
        %v4548 = vmul.f32 %v3308, 0.5
        %v4549 = vmul.f32 %v3313, 0.5
        %v4550 = vmul.f32 %v3318, 0.5
        %v4551 = vmul.f32 %v3323, 0.5
        %v4552 = vmul.f32 %v3328, 0.5
        %v4553 = vmul.f32 %v3333, 0.5
        %v4554 = vmul.f32 %v3338, 0.5
        %v4555 = vmul.f32 %v3343, 0.5
        %v4556 = vmul.f32 %v3348, 0.5
        %v4557 = vmul.f32 %v3353, 0.5
        %v4558 = vmul.f32 %v3358, 0.5
        %v4559 = vmul.f32 %v3363, 0.5
        %v4560 = vmul.f32 %v3368, 0.5
        %v4561 = vmul.f32 %v3373, 0.5
        %v4562 = vmul.f32 %v3378, 0.5
        %v4563 = vmul.f32 %v3383, 0.5
        %v4564 = vmul.f32 %v3388, 0.5
        %v4565 = vmul.f32 %v3393, 0.5
        %v4566 = vmul.f32 %v3398, 0.5
        %v4567 = vmul.f32 %v3403, 0.5
        %v4568 = vmul.f32 %v3408, 0.5
        %v4569 = vmul.f32 %v3413, 0.5
        %v4570 = vmul.f32 %v3418, 0.5
        %v4571 = vmul.f32 %v3423, 0.5
        %v4572 = vmul.f32 %v3428, 0.5
        %v4573 = vmul.f32 %v3433, 0.5
        %v4574 = vmul.f32 %v3438, 0.5
        %v4575 = vmul.f32 %v3443, 0.5
        %v4576 = vmul.f32 %v3448, 0.5
        %v4577 = vmul.f32 %v3453, 0.5
        %v4578 = vmul.f32 %v3458, 0.5
        %v4579 = vmul.f32 %v3463, 0.5
        %v4580 = vmul.f32 %v3468, 0.5
        %v4581 = vmul.f32 %v3473, 0.5
        %v4582 = vmul.f32 %v3478, 0.5
        %v4583 = vmul.f32 %v3483, 0.5
        %v4584 = vmul.f32 %v3488, 0.5
        %v4585 = vmul.f32 %v3493, 0.5
        %v4586 = vmul.f32 %v3498, 0.5
        %v4587 = vmul.f32 %v3503, 0.5
        %v4588 = vmul.f32 %v3508, 0.5
        %v4589 = vmul.f32 %v3513, 0.5
        %v4590 = vmul.f32 %v3518, 0.5
        %v4591 = vmul.f32 %v3523, 0.5
        %v4592 = vmul.f32 %v3528, 0.5
        %v4593 = vmul.f32 %v3533, 0.5
        %v4594 = vmul.f32 %v3538, 0.5
        %v4595 = vmul.f32 %v3543, 0.5
        %v4596 = vmul.f32 %v3548, 0.5
        %v4597 = vmul.f32 %v3553, 0.5
        %v4598 = vmul.f32 %v3558, 0.5
        %v4599 = vmul.f32 %v3563, 0.5
        %v4600 = vmul.f32 %v3568, 0.5
        %v4601 = vmul.f32 %v3573, 0.5
        %v4602 = vmul.f32 %v3578, 0.5
        %v4603 = vmul.f32 %v3583, 0.5
        %v4604 = vmul.f32 %v3588, 0.5
        %v4605 = vmul.f32 %v3593, 0.5
        %v4606 = vmul.f32 %v3598, 0.5
        %v4607 = vmul.f32 %v3603, 0.5
        %v4608 = vmul.f32 %v3608, 0.5
        %v4609 = vmul.f32 %v3613, 0.5
        %v4610 = vmul.f32 %v3618, 0.5
        %v4611 = vmul.f32 %v3623, 0.5
        %v4612 = vtanh.pop %v4548
        %v4613 = vtanh.pop %v4549
        %v4614 = vtanh.pop %v4550
        %v4615 = vtanh.pop %v4551
        %v4616 = vtanh.pop %v4552
        %v4617 = vtanh.pop %v4553
        %v4618 = vtanh.pop %v4554
        %v4619 = vtanh.pop %v4555
        %v4620 = vtanh.pop %v4556
        %v4621 = vtanh.pop %v4557
        %v4622 = vtanh.pop %v4558
        %v4623 = vtanh.pop %v4559
        %v4624 = vtanh.pop %v4560
        %v4625 = vtanh.pop %v4561
        %v4626 = vtanh.pop %v4562
        %v4627 = vtanh.pop %v4563
        %v4628 = vtanh.pop %v4564
        %v4629 = vtanh.pop %v4565
        %v4630 = vtanh.pop %v4566
        %v4631 = vtanh.pop %v4567
        %v4632 = vtanh.pop %v4568
        %v4633 = vtanh.pop %v4569
        %v4634 = vtanh.pop %v4570
        %v4635 = vtanh.pop %v4571
        %v4636 = vtanh.pop %v4572
        %v4637 = vtanh.pop %v4573
        %v4638 = vtanh.pop %v4574
        %v4639 = vtanh.pop %v4575
        %v4640 = vtanh.pop %v4576
        %v4641 = vtanh.pop %v4577
        %v4642 = vtanh.pop %v4578
        %v4643 = vtanh.pop %v4579
        %v4644 = vtanh.pop %v4580
        %v4645 = vtanh.pop %v4581
        %v4646 = vtanh.pop %v4582
        %v4647 = vtanh.pop %v4583
        %v4648 = vtanh.pop %v4584
        %v4649 = vtanh.pop %v4585
        %v4650 = vtanh.pop %v4586
        %v4651 = vtanh.pop %v4587
        %v4652 = vtanh.pop %v4588
        %v4653 = vtanh.pop %v4589
        %v4654 = vtanh.pop %v4590
        %v4655 = vtanh.pop %v4591
        %v4656 = vtanh.pop %v4592
        %v4657 = vtanh.pop %v4593
        %v4658 = vtanh.pop %v4594
        %v4659 = vtanh.pop %v4595
        %v4660 = vtanh.pop %v4596
        %v4661 = vtanh.pop %v4597
        %v4662 = vtanh.pop %v4598
        %v4663 = vtanh.pop %v4599
        %v4664 = vtanh.pop %v4600
        %v4665 = vtanh.pop %v4601
        %v4666 = vtanh.pop %v4602
        %v4667 = vtanh.pop %v4603
        %v4668 = vtanh.pop %v4604
        %v4669 = vtanh.pop %v4605
        %v4670 = vtanh.pop %v4606
        %v4671 = vtanh.pop %v4607
        %v4672 = vtanh.pop %v4608
        %v4673 = vtanh.pop %v4609
        %v4674 = vtanh.pop %v4610
        %v4675 = vtanh.pop %v4611
        %v4676 = vmul.f32 %v4612, 0.5
        %v4677 = vmul.f32 %v4613, 0.5
        %v4678 = vmul.f32 %v4614, 0.5
        %v4679 = vmul.f32 %v4615, 0.5
        %v4680 = vmul.f32 %v4616, 0.5
        %v4681 = vmul.f32 %v4617, 0.5
        %v4682 = vmul.f32 %v4618, 0.5
        %v4683 = vmul.f32 %v4619, 0.5
        %v4684 = vmul.f32 %v4620, 0.5
        %v4685 = vmul.f32 %v4621, 0.5
        %v4686 = vmul.f32 %v4622, 0.5
        %v4687 = vmul.f32 %v4623, 0.5
        %v4688 = vmul.f32 %v4624, 0.5
        %v4689 = vmul.f32 %v4625, 0.5
        %v4690 = vmul.f32 %v4626, 0.5
        %v4691 = vmul.f32 %v4627, 0.5
        %v4692 = vmul.f32 %v4628, 0.5
        %v4693 = vmul.f32 %v4629, 0.5
        %v4694 = vmul.f32 %v4630, 0.5
        %v4695 = vmul.f32 %v4631, 0.5
        %v4696 = vmul.f32 %v4632, 0.5
        %v4697 = vmul.f32 %v4633, 0.5
        %v4698 = vmul.f32 %v4634, 0.5
        %v4699 = vmul.f32 %v4635, 0.5
        %v4700 = vmul.f32 %v4636, 0.5
        %v4701 = vmul.f32 %v4637, 0.5
        %v4702 = vmul.f32 %v4638, 0.5
        %v4703 = vmul.f32 %v4639, 0.5
        %v4704 = vmul.f32 %v4640, 0.5
        %v4705 = vmul.f32 %v4641, 0.5
        %v4706 = vmul.f32 %v4642, 0.5
        %v4707 = vmul.f32 %v4643, 0.5
        %v4708 = vmul.f32 %v4644, 0.5
        %v4709 = vmul.f32 %v4645, 0.5
        %v4710 = vmul.f32 %v4646, 0.5
        %v4711 = vmul.f32 %v4647, 0.5
        %v4712 = vmul.f32 %v4648, 0.5
        %v4713 = vmul.f32 %v4649, 0.5
        %v4714 = vmul.f32 %v4650, 0.5
        %v4715 = vmul.f32 %v4651, 0.5
        %v4716 = vmul.f32 %v4652, 0.5
        %v4717 = vmul.f32 %v4653, 0.5
        %v4718 = vmul.f32 %v4654, 0.5
        %v4719 = vmul.f32 %v4655, 0.5
        %v4720 = vmul.f32 %v4656, 0.5
        %v4721 = vmul.f32 %v4657, 0.5
        %v4722 = vmul.f32 %v4658, 0.5
        %v4723 = vmul.f32 %v4659, 0.5
        %v4724 = vmul.f32 %v4660, 0.5
        %v4725 = vmul.f32 %v4661, 0.5
        %v4726 = vmul.f32 %v4662, 0.5
        %v4727 = vmul.f32 %v4663, 0.5
        %v4728 = vmul.f32 %v4664, 0.5
        %v4729 = vmul.f32 %v4665, 0.5
        %v4730 = vmul.f32 %v4666, 0.5
        %v4731 = vmul.f32 %v4667, 0.5
        %v4732 = vmul.f32 %v4668, 0.5
        %v4733 = vmul.f32 %v4669, 0.5
        %v4734 = vmul.f32 %v4670, 0.5
        %v4735 = vmul.f32 %v4671, 0.5
        %v4736 = vmul.f32 %v4672, 0.5
        %v4737 = vmul.f32 %v4673, 0.5
        %v4738 = vmul.f32 %v4674, 0.5
        %v4739 = vmul.f32 %v4675, 0.5
        %v4740 = vadd.f32 %v4676, 0.5
        %v4741 = vadd.f32 %v4677, 0.5
        %v4742 = vadd.f32 %v4678, 0.5
        %v4743 = vadd.f32 %v4679, 0.5
        %v4744 = vadd.f32 %v4680, 0.5
        %v4745 = vadd.f32 %v4681, 0.5
        %v4746 = vadd.f32 %v4682, 0.5
        %v4747 = vadd.f32 %v4683, 0.5
        %v4748 = vadd.f32 %v4684, 0.5
        %v4749 = vadd.f32 %v4685, 0.5
        %v4750 = vadd.f32 %v4686, 0.5
        %v4751 = vadd.f32 %v4687, 0.5
        %v4752 = vadd.f32 %v4688, 0.5
        %v4753 = vadd.f32 %v4689, 0.5
        %v4754 = vadd.f32 %v4690, 0.5
        %v4755 = vadd.f32 %v4691, 0.5
        %v4756 = vadd.f32 %v4692, 0.5
        %v4757 = vadd.f32 %v4693, 0.5
        %v4758 = vadd.f32 %v4694, 0.5
        %v4759 = vadd.f32 %v4695, 0.5
        %v4760 = vadd.f32 %v4696, 0.5
        %v4761 = vadd.f32 %v4697, 0.5
        %v4762 = vadd.f32 %v4698, 0.5
        %v4763 = vadd.f32 %v4699, 0.5
        %v4764 = vadd.f32 %v4700, 0.5
        %v4765 = vadd.f32 %v4701, 0.5
        %v4766 = vadd.f32 %v4702, 0.5
        %v4767 = vadd.f32 %v4703, 0.5
        %v4768 = vadd.f32 %v4704, 0.5
        %v4769 = vadd.f32 %v4705, 0.5
        %v4770 = vadd.f32 %v4706, 0.5
        %v4771 = vadd.f32 %v4707, 0.5
        %v4772 = vadd.f32 %v4708, 0.5
        %v4773 = vadd.f32 %v4709, 0.5
        %v4774 = vadd.f32 %v4710, 0.5
        %v4775 = vadd.f32 %v4711, 0.5
        %v4776 = vadd.f32 %v4712, 0.5
        %v4777 = vadd.f32 %v4713, 0.5
        %v4778 = vadd.f32 %v4714, 0.5
        %v4779 = vadd.f32 %v4715, 0.5
        %v4780 = vadd.f32 %v4716, 0.5
        %v4781 = vadd.f32 %v4717, 0.5
        %v4782 = vadd.f32 %v4718, 0.5
        %v4783 = vadd.f32 %v4719, 0.5
        %v4784 = vadd.f32 %v4720, 0.5
        %v4785 = vadd.f32 %v4721, 0.5
        %v4786 = vadd.f32 %v4722, 0.5
        %v4787 = vadd.f32 %v4723, 0.5
        %v4788 = vadd.f32 %v4724, 0.5
        %v4789 = vadd.f32 %v4725, 0.5
        %v4790 = vadd.f32 %v4726, 0.5
        %v4791 = vadd.f32 %v4727, 0.5
        %v4792 = vadd.f32 %v4728, 0.5
        %v4793 = vadd.f32 %v4729, 0.5
        %v4794 = vadd.f32 %v4730, 0.5
        %v4795 = vadd.f32 %v4731, 0.5
        %v4796 = vadd.f32 %v4732, 0.5
        %v4797 = vadd.f32 %v4733, 0.5
        %v4798 = vadd.f32 %v4734, 0.5
        %v4799 = vadd.f32 %v4735, 0.5
        %v4800 = vadd.f32 %v4736, 0.5
        %v4801 = vadd.f32 %v4737, 0.5
        %v4802 = vadd.f32 %v4738, 0.5
        %v4803 = vadd.f32 %v4739, 0.5
        %v4804 = vtanh.pop %v3718
        %v4805 = vtanh.pop %v3723
        %v4806 = vtanh.pop %v3728
        %v4807 = vtanh.pop %v3733
        %v4808 = vtanh.pop %v3738
        %v4809 = vtanh.pop %v3743
        %v4810 = vtanh.pop %v3748
        %v4811 = vtanh.pop %v3753
        %v4812 = vtanh.pop %v3758
        %v4813 = vtanh.pop %v3763
        %v4814 = vtanh.pop %v3768
        %v4815 = vtanh.pop %v3773
        %v4816 = vtanh.pop %v3778
        %v4817 = vtanh.pop %v3783
        %v4818 = vtanh.pop %v3788
        %v4819 = vtanh.pop %v3793
        %v4820 = vtanh.pop %v3798
        %v4821 = vtanh.pop %v3803
        %v4822 = vtanh.pop %v3808
        %v4823 = vtanh.pop %v3813
        %v4824 = vtanh.pop %v3818
        %v4825 = vtanh.pop %v3823
        %v4826 = vtanh.pop %v3828
        %v4827 = vtanh.pop %v3833
        %v4828 = vtanh.pop %v3838
        %v4829 = vtanh.pop %v3843
        %v4830 = vtanh.pop %v3848
        %v4831 = vtanh.pop %v3853
        %v4832 = vtanh.pop %v3858
        %v4833 = vtanh.pop %v3863
        %v4834 = vtanh.pop %v3868
        %v4835 = vtanh.pop %v3873
        %v4836 = vtanh.pop %v3878
        %v4837 = vtanh.pop %v3883
        %v4838 = vtanh.pop %v3888
        %v4839 = vtanh.pop %v3893
        %v4840 = vtanh.pop %v3898
        %v4841 = vtanh.pop %v3903
        %v4842 = vtanh.pop %v3908
        %v4843 = vtanh.pop %v3913
        %v4844 = vtanh.pop %v3918
        %v4845 = vtanh.pop %v3923
        %v4846 = vtanh.pop %v3928
        %v4847 = vtanh.pop %v3933
        %v4848 = vtanh.pop %v3938
        %v4849 = vtanh.pop %v3943
        %v4850 = vtanh.pop %v3948
        %v4851 = vtanh.pop %v3953
        %v4852 = vtanh.pop %v3958
        %v4853 = vtanh.pop %v3963
        %v4854 = vtanh.pop %v3968
        %v4855 = vtanh.pop %v3973
        %v4856 = vtanh.pop %v3978
        %v4857 = vtanh.pop %v3983
        %v4858 = vtanh.pop %v3988
        %v4859 = vtanh.pop %v3993
        %v4860 = vtanh.pop %v3998
        %v4861 = vtanh.pop %v4003
        %v4862 = vtanh.pop %v4008
        %v4863 = vtanh.pop %v4013
        %v4864 = vtanh.pop %v4018
        %v4865 = vtanh.pop %v4023
        %v4866 = vtanh.pop %v4028
        %v4867 = vtanh.pop %v4033
        %s4868 = scalar_lea.vmem [#allocation8], 512
        %v4869 = vld [vmem:[%s4868] sm:$0xff]
        %v4870 = vld [vmem:[%s4868 + $0x8] sm:$0xff]
        %v4871 = vld [vmem:[%s4868 + $0x10] sm:$0xff]
        %v4872 = vld [vmem:[%s4868 + $0x18] sm:$0xff]
        %v4873 = vld [vmem:[%s4868 + $0x20] sm:$0xff]
        %v4874 = vld [vmem:[%s4868 + $0x28] sm:$0xff]
        %v4875 = vld [vmem:[%s4868 + $0x30] sm:$0xff]
        %v4876 = vld [vmem:[%s4868 + $0x38] sm:$0xff]
        %v4877 = vld [vmem:[%s4868 + $0x40] sm:$0xff]
        %v4878 = vld [vmem:[%s4868 + $0x48] sm:$0xff]
        %v4879 = vld [vmem:[%s4868 + $0x50] sm:$0xff]
        %v4880 = vld [vmem:[%s4868 + $0x58] sm:$0xff]
        %v4881 = vld [vmem:[%s4868 + $0x60] sm:$0xff]
        %v4882 = vld [vmem:[%s4868 + $0x68] sm:$0xff]
        %v4883 = vld [vmem:[%s4868 + $0x70] sm:$0xff]
        %v4884 = vld [vmem:[%s4868 + $0x78] sm:$0xff]
        %s4885 = scalar_lea.vmem %s5, 4
        %v4886 = vld [vmem:[%s4885] sm:$0x1]
        %v4888 = vlaneseq
        %v4889 = vshrl.u32 %v4888, 7
        %v4890 = vsub.s32 0, %v4889
        %v4891 = vrot.slane %v4886, %v4890
        %4893 = vmatprep.subr.mxu0 0.0
        %4894 = vmatpush1.msra.mxu0 %v4869
        %4895 = vmatprep.subr.mxu0 0.0
        %4896 = vmatpush1.msra.mxu0 %v4870
        %4897 = vmatprep.subr.mxu0 0.0
        %4898 = vmatpush1.msra.mxu0 %v4871
        %4899 = vmatprep.subr.mxu0 0.0
        %4900 = vmatpush1.msra.mxu0 %v4872
        %4901 = vmatprep.subr.mxu0 0.0
        %4902 = vmatpush1.msra.mxu0 %v4873
        %4903 = vmatprep.subr.mxu0 0.0
        %4904 = vmatpush1.msra.mxu0 %v4874
        %4905 = vmatprep.subr.mxu0 0.0
        %4906 = vmatpush1.msra.mxu0 %v4875
        %4907 = vmatprep.subr.mxu0 0.0
        %4908 = vmatpush1.msra.mxu0 %v4876
        %4909 = vmatprep.subr.mxu0 0.0
        %4910 = vmatpush1.msra.mxu0 %v4877
        %4911 = vmatprep.subr.mxu0 0.0
        %4912 = vmatpush1.msra.mxu0 %v4878
        %4913 = vmatprep.subr.mxu0 0.0
        %4914 = vmatpush1.msra.mxu0 %v4879
        %4915 = vmatprep.subr.mxu0 0.0
        %4916 = vmatpush1.msra.mxu0 %v4880
        %4917 = vmatprep.subr.mxu0 0.0
        %4918 = vmatpush1.msra.mxu0 %v4881
        %4919 = vmatprep.subr.mxu0 0.0
        %4920 = vmatpush1.msra.mxu0 %v4882
        %4921 = vmatprep.subr.mxu0 0.0
        %4922 = vmatpush1.msra.mxu0 %v4883
        %4923 = vmatprep.subr.mxu0 0.0
        %4924 = vmatpush1.msra.mxu0 %v4884
        %4925 = vmatprep.subr.mxu0 0.0
        %4926 = vmatpush1.msra.mxu0 0.0
        %4927 = vmatprep.subr.mxu0 0.0
        %4928 = vmatpush1.msra.mxu0 0.0
        %4929 = vmatprep.subr.mxu0 0.0
        %4930 = vmatpush1.msra.mxu0 0.0
        %4931 = vmatprep.subr.mxu0 0.0
        %4932 = vmatpush1.msra.mxu0 0.0
        %4933 = vmatprep.subr.mxu0 0.0
        %4934 = vmatpush1.msra.mxu0 0.0
        %4935 = vmatprep.subr.mxu0 0.0
        %4936 = vmatpush1.msra.mxu0 0.0
        %4937 = vmatprep.subr.mxu0 0.0
        %4938 = vmatpush1.msra.mxu0 0.0
        %4939 = vmatprep.subr.mxu0 0.0
        %4940 = vmatpush1.msra.mxu0 0.0
        %4941 = vmatprep.subr.mxu0 0.0
        %4942 = vmatpush1.msra.mxu0 0.0
        %4943 = vmatprep.subr.mxu0 0.0
        %4944 = vmatpush1.msra.mxu0 0.0
        %4945 = vmatprep.subr.mxu0 0.0
        %4946 = vmatpush1.msra.mxu0 0.0
        %4947 = vmatprep.subr.mxu0 0.0
        %4948 = vmatpush1.msra.mxu0 0.0
        %4949 = vmatprep.subr.mxu0 0.0
        %4950 = vmatpush1.msra.mxu0 0.0
        %4951 = vmatprep.subr.mxu0 0.0
        %4952 = vmatpush1.msra.mxu0 0.0
        %4953 = vmatprep.subr.mxu0 0.0
        %4954 = vmatpush1.msra.mxu0 0.0
        %4955 = vmatprep.subr.mxu0 0.0
        %4956 = vmatpush1.msra.mxu0 0.0
        %4957 = vmatprep.mubr.f32.mxu0 0.0
        %4958 = vmatmul.mubr.f32.gmra.mrb[0].mxu0 %v4228
        %v4959 = vpop.f32.mrb[0].mxu0
        %v4960 = vadd.f32 %v4891, %v4959
        %v4961 = vpop.f32.mrb[0].mxu0
        %4962 = vmatprep.mubr.f32.mxu0 0.0
        %4963 = vmatmul.mubr.f32.gmra.mrb[0].mxu0 %v4229
        %v4964 = vpop.f32.mrb[0].mxu0
        %v4965 = vadd.f32 %v4891, %v4964
        %v4966 = vpop.f32.mrb[0].mxu0
        %4967 = vmatprep.mubr.f32.mxu0 0.0
        %4968 = vmatmul.mubr.f32.gmra.mrb[0].mxu0 %v4230
        %v4969 = vpop.f32.mrb[0].mxu0
        %v4970 = vadd.f32 %v4891, %v4969
        %v4971 = vpop.f32.mrb[0].mxu0
        %4972 = vmatprep.mubr.f32.mxu0 0.0
        %4973 = vmatmul.mubr.f32.gmra.mrb[0].mxu0 %v4231
        %v4974 = vpop.f32.mrb[0].mxu0
        %v4975 = vadd.f32 %v4891, %v4974
        %v4976 = vpop.f32.mrb[0].mxu0
        %4977 = vmatprep.mubr.f32.mxu0 0.0
        %4978 = vmatmul.mubr.f32.gmra.mrb[0].mxu0 %v4232
        %v4979 = vpop.f32.mrb[0].mxu0
        %v4980 = vadd.f32 %v4891, %v4979
        %v4981 = vpop.f32.mrb[0].mxu0
        %4982 = vmatprep.mubr.f32.mxu0 0.0
        %4983 = vmatmul.mubr.f32.gmra.mrb[0].mxu0 %v4233
        %v4984 = vpop.f32.mrb[0].mxu0
        %v4985 = vadd.f32 %v4891, %v4984
        %v4986 = vpop.f32.mrb[0].mxu0
        %4987 = vmatprep.mubr.f32.mxu0 0.0
        %4988 = vmatmul.mubr.f32.gmra.mrb[0].mxu0 %v4234
        %v4989 = vpop.f32.mrb[0].mxu0
        %v4990 = vadd.f32 %v4891, %v4989
        %v4991 = vpop.f32.mrb[0].mxu0
        %4992 = vmatprep.mubr.f32.mxu0 0.0
        %4993 = vmatmul.mubr.f32.gmra.mrb[0].mxu0 %v4235
        %v4994 = vpop.f32.mrb[0].mxu0
        %v4995 = vadd.f32 %v4891, %v4994
        %v4996 = vpop.f32.mrb[0].mxu0
        %4997 = vmatprep.mubr.f32.mxu0 0.0
        %4998 = vmatmul.mubr.f32.gmra.mrb[0].mxu0 %v4236
        %v4999 = vpop.f32.mrb[0].mxu0
        %v5000 = vadd.f32 %v4891, %v4999
        %v5001 = vpop.f32.mrb[0].mxu0
        %5002 = vmatprep.mubr.f32.mxu0 0.0
        %5003 = vmatmul.mubr.f32.gmra.mrb[0].mxu0 %v4237
        %v5004 = vpop.f32.mrb[0].mxu0
        %v5005 = vadd.f32 %v4891, %v5004
        %v5006 = vpop.f32.mrb[0].mxu0
        %5007 = vmatprep.mubr.f32.mxu0 0.0
        %5008 = vmatmul.mubr.f32.gmra.mrb[0].mxu0 %v4238
        %v5009 = vpop.f32.mrb[0].mxu0
        %v5010 = vadd.f32 %v4891, %v5009
        %v5011 = vpop.f32.mrb[0].mxu0
        %5012 = vmatprep.mubr.f32.mxu0 0.0
        %5013 = vmatmul.mubr.f32.gmra.mrb[0].mxu0 %v4239
        %v5014 = vpop.f32.mrb[0].mxu0
        %v5015 = vadd.f32 %v4891, %v5014
        %v5016 = vpop.f32.mrb[0].mxu0
        %5017 = vmatprep.mubr.f32.mxu0 0.0
        %5018 = vmatmul.mubr.f32.gmra.mrb[0].mxu0 %v4240
        %v5019 = vpop.f32.mrb[0].mxu0
        %v5020 = vadd.f32 %v4891, %v5019
        %v5021 = vpop.f32.mrb[0].mxu0
        %5022 = vmatprep.mubr.f32.mxu0 0.0
        %5023 = vmatmul.mubr.f32.gmra.mrb[0].mxu0 %v4241
        %v5024 = vpop.f32.mrb[0].mxu0
        %v5025 = vadd.f32 %v4891, %v5024
        %v5026 = vpop.f32.mrb[0].mxu0
        %5027 = vmatprep.mubr.f32.mxu0 0.0
        %5028 = vmatmul.mubr.f32.gmra.mrb[0].mxu0 %v4242
        %v5029 = vpop.f32.mrb[0].mxu0
        %v5030 = vadd.f32 %v4891, %v5029
        %v5031 = vpop.f32.mrb[0].mxu0
        %5032 = vmatprep.mubr.f32.mxu0 0.0
        %5033 = vmatmul.mubr.f32.gmra.mrb[0].mxu0 %v4243
        %v5034 = vpop.f32.mrb[0].mxu0
        %v5035 = vadd.f32 %v4891, %v5034
        %v5036 = vpop.f32.mrb[0].mxu0
        %5037 = vmatprep.mubr.f32.mxu0 0.0
        %5038 = vmatmul.mubr.f32.gmra.mrb[0].mxu0 %v4244
        %v5039 = vpop.f32.mrb[0].mxu0
        %v5040 = vadd.f32 %v4891, %v5039
        %v5041 = vpop.f32.mrb[0].mxu0
        %5042 = vmatprep.mubr.f32.mxu0 0.0
        %5043 = vmatmul.mubr.f32.gmra.mrb[0].mxu0 %v4245
        %v5044 = vpop.f32.mrb[0].mxu0
        %v5045 = vadd.f32 %v4891, %v5044
        %v5046 = vpop.f32.mrb[0].mxu0
        %5047 = vmatprep.mubr.f32.mxu0 0.0
        %5048 = vmatmul.mubr.f32.gmra.mrb[0].mxu0 %v4246
        %v5049 = vpop.f32.mrb[0].mxu0
        %v5050 = vadd.f32 %v4891, %v5049
        %v5051 = vpop.f32.mrb[0].mxu0
        %5052 = vmatprep.mubr.f32.mxu0 0.0
        %5053 = vmatmul.mubr.f32.gmra.mrb[0].mxu0 %v4247
        %v5054 = vpop.f32.mrb[0].mxu0
        %v5055 = vadd.f32 %v4891, %v5054
        %v5056 = vpop.f32.mrb[0].mxu0
        %5057 = vmatprep.mubr.f32.mxu0 0.0
        %5058 = vmatmul.mubr.f32.gmra.mrb[0].mxu0 %v4248
        %v5059 = vpop.f32.mrb[0].mxu0
        %v5060 = vadd.f32 %v4891, %v5059
        %v5061 = vpop.f32.mrb[0].mxu0
        %5062 = vmatprep.mubr.f32.mxu0 0.0
        %5063 = vmatmul.mubr.f32.gmra.mrb[0].mxu0 %v4249
        %v5064 = vpop.f32.mrb[0].mxu0
        %v5065 = vadd.f32 %v4891, %v5064
        %v5066 = vpop.f32.mrb[0].mxu0
        %5067 = vmatprep.mubr.f32.mxu0 0.0
        %5068 = vmatmul.mubr.f32.gmra.mrb[0].mxu0 %v4250
        %v5069 = vpop.f32.mrb[0].mxu0
        %v5070 = vadd.f32 %v4891, %v5069
        %v5071 = vpop.f32.mrb[0].mxu0
        %5072 = vmatprep.mubr.f32.mxu0 0.0
        %5073 = vmatmul.mubr.f32.gmra.mrb[0].mxu0 %v4251
        %v5074 = vpop.f32.mrb[0].mxu0
        %v5075 = vadd.f32 %v4891, %v5074
        %v5076 = vpop.f32.mrb[0].mxu0
        %5077 = vmatprep.mubr.f32.mxu0 0.0
        %5078 = vmatmul.mubr.f32.gmra.mrb[0].mxu0 %v4252
        %v5079 = vpop.f32.mrb[0].mxu0
        %v5080 = vadd.f32 %v4891, %v5079
        %v5081 = vpop.f32.mrb[0].mxu0
        %5082 = vmatprep.mubr.f32.mxu0 0.0
        %5083 = vmatmul.mubr.f32.gmra.mrb[0].mxu0 %v4253
        %v5084 = vpop.f32.mrb[0].mxu0
        %v5085 = vadd.f32 %v4891, %v5084
        %v5086 = vpop.f32.mrb[0].mxu0
        %5087 = vmatprep.mubr.f32.mxu0 0.0
        %5088 = vmatmul.mubr.f32.gmra.mrb[0].mxu0 %v4254
        %v5089 = vpop.f32.mrb[0].mxu0
        %v5090 = vadd.f32 %v4891, %v5089
        %v5091 = vpop.f32.mrb[0].mxu0
        %5092 = vmatprep.mubr.f32.mxu0 0.0
        %5093 = vmatmul.mubr.f32.gmra.mrb[0].mxu0 %v4255
        %v5094 = vpop.f32.mrb[0].mxu0
        %v5095 = vadd.f32 %v4891, %v5094
        %v5096 = vpop.f32.mrb[0].mxu0
        %5097 = vmatprep.mubr.f32.mxu0 0.0
        %5098 = vmatmul.mubr.f32.gmra.mrb[0].mxu0 %v4256
        %v5099 = vpop.f32.mrb[0].mxu0
        %v5100 = vadd.f32 %v4891, %v5099
        %v5101 = vpop.f32.mrb[0].mxu0
        %5102 = vmatprep.mubr.f32.mxu0 0.0
        %5103 = vmatmul.mubr.f32.gmra.mrb[0].mxu0 %v4257
        %v5104 = vpop.f32.mrb[0].mxu0
        %v5105 = vadd.f32 %v4891, %v5104
        %v5106 = vpop.f32.mrb[0].mxu0
        %5107 = vmatprep.mubr.f32.mxu0 0.0
        %5108 = vmatmul.mubr.f32.gmra.mrb[0].mxu0 %v4258
        %v5109 = vpop.f32.mrb[0].mxu0
        %v5110 = vadd.f32 %v4891, %v5109
        %v5111 = vpop.f32.mrb[0].mxu0
        %5112 = vmatprep.mubr.f32.mxu0 0.0
        %5113 = vmatmul.mubr.f32.gmra.mrb[0].mxu0 %v4259
        %v5114 = vpop.f32.mrb[0].mxu0
        %v5115 = vadd.f32 %v4891, %v5114
        %v5116 = vpop.f32.mrb[0].mxu0
        %5117 = vmatprep.mubr.f32.mxu0 0.0
        %5118 = vmatmul.mubr.f32.gmra.mrb[0].mxu0 %v4260
        %v5119 = vpop.f32.mrb[0].mxu0
        %v5120 = vadd.f32 %v4891, %v5119
        %v5121 = vpop.f32.mrb[0].mxu0
        %5122 = vmatprep.mubr.f32.mxu0 0.0
        %5123 = vmatmul.mubr.f32.gmra.mrb[0].mxu0 %v4261
        %v5124 = vpop.f32.mrb[0].mxu0
        %v5125 = vadd.f32 %v4891, %v5124
        %v5126 = vpop.f32.mrb[0].mxu0
        %5127 = vmatprep.mubr.f32.mxu0 0.0
        %5128 = vmatmul.mubr.f32.gmra.mrb[0].mxu0 %v4262
        %v5129 = vpop.f32.mrb[0].mxu0
        %v5130 = vadd.f32 %v4891, %v5129
        %v5131 = vpop.f32.mrb[0].mxu0
        %5132 = vmatprep.mubr.f32.mxu0 0.0
        %5133 = vmatmul.mubr.f32.gmra.mrb[0].mxu0 %v4263
        %v5134 = vpop.f32.mrb[0].mxu0
        %v5135 = vadd.f32 %v4891, %v5134
        %v5136 = vpop.f32.mrb[0].mxu0
        %5137 = vmatprep.mubr.f32.mxu0 0.0
        %5138 = vmatmul.mubr.f32.gmra.mrb[0].mxu0 %v4264
        %v5139 = vpop.f32.mrb[0].mxu0
        %v5140 = vadd.f32 %v4891, %v5139
        %v5141 = vpop.f32.mrb[0].mxu0
        %5142 = vmatprep.mubr.f32.mxu0 0.0
        %5143 = vmatmul.mubr.f32.gmra.mrb[0].mxu0 %v4265
        %v5144 = vpop.f32.mrb[0].mxu0
        %v5145 = vadd.f32 %v4891, %v5144
        %v5146 = vpop.f32.mrb[0].mxu0
        %5147 = vmatprep.mubr.f32.mxu0 0.0
        %5148 = vmatmul.mubr.f32.gmra.mrb[0].mxu0 %v4266
        %v5149 = vpop.f32.mrb[0].mxu0
        %v5150 = vadd.f32 %v4891, %v5149
        %v5151 = vpop.f32.mrb[0].mxu0
        %5152 = vmatprep.mubr.f32.mxu0 0.0
        %5153 = vmatmul.mubr.f32.gmra.mrb[0].mxu0 %v4267
        %v5154 = vpop.f32.mrb[0].mxu0
        %v5155 = vadd.f32 %v4891, %v5154
        %v5156 = vpop.f32.mrb[0].mxu0
        %5157 = vmatprep.mubr.f32.mxu0 0.0
        %5158 = vmatmul.mubr.f32.gmra.mrb[0].mxu0 %v4268
        %v5159 = vpop.f32.mrb[0].mxu0
        %v5160 = vadd.f32 %v4891, %v5159
        %v5161 = vpop.f32.mrb[0].mxu0
        %5162 = vmatprep.mubr.f32.mxu0 0.0
        %5163 = vmatmul.mubr.f32.gmra.mrb[0].mxu0 %v4269
        %v5164 = vpop.f32.mrb[0].mxu0
        %v5165 = vadd.f32 %v4891, %v5164
        %v5166 = vpop.f32.mrb[0].mxu0
        %5167 = vmatprep.mubr.f32.mxu0 0.0
        %5168 = vmatmul.mubr.f32.gmra.mrb[0].mxu0 %v4270
        %v5169 = vpop.f32.mrb[0].mxu0
        %v5170 = vadd.f32 %v4891, %v5169
        %v5171 = vpop.f32.mrb[0].mxu0
        %5172 = vmatprep.mubr.f32.mxu0 0.0
        %5173 = vmatmul.mubr.f32.gmra.mrb[0].mxu0 %v4271
        %v5174 = vpop.f32.mrb[0].mxu0
        %v5175 = vadd.f32 %v4891, %v5174
        %v5176 = vpop.f32.mrb[0].mxu0
        %5177 = vmatprep.mubr.f32.mxu0 0.0
        %5178 = vmatmul.mubr.f32.gmra.mrb[0].mxu0 %v4272
        %v5179 = vpop.f32.mrb[0].mxu0
        %v5180 = vadd.f32 %v4891, %v5179
        %v5181 = vpop.f32.mrb[0].mxu0
        %5182 = vmatprep.mubr.f32.mxu0 0.0
        %5183 = vmatmul.mubr.f32.gmra.mrb[0].mxu0 %v4273
        %v5184 = vpop.f32.mrb[0].mxu0
        %v5185 = vadd.f32 %v4891, %v5184
        %v5186 = vpop.f32.mrb[0].mxu0
        %5187 = vmatprep.mubr.f32.mxu0 0.0
        %5188 = vmatmul.mubr.f32.gmra.mrb[0].mxu0 %v4274
        %v5189 = vpop.f32.mrb[0].mxu0
        %v5190 = vadd.f32 %v4891, %v5189
        %v5191 = vpop.f32.mrb[0].mxu0
        %5192 = vmatprep.mubr.f32.mxu0 0.0
        %5193 = vmatmul.mubr.f32.gmra.mrb[0].mxu0 %v4275
        %v5194 = vpop.f32.mrb[0].mxu0
        %v5195 = vadd.f32 %v4891, %v5194
        %v5196 = vpop.f32.mrb[0].mxu0
        %5197 = vmatprep.mubr.f32.mxu0 0.0
        %5198 = vmatmul.mubr.f32.gmra.mrb[0].mxu0 %v4276
        %v5199 = vpop.f32.mrb[0].mxu0
        %v5200 = vadd.f32 %v4891, %v5199
        %v5201 = vpop.f32.mrb[0].mxu0
        %5202 = vmatprep.mubr.f32.mxu0 0.0
        %5203 = vmatmul.mubr.f32.gmra.mrb[0].mxu0 %v4277
        %v5204 = vpop.f32.mrb[0].mxu0
        %v5205 = vadd.f32 %v4891, %v5204
        %v5206 = vpop.f32.mrb[0].mxu0
        %5207 = vmatprep.mubr.f32.mxu0 0.0
        %5208 = vmatmul.mubr.f32.gmra.mrb[0].mxu0 %v4278
        %v5209 = vpop.f32.mrb[0].mxu0
        %v5210 = vadd.f32 %v4891, %v5209
        %v5211 = vpop.f32.mrb[0].mxu0
        %5212 = vmatprep.mubr.f32.mxu0 0.0
        %5213 = vmatmul.mubr.f32.gmra.mrb[0].mxu0 %v4279
        %v5214 = vpop.f32.mrb[0].mxu0
        %v5215 = vadd.f32 %v4891, %v5214
        %v5216 = vpop.f32.mrb[0].mxu0
        %5217 = vmatprep.mubr.f32.mxu0 0.0
        %5218 = vmatmul.mubr.f32.gmra.mrb[0].mxu0 %v4280
        %v5219 = vpop.f32.mrb[0].mxu0
        %v5220 = vadd.f32 %v4891, %v5219
        %v5221 = vpop.f32.mrb[0].mxu0
        %5222 = vmatprep.mubr.f32.mxu0 0.0
        %5223 = vmatmul.mubr.f32.gmra.mrb[0].mxu0 %v4281
        %v5224 = vpop.f32.mrb[0].mxu0
        %v5225 = vadd.f32 %v4891, %v5224
        %v5226 = vpop.f32.mrb[0].mxu0
        %5227 = vmatprep.mubr.f32.mxu0 0.0
        %5228 = vmatmul.mubr.f32.gmra.mrb[0].mxu0 %v4282
        %v5229 = vpop.f32.mrb[0].mxu0
        %v5230 = vadd.f32 %v4891, %v5229
        %v5231 = vpop.f32.mrb[0].mxu0
        %5232 = vmatprep.mubr.f32.mxu0 0.0
        %5233 = vmatmul.mubr.f32.gmra.mrb[0].mxu0 %v4283
        %v5234 = vpop.f32.mrb[0].mxu0
        %v5235 = vadd.f32 %v4891, %v5234
        %v5236 = vpop.f32.mrb[0].mxu0
        %5237 = vmatprep.mubr.f32.mxu0 0.0
        %5238 = vmatmul.mubr.f32.gmra.mrb[0].mxu0 %v4284
        %v5239 = vpop.f32.mrb[0].mxu0
        %v5240 = vadd.f32 %v4891, %v5239
        %v5241 = vpop.f32.mrb[0].mxu0
        %5242 = vmatprep.mubr.f32.mxu0 0.0
        %5243 = vmatmul.mubr.f32.gmra.mrb[0].mxu0 %v4285
        %v5244 = vpop.f32.mrb[0].mxu0
        %v5245 = vadd.f32 %v4891, %v5244
        %v5246 = vpop.f32.mrb[0].mxu0
        %5247 = vmatprep.mubr.f32.mxu0 0.0
        %5248 = vmatmul.mubr.f32.gmra.mrb[0].mxu0 %v4286
        %v5249 = vpop.f32.mrb[0].mxu0
        %v5250 = vadd.f32 %v4891, %v5249
        %v5251 = vpop.f32.mrb[0].mxu0
        %5252 = vmatprep.mubr.f32.mxu0 0.0
        %5253 = vmatmul.mubr.f32.gmra.mrb[0].mxu0 %v4287
        %v5254 = vpop.f32.mrb[0].mxu0
        %v5255 = vadd.f32 %v4891, %v5254
        %v5256 = vpop.f32.mrb[0].mxu0
        %5257 = vmatprep.mubr.f32.mxu0 0.0
        %5258 = vmatmul.mubr.f32.gmra.mrb[0].mxu0 %v4288
        %v5259 = vpop.f32.mrb[0].mxu0
        %v5260 = vadd.f32 %v4891, %v5259
        %v5261 = vpop.f32.mrb[0].mxu0
        %5262 = vmatprep.mubr.f32.mxu0 0.0
        %5263 = vmatmul.mubr.f32.gmra.mrb[0].mxu0 %v4289
        %v5264 = vpop.f32.mrb[0].mxu0
        %v5265 = vadd.f32 %v4891, %v5264
        %v5266 = vpop.f32.mrb[0].mxu0
        %5267 = vmatprep.mubr.f32.mxu0 0.0
        %5268 = vmatmul.mubr.f32.gmra.mrb[0].mxu0 %v4290
        %v5269 = vpop.f32.mrb[0].mxu0
        %v5270 = vadd.f32 %v4891, %v5269
        %v5271 = vpop.f32.mrb[0].mxu0
        %5272 = vmatprep.mubr.f32.mxu0 0.0
        %5273 = vmatmul.mubr.f32.gmra.mrb[0].mxu0 %v4291
        %v5274 = vpop.f32.mrb[0].mxu0
        %v5275 = vadd.f32 %v4891, %v5274
        %v5276 = vpop.f32.mrb[0].mxu0
        %5277 = vdwg.mxu0
        %s5278 = scalar_lea.vmem [#allocation8], 640
        %v5279 = vld [vmem:[%s5278] sm:$0xff]
        %v5280 = vld [vmem:[%s5278 + $0x8] sm:$0xff]
        %v5281 = vld [vmem:[%s5278 + $0x10] sm:$0xff]
        %v5282 = vld [vmem:[%s5278 + $0x18] sm:$0xff]
        %v5283 = vld [vmem:[%s5278 + $0x20] sm:$0xff]
        %v5284 = vld [vmem:[%s5278 + $0x28] sm:$0xff]
        %v5285 = vld [vmem:[%s5278 + $0x30] sm:$0xff]
        %v5286 = vld [vmem:[%s5278 + $0x38] sm:$0xff]
        %v5287 = vld [vmem:[%s5278 + $0x40] sm:$0xff]
        %v5288 = vld [vmem:[%s5278 + $0x48] sm:$0xff]
        %v5289 = vld [vmem:[%s5278 + $0x50] sm:$0xff]
        %v5290 = vld [vmem:[%s5278 + $0x58] sm:$0xff]
        %v5291 = vld [vmem:[%s5278 + $0x60] sm:$0xff]
        %v5292 = vld [vmem:[%s5278 + $0x68] sm:$0xff]
        %v5293 = vld [vmem:[%s5278 + $0x70] sm:$0xff]
        %v5294 = vld [vmem:[%s5278 + $0x78] sm:$0xff]
        %s5295 = scalar_lea.vmem %s5, 5
        %v5296 = vld [vmem:[%s5295] sm:$0x1]
        %v5298 = vlaneseq
        %v5299 = vshrl.u32 %v5298, 7
        %v5300 = vsub.s32 0, %v5299
        %v5301 = vrot.slane %v5296, %v5300
        %5303 = vmatprep.subr.mxu0 0.0
        %5304 = vmatpush1.msra.mxu0 %v5279
        %5305 = vmatprep.subr.mxu0 0.0
        %5306 = vmatpush1.msra.mxu0 %v5280
        %5307 = vmatprep.subr.mxu0 0.0
        %5308 = vmatpush1.msra.mxu0 %v5281
        %5309 = vmatprep.subr.mxu0 0.0
        %5310 = vmatpush1.msra.mxu0 %v5282
        %5311 = vmatprep.subr.mxu0 0.0
        %5312 = vmatpush1.msra.mxu0 %v5283
        %5313 = vmatprep.subr.mxu0 0.0
        %5314 = vmatpush1.msra.mxu0 %v5284
        %5315 = vmatprep.subr.mxu0 0.0
        %5316 = vmatpush1.msra.mxu0 %v5285
        %5317 = vmatprep.subr.mxu0 0.0
        %5318 = vmatpush1.msra.mxu0 %v5286
        %5319 = vmatprep.subr.mxu0 0.0
        %5320 = vmatpush1.msra.mxu0 %v5287
        %5321 = vmatprep.subr.mxu0 0.0
        %5322 = vmatpush1.msra.mxu0 %v5288
        %5323 = vmatprep.subr.mxu0 0.0
        %5324 = vmatpush1.msra.mxu0 %v5289
        %5325 = vmatprep.subr.mxu0 0.0
        %5326 = vmatpush1.msra.mxu0 %v5290
        %5327 = vmatprep.subr.mxu0 0.0
        %5328 = vmatpush1.msra.mxu0 %v5291
        %5329 = vmatprep.subr.mxu0 0.0
        %5330 = vmatpush1.msra.mxu0 %v5292
        %5331 = vmatprep.subr.mxu0 0.0
        %5332 = vmatpush1.msra.mxu0 %v5293
        %5333 = vmatprep.subr.mxu0 0.0
        %5334 = vmatpush1.msra.mxu0 %v5294
        %5335 = vmatprep.subr.mxu0 0.0
        %5336 = vmatpush1.msra.mxu0 0.0
        %5337 = vmatprep.subr.mxu0 0.0
        %5338 = vmatpush1.msra.mxu0 0.0
        %5339 = vmatprep.subr.mxu0 0.0
        %5340 = vmatpush1.msra.mxu0 0.0
        %5341 = vmatprep.subr.mxu0 0.0
        %5342 = vmatpush1.msra.mxu0 0.0
        %5343 = vmatprep.subr.mxu0 0.0
        %5344 = vmatpush1.msra.mxu0 0.0
        %5345 = vmatprep.subr.mxu0 0.0
        %5346 = vmatpush1.msra.mxu0 0.0
        %5347 = vmatprep.subr.mxu0 0.0
        %5348 = vmatpush1.msra.mxu0 0.0
        %5349 = vmatprep.subr.mxu0 0.0
        %5350 = vmatpush1.msra.mxu0 0.0
        %5351 = vmatprep.subr.mxu0 0.0
        %5352 = vmatpush1.msra.mxu0 0.0
        %5353 = vmatprep.subr.mxu0 0.0
        %5354 = vmatpush1.msra.mxu0 0.0
        %5355 = vmatprep.subr.mxu0 0.0
        %5356 = vmatpush1.msra.mxu0 0.0
        %5357 = vmatprep.subr.mxu0 0.0
        %5358 = vmatpush1.msra.mxu0 0.0
        %5359 = vmatprep.subr.mxu0 0.0
        %5360 = vmatpush1.msra.mxu0 0.0
        %5361 = vmatprep.subr.mxu0 0.0
        %5362 = vmatpush1.msra.mxu0 0.0
        %5363 = vmatprep.subr.mxu0 0.0
        %5364 = vmatpush1.msra.mxu0 0.0
        %5365 = vmatprep.subr.mxu0 0.0
        %5366 = vmatpush1.msra.mxu0 0.0
        %5367 = vmatprep.mubr.f32.mxu0 0.0
        %5368 = vmatmul.mubr.f32.gmra.mrb[0].mxu0 %v4484
        %v5369 = vpop.f32.mrb[0].mxu0
        %v5370 = vadd.f32 %v5301, %v5369
        %v5371 = vpop.f32.mrb[0].mxu0
        %5372 = vmatprep.mubr.f32.mxu0 0.0
        %5373 = vmatmul.mubr.f32.gmra.mrb[0].mxu0 %v4485
        %v5374 = vpop.f32.mrb[0].mxu0
        %v5375 = vadd.f32 %v5301, %v5374
        %v5376 = vpop.f32.mrb[0].mxu0
        %5377 = vmatprep.mubr.f32.mxu0 0.0
        %5378 = vmatmul.mubr.f32.gmra.mrb[0].mxu0 %v4486
        %v5379 = vpop.f32.mrb[0].mxu0
        %v5380 = vadd.f32 %v5301, %v5379
        %v5381 = vpop.f32.mrb[0].mxu0
        %5382 = vmatprep.mubr.f32.mxu0 0.0
        %5383 = vmatmul.mubr.f32.gmra.mrb[0].mxu0 %v4487
        %v5384 = vpop.f32.mrb[0].mxu0
        %v5385 = vadd.f32 %v5301, %v5384
        %v5386 = vpop.f32.mrb[0].mxu0
        %5387 = vmatprep.mubr.f32.mxu0 0.0
        %5388 = vmatmul.mubr.f32.gmra.mrb[0].mxu0 %v4488
        %v5389 = vpop.f32.mrb[0].mxu0
        %v5390 = vadd.f32 %v5301, %v5389
        %v5391 = vpop.f32.mrb[0].mxu0
        %5392 = vmatprep.mubr.f32.mxu0 0.0
        %5393 = vmatmul.mubr.f32.gmra.mrb[0].mxu0 %v4489
        %v5394 = vpop.f32.mrb[0].mxu0
        %v5395 = vadd.f32 %v5301, %v5394
        %v5396 = vpop.f32.mrb[0].mxu0
        %5397 = vmatprep.mubr.f32.mxu0 0.0
        %5398 = vmatmul.mubr.f32.gmra.mrb[0].mxu0 %v4490
        %v5399 = vpop.f32.mrb[0].mxu0
        %v5400 = vadd.f32 %v5301, %v5399
        %v5401 = vpop.f32.mrb[0].mxu0
        %5402 = vmatprep.mubr.f32.mxu0 0.0
        %5403 = vmatmul.mubr.f32.gmra.mrb[0].mxu0 %v4491
        %v5404 = vpop.f32.mrb[0].mxu0
        %v5405 = vadd.f32 %v5301, %v5404
        %v5406 = vpop.f32.mrb[0].mxu0
        %5407 = vmatprep.mubr.f32.mxu0 0.0
        %5408 = vmatmul.mubr.f32.gmra.mrb[0].mxu0 %v4492
        %v5409 = vpop.f32.mrb[0].mxu0
        %v5410 = vadd.f32 %v5301, %v5409
        %v5411 = vpop.f32.mrb[0].mxu0
        %5412 = vmatprep.mubr.f32.mxu0 0.0
        %5413 = vmatmul.mubr.f32.gmra.mrb[0].mxu0 %v4493
        %v5414 = vpop.f32.mrb[0].mxu0
        %v5415 = vadd.f32 %v5301, %v5414
        %v5416 = vpop.f32.mrb[0].mxu0
        %5417 = vmatprep.mubr.f32.mxu0 0.0
        %5418 = vmatmul.mubr.f32.gmra.mrb[0].mxu0 %v4494
        %v5419 = vpop.f32.mrb[0].mxu0
        %v5420 = vadd.f32 %v5301, %v5419
        %v5421 = vpop.f32.mrb[0].mxu0
        %5422 = vmatprep.mubr.f32.mxu0 0.0
        %5423 = vmatmul.mubr.f32.gmra.mrb[0].mxu0 %v4495
        %v5424 = vpop.f32.mrb[0].mxu0
        %v5425 = vadd.f32 %v5301, %v5424
        %v5426 = vpop.f32.mrb[0].mxu0
        %5427 = vmatprep.mubr.f32.mxu0 0.0
        %5428 = vmatmul.mubr.f32.gmra.mrb[0].mxu0 %v4496
        %v5429 = vpop.f32.mrb[0].mxu0
        %v5430 = vadd.f32 %v5301, %v5429
        %v5431 = vpop.f32.mrb[0].mxu0
        %5432 = vmatprep.mubr.f32.mxu0 0.0
        %5433 = vmatmul.mubr.f32.gmra.mrb[0].mxu0 %v4497
        %v5434 = vpop.f32.mrb[0].mxu0
        %v5435 = vadd.f32 %v5301, %v5434
        %v5436 = vpop.f32.mrb[0].mxu0
        %5437 = vmatprep.mubr.f32.mxu0 0.0
        %5438 = vmatmul.mubr.f32.gmra.mrb[0].mxu0 %v4498
        %v5439 = vpop.f32.mrb[0].mxu0
        %v5440 = vadd.f32 %v5301, %v5439
        %v5441 = vpop.f32.mrb[0].mxu0
        %5442 = vmatprep.mubr.f32.mxu0 0.0
        %5443 = vmatmul.mubr.f32.gmra.mrb[0].mxu0 %v4499
        %v5444 = vpop.f32.mrb[0].mxu0
        %v5445 = vadd.f32 %v5301, %v5444
        %v5446 = vpop.f32.mrb[0].mxu0
        %5447 = vmatprep.mubr.f32.mxu0 0.0
        %5448 = vmatmul.mubr.f32.gmra.mrb[0].mxu0 %v4500
        %v5449 = vpop.f32.mrb[0].mxu0
        %v5450 = vadd.f32 %v5301, %v5449
        %v5451 = vpop.f32.mrb[0].mxu0
        %5452 = vmatprep.mubr.f32.mxu0 0.0
        %5453 = vmatmul.mubr.f32.gmra.mrb[0].mxu0 %v4501
        %v5454 = vpop.f32.mrb[0].mxu0
        %v5455 = vadd.f32 %v5301, %v5454
        %v5456 = vpop.f32.mrb[0].mxu0
        %5457 = vmatprep.mubr.f32.mxu0 0.0
        %5458 = vmatmul.mubr.f32.gmra.mrb[0].mxu0 %v4502
        %v5459 = vpop.f32.mrb[0].mxu0
        %v5460 = vadd.f32 %v5301, %v5459
        %v5461 = vpop.f32.mrb[0].mxu0
        %5462 = vmatprep.mubr.f32.mxu0 0.0
        %5463 = vmatmul.mubr.f32.gmra.mrb[0].mxu0 %v4503
        %v5464 = vpop.f32.mrb[0].mxu0
        %v5465 = vadd.f32 %v5301, %v5464
        %v5466 = vpop.f32.mrb[0].mxu0
        %5467 = vmatprep.mubr.f32.mxu0 0.0
        %5468 = vmatmul.mubr.f32.gmra.mrb[0].mxu0 %v4504
        %v5469 = vpop.f32.mrb[0].mxu0
        %v5470 = vadd.f32 %v5301, %v5469
        %v5471 = vpop.f32.mrb[0].mxu0
        %5472 = vmatprep.mubr.f32.mxu0 0.0
        %5473 = vmatmul.mubr.f32.gmra.mrb[0].mxu0 %v4505
        %v5474 = vpop.f32.mrb[0].mxu0
        %v5475 = vadd.f32 %v5301, %v5474
        %v5476 = vpop.f32.mrb[0].mxu0
        %5477 = vmatprep.mubr.f32.mxu0 0.0
        %5478 = vmatmul.mubr.f32.gmra.mrb[0].mxu0 %v4506
        %v5479 = vpop.f32.mrb[0].mxu0
        %v5480 = vadd.f32 %v5301, %v5479
        %v5481 = vpop.f32.mrb[0].mxu0
        %5482 = vmatprep.mubr.f32.mxu0 0.0
        %5483 = vmatmul.mubr.f32.gmra.mrb[0].mxu0 %v4507
        %v5484 = vpop.f32.mrb[0].mxu0
        %v5485 = vadd.f32 %v5301, %v5484
        %v5486 = vpop.f32.mrb[0].mxu0
        %5487 = vmatprep.mubr.f32.mxu0 0.0
        %5488 = vmatmul.mubr.f32.gmra.mrb[0].mxu0 %v4508
        %v5489 = vpop.f32.mrb[0].mxu0
        %v5490 = vadd.f32 %v5301, %v5489
        %v5491 = vpop.f32.mrb[0].mxu0
        %5492 = vmatprep.mubr.f32.mxu0 0.0
        %5493 = vmatmul.mubr.f32.gmra.mrb[0].mxu0 %v4509
        %v5494 = vpop.f32.mrb[0].mxu0
        %v5495 = vadd.f32 %v5301, %v5494
        %v5496 = vpop.f32.mrb[0].mxu0
        %5497 = vmatprep.mubr.f32.mxu0 0.0
        %5498 = vmatmul.mubr.f32.gmra.mrb[0].mxu0 %v4510
        %v5499 = vpop.f32.mrb[0].mxu0
        %v5500 = vadd.f32 %v5301, %v5499
        %v5501 = vpop.f32.mrb[0].mxu0
        %5502 = vmatprep.mubr.f32.mxu0 0.0
        %5503 = vmatmul.mubr.f32.gmra.mrb[0].mxu0 %v4511
        %v5504 = vpop.f32.mrb[0].mxu0
        %v5505 = vadd.f32 %v5301, %v5504
        %v5506 = vpop.f32.mrb[0].mxu0
        %5507 = vmatprep.mubr.f32.mxu0 0.0
        %5508 = vmatmul.mubr.f32.gmra.mrb[0].mxu0 %v4512
        %v5509 = vpop.f32.mrb[0].mxu0
        %v5510 = vadd.f32 %v5301, %v5509
        %v5511 = vpop.f32.mrb[0].mxu0
        %5512 = vmatprep.mubr.f32.mxu0 0.0
        %5513 = vmatmul.mubr.f32.gmra.mrb[0].mxu0 %v4513
        %v5514 = vpop.f32.mrb[0].mxu0
        %v5515 = vadd.f32 %v5301, %v5514
        %v5516 = vpop.f32.mrb[0].mxu0
        %5517 = vmatprep.mubr.f32.mxu0 0.0
        %5518 = vmatmul.mubr.f32.gmra.mrb[0].mxu0 %v4514
        %v5519 = vpop.f32.mrb[0].mxu0
        %v5520 = vadd.f32 %v5301, %v5519
        %v5521 = vpop.f32.mrb[0].mxu0
        %5522 = vmatprep.mubr.f32.mxu0 0.0
        %5523 = vmatmul.mubr.f32.gmra.mrb[0].mxu0 %v4515
        %v5524 = vpop.f32.mrb[0].mxu0
        %v5525 = vadd.f32 %v5301, %v5524
        %v5526 = vpop.f32.mrb[0].mxu0
        %5527 = vmatprep.mubr.f32.mxu0 0.0
        %5528 = vmatmul.mubr.f32.gmra.mrb[0].mxu0 %v4516
        %v5529 = vpop.f32.mrb[0].mxu0
        %v5530 = vadd.f32 %v5301, %v5529
        %v5531 = vpop.f32.mrb[0].mxu0
        %5532 = vmatprep.mubr.f32.mxu0 0.0
        %5533 = vmatmul.mubr.f32.gmra.mrb[0].mxu0 %v4517
        %v5534 = vpop.f32.mrb[0].mxu0
        %v5535 = vadd.f32 %v5301, %v5534
        %v5536 = vpop.f32.mrb[0].mxu0
        %5537 = vmatprep.mubr.f32.mxu0 0.0
        %5538 = vmatmul.mubr.f32.gmra.mrb[0].mxu0 %v4518
        %v5539 = vpop.f32.mrb[0].mxu0
        %v5540 = vadd.f32 %v5301, %v5539
        %v5541 = vpop.f32.mrb[0].mxu0
        %5542 = vmatprep.mubr.f32.mxu0 0.0
        %5543 = vmatmul.mubr.f32.gmra.mrb[0].mxu0 %v4519
        %v5544 = vpop.f32.mrb[0].mxu0
        %v5545 = vadd.f32 %v5301, %v5544
        %v5546 = vpop.f32.mrb[0].mxu0
        %5547 = vmatprep.mubr.f32.mxu0 0.0
        %5548 = vmatmul.mubr.f32.gmra.mrb[0].mxu0 %v4520
        %v5549 = vpop.f32.mrb[0].mxu0
        %v5550 = vadd.f32 %v5301, %v5549
        %v5551 = vpop.f32.mrb[0].mxu0
        %5552 = vmatprep.mubr.f32.mxu0 0.0
        %5553 = vmatmul.mubr.f32.gmra.mrb[0].mxu0 %v4521
        %v5554 = vpop.f32.mrb[0].mxu0
        %v5555 = vadd.f32 %v5301, %v5554
        %v5556 = vpop.f32.mrb[0].mxu0
        %5557 = vmatprep.mubr.f32.mxu0 0.0
        %5558 = vmatmul.mubr.f32.gmra.mrb[0].mxu0 %v4522
        %v5559 = vpop.f32.mrb[0].mxu0
        %v5560 = vadd.f32 %v5301, %v5559
        %v5561 = vpop.f32.mrb[0].mxu0
        %5562 = vmatprep.mubr.f32.mxu0 0.0
        %5563 = vmatmul.mubr.f32.gmra.mrb[0].mxu0 %v4523
        %v5564 = vpop.f32.mrb[0].mxu0
        %v5565 = vadd.f32 %v5301, %v5564
        %v5566 = vpop.f32.mrb[0].mxu0
        %5567 = vmatprep.mubr.f32.mxu0 0.0
        %5568 = vmatmul.mubr.f32.gmra.mrb[0].mxu0 %v4524
        %v5569 = vpop.f32.mrb[0].mxu0
        %v5570 = vadd.f32 %v5301, %v5569
        %v5571 = vpop.f32.mrb[0].mxu0
        %5572 = vmatprep.mubr.f32.mxu0 0.0
        %5573 = vmatmul.mubr.f32.gmra.mrb[0].mxu0 %v4525
        %v5574 = vpop.f32.mrb[0].mxu0
        %v5575 = vadd.f32 %v5301, %v5574
        %v5576 = vpop.f32.mrb[0].mxu0
        %5577 = vmatprep.mubr.f32.mxu0 0.0
        %5578 = vmatmul.mubr.f32.gmra.mrb[0].mxu0 %v4526
        %v5579 = vpop.f32.mrb[0].mxu0
        %v5580 = vadd.f32 %v5301, %v5579
        %v5581 = vpop.f32.mrb[0].mxu0
        %5582 = vmatprep.mubr.f32.mxu0 0.0
        %5583 = vmatmul.mubr.f32.gmra.mrb[0].mxu0 %v4527
        %v5584 = vpop.f32.mrb[0].mxu0
        %v5585 = vadd.f32 %v5301, %v5584
        %v5586 = vpop.f32.mrb[0].mxu0
        %5587 = vmatprep.mubr.f32.mxu0 0.0
        %5588 = vmatmul.mubr.f32.gmra.mrb[0].mxu0 %v4528
        %v5589 = vpop.f32.mrb[0].mxu0
        %v5590 = vadd.f32 %v5301, %v5589
        %v5591 = vpop.f32.mrb[0].mxu0
        %5592 = vmatprep.mubr.f32.mxu0 0.0
        %5593 = vmatmul.mubr.f32.gmra.mrb[0].mxu0 %v4529
        %v5594 = vpop.f32.mrb[0].mxu0
        %v5595 = vadd.f32 %v5301, %v5594
        %v5596 = vpop.f32.mrb[0].mxu0
        %5597 = vmatprep.mubr.f32.mxu0 0.0
        %5598 = vmatmul.mubr.f32.gmra.mrb[0].mxu0 %v4530
        %v5599 = vpop.f32.mrb[0].mxu0
        %v5600 = vadd.f32 %v5301, %v5599
        %v5601 = vpop.f32.mrb[0].mxu0
        %5602 = vmatprep.mubr.f32.mxu0 0.0
        %5603 = vmatmul.mubr.f32.gmra.mrb[0].mxu0 %v4531
        %v5604 = vpop.f32.mrb[0].mxu0
        %v5605 = vadd.f32 %v5301, %v5604
        %v5606 = vpop.f32.mrb[0].mxu0
        %5607 = vmatprep.mubr.f32.mxu0 0.0
        %5608 = vmatmul.mubr.f32.gmra.mrb[0].mxu0 %v4532
        %v5609 = vpop.f32.mrb[0].mxu0
        %v5610 = vadd.f32 %v5301, %v5609
        %v5611 = vpop.f32.mrb[0].mxu0
        %5612 = vmatprep.mubr.f32.mxu0 0.0
        %5613 = vmatmul.mubr.f32.gmra.mrb[0].mxu0 %v4533
        %v5614 = vpop.f32.mrb[0].mxu0
        %v5615 = vadd.f32 %v5301, %v5614
        %v5616 = vpop.f32.mrb[0].mxu0
        %5617 = vmatprep.mubr.f32.mxu0 0.0
        %5618 = vmatmul.mubr.f32.gmra.mrb[0].mxu0 %v4534
        %v5619 = vpop.f32.mrb[0].mxu0
        %v5620 = vadd.f32 %v5301, %v5619
        %v5621 = vpop.f32.mrb[0].mxu0
        %5622 = vmatprep.mubr.f32.mxu0 0.0
        %5623 = vmatmul.mubr.f32.gmra.mrb[0].mxu0 %v4535
        %v5624 = vpop.f32.mrb[0].mxu0
        %v5625 = vadd.f32 %v5301, %v5624
        %v5626 = vpop.f32.mrb[0].mxu0
        %5627 = vmatprep.mubr.f32.mxu0 0.0
        %5628 = vmatmul.mubr.f32.gmra.mrb[0].mxu0 %v4536
        %v5629 = vpop.f32.mrb[0].mxu0
        %v5630 = vadd.f32 %v5301, %v5629
        %v5631 = vpop.f32.mrb[0].mxu0
        %5632 = vmatprep.mubr.f32.mxu0 0.0
        %5633 = vmatmul.mubr.f32.gmra.mrb[0].mxu0 %v4537
        %v5634 = vpop.f32.mrb[0].mxu0
        %v5635 = vadd.f32 %v5301, %v5634
        %v5636 = vpop.f32.mrb[0].mxu0
        %5637 = vmatprep.mubr.f32.mxu0 0.0
        %5638 = vmatmul.mubr.f32.gmra.mrb[0].mxu0 %v4538
        %v5639 = vpop.f32.mrb[0].mxu0
        %v5640 = vadd.f32 %v5301, %v5639
        %v5641 = vpop.f32.mrb[0].mxu0
        %5642 = vmatprep.mubr.f32.mxu0 0.0
        %5643 = vmatmul.mubr.f32.gmra.mrb[0].mxu0 %v4539
        %v5644 = vpop.f32.mrb[0].mxu0
        %v5645 = vadd.f32 %v5301, %v5644
        %v5646 = vpop.f32.mrb[0].mxu0
        %5647 = vmatprep.mubr.f32.mxu0 0.0
        %5648 = vmatmul.mubr.f32.gmra.mrb[0].mxu0 %v4540
        %v5649 = vpop.f32.mrb[0].mxu0
        %v5650 = vadd.f32 %v5301, %v5649
        %v5651 = vpop.f32.mrb[0].mxu0
        %5652 = vmatprep.mubr.f32.mxu0 0.0
        %5653 = vmatmul.mubr.f32.gmra.mrb[0].mxu0 %v4541
        %v5654 = vpop.f32.mrb[0].mxu0
        %v5655 = vadd.f32 %v5301, %v5654
        %v5656 = vpop.f32.mrb[0].mxu0
        %5657 = vmatprep.mubr.f32.mxu0 0.0
        %5658 = vmatmul.mubr.f32.gmra.mrb[0].mxu0 %v4542
        %v5659 = vpop.f32.mrb[0].mxu0
        %v5660 = vadd.f32 %v5301, %v5659
        %v5661 = vpop.f32.mrb[0].mxu0
        %5662 = vmatprep.mubr.f32.mxu0 0.0
        %5663 = vmatmul.mubr.f32.gmra.mrb[0].mxu0 %v4543
        %v5664 = vpop.f32.mrb[0].mxu0
        %v5665 = vadd.f32 %v5301, %v5664
        %v5666 = vpop.f32.mrb[0].mxu0
        %5667 = vmatprep.mubr.f32.mxu0 0.0
        %5668 = vmatmul.mubr.f32.gmra.mrb[0].mxu0 %v4544
        %v5669 = vpop.f32.mrb[0].mxu0
        %v5670 = vadd.f32 %v5301, %v5669
        %v5671 = vpop.f32.mrb[0].mxu0
        %5672 = vmatprep.mubr.f32.mxu0 0.0
        %5673 = vmatmul.mubr.f32.gmra.mrb[0].mxu0 %v4545
        %v5674 = vpop.f32.mrb[0].mxu0
        %v5675 = vadd.f32 %v5301, %v5674
        %v5676 = vpop.f32.mrb[0].mxu0
        %5677 = vmatprep.mubr.f32.mxu0 0.0
        %5678 = vmatmul.mubr.f32.gmra.mrb[0].mxu0 %v4546
        %v5679 = vpop.f32.mrb[0].mxu0
        %v5680 = vadd.f32 %v5301, %v5679
        %v5681 = vpop.f32.mrb[0].mxu0
        %5682 = vmatprep.mubr.f32.mxu0 0.0
        %5683 = vmatmul.mubr.f32.gmra.mrb[0].mxu0 %v4547
        %v5684 = vpop.f32.mrb[0].mxu0
        %v5685 = vadd.f32 %v5301, %v5684
        %v5686 = vpop.f32.mrb[0].mxu0
        %5687 = vdwg.mxu0
        %s5688 = scalar_lea.vmem [#allocation8], 768
        %v5689 = vld [vmem:[%s5688] sm:$0xff]
        %v5690 = vld [vmem:[%s5688 + $0x8] sm:$0xff]
        %v5691 = vld [vmem:[%s5688 + $0x10] sm:$0xff]
        %v5692 = vld [vmem:[%s5688 + $0x18] sm:$0xff]
        %v5693 = vld [vmem:[%s5688 + $0x20] sm:$0xff]
        %v5694 = vld [vmem:[%s5688 + $0x28] sm:$0xff]
        %v5695 = vld [vmem:[%s5688 + $0x30] sm:$0xff]
        %v5696 = vld [vmem:[%s5688 + $0x38] sm:$0xff]
        %v5697 = vld [vmem:[%s5688 + $0x40] sm:$0xff]
        %v5698 = vld [vmem:[%s5688 + $0x48] sm:$0xff]
        %v5699 = vld [vmem:[%s5688 + $0x50] sm:$0xff]
        %v5700 = vld [vmem:[%s5688 + $0x58] sm:$0xff]
        %v5701 = vld [vmem:[%s5688 + $0x60] sm:$0xff]
        %v5702 = vld [vmem:[%s5688 + $0x68] sm:$0xff]
        %v5703 = vld [vmem:[%s5688 + $0x70] sm:$0xff]
        %v5704 = vld [vmem:[%s5688 + $0x78] sm:$0xff]
        %s5705 = scalar_lea.vmem %s5, 6
        %v5706 = vld [vmem:[%s5705] sm:$0x1]
        %v5708 = vlaneseq
        %v5709 = vshrl.u32 %v5708, 7
        %v5710 = vsub.s32 0, %v5709
        %v5711 = vrot.slane %v5706, %v5710
        %5713 = vmatprep.subr.mxu0 0.0
        %5714 = vmatpush1.msra.mxu0 %v5689
        %5715 = vmatprep.subr.mxu0 0.0
        %5716 = vmatpush1.msra.mxu0 %v5690
        %5717 = vmatprep.subr.mxu0 0.0
        %5718 = vmatpush1.msra.mxu0 %v5691
        %5719 = vmatprep.subr.mxu0 0.0
        %5720 = vmatpush1.msra.mxu0 %v5692
        %5721 = vmatprep.subr.mxu0 0.0
        %5722 = vmatpush1.msra.mxu0 %v5693
        %5723 = vmatprep.subr.mxu0 0.0
        %5724 = vmatpush1.msra.mxu0 %v5694
        %5725 = vmatprep.subr.mxu0 0.0
        %5726 = vmatpush1.msra.mxu0 %v5695
        %5727 = vmatprep.subr.mxu0 0.0
        %5728 = vmatpush1.msra.mxu0 %v5696
        %5729 = vmatprep.subr.mxu0 0.0
        %5730 = vmatpush1.msra.mxu0 %v5697
        %5731 = vmatprep.subr.mxu0 0.0
        %5732 = vmatpush1.msra.mxu0 %v5698
        %5733 = vmatprep.subr.mxu0 0.0
        %5734 = vmatpush1.msra.mxu0 %v5699
        %5735 = vmatprep.subr.mxu0 0.0
        %5736 = vmatpush1.msra.mxu0 %v5700
        %5737 = vmatprep.subr.mxu0 0.0
        %5738 = vmatpush1.msra.mxu0 %v5701
        %5739 = vmatprep.subr.mxu0 0.0
        %5740 = vmatpush1.msra.mxu0 %v5702
        %5741 = vmatprep.subr.mxu0 0.0
        %5742 = vmatpush1.msra.mxu0 %v5703
        %5743 = vmatprep.subr.mxu0 0.0
        %5744 = vmatpush1.msra.mxu0 %v5704
        %5745 = vmatprep.subr.mxu0 0.0
        %5746 = vmatpush1.msra.mxu0 0.0
        %5747 = vmatprep.subr.mxu0 0.0
        %5748 = vmatpush1.msra.mxu0 0.0
        %5749 = vmatprep.subr.mxu0 0.0
        %5750 = vmatpush1.msra.mxu0 0.0
        %5751 = vmatprep.subr.mxu0 0.0
        %5752 = vmatpush1.msra.mxu0 0.0
        %5753 = vmatprep.subr.mxu0 0.0
        %5754 = vmatpush1.msra.mxu0 0.0
        %5755 = vmatprep.subr.mxu0 0.0
        %5756 = vmatpush1.msra.mxu0 0.0
        %5757 = vmatprep.subr.mxu0 0.0
        %5758 = vmatpush1.msra.mxu0 0.0
        %5759 = vmatprep.subr.mxu0 0.0
        %5760 = vmatpush1.msra.mxu0 0.0
        %5761 = vmatprep.subr.mxu0 0.0
        %5762 = vmatpush1.msra.mxu0 0.0
        %5763 = vmatprep.subr.mxu0 0.0
        %5764 = vmatpush1.msra.mxu0 0.0
        %5765 = vmatprep.subr.mxu0 0.0
        %5766 = vmatpush1.msra.mxu0 0.0
        %5767 = vmatprep.subr.mxu0 0.0
        %5768 = vmatpush1.msra.mxu0 0.0
        %5769 = vmatprep.subr.mxu0 0.0
        %5770 = vmatpush1.msra.mxu0 0.0
        %5771 = vmatprep.subr.mxu0 0.0
        %5772 = vmatpush1.msra.mxu0 0.0
        %5773 = vmatprep.subr.mxu0 0.0
        %5774 = vmatpush1.msra.mxu0 0.0
        %5775 = vmatprep.subr.mxu0 0.0
        %5776 = vmatpush1.msra.mxu0 0.0
        %5777 = vmatprep.mubr.f32.mxu0 0.0
        %5778 = vmatmul.mubr.f32.gmra.mrb[0].mxu0 %v4740
        %v5779 = vpop.f32.mrb[0].mxu0
        %v5780 = vadd.f32 %v5711, %v5779
        %v5781 = vpop.f32.mrb[0].mxu0
        %5782 = vmatprep.mubr.f32.mxu0 0.0
        %5783 = vmatmul.mubr.f32.gmra.mrb[0].mxu0 %v4741
        %v5784 = vpop.f32.mrb[0].mxu0
        %v5785 = vadd.f32 %v5711, %v5784
        %v5786 = vpop.f32.mrb[0].mxu0
        %5787 = vmatprep.mubr.f32.mxu0 0.0
        %5788 = vmatmul.mubr.f32.gmra.mrb[0].mxu0 %v4742
        %v5789 = vpop.f32.mrb[0].mxu0
        %v5790 = vadd.f32 %v5711, %v5789
        %v5791 = vpop.f32.mrb[0].mxu0
        %5792 = vmatprep.mubr.f32.mxu0 0.0
        %5793 = vmatmul.mubr.f32.gmra.mrb[0].mxu0 %v4743
        %v5794 = vpop.f32.mrb[0].mxu0
        %v5795 = vadd.f32 %v5711, %v5794
        %v5796 = vpop.f32.mrb[0].mxu0
        %5797 = vmatprep.mubr.f32.mxu0 0.0
        %5798 = vmatmul.mubr.f32.gmra.mrb[0].mxu0 %v4744
        %v5799 = vpop.f32.mrb[0].mxu0
        %v5800 = vadd.f32 %v5711, %v5799
        %v5801 = vpop.f32.mrb[0].mxu0
        %5802 = vmatprep.mubr.f32.mxu0 0.0
        %5803 = vmatmul.mubr.f32.gmra.mrb[0].mxu0 %v4745
        %v5804 = vpop.f32.mrb[0].mxu0
        %v5805 = vadd.f32 %v5711, %v5804
        %v5806 = vpop.f32.mrb[0].mxu0
        %5807 = vmatprep.mubr.f32.mxu0 0.0
        %5808 = vmatmul.mubr.f32.gmra.mrb[0].mxu0 %v4746
        %v5809 = vpop.f32.mrb[0].mxu0
        %v5810 = vadd.f32 %v5711, %v5809
        %v5811 = vpop.f32.mrb[0].mxu0
        %5812 = vmatprep.mubr.f32.mxu0 0.0
        %5813 = vmatmul.mubr.f32.gmra.mrb[0].mxu0 %v4747
        %v5814 = vpop.f32.mrb[0].mxu0
        %v5815 = vadd.f32 %v5711, %v5814
        %v5816 = vpop.f32.mrb[0].mxu0
        %5817 = vmatprep.mubr.f32.mxu0 0.0
        %5818 = vmatmul.mubr.f32.gmra.mrb[0].mxu0 %v4748
        %v5819 = vpop.f32.mrb[0].mxu0
        %v5820 = vadd.f32 %v5711, %v5819
        %v5821 = vpop.f32.mrb[0].mxu0
        %5822 = vmatprep.mubr.f32.mxu0 0.0
        %5823 = vmatmul.mubr.f32.gmra.mrb[0].mxu0 %v4749
        %v5824 = vpop.f32.mrb[0].mxu0
        %v5825 = vadd.f32 %v5711, %v5824
        %v5826 = vpop.f32.mrb[0].mxu0
        %5827 = vmatprep.mubr.f32.mxu0 0.0
        %5828 = vmatmul.mubr.f32.gmra.mrb[0].mxu0 %v4750
        %v5829 = vpop.f32.mrb[0].mxu0
        %v5830 = vadd.f32 %v5711, %v5829
        %v5831 = vpop.f32.mrb[0].mxu0
        %5832 = vmatprep.mubr.f32.mxu0 0.0
        %5833 = vmatmul.mubr.f32.gmra.mrb[0].mxu0 %v4751
        %v5834 = vpop.f32.mrb[0].mxu0
        %v5835 = vadd.f32 %v5711, %v5834
        %v5836 = vpop.f32.mrb[0].mxu0
        %5837 = vmatprep.mubr.f32.mxu0 0.0
        %5838 = vmatmul.mubr.f32.gmra.mrb[0].mxu0 %v4752
        %v5839 = vpop.f32.mrb[0].mxu0
        %v5840 = vadd.f32 %v5711, %v5839
        %v5841 = vpop.f32.mrb[0].mxu0
        %5842 = vmatprep.mubr.f32.mxu0 0.0
        %5843 = vmatmul.mubr.f32.gmra.mrb[0].mxu0 %v4753
        %v5844 = vpop.f32.mrb[0].mxu0
        %v5845 = vadd.f32 %v5711, %v5844
        %v5846 = vpop.f32.mrb[0].mxu0
        %5847 = vmatprep.mubr.f32.mxu0 0.0
        %5848 = vmatmul.mubr.f32.gmra.mrb[0].mxu0 %v4754
        %v5849 = vpop.f32.mrb[0].mxu0
        %v5850 = vadd.f32 %v5711, %v5849
        %v5851 = vpop.f32.mrb[0].mxu0
        %5852 = vmatprep.mubr.f32.mxu0 0.0
        %5853 = vmatmul.mubr.f32.gmra.mrb[0].mxu0 %v4755
        %v5854 = vpop.f32.mrb[0].mxu0
        %v5855 = vadd.f32 %v5711, %v5854
        %v5856 = vpop.f32.mrb[0].mxu0
        %5857 = vmatprep.mubr.f32.mxu0 0.0
        %5858 = vmatmul.mubr.f32.gmra.mrb[0].mxu0 %v4756
        %v5859 = vpop.f32.mrb[0].mxu0
        %v5860 = vadd.f32 %v5711, %v5859
        %v5861 = vpop.f32.mrb[0].mxu0
        %5862 = vmatprep.mubr.f32.mxu0 0.0
        %5863 = vmatmul.mubr.f32.gmra.mrb[0].mxu0 %v4757
        %v5864 = vpop.f32.mrb[0].mxu0
        %v5865 = vadd.f32 %v5711, %v5864
        %v5866 = vpop.f32.mrb[0].mxu0
        %5867 = vmatprep.mubr.f32.mxu0 0.0
        %5868 = vmatmul.mubr.f32.gmra.mrb[0].mxu0 %v4758
        %v5869 = vpop.f32.mrb[0].mxu0
        %v5870 = vadd.f32 %v5711, %v5869
        %v5871 = vpop.f32.mrb[0].mxu0
        %5872 = vmatprep.mubr.f32.mxu0 0.0
        %5873 = vmatmul.mubr.f32.gmra.mrb[0].mxu0 %v4759
        %v5874 = vpop.f32.mrb[0].mxu0
        %v5875 = vadd.f32 %v5711, %v5874
        %v5876 = vpop.f32.mrb[0].mxu0
        %5877 = vmatprep.mubr.f32.mxu0 0.0
        %5878 = vmatmul.mubr.f32.gmra.mrb[0].mxu0 %v4760
        %v5879 = vpop.f32.mrb[0].mxu0
        %v5880 = vadd.f32 %v5711, %v5879
        %v5881 = vpop.f32.mrb[0].mxu0
        %5882 = vmatprep.mubr.f32.mxu0 0.0
        %5883 = vmatmul.mubr.f32.gmra.mrb[0].mxu0 %v4761
        %v5884 = vpop.f32.mrb[0].mxu0
        %v5885 = vadd.f32 %v5711, %v5884
        %v5886 = vpop.f32.mrb[0].mxu0
        %5887 = vmatprep.mubr.f32.mxu0 0.0
        %5888 = vmatmul.mubr.f32.gmra.mrb[0].mxu0 %v4762
        %v5889 = vpop.f32.mrb[0].mxu0
        %v5890 = vadd.f32 %v5711, %v5889
        %v5891 = vpop.f32.mrb[0].mxu0
        %5892 = vmatprep.mubr.f32.mxu0 0.0
        %5893 = vmatmul.mubr.f32.gmra.mrb[0].mxu0 %v4763
        %v5894 = vpop.f32.mrb[0].mxu0
        %v5895 = vadd.f32 %v5711, %v5894
        %v5896 = vpop.f32.mrb[0].mxu0
        %5897 = vmatprep.mubr.f32.mxu0 0.0
        %5898 = vmatmul.mubr.f32.gmra.mrb[0].mxu0 %v4764
        %v5899 = vpop.f32.mrb[0].mxu0
        %v5900 = vadd.f32 %v5711, %v5899
        %v5901 = vpop.f32.mrb[0].mxu0
        %5902 = vmatprep.mubr.f32.mxu0 0.0
        %5903 = vmatmul.mubr.f32.gmra.mrb[0].mxu0 %v4765
        %v5904 = vpop.f32.mrb[0].mxu0
        %v5905 = vadd.f32 %v5711, %v5904
        %v5906 = vpop.f32.mrb[0].mxu0
        %5907 = vmatprep.mubr.f32.mxu0 0.0
        %5908 = vmatmul.mubr.f32.gmra.mrb[0].mxu0 %v4766
        %v5909 = vpop.f32.mrb[0].mxu0
        %v5910 = vadd.f32 %v5711, %v5909
        %v5911 = vpop.f32.mrb[0].mxu0
        %5912 = vmatprep.mubr.f32.mxu0 0.0
        %5913 = vmatmul.mubr.f32.gmra.mrb[0].mxu0 %v4767
        %v5914 = vpop.f32.mrb[0].mxu0
        %v5915 = vadd.f32 %v5711, %v5914
        %v5916 = vpop.f32.mrb[0].mxu0
        %5917 = vmatprep.mubr.f32.mxu0 0.0
        %5918 = vmatmul.mubr.f32.gmra.mrb[0].mxu0 %v4768
        %v5919 = vpop.f32.mrb[0].mxu0
        %v5920 = vadd.f32 %v5711, %v5919
        %v5921 = vpop.f32.mrb[0].mxu0
        %5922 = vmatprep.mubr.f32.mxu0 0.0
        %5923 = vmatmul.mubr.f32.gmra.mrb[0].mxu0 %v4769
        %v5924 = vpop.f32.mrb[0].mxu0
        %v5925 = vadd.f32 %v5711, %v5924
        %v5926 = vpop.f32.mrb[0].mxu0
        %5927 = vmatprep.mubr.f32.mxu0 0.0
        %5928 = vmatmul.mubr.f32.gmra.mrb[0].mxu0 %v4770
        %v5929 = vpop.f32.mrb[0].mxu0
        %v5930 = vadd.f32 %v5711, %v5929
        %v5931 = vpop.f32.mrb[0].mxu0
        %5932 = vmatprep.mubr.f32.mxu0 0.0
        %5933 = vmatmul.mubr.f32.gmra.mrb[0].mxu0 %v4771
        %v5934 = vpop.f32.mrb[0].mxu0
        %v5935 = vadd.f32 %v5711, %v5934
        %v5936 = vpop.f32.mrb[0].mxu0
        %5937 = vmatprep.mubr.f32.mxu0 0.0
        %5938 = vmatmul.mubr.f32.gmra.mrb[0].mxu0 %v4772
        %v5939 = vpop.f32.mrb[0].mxu0
        %v5940 = vadd.f32 %v5711, %v5939
        %v5941 = vpop.f32.mrb[0].mxu0
        %5942 = vmatprep.mubr.f32.mxu0 0.0
        %5943 = vmatmul.mubr.f32.gmra.mrb[0].mxu0 %v4773
        %v5944 = vpop.f32.mrb[0].mxu0
        %v5945 = vadd.f32 %v5711, %v5944
        %v5946 = vpop.f32.mrb[0].mxu0
        %5947 = vmatprep.mubr.f32.mxu0 0.0
        %5948 = vmatmul.mubr.f32.gmra.mrb[0].mxu0 %v4774
        %v5949 = vpop.f32.mrb[0].mxu0
        %v5950 = vadd.f32 %v5711, %v5949
        %v5951 = vpop.f32.mrb[0].mxu0
        %5952 = vmatprep.mubr.f32.mxu0 0.0
        %5953 = vmatmul.mubr.f32.gmra.mrb[0].mxu0 %v4775
        %v5954 = vpop.f32.mrb[0].mxu0
        %v5955 = vadd.f32 %v5711, %v5954
        %v5956 = vpop.f32.mrb[0].mxu0
        %5957 = vmatprep.mubr.f32.mxu0 0.0
        %5958 = vmatmul.mubr.f32.gmra.mrb[0].mxu0 %v4776
        %v5959 = vpop.f32.mrb[0].mxu0
        %v5960 = vadd.f32 %v5711, %v5959
        %v5961 = vpop.f32.mrb[0].mxu0
        %5962 = vmatprep.mubr.f32.mxu0 0.0
        %5963 = vmatmul.mubr.f32.gmra.mrb[0].mxu0 %v4777
        %v5964 = vpop.f32.mrb[0].mxu0
        %v5965 = vadd.f32 %v5711, %v5964
        %v5966 = vpop.f32.mrb[0].mxu0
        %5967 = vmatprep.mubr.f32.mxu0 0.0
        %5968 = vmatmul.mubr.f32.gmra.mrb[0].mxu0 %v4778
        %v5969 = vpop.f32.mrb[0].mxu0
        %v5970 = vadd.f32 %v5711, %v5969
        %v5971 = vpop.f32.mrb[0].mxu0
        %5972 = vmatprep.mubr.f32.mxu0 0.0
        %5973 = vmatmul.mubr.f32.gmra.mrb[0].mxu0 %v4779
        %v5974 = vpop.f32.mrb[0].mxu0
        %v5975 = vadd.f32 %v5711, %v5974
        %v5976 = vpop.f32.mrb[0].mxu0
        %5977 = vmatprep.mubr.f32.mxu0 0.0
        %5978 = vmatmul.mubr.f32.gmra.mrb[0].mxu0 %v4780
        %v5979 = vpop.f32.mrb[0].mxu0
        %v5980 = vadd.f32 %v5711, %v5979
        %v5981 = vpop.f32.mrb[0].mxu0
        %5982 = vmatprep.mubr.f32.mxu0 0.0
        %5983 = vmatmul.mubr.f32.gmra.mrb[0].mxu0 %v4781
        %v5984 = vpop.f32.mrb[0].mxu0
        %v5985 = vadd.f32 %v5711, %v5984
        %v5986 = vpop.f32.mrb[0].mxu0
        %5987 = vmatprep.mubr.f32.mxu0 0.0
        %5988 = vmatmul.mubr.f32.gmra.mrb[0].mxu0 %v4782
        %v5989 = vpop.f32.mrb[0].mxu0
        %v5990 = vadd.f32 %v5711, %v5989
        %v5991 = vpop.f32.mrb[0].mxu0
        %5992 = vmatprep.mubr.f32.mxu0 0.0
        %5993 = vmatmul.mubr.f32.gmra.mrb[0].mxu0 %v4783
        %v5994 = vpop.f32.mrb[0].mxu0
        %v5995 = vadd.f32 %v5711, %v5994
        %v5996 = vpop.f32.mrb[0].mxu0
        %5997 = vmatprep.mubr.f32.mxu0 0.0
        %5998 = vmatmul.mubr.f32.gmra.mrb[0].mxu0 %v4784
        %v5999 = vpop.f32.mrb[0].mxu0
        %v6000 = vadd.f32 %v5711, %v5999
        %v6001 = vpop.f32.mrb[0].mxu0
        %6002 = vmatprep.mubr.f32.mxu0 0.0
        %6003 = vmatmul.mubr.f32.gmra.mrb[0].mxu0 %v4785
        %v6004 = vpop.f32.mrb[0].mxu0
        %v6005 = vadd.f32 %v5711, %v6004
        %v6006 = vpop.f32.mrb[0].mxu0
        %6007 = vmatprep.mubr.f32.mxu0 0.0
        %6008 = vmatmul.mubr.f32.gmra.mrb[0].mxu0 %v4786
        %v6009 = vpop.f32.mrb[0].mxu0
        %v6010 = vadd.f32 %v5711, %v6009
        %v6011 = vpop.f32.mrb[0].mxu0
        %6012 = vmatprep.mubr.f32.mxu0 0.0
        %6013 = vmatmul.mubr.f32.gmra.mrb[0].mxu0 %v4787
        %v6014 = vpop.f32.mrb[0].mxu0
        %v6015 = vadd.f32 %v5711, %v6014
        %v6016 = vpop.f32.mrb[0].mxu0
        %6017 = vmatprep.mubr.f32.mxu0 0.0
        %6018 = vmatmul.mubr.f32.gmra.mrb[0].mxu0 %v4788
        %v6019 = vpop.f32.mrb[0].mxu0
        %v6020 = vadd.f32 %v5711, %v6019
        %v6021 = vpop.f32.mrb[0].mxu0
        %6022 = vmatprep.mubr.f32.mxu0 0.0
        %6023 = vmatmul.mubr.f32.gmra.mrb[0].mxu0 %v4789
        %v6024 = vpop.f32.mrb[0].mxu0
        %v6025 = vadd.f32 %v5711, %v6024
        %v6026 = vpop.f32.mrb[0].mxu0
        %6027 = vmatprep.mubr.f32.mxu0 0.0
        %6028 = vmatmul.mubr.f32.gmra.mrb[0].mxu0 %v4790
        %v6029 = vpop.f32.mrb[0].mxu0
        %v6030 = vadd.f32 %v5711, %v6029
        %v6031 = vpop.f32.mrb[0].mxu0
        %6032 = vmatprep.mubr.f32.mxu0 0.0
        %6033 = vmatmul.mubr.f32.gmra.mrb[0].mxu0 %v4791
        %v6034 = vpop.f32.mrb[0].mxu0
        %v6035 = vadd.f32 %v5711, %v6034
        %v6036 = vpop.f32.mrb[0].mxu0
        %6037 = vmatprep.mubr.f32.mxu0 0.0
        %6038 = vmatmul.mubr.f32.gmra.mrb[0].mxu0 %v4792
        %v6039 = vpop.f32.mrb[0].mxu0
        %v6040 = vadd.f32 %v5711, %v6039
        %v6041 = vpop.f32.mrb[0].mxu0
        %6042 = vmatprep.mubr.f32.mxu0 0.0
        %6043 = vmatmul.mubr.f32.gmra.mrb[0].mxu0 %v4793
        %v6044 = vpop.f32.mrb[0].mxu0
        %v6045 = vadd.f32 %v5711, %v6044
        %v6046 = vpop.f32.mrb[0].mxu0
        %6047 = vmatprep.mubr.f32.mxu0 0.0
        %6048 = vmatmul.mubr.f32.gmra.mrb[0].mxu0 %v4794
        %v6049 = vpop.f32.mrb[0].mxu0
        %v6050 = vadd.f32 %v5711, %v6049
        %v6051 = vpop.f32.mrb[0].mxu0
        %6052 = vmatprep.mubr.f32.mxu0 0.0
        %6053 = vmatmul.mubr.f32.gmra.mrb[0].mxu0 %v4795
        %v6054 = vpop.f32.mrb[0].mxu0
        %v6055 = vadd.f32 %v5711, %v6054
        %v6056 = vpop.f32.mrb[0].mxu0
        %6057 = vmatprep.mubr.f32.mxu0 0.0
        %6058 = vmatmul.mubr.f32.gmra.mrb[0].mxu0 %v4796
        %v6059 = vpop.f32.mrb[0].mxu0
        %v6060 = vadd.f32 %v5711, %v6059
        %v6061 = vpop.f32.mrb[0].mxu0
        %6062 = vmatprep.mubr.f32.mxu0 0.0
        %6063 = vmatmul.mubr.f32.gmra.mrb[0].mxu0 %v4797
        %v6064 = vpop.f32.mrb[0].mxu0
        %v6065 = vadd.f32 %v5711, %v6064
        %v6066 = vpop.f32.mrb[0].mxu0
        %6067 = vmatprep.mubr.f32.mxu0 0.0
        %6068 = vmatmul.mubr.f32.gmra.mrb[0].mxu0 %v4798
        %v6069 = vpop.f32.mrb[0].mxu0
        %v6070 = vadd.f32 %v5711, %v6069
        %v6071 = vpop.f32.mrb[0].mxu0
        %6072 = vmatprep.mubr.f32.mxu0 0.0
        %6073 = vmatmul.mubr.f32.gmra.mrb[0].mxu0 %v4799
        %v6074 = vpop.f32.mrb[0].mxu0
        %v6075 = vadd.f32 %v5711, %v6074
        %v6076 = vpop.f32.mrb[0].mxu0
        %6077 = vmatprep.mubr.f32.mxu0 0.0
        %6078 = vmatmul.mubr.f32.gmra.mrb[0].mxu0 %v4800
        %v6079 = vpop.f32.mrb[0].mxu0
        %v6080 = vadd.f32 %v5711, %v6079
        %v6081 = vpop.f32.mrb[0].mxu0
        %6082 = vmatprep.mubr.f32.mxu0 0.0
        %6083 = vmatmul.mubr.f32.gmra.mrb[0].mxu0 %v4801
        %v6084 = vpop.f32.mrb[0].mxu0
        %v6085 = vadd.f32 %v5711, %v6084
        %v6086 = vpop.f32.mrb[0].mxu0
        %6087 = vmatprep.mubr.f32.mxu0 0.0
        %6088 = vmatmul.mubr.f32.gmra.mrb[0].mxu0 %v4802
        %v6089 = vpop.f32.mrb[0].mxu0
        %v6090 = vadd.f32 %v5711, %v6089
        %v6091 = vpop.f32.mrb[0].mxu0
        %6092 = vmatprep.mubr.f32.mxu0 0.0
        %6093 = vmatmul.mubr.f32.gmra.mrb[0].mxu0 %v4803
        %v6094 = vpop.f32.mrb[0].mxu0
        %v6095 = vadd.f32 %v5711, %v6094
        %v6096 = vpop.f32.mrb[0].mxu0
        %6097 = vdwg.mxu0
        %s6098 = scalar_lea.vmem [#allocation8], 896
        %v6099 = vld [vmem:[%s6098] sm:$0xff]
        %v6100 = vld [vmem:[%s6098 + $0x8] sm:$0xff]
        %v6101 = vld [vmem:[%s6098 + $0x10] sm:$0xff]
        %v6102 = vld [vmem:[%s6098 + $0x18] sm:$0xff]
        %v6103 = vld [vmem:[%s6098 + $0x20] sm:$0xff]
        %v6104 = vld [vmem:[%s6098 + $0x28] sm:$0xff]
        %v6105 = vld [vmem:[%s6098 + $0x30] sm:$0xff]
        %v6106 = vld [vmem:[%s6098 + $0x38] sm:$0xff]
        %v6107 = vld [vmem:[%s6098 + $0x40] sm:$0xff]
        %v6108 = vld [vmem:[%s6098 + $0x48] sm:$0xff]
        %v6109 = vld [vmem:[%s6098 + $0x50] sm:$0xff]
        %v6110 = vld [vmem:[%s6098 + $0x58] sm:$0xff]
        %v6111 = vld [vmem:[%s6098 + $0x60] sm:$0xff]
        %v6112 = vld [vmem:[%s6098 + $0x68] sm:$0xff]
        %v6113 = vld [vmem:[%s6098 + $0x70] sm:$0xff]
        %v6114 = vld [vmem:[%s6098 + $0x78] sm:$0xff]
        %s6115 = scalar_lea.vmem %s5, 7
        %v6116 = vld [vmem:[%s6115] sm:$0x1]
        %v6118 = vlaneseq
        %v6119 = vshrl.u32 %v6118, 7
        %v6120 = vsub.s32 0, %v6119
        %v6121 = vrot.slane %v6116, %v6120
        %6123 = vmatprep.subr.mxu0 0.0
        %6124 = vmatpush1.msra.mxu0 %v6099
        %6125 = vmatprep.subr.mxu0 0.0
        %6126 = vmatpush1.msra.mxu0 %v6100
        %6127 = vmatprep.subr.mxu0 0.0
        %6128 = vmatpush1.msra.mxu0 %v6101
        %6129 = vmatprep.subr.mxu0 0.0
        %6130 = vmatpush1.msra.mxu0 %v6102
        %6131 = vmatprep.subr.mxu0 0.0
        %6132 = vmatpush1.msra.mxu0 %v6103
        %6133 = vmatprep.subr.mxu0 0.0
        %6134 = vmatpush1.msra.mxu0 %v6104
        %6135 = vmatprep.subr.mxu0 0.0
        %6136 = vmatpush1.msra.mxu0 %v6105
        %6137 = vmatprep.subr.mxu0 0.0
        %6138 = vmatpush1.msra.mxu0 %v6106
        %6139 = vmatprep.subr.mxu0 0.0
        %6140 = vmatpush1.msra.mxu0 %v6107
        %6141 = vmatprep.subr.mxu0 0.0
        %6142 = vmatpush1.msra.mxu0 %v6108
        %6143 = vmatprep.subr.mxu0 0.0
        %6144 = vmatpush1.msra.mxu0 %v6109
        %6145 = vmatprep.subr.mxu0 0.0
        %6146 = vmatpush1.msra.mxu0 %v6110
        %6147 = vmatprep.subr.mxu0 0.0
        %6148 = vmatpush1.msra.mxu0 %v6111
        %6149 = vmatprep.subr.mxu0 0.0
        %6150 = vmatpush1.msra.mxu0 %v6112
        %6151 = vmatprep.subr.mxu0 0.0
        %6152 = vmatpush1.msra.mxu0 %v6113
        %6153 = vmatprep.subr.mxu0 0.0
        %6154 = vmatpush1.msra.mxu0 %v6114
        %6155 = vmatprep.subr.mxu0 0.0
        %6156 = vmatpush1.msra.mxu0 0.0
        %6157 = vmatprep.subr.mxu0 0.0
        %6158 = vmatpush1.msra.mxu0 0.0
        %6159 = vmatprep.subr.mxu0 0.0
        %6160 = vmatpush1.msra.mxu0 0.0
        %6161 = vmatprep.subr.mxu0 0.0
        %6162 = vmatpush1.msra.mxu0 0.0
        %6163 = vmatprep.subr.mxu0 0.0
        %6164 = vmatpush1.msra.mxu0 0.0
        %6165 = vmatprep.subr.mxu0 0.0
        %6166 = vmatpush1.msra.mxu0 0.0
        %6167 = vmatprep.subr.mxu0 0.0
        %6168 = vmatpush1.msra.mxu0 0.0
        %6169 = vmatprep.subr.mxu0 0.0
        %6170 = vmatpush1.msra.mxu0 0.0
        %6171 = vmatprep.subr.mxu0 0.0
        %6172 = vmatpush1.msra.mxu0 0.0
        %6173 = vmatprep.subr.mxu0 0.0
        %6174 = vmatpush1.msra.mxu0 0.0
        %6175 = vmatprep.subr.mxu0 0.0
        %6176 = vmatpush1.msra.mxu0 0.0
        %6177 = vmatprep.subr.mxu0 0.0
        %6178 = vmatpush1.msra.mxu0 0.0
        %6179 = vmatprep.subr.mxu0 0.0
        %6180 = vmatpush1.msra.mxu0 0.0
        %6181 = vmatprep.subr.mxu0 0.0
        %6182 = vmatpush1.msra.mxu0 0.0
        %6183 = vmatprep.subr.mxu0 0.0
        %6184 = vmatpush1.msra.mxu0 0.0
        %6185 = vmatprep.subr.mxu0 0.0
        %6186 = vmatpush1.msra.mxu0 0.0
        %6187 = vmatprep.mubr.f32.mxu0 0.0
        %6188 = vmatmul.mubr.f32.gmra.mrb[0].mxu0 %v4804
        %v6189 = vpop.f32.mrb[0].mxu0
        %v6190 = vadd.f32 %v6121, %v6189
        %v6191 = vpop.f32.mrb[0].mxu0
        %6192 = vmatprep.mubr.f32.mxu0 0.0
        %6193 = vmatmul.mubr.f32.gmra.mrb[0].mxu0 %v4805
        %v6194 = vpop.f32.mrb[0].mxu0
        %v6195 = vadd.f32 %v6121, %v6194
        %v6196 = vpop.f32.mrb[0].mxu0
        %6197 = vmatprep.mubr.f32.mxu0 0.0
        %6198 = vmatmul.mubr.f32.gmra.mrb[0].mxu0 %v4806
        %v6199 = vpop.f32.mrb[0].mxu0
        %v6200 = vadd.f32 %v6121, %v6199
        %v6201 = vpop.f32.mrb[0].mxu0
        %6202 = vmatprep.mubr.f32.mxu0 0.0
        %6203 = vmatmul.mubr.f32.gmra.mrb[0].mxu0 %v4807
        %v6204 = vpop.f32.mrb[0].mxu0
        %v6205 = vadd.f32 %v6121, %v6204
        %v6206 = vpop.f32.mrb[0].mxu0
        %6207 = vmatprep.mubr.f32.mxu0 0.0
        %6208 = vmatmul.mubr.f32.gmra.mrb[0].mxu0 %v4808
        %v6209 = vpop.f32.mrb[0].mxu0
        %v6210 = vadd.f32 %v6121, %v6209
        %v6211 = vpop.f32.mrb[0].mxu0
        %6212 = vmatprep.mubr.f32.mxu0 0.0
        %6213 = vmatmul.mubr.f32.gmra.mrb[0].mxu0 %v4809
        %v6214 = vpop.f32.mrb[0].mxu0
        %v6215 = vadd.f32 %v6121, %v6214
        %v6216 = vpop.f32.mrb[0].mxu0
        %6217 = vmatprep.mubr.f32.mxu0 0.0
        %6218 = vmatmul.mubr.f32.gmra.mrb[0].mxu0 %v4810
        %v6219 = vpop.f32.mrb[0].mxu0
        %v6220 = vadd.f32 %v6121, %v6219
        %v6221 = vpop.f32.mrb[0].mxu0
        %6222 = vmatprep.mubr.f32.mxu0 0.0
        %6223 = vmatmul.mubr.f32.gmra.mrb[0].mxu0 %v4811
        %v6224 = vpop.f32.mrb[0].mxu0
        %v6225 = vadd.f32 %v6121, %v6224
        %v6226 = vpop.f32.mrb[0].mxu0
        %6227 = vmatprep.mubr.f32.mxu0 0.0
        %6228 = vmatmul.mubr.f32.gmra.mrb[0].mxu0 %v4812
        %v6229 = vpop.f32.mrb[0].mxu0
        %v6230 = vadd.f32 %v6121, %v6229
        %v6231 = vpop.f32.mrb[0].mxu0
        %6232 = vmatprep.mubr.f32.mxu0 0.0
        %6233 = vmatmul.mubr.f32.gmra.mrb[0].mxu0 %v4813
        %v6234 = vpop.f32.mrb[0].mxu0
        %v6235 = vadd.f32 %v6121, %v6234
        %v6236 = vpop.f32.mrb[0].mxu0
        %6237 = vmatprep.mubr.f32.mxu0 0.0
        %6238 = vmatmul.mubr.f32.gmra.mrb[0].mxu0 %v4814
        %v6239 = vpop.f32.mrb[0].mxu0
        %v6240 = vadd.f32 %v6121, %v6239
        %v6241 = vpop.f32.mrb[0].mxu0
        %6242 = vmatprep.mubr.f32.mxu0 0.0
        %6243 = vmatmul.mubr.f32.gmra.mrb[0].mxu0 %v4815
        %v6244 = vpop.f32.mrb[0].mxu0
        %v6245 = vadd.f32 %v6121, %v6244
        %v6246 = vpop.f32.mrb[0].mxu0
        %6247 = vmatprep.mubr.f32.mxu0 0.0
        %6248 = vmatmul.mubr.f32.gmra.mrb[0].mxu0 %v4816
        %v6249 = vpop.f32.mrb[0].mxu0
        %v6250 = vadd.f32 %v6121, %v6249
        %v6251 = vpop.f32.mrb[0].mxu0
        %6252 = vmatprep.mubr.f32.mxu0 0.0
        %6253 = vmatmul.mubr.f32.gmra.mrb[0].mxu0 %v4817
        %v6254 = vpop.f32.mrb[0].mxu0
        %v6255 = vadd.f32 %v6121, %v6254
        %v6256 = vpop.f32.mrb[0].mxu0
        %6257 = vmatprep.mubr.f32.mxu0 0.0
        %6258 = vmatmul.mubr.f32.gmra.mrb[0].mxu0 %v4818
        %v6259 = vpop.f32.mrb[0].mxu0
        %v6260 = vadd.f32 %v6121, %v6259
        %v6261 = vpop.f32.mrb[0].mxu0
        %6262 = vmatprep.mubr.f32.mxu0 0.0
        %6263 = vmatmul.mubr.f32.gmra.mrb[0].mxu0 %v4819
        %v6264 = vpop.f32.mrb[0].mxu0
        %v6265 = vadd.f32 %v6121, %v6264
        %v6266 = vpop.f32.mrb[0].mxu0
        %6267 = vmatprep.mubr.f32.mxu0 0.0
        %6268 = vmatmul.mubr.f32.gmra.mrb[0].mxu0 %v4820
        %v6269 = vpop.f32.mrb[0].mxu0
        %v6270 = vadd.f32 %v6121, %v6269
        %v6271 = vpop.f32.mrb[0].mxu0
        %6272 = vmatprep.mubr.f32.mxu0 0.0
        %6273 = vmatmul.mubr.f32.gmra.mrb[0].mxu0 %v4821
        %v6274 = vpop.f32.mrb[0].mxu0
        %v6275 = vadd.f32 %v6121, %v6274
        %v6276 = vpop.f32.mrb[0].mxu0
        %6277 = vmatprep.mubr.f32.mxu0 0.0
        %6278 = vmatmul.mubr.f32.gmra.mrb[0].mxu0 %v4822
        %v6279 = vpop.f32.mrb[0].mxu0
        %v6280 = vadd.f32 %v6121, %v6279
        %v6281 = vpop.f32.mrb[0].mxu0
        %6282 = vmatprep.mubr.f32.mxu0 0.0
        %6283 = vmatmul.mubr.f32.gmra.mrb[0].mxu0 %v4823
        %v6284 = vpop.f32.mrb[0].mxu0
        %v6285 = vadd.f32 %v6121, %v6284
        %v6286 = vpop.f32.mrb[0].mxu0
        %6287 = vmatprep.mubr.f32.mxu0 0.0
        %6288 = vmatmul.mubr.f32.gmra.mrb[0].mxu0 %v4824
        %v6289 = vpop.f32.mrb[0].mxu0
        %v6290 = vadd.f32 %v6121, %v6289
        %v6291 = vpop.f32.mrb[0].mxu0
        %6292 = vmatprep.mubr.f32.mxu0 0.0
        %6293 = vmatmul.mubr.f32.gmra.mrb[0].mxu0 %v4825
        %v6294 = vpop.f32.mrb[0].mxu0
        %v6295 = vadd.f32 %v6121, %v6294
        %v6296 = vpop.f32.mrb[0].mxu0
        %6297 = vmatprep.mubr.f32.mxu0 0.0
        %6298 = vmatmul.mubr.f32.gmra.mrb[0].mxu0 %v4826
        %v6299 = vpop.f32.mrb[0].mxu0
        %v6300 = vadd.f32 %v6121, %v6299
        %v6301 = vpop.f32.mrb[0].mxu0
        %6302 = vmatprep.mubr.f32.mxu0 0.0
        %6303 = vmatmul.mubr.f32.gmra.mrb[0].mxu0 %v4827
        %v6304 = vpop.f32.mrb[0].mxu0
        %v6305 = vadd.f32 %v6121, %v6304
        %v6306 = vpop.f32.mrb[0].mxu0
        %6307 = vmatprep.mubr.f32.mxu0 0.0
        %6308 = vmatmul.mubr.f32.gmra.mrb[0].mxu0 %v4828
        %v6309 = vpop.f32.mrb[0].mxu0
        %v6310 = vadd.f32 %v6121, %v6309
        %v6311 = vpop.f32.mrb[0].mxu0
        %6312 = vmatprep.mubr.f32.mxu0 0.0
        %6313 = vmatmul.mubr.f32.gmra.mrb[0].mxu0 %v4829
        %v6314 = vpop.f32.mrb[0].mxu0
        %v6315 = vadd.f32 %v6121, %v6314
        %v6316 = vpop.f32.mrb[0].mxu0
        %6317 = vmatprep.mubr.f32.mxu0 0.0
        %6318 = vmatmul.mubr.f32.gmra.mrb[0].mxu0 %v4830
        %v6319 = vpop.f32.mrb[0].mxu0
        %v6320 = vadd.f32 %v6121, %v6319
        %v6321 = vpop.f32.mrb[0].mxu0
        %6322 = vmatprep.mubr.f32.mxu0 0.0
        %6323 = vmatmul.mubr.f32.gmra.mrb[0].mxu0 %v4831
        %v6324 = vpop.f32.mrb[0].mxu0
        %v6325 = vadd.f32 %v6121, %v6324
        %v6326 = vpop.f32.mrb[0].mxu0
        %6327 = vmatprep.mubr.f32.mxu0 0.0
        %6328 = vmatmul.mubr.f32.gmra.mrb[0].mxu0 %v4832
        %v6329 = vpop.f32.mrb[0].mxu0
        %v6330 = vadd.f32 %v6121, %v6329
        %v6331 = vpop.f32.mrb[0].mxu0
        %6332 = vmatprep.mubr.f32.mxu0 0.0
        %6333 = vmatmul.mubr.f32.gmra.mrb[0].mxu0 %v4833
        %v6334 = vpop.f32.mrb[0].mxu0
        %v6335 = vadd.f32 %v6121, %v6334
        %v6336 = vpop.f32.mrb[0].mxu0
        %6337 = vmatprep.mubr.f32.mxu0 0.0
        %6338 = vmatmul.mubr.f32.gmra.mrb[0].mxu0 %v4834
        %v6339 = vpop.f32.mrb[0].mxu0
        %v6340 = vadd.f32 %v6121, %v6339
        %v6341 = vpop.f32.mrb[0].mxu0
        %6342 = vmatprep.mubr.f32.mxu0 0.0
        %6343 = vmatmul.mubr.f32.gmra.mrb[0].mxu0 %v4835
        %v6344 = vpop.f32.mrb[0].mxu0
        %v6345 = vadd.f32 %v6121, %v6344
        %v6346 = vpop.f32.mrb[0].mxu0
        %6347 = vmatprep.mubr.f32.mxu0 0.0
        %6348 = vmatmul.mubr.f32.gmra.mrb[0].mxu0 %v4836
        %v6349 = vpop.f32.mrb[0].mxu0
        %v6350 = vadd.f32 %v6121, %v6349
        %v6351 = vpop.f32.mrb[0].mxu0
        %6352 = vmatprep.mubr.f32.mxu0 0.0
        %6353 = vmatmul.mubr.f32.gmra.mrb[0].mxu0 %v4837
        %v6354 = vpop.f32.mrb[0].mxu0
        %v6355 = vadd.f32 %v6121, %v6354
        %v6356 = vpop.f32.mrb[0].mxu0
        %6357 = vmatprep.mubr.f32.mxu0 0.0
        %6358 = vmatmul.mubr.f32.gmra.mrb[0].mxu0 %v4838
        %v6359 = vpop.f32.mrb[0].mxu0
        %v6360 = vadd.f32 %v6121, %v6359
        %v6361 = vpop.f32.mrb[0].mxu0
        %6362 = vmatprep.mubr.f32.mxu0 0.0
        %6363 = vmatmul.mubr.f32.gmra.mrb[0].mxu0 %v4839
        %v6364 = vpop.f32.mrb[0].mxu0
        %v6365 = vadd.f32 %v6121, %v6364
        %v6366 = vpop.f32.mrb[0].mxu0
        %6367 = vmatprep.mubr.f32.mxu0 0.0
        %6368 = vmatmul.mubr.f32.gmra.mrb[0].mxu0 %v4840
        %v6369 = vpop.f32.mrb[0].mxu0
        %v6370 = vadd.f32 %v6121, %v6369
        %v6371 = vpop.f32.mrb[0].mxu0
        %6372 = vmatprep.mubr.f32.mxu0 0.0
        %6373 = vmatmul.mubr.f32.gmra.mrb[0].mxu0 %v4841
        %v6374 = vpop.f32.mrb[0].mxu0
        %v6375 = vadd.f32 %v6121, %v6374
        %v6376 = vpop.f32.mrb[0].mxu0
        %6377 = vmatprep.mubr.f32.mxu0 0.0
        %6378 = vmatmul.mubr.f32.gmra.mrb[0].mxu0 %v4842
        %v6379 = vpop.f32.mrb[0].mxu0
        %v6380 = vadd.f32 %v6121, %v6379
        %v6381 = vpop.f32.mrb[0].mxu0
        %6382 = vmatprep.mubr.f32.mxu0 0.0
        %6383 = vmatmul.mubr.f32.gmra.mrb[0].mxu0 %v4843
        %v6384 = vpop.f32.mrb[0].mxu0
        %v6385 = vadd.f32 %v6121, %v6384
        %v6386 = vpop.f32.mrb[0].mxu0
        %6387 = vmatprep.mubr.f32.mxu0 0.0
        %6388 = vmatmul.mubr.f32.gmra.mrb[0].mxu0 %v4844
        %v6389 = vpop.f32.mrb[0].mxu0
        %v6390 = vadd.f32 %v6121, %v6389
        %v6391 = vpop.f32.mrb[0].mxu0
        %6392 = vmatprep.mubr.f32.mxu0 0.0
        %6393 = vmatmul.mubr.f32.gmra.mrb[0].mxu0 %v4845
        %v6394 = vpop.f32.mrb[0].mxu0
        %v6395 = vadd.f32 %v6121, %v6394
        %v6396 = vpop.f32.mrb[0].mxu0
        %6397 = vmatprep.mubr.f32.mxu0 0.0
        %6398 = vmatmul.mubr.f32.gmra.mrb[0].mxu0 %v4846
        %v6399 = vpop.f32.mrb[0].mxu0
        %v6400 = vadd.f32 %v6121, %v6399
        %v6401 = vpop.f32.mrb[0].mxu0
        %6402 = vmatprep.mubr.f32.mxu0 0.0
        %6403 = vmatmul.mubr.f32.gmra.mrb[0].mxu0 %v4847
        %v6404 = vpop.f32.mrb[0].mxu0
        %v6405 = vadd.f32 %v6121, %v6404
        %v6406 = vpop.f32.mrb[0].mxu0
        %6407 = vmatprep.mubr.f32.mxu0 0.0
        %6408 = vmatmul.mubr.f32.gmra.mrb[0].mxu0 %v4848
        %v6409 = vpop.f32.mrb[0].mxu0
        %v6410 = vadd.f32 %v6121, %v6409
        %v6411 = vpop.f32.mrb[0].mxu0
        %6412 = vmatprep.mubr.f32.mxu0 0.0
        %6413 = vmatmul.mubr.f32.gmra.mrb[0].mxu0 %v4849
        %v6414 = vpop.f32.mrb[0].mxu0
        %v6415 = vadd.f32 %v6121, %v6414
        %v6416 = vpop.f32.mrb[0].mxu0
        %6417 = vmatprep.mubr.f32.mxu0 0.0
        %6418 = vmatmul.mubr.f32.gmra.mrb[0].mxu0 %v4850
        %v6419 = vpop.f32.mrb[0].mxu0
        %v6420 = vadd.f32 %v6121, %v6419
        %v6421 = vpop.f32.mrb[0].mxu0
        %6422 = vmatprep.mubr.f32.mxu0 0.0
        %6423 = vmatmul.mubr.f32.gmra.mrb[0].mxu0 %v4851
        %v6424 = vpop.f32.mrb[0].mxu0
        %v6425 = vadd.f32 %v6121, %v6424
        %v6426 = vpop.f32.mrb[0].mxu0
        %6427 = vmatprep.mubr.f32.mxu0 0.0
        %6428 = vmatmul.mubr.f32.gmra.mrb[0].mxu0 %v4852
        %v6429 = vpop.f32.mrb[0].mxu0
        %v6430 = vadd.f32 %v6121, %v6429
        %v6431 = vpop.f32.mrb[0].mxu0
        %6432 = vmatprep.mubr.f32.mxu0 0.0
        %6433 = vmatmul.mubr.f32.gmra.mrb[0].mxu0 %v4853
        %v6434 = vpop.f32.mrb[0].mxu0
        %v6435 = vadd.f32 %v6121, %v6434
        %v6436 = vpop.f32.mrb[0].mxu0
        %6437 = vmatprep.mubr.f32.mxu0 0.0
        %6438 = vmatmul.mubr.f32.gmra.mrb[0].mxu0 %v4854
        %v6439 = vpop.f32.mrb[0].mxu0
        %v6440 = vadd.f32 %v6121, %v6439
        %v6441 = vpop.f32.mrb[0].mxu0
        %6442 = vmatprep.mubr.f32.mxu0 0.0
        %6443 = vmatmul.mubr.f32.gmra.mrb[0].mxu0 %v4855
        %v6444 = vpop.f32.mrb[0].mxu0
        %v6445 = vadd.f32 %v6121, %v6444
        %v6446 = vpop.f32.mrb[0].mxu0
        %6447 = vmatprep.mubr.f32.mxu0 0.0
        %6448 = vmatmul.mubr.f32.gmra.mrb[0].mxu0 %v4856
        %v6449 = vpop.f32.mrb[0].mxu0
        %v6450 = vadd.f32 %v6121, %v6449
        %v6451 = vpop.f32.mrb[0].mxu0
        %6452 = vmatprep.mubr.f32.mxu0 0.0
        %6453 = vmatmul.mubr.f32.gmra.mrb[0].mxu0 %v4857
        %v6454 = vpop.f32.mrb[0].mxu0
        %v6455 = vadd.f32 %v6121, %v6454
        %v6456 = vpop.f32.mrb[0].mxu0
        %6457 = vmatprep.mubr.f32.mxu0 0.0
        %6458 = vmatmul.mubr.f32.gmra.mrb[0].mxu0 %v4858
        %v6459 = vpop.f32.mrb[0].mxu0
        %v6460 = vadd.f32 %v6121, %v6459
        %v6461 = vpop.f32.mrb[0].mxu0
        %6462 = vmatprep.mubr.f32.mxu0 0.0
        %6463 = vmatmul.mubr.f32.gmra.mrb[0].mxu0 %v4859
        %v6464 = vpop.f32.mrb[0].mxu0
        %v6465 = vadd.f32 %v6121, %v6464
        %v6466 = vpop.f32.mrb[0].mxu0
        %6467 = vmatprep.mubr.f32.mxu0 0.0
        %6468 = vmatmul.mubr.f32.gmra.mrb[0].mxu0 %v4860
        %v6469 = vpop.f32.mrb[0].mxu0
        %v6470 = vadd.f32 %v6121, %v6469
        %v6471 = vpop.f32.mrb[0].mxu0
        %6472 = vmatprep.mubr.f32.mxu0 0.0
        %6473 = vmatmul.mubr.f32.gmra.mrb[0].mxu0 %v4861
        %v6474 = vpop.f32.mrb[0].mxu0
        %v6475 = vadd.f32 %v6121, %v6474
        %v6476 = vpop.f32.mrb[0].mxu0
        %6477 = vmatprep.mubr.f32.mxu0 0.0
        %6478 = vmatmul.mubr.f32.gmra.mrb[0].mxu0 %v4862
        %v6479 = vpop.f32.mrb[0].mxu0
        %v6480 = vadd.f32 %v6121, %v6479
        %v6481 = vpop.f32.mrb[0].mxu0
        %6482 = vmatprep.mubr.f32.mxu0 0.0
        %6483 = vmatmul.mubr.f32.gmra.mrb[0].mxu0 %v4863
        %v6484 = vpop.f32.mrb[0].mxu0
        %v6485 = vadd.f32 %v6121, %v6484
        %v6486 = vpop.f32.mrb[0].mxu0
        %6487 = vmatprep.mubr.f32.mxu0 0.0
        %6488 = vmatmul.mubr.f32.gmra.mrb[0].mxu0 %v4864
        %v6489 = vpop.f32.mrb[0].mxu0
        %v6490 = vadd.f32 %v6121, %v6489
        %v6491 = vpop.f32.mrb[0].mxu0
        %6492 = vmatprep.mubr.f32.mxu0 0.0
        %6493 = vmatmul.mubr.f32.gmra.mrb[0].mxu0 %v4865
        %v6494 = vpop.f32.mrb[0].mxu0
        %v6495 = vadd.f32 %v6121, %v6494
        %v6496 = vpop.f32.mrb[0].mxu0
        %6497 = vmatprep.mubr.f32.mxu0 0.0
        %6498 = vmatmul.mubr.f32.gmra.mrb[0].mxu0 %v4866
        %v6499 = vpop.f32.mrb[0].mxu0
        %v6500 = vadd.f32 %v6121, %v6499
        %v6501 = vpop.f32.mrb[0].mxu0
        %6502 = vmatprep.mubr.f32.mxu0 0.0
        %6503 = vmatmul.mubr.f32.gmra.mrb[0].mxu0 %v4867
        %v6504 = vpop.f32.mrb[0].mxu0
        %v6505 = vadd.f32 %v6121, %v6504
        %v6506 = vpop.f32.mrb[0].mxu0
        %6507 = vdwg.mxu0
        %v6508 = vmul.f32 %v4960, 0.5
        %v6509 = vmul.f32 %v4965, 0.5
        %v6510 = vmul.f32 %v4970, 0.5
        %v6511 = vmul.f32 %v4975, 0.5
        %v6512 = vmul.f32 %v4980, 0.5
        %v6513 = vmul.f32 %v4985, 0.5
        %v6514 = vmul.f32 %v4990, 0.5
        %v6515 = vmul.f32 %v4995, 0.5
        %v6516 = vmul.f32 %v5000, 0.5
        %v6517 = vmul.f32 %v5005, 0.5
        %v6518 = vmul.f32 %v5010, 0.5
        %v6519 = vmul.f32 %v5015, 0.5
        %v6520 = vmul.f32 %v5020, 0.5
        %v6521 = vmul.f32 %v5025, 0.5
        %v6522 = vmul.f32 %v5030, 0.5
        %v6523 = vmul.f32 %v5035, 0.5
        %v6524 = vmul.f32 %v5040, 0.5
        %v6525 = vmul.f32 %v5045, 0.5
        %v6526 = vmul.f32 %v5050, 0.5
        %v6527 = vmul.f32 %v5055, 0.5
        %v6528 = vmul.f32 %v5060, 0.5
        %v6529 = vmul.f32 %v5065, 0.5
        %v6530 = vmul.f32 %v5070, 0.5
        %v6531 = vmul.f32 %v5075, 0.5
        %v6532 = vmul.f32 %v5080, 0.5
        %v6533 = vmul.f32 %v5085, 0.5
        %v6534 = vmul.f32 %v5090, 0.5
        %v6535 = vmul.f32 %v5095, 0.5
        %v6536 = vmul.f32 %v5100, 0.5
        %v6537 = vmul.f32 %v5105, 0.5
        %v6538 = vmul.f32 %v5110, 0.5
        %v6539 = vmul.f32 %v5115, 0.5
        %v6540 = vmul.f32 %v5120, 0.5
        %v6541 = vmul.f32 %v5125, 0.5
        %v6542 = vmul.f32 %v5130, 0.5
        %v6543 = vmul.f32 %v5135, 0.5
        %v6544 = vmul.f32 %v5140, 0.5
        %v6545 = vmul.f32 %v5145, 0.5
        %v6546 = vmul.f32 %v5150, 0.5
        %v6547 = vmul.f32 %v5155, 0.5
        %v6548 = vmul.f32 %v5160, 0.5
        %v6549 = vmul.f32 %v5165, 0.5
        %v6550 = vmul.f32 %v5170, 0.5
        %v6551 = vmul.f32 %v5175, 0.5
        %v6552 = vmul.f32 %v5180, 0.5
        %v6553 = vmul.f32 %v5185, 0.5
        %v6554 = vmul.f32 %v5190, 0.5
        %v6555 = vmul.f32 %v5195, 0.5
        %v6556 = vmul.f32 %v5200, 0.5
        %v6557 = vmul.f32 %v5205, 0.5
        %v6558 = vmul.f32 %v5210, 0.5
        %v6559 = vmul.f32 %v5215, 0.5
        %v6560 = vmul.f32 %v5220, 0.5
        %v6561 = vmul.f32 %v5225, 0.5
        %v6562 = vmul.f32 %v5230, 0.5
        %v6563 = vmul.f32 %v5235, 0.5
        %v6564 = vmul.f32 %v5240, 0.5
        %v6565 = vmul.f32 %v5245, 0.5
        %v6566 = vmul.f32 %v5250, 0.5
        %v6567 = vmul.f32 %v5255, 0.5
        %v6568 = vmul.f32 %v5260, 0.5
        %v6569 = vmul.f32 %v5265, 0.5
        %v6570 = vmul.f32 %v5270, 0.5
        %v6571 = vmul.f32 %v5275, 0.5
        %v6572 = vtanh.pop %v6508
        %v6573 = vtanh.pop %v6509
        %v6574 = vtanh.pop %v6510
        %v6575 = vtanh.pop %v6511
        %v6576 = vtanh.pop %v6512
        %v6577 = vtanh.pop %v6513
        %v6578 = vtanh.pop %v6514
        %v6579 = vtanh.pop %v6515
        %v6580 = vtanh.pop %v6516
        %v6581 = vtanh.pop %v6517
        %v6582 = vtanh.pop %v6518
        %v6583 = vtanh.pop %v6519
        %v6584 = vtanh.pop %v6520
        %v6585 = vtanh.pop %v6521
        %v6586 = vtanh.pop %v6522
        %v6587 = vtanh.pop %v6523
        %v6588 = vtanh.pop %v6524
        %v6589 = vtanh.pop %v6525
        %v6590 = vtanh.pop %v6526
        %v6591 = vtanh.pop %v6527
        %v6592 = vtanh.pop %v6528
        %v6593 = vtanh.pop %v6529
        %v6594 = vtanh.pop %v6530
        %v6595 = vtanh.pop %v6531
        %v6596 = vtanh.pop %v6532
        %v6597 = vtanh.pop %v6533
        %v6598 = vtanh.pop %v6534
        %v6599 = vtanh.pop %v6535
        %v6600 = vtanh.pop %v6536
        %v6601 = vtanh.pop %v6537
        %v6602 = vtanh.pop %v6538
        %v6603 = vtanh.pop %v6539
        %v6604 = vtanh.pop %v6540
        %v6605 = vtanh.pop %v6541
        %v6606 = vtanh.pop %v6542
        %v6607 = vtanh.pop %v6543
        %v6608 = vtanh.pop %v6544
        %v6609 = vtanh.pop %v6545
        %v6610 = vtanh.pop %v6546
        %v6611 = vtanh.pop %v6547
        %v6612 = vtanh.pop %v6548
        %v6613 = vtanh.pop %v6549
        %v6614 = vtanh.pop %v6550
        %v6615 = vtanh.pop %v6551
        %v6616 = vtanh.pop %v6552
        %v6617 = vtanh.pop %v6553
        %v6618 = vtanh.pop %v6554
        %v6619 = vtanh.pop %v6555
        %v6620 = vtanh.pop %v6556
        %v6621 = vtanh.pop %v6557
        %v6622 = vtanh.pop %v6558
        %v6623 = vtanh.pop %v6559
        %v6624 = vtanh.pop %v6560
        %v6625 = vtanh.pop %v6561
        %v6626 = vtanh.pop %v6562
        %v6627 = vtanh.pop %v6563
        %v6628 = vtanh.pop %v6564
        %v6629 = vtanh.pop %v6565
        %v6630 = vtanh.pop %v6566
        %v6631 = vtanh.pop %v6567
        %v6632 = vtanh.pop %v6568
        %v6633 = vtanh.pop %v6569
        %v6634 = vtanh.pop %v6570
        %v6635 = vtanh.pop %v6571
        %v6636 = vmul.f32 %v6572, 0.5
        %v6637 = vmul.f32 %v6573, 0.5
        %v6638 = vmul.f32 %v6574, 0.5
        %v6639 = vmul.f32 %v6575, 0.5
        %v6640 = vmul.f32 %v6576, 0.5
        %v6641 = vmul.f32 %v6577, 0.5
        %v6642 = vmul.f32 %v6578, 0.5
        %v6643 = vmul.f32 %v6579, 0.5
        %v6644 = vmul.f32 %v6580, 0.5
        %v6645 = vmul.f32 %v6581, 0.5
        %v6646 = vmul.f32 %v6582, 0.5
        %v6647 = vmul.f32 %v6583, 0.5
        %v6648 = vmul.f32 %v6584, 0.5
        %v6649 = vmul.f32 %v6585, 0.5
        %v6650 = vmul.f32 %v6586, 0.5
        %v6651 = vmul.f32 %v6587, 0.5
        %v6652 = vmul.f32 %v6588, 0.5
        %v6653 = vmul.f32 %v6589, 0.5
        %v6654 = vmul.f32 %v6590, 0.5
        %v6655 = vmul.f32 %v6591, 0.5
        %v6656 = vmul.f32 %v6592, 0.5
        %v6657 = vmul.f32 %v6593, 0.5
        %v6658 = vmul.f32 %v6594, 0.5
        %v6659 = vmul.f32 %v6595, 0.5
        %v6660 = vmul.f32 %v6596, 0.5
        %v6661 = vmul.f32 %v6597, 0.5
        %v6662 = vmul.f32 %v6598, 0.5
        %v6663 = vmul.f32 %v6599, 0.5
        %v6664 = vmul.f32 %v6600, 0.5
        %v6665 = vmul.f32 %v6601, 0.5
        %v6666 = vmul.f32 %v6602, 0.5
        %v6667 = vmul.f32 %v6603, 0.5
        %v6668 = vmul.f32 %v6604, 0.5
        %v6669 = vmul.f32 %v6605, 0.5
        %v6670 = vmul.f32 %v6606, 0.5
        %v6671 = vmul.f32 %v6607, 0.5
        %v6672 = vmul.f32 %v6608, 0.5
        %v6673 = vmul.f32 %v6609, 0.5
        %v6674 = vmul.f32 %v6610, 0.5
        %v6675 = vmul.f32 %v6611, 0.5
        %v6676 = vmul.f32 %v6612, 0.5
        %v6677 = vmul.f32 %v6613, 0.5
        %v6678 = vmul.f32 %v6614, 0.5
        %v6679 = vmul.f32 %v6615, 0.5
        %v6680 = vmul.f32 %v6616, 0.5
        %v6681 = vmul.f32 %v6617, 0.5
        %v6682 = vmul.f32 %v6618, 0.5
        %v6683 = vmul.f32 %v6619, 0.5
        %v6684 = vmul.f32 %v6620, 0.5
        %v6685 = vmul.f32 %v6621, 0.5
        %v6686 = vmul.f32 %v6622, 0.5
        %v6687 = vmul.f32 %v6623, 0.5
        %v6688 = vmul.f32 %v6624, 0.5
        %v6689 = vmul.f32 %v6625, 0.5
        %v6690 = vmul.f32 %v6626, 0.5
        %v6691 = vmul.f32 %v6627, 0.5
        %v6692 = vmul.f32 %v6628, 0.5
        %v6693 = vmul.f32 %v6629, 0.5
        %v6694 = vmul.f32 %v6630, 0.5
        %v6695 = vmul.f32 %v6631, 0.5
        %v6696 = vmul.f32 %v6632, 0.5
        %v6697 = vmul.f32 %v6633, 0.5
        %v6698 = vmul.f32 %v6634, 0.5
        %v6699 = vmul.f32 %v6635, 0.5
        %v6700 = vadd.f32 %v6636, 0.5
        %v6701 = vadd.f32 %v6637, 0.5
        %v6702 = vadd.f32 %v6638, 0.5
        %v6703 = vadd.f32 %v6639, 0.5
        %v6704 = vadd.f32 %v6640, 0.5
        %v6705 = vadd.f32 %v6641, 0.5
        %v6706 = vadd.f32 %v6642, 0.5
        %v6707 = vadd.f32 %v6643, 0.5
        %v6708 = vadd.f32 %v6644, 0.5
        %v6709 = vadd.f32 %v6645, 0.5
        %v6710 = vadd.f32 %v6646, 0.5
        %v6711 = vadd.f32 %v6647, 0.5
        %v6712 = vadd.f32 %v6648, 0.5
        %v6713 = vadd.f32 %v6649, 0.5
        %v6714 = vadd.f32 %v6650, 0.5
        %v6715 = vadd.f32 %v6651, 0.5
        %v6716 = vadd.f32 %v6652, 0.5
        %v6717 = vadd.f32 %v6653, 0.5
        %v6718 = vadd.f32 %v6654, 0.5
        %v6719 = vadd.f32 %v6655, 0.5
        %v6720 = vadd.f32 %v6656, 0.5
        %v6721 = vadd.f32 %v6657, 0.5
        %v6722 = vadd.f32 %v6658, 0.5
        %v6723 = vadd.f32 %v6659, 0.5
        %v6724 = vadd.f32 %v6660, 0.5
        %v6725 = vadd.f32 %v6661, 0.5
        %v6726 = vadd.f32 %v6662, 0.5
        %v6727 = vadd.f32 %v6663, 0.5
        %v6728 = vadd.f32 %v6664, 0.5
        %v6729 = vadd.f32 %v6665, 0.5
        %v6730 = vadd.f32 %v6666, 0.5
        %v6731 = vadd.f32 %v6667, 0.5
        %v6732 = vadd.f32 %v6668, 0.5
        %v6733 = vadd.f32 %v6669, 0.5
        %v6734 = vadd.f32 %v6670, 0.5
        %v6735 = vadd.f32 %v6671, 0.5
        %v6736 = vadd.f32 %v6672, 0.5
        %v6737 = vadd.f32 %v6673, 0.5
        %v6738 = vadd.f32 %v6674, 0.5
        %v6739 = vadd.f32 %v6675, 0.5
        %v6740 = vadd.f32 %v6676, 0.5
        %v6741 = vadd.f32 %v6677, 0.5
        %v6742 = vadd.f32 %v6678, 0.5
        %v6743 = vadd.f32 %v6679, 0.5
        %v6744 = vadd.f32 %v6680, 0.5
        %v6745 = vadd.f32 %v6681, 0.5
        %v6746 = vadd.f32 %v6682, 0.5
        %v6747 = vadd.f32 %v6683, 0.5
        %v6748 = vadd.f32 %v6684, 0.5
        %v6749 = vadd.f32 %v6685, 0.5
        %v6750 = vadd.f32 %v6686, 0.5
        %v6751 = vadd.f32 %v6687, 0.5
        %v6752 = vadd.f32 %v6688, 0.5
        %v6753 = vadd.f32 %v6689, 0.5
        %v6754 = vadd.f32 %v6690, 0.5
        %v6755 = vadd.f32 %v6691, 0.5
        %v6756 = vadd.f32 %v6692, 0.5
        %v6757 = vadd.f32 %v6693, 0.5
        %v6758 = vadd.f32 %v6694, 0.5
        %v6759 = vadd.f32 %v6695, 0.5
        %v6760 = vadd.f32 %v6696, 0.5
        %v6761 = vadd.f32 %v6697, 0.5
        %v6762 = vadd.f32 %v6698, 0.5
        %v6763 = vadd.f32 %v6699, 0.5
        %v6764 = vmul.f32 %v5370, 0.5
        %v6765 = vmul.f32 %v5375, 0.5
        %v6766 = vmul.f32 %v5380, 0.5
        %v6767 = vmul.f32 %v5385, 0.5
        %v6768 = vmul.f32 %v5390, 0.5
        %v6769 = vmul.f32 %v5395, 0.5
        %v6770 = vmul.f32 %v5400, 0.5
        %v6771 = vmul.f32 %v5405, 0.5
        %v6772 = vmul.f32 %v5410, 0.5
        %v6773 = vmul.f32 %v5415, 0.5
        %v6774 = vmul.f32 %v5420, 0.5
        %v6775 = vmul.f32 %v5425, 0.5
        %v6776 = vmul.f32 %v5430, 0.5
        %v6777 = vmul.f32 %v5435, 0.5
        %v6778 = vmul.f32 %v5440, 0.5
        %v6779 = vmul.f32 %v5445, 0.5
        %v6780 = vmul.f32 %v5450, 0.5
        %v6781 = vmul.f32 %v5455, 0.5
        %v6782 = vmul.f32 %v5460, 0.5
        %v6783 = vmul.f32 %v5465, 0.5
        %v6784 = vmul.f32 %v5470, 0.5
        %v6785 = vmul.f32 %v5475, 0.5
        %v6786 = vmul.f32 %v5480, 0.5
        %v6787 = vmul.f32 %v5485, 0.5
        %v6788 = vmul.f32 %v5490, 0.5
        %v6789 = vmul.f32 %v5495, 0.5
        %v6790 = vmul.f32 %v5500, 0.5
        %v6791 = vmul.f32 %v5505, 0.5
        %v6792 = vmul.f32 %v5510, 0.5
        %v6793 = vmul.f32 %v5515, 0.5
        %v6794 = vmul.f32 %v5520, 0.5
        %v6795 = vmul.f32 %v5525, 0.5
        %v6796 = vmul.f32 %v5530, 0.5
        %v6797 = vmul.f32 %v5535, 0.5
        %v6798 = vmul.f32 %v5540, 0.5
        %v6799 = vmul.f32 %v5545, 0.5
        %v6800 = vmul.f32 %v5550, 0.5
        %v6801 = vmul.f32 %v5555, 0.5
        %v6802 = vmul.f32 %v5560, 0.5
        %v6803 = vmul.f32 %v5565, 0.5
        %v6804 = vmul.f32 %v5570, 0.5
        %v6805 = vmul.f32 %v5575, 0.5
        %v6806 = vmul.f32 %v5580, 0.5
        %v6807 = vmul.f32 %v5585, 0.5
        %v6808 = vmul.f32 %v5590, 0.5
        %v6809 = vmul.f32 %v5595, 0.5
        %v6810 = vmul.f32 %v5600, 0.5
        %v6811 = vmul.f32 %v5605, 0.5
        %v6812 = vmul.f32 %v5610, 0.5
        %v6813 = vmul.f32 %v5615, 0.5
        %v6814 = vmul.f32 %v5620, 0.5
        %v6815 = vmul.f32 %v5625, 0.5
        %v6816 = vmul.f32 %v5630, 0.5
        %v6817 = vmul.f32 %v5635, 0.5
        %v6818 = vmul.f32 %v5640, 0.5
        %v6819 = vmul.f32 %v5645, 0.5
        %v6820 = vmul.f32 %v5650, 0.5
        %v6821 = vmul.f32 %v5655, 0.5
        %v6822 = vmul.f32 %v5660, 0.5
        %v6823 = vmul.f32 %v5665, 0.5
        %v6824 = vmul.f32 %v5670, 0.5
        %v6825 = vmul.f32 %v5675, 0.5
        %v6826 = vmul.f32 %v5680, 0.5
        %v6827 = vmul.f32 %v5685, 0.5
        %v6828 = vtanh.pop %v6764
        %v6829 = vtanh.pop %v6765
        %v6830 = vtanh.pop %v6766
        %v6831 = vtanh.pop %v6767
        %v6832 = vtanh.pop %v6768
        %v6833 = vtanh.pop %v6769
        %v6834 = vtanh.pop %v6770
        %v6835 = vtanh.pop %v6771
        %v6836 = vtanh.pop %v6772
        %v6837 = vtanh.pop %v6773
        %v6838 = vtanh.pop %v6774
        %v6839 = vtanh.pop %v6775
        %v6840 = vtanh.pop %v6776
        %v6841 = vtanh.pop %v6777
        %v6842 = vtanh.pop %v6778
        %v6843 = vtanh.pop %v6779
        %v6844 = vtanh.pop %v6780
        %v6845 = vtanh.pop %v6781
        %v6846 = vtanh.pop %v6782
        %v6847 = vtanh.pop %v6783
        %v6848 = vtanh.pop %v6784
        %v6849 = vtanh.pop %v6785
        %v6850 = vtanh.pop %v6786
        %v6851 = vtanh.pop %v6787
        %v6852 = vtanh.pop %v6788
        %v6853 = vtanh.pop %v6789
        %v6854 = vtanh.pop %v6790
        %v6855 = vtanh.pop %v6791
        %v6856 = vtanh.pop %v6792
        %v6857 = vtanh.pop %v6793
        %v6858 = vtanh.pop %v6794
        %v6859 = vtanh.pop %v6795
        %v6860 = vtanh.pop %v6796
        %v6861 = vtanh.pop %v6797
        %v6862 = vtanh.pop %v6798
        %v6863 = vtanh.pop %v6799
        %v6864 = vtanh.pop %v6800
        %v6865 = vtanh.pop %v6801
        %v6866 = vtanh.pop %v6802
        %v6867 = vtanh.pop %v6803
        %v6868 = vtanh.pop %v6804
        %v6869 = vtanh.pop %v6805
        %v6870 = vtanh.pop %v6806
        %v6871 = vtanh.pop %v6807
        %v6872 = vtanh.pop %v6808
        %v6873 = vtanh.pop %v6809
        %v6874 = vtanh.pop %v6810
        %v6875 = vtanh.pop %v6811
        %v6876 = vtanh.pop %v6812
        %v6877 = vtanh.pop %v6813
        %v6878 = vtanh.pop %v6814
        %v6879 = vtanh.pop %v6815
        %v6880 = vtanh.pop %v6816
        %v6881 = vtanh.pop %v6817
        %v6882 = vtanh.pop %v6818
        %v6883 = vtanh.pop %v6819
        %v6884 = vtanh.pop %v6820
        %v6885 = vtanh.pop %v6821
        %v6886 = vtanh.pop %v6822
        %v6887 = vtanh.pop %v6823
        %v6888 = vtanh.pop %v6824
        %v6889 = vtanh.pop %v6825
        %v6890 = vtanh.pop %v6826
        %v6891 = vtanh.pop %v6827
        %v6892 = vmul.f32 %v6828, 0.5
        %v6893 = vmul.f32 %v6829, 0.5
        %v6894 = vmul.f32 %v6830, 0.5
        %v6895 = vmul.f32 %v6831, 0.5
        %v6896 = vmul.f32 %v6832, 0.5
        %v6897 = vmul.f32 %v6833, 0.5
        %v6898 = vmul.f32 %v6834, 0.5
        %v6899 = vmul.f32 %v6835, 0.5
        %v6900 = vmul.f32 %v6836, 0.5
        %v6901 = vmul.f32 %v6837, 0.5
        %v6902 = vmul.f32 %v6838, 0.5
        %v6903 = vmul.f32 %v6839, 0.5
        %v6904 = vmul.f32 %v6840, 0.5
        %v6905 = vmul.f32 %v6841, 0.5
        %v6906 = vmul.f32 %v6842, 0.5
        %v6907 = vmul.f32 %v6843, 0.5
        %v6908 = vmul.f32 %v6844, 0.5
        %v6909 = vmul.f32 %v6845, 0.5
        %v6910 = vmul.f32 %v6846, 0.5
        %v6911 = vmul.f32 %v6847, 0.5
        %v6912 = vmul.f32 %v6848, 0.5
        %v6913 = vmul.f32 %v6849, 0.5
        %v6914 = vmul.f32 %v6850, 0.5
        %v6915 = vmul.f32 %v6851, 0.5
        %v6916 = vmul.f32 %v6852, 0.5
        %v6917 = vmul.f32 %v6853, 0.5
        %v6918 = vmul.f32 %v6854, 0.5
        %v6919 = vmul.f32 %v6855, 0.5
        %v6920 = vmul.f32 %v6856, 0.5
        %v6921 = vmul.f32 %v6857, 0.5
        %v6922 = vmul.f32 %v6858, 0.5
        %v6923 = vmul.f32 %v6859, 0.5
        %v6924 = vmul.f32 %v6860, 0.5
        %v6925 = vmul.f32 %v6861, 0.5
        %v6926 = vmul.f32 %v6862, 0.5
        %v6927 = vmul.f32 %v6863, 0.5
        %v6928 = vmul.f32 %v6864, 0.5
        %v6929 = vmul.f32 %v6865, 0.5
        %v6930 = vmul.f32 %v6866, 0.5
        %v6931 = vmul.f32 %v6867, 0.5
        %v6932 = vmul.f32 %v6868, 0.5
        %v6933 = vmul.f32 %v6869, 0.5
        %v6934 = vmul.f32 %v6870, 0.5
        %v6935 = vmul.f32 %v6871, 0.5
        %v6936 = vmul.f32 %v6872, 0.5
        %v6937 = vmul.f32 %v6873, 0.5
        %v6938 = vmul.f32 %v6874, 0.5
        %v6939 = vmul.f32 %v6875, 0.5
        %v6940 = vmul.f32 %v6876, 0.5
        %v6941 = vmul.f32 %v6877, 0.5
        %v6942 = vmul.f32 %v6878, 0.5
        %v6943 = vmul.f32 %v6879, 0.5
        %v6944 = vmul.f32 %v6880, 0.5
        %v6945 = vmul.f32 %v6881, 0.5
        %v6946 = vmul.f32 %v6882, 0.5
        %v6947 = vmul.f32 %v6883, 0.5
        %v6948 = vmul.f32 %v6884, 0.5
        %v6949 = vmul.f32 %v6885, 0.5
        %v6950 = vmul.f32 %v6886, 0.5
        %v6951 = vmul.f32 %v6887, 0.5
        %v6952 = vmul.f32 %v6888, 0.5
        %v6953 = vmul.f32 %v6889, 0.5
        %v6954 = vmul.f32 %v6890, 0.5
        %v6955 = vmul.f32 %v6891, 0.5
        %v6956 = vadd.f32 %v6892, 0.5
        %v6957 = vadd.f32 %v6893, 0.5
        %v6958 = vadd.f32 %v6894, 0.5
        %v6959 = vadd.f32 %v6895, 0.5
        %v6960 = vadd.f32 %v6896, 0.5
        %v6961 = vadd.f32 %v6897, 0.5
        %v6962 = vadd.f32 %v6898, 0.5
        %v6963 = vadd.f32 %v6899, 0.5
        %v6964 = vadd.f32 %v6900, 0.5
        %v6965 = vadd.f32 %v6901, 0.5
        %v6966 = vadd.f32 %v6902, 0.5
        %v6967 = vadd.f32 %v6903, 0.5
        %v6968 = vadd.f32 %v6904, 0.5
        %v6969 = vadd.f32 %v6905, 0.5
        %v6970 = vadd.f32 %v6906, 0.5
        %v6971 = vadd.f32 %v6907, 0.5
        %v6972 = vadd.f32 %v6908, 0.5
        %v6973 = vadd.f32 %v6909, 0.5
        %v6974 = vadd.f32 %v6910, 0.5
        %v6975 = vadd.f32 %v6911, 0.5
        %v6976 = vadd.f32 %v6912, 0.5
        %v6977 = vadd.f32 %v6913, 0.5
        %v6978 = vadd.f32 %v6914, 0.5
        %v6979 = vadd.f32 %v6915, 0.5
        %v6980 = vadd.f32 %v6916, 0.5
        %v6981 = vadd.f32 %v6917, 0.5
        %v6982 = vadd.f32 %v6918, 0.5
        %v6983 = vadd.f32 %v6919, 0.5
        %v6984 = vadd.f32 %v6920, 0.5
        %v6985 = vadd.f32 %v6921, 0.5
        %v6986 = vadd.f32 %v6922, 0.5
        %v6987 = vadd.f32 %v6923, 0.5
        %v6988 = vadd.f32 %v6924, 0.5
        %v6989 = vadd.f32 %v6925, 0.5
        %v6990 = vadd.f32 %v6926, 0.5
        %v6991 = vadd.f32 %v6927, 0.5
        %v6992 = vadd.f32 %v6928, 0.5
        %v6993 = vadd.f32 %v6929, 0.5
        %v6994 = vadd.f32 %v6930, 0.5
        %v6995 = vadd.f32 %v6931, 0.5
        %v6996 = vadd.f32 %v6932, 0.5
        %v6997 = vadd.f32 %v6933, 0.5
        %v6998 = vadd.f32 %v6934, 0.5
        %v6999 = vadd.f32 %v6935, 0.5
        %v7000 = vadd.f32 %v6936, 0.5
        %v7001 = vadd.f32 %v6937, 0.5
        %v7002 = vadd.f32 %v6938, 0.5
        %v7003 = vadd.f32 %v6939, 0.5
        %v7004 = vadd.f32 %v6940, 0.5
        %v7005 = vadd.f32 %v6941, 0.5
        %v7006 = vadd.f32 %v6942, 0.5
        %v7007 = vadd.f32 %v6943, 0.5
        %v7008 = vadd.f32 %v6944, 0.5
        %v7009 = vadd.f32 %v6945, 0.5
        %v7010 = vadd.f32 %v6946, 0.5
        %v7011 = vadd.f32 %v6947, 0.5
        %v7012 = vadd.f32 %v6948, 0.5
        %v7013 = vadd.f32 %v6949, 0.5
        %v7014 = vadd.f32 %v6950, 0.5
        %v7015 = vadd.f32 %v6951, 0.5
        %v7016 = vadd.f32 %v6952, 0.5
        %v7017 = vadd.f32 %v6953, 0.5
        %v7018 = vadd.f32 %v6954, 0.5
        %v7019 = vadd.f32 %v6955, 0.5
        %v7020 = vmul.f32 %v5780, 0.5
        %v7021 = vmul.f32 %v5785, 0.5
        %v7022 = vmul.f32 %v5790, 0.5
        %v7023 = vmul.f32 %v5795, 0.5
        %v7024 = vmul.f32 %v5800, 0.5
        %v7025 = vmul.f32 %v5805, 0.5
        %v7026 = vmul.f32 %v5810, 0.5
        %v7027 = vmul.f32 %v5815, 0.5
        %v7028 = vmul.f32 %v5820, 0.5
        %v7029 = vmul.f32 %v5825, 0.5
        %v7030 = vmul.f32 %v5830, 0.5
        %v7031 = vmul.f32 %v5835, 0.5
        %v7032 = vmul.f32 %v5840, 0.5
        %v7033 = vmul.f32 %v5845, 0.5
        %v7034 = vmul.f32 %v5850, 0.5
        %v7035 = vmul.f32 %v5855, 0.5
        %v7036 = vmul.f32 %v5860, 0.5
        %v7037 = vmul.f32 %v5865, 0.5
        %v7038 = vmul.f32 %v5870, 0.5
        %v7039 = vmul.f32 %v5875, 0.5
        %v7040 = vmul.f32 %v5880, 0.5
        %v7041 = vmul.f32 %v5885, 0.5
        %v7042 = vmul.f32 %v5890, 0.5
        %v7043 = vmul.f32 %v5895, 0.5
        %v7044 = vmul.f32 %v5900, 0.5
        %v7045 = vmul.f32 %v5905, 0.5
        %v7046 = vmul.f32 %v5910, 0.5
        %v7047 = vmul.f32 %v5915, 0.5
        %v7048 = vmul.f32 %v5920, 0.5
        %v7049 = vmul.f32 %v5925, 0.5
        %v7050 = vmul.f32 %v5930, 0.5
        %v7051 = vmul.f32 %v5935, 0.5
        %v7052 = vmul.f32 %v5940, 0.5
        %v7053 = vmul.f32 %v5945, 0.5
        %v7054 = vmul.f32 %v5950, 0.5
        %v7055 = vmul.f32 %v5955, 0.5
        %v7056 = vmul.f32 %v5960, 0.5
        %v7057 = vmul.f32 %v5965, 0.5
        %v7058 = vmul.f32 %v5970, 0.5
        %v7059 = vmul.f32 %v5975, 0.5
        %v7060 = vmul.f32 %v5980, 0.5
        %v7061 = vmul.f32 %v5985, 0.5
        %v7062 = vmul.f32 %v5990, 0.5
        %v7063 = vmul.f32 %v5995, 0.5
        %v7064 = vmul.f32 %v6000, 0.5
        %v7065 = vmul.f32 %v6005, 0.5
        %v7066 = vmul.f32 %v6010, 0.5
        %v7067 = vmul.f32 %v6015, 0.5
        %v7068 = vmul.f32 %v6020, 0.5
        %v7069 = vmul.f32 %v6025, 0.5
        %v7070 = vmul.f32 %v6030, 0.5
        %v7071 = vmul.f32 %v6035, 0.5
        %v7072 = vmul.f32 %v6040, 0.5
        %v7073 = vmul.f32 %v6045, 0.5
        %v7074 = vmul.f32 %v6050, 0.5
        %v7075 = vmul.f32 %v6055, 0.5
        %v7076 = vmul.f32 %v6060, 0.5
        %v7077 = vmul.f32 %v6065, 0.5
        %v7078 = vmul.f32 %v6070, 0.5
        %v7079 = vmul.f32 %v6075, 0.5
        %v7080 = vmul.f32 %v6080, 0.5
        %v7081 = vmul.f32 %v6085, 0.5
        %v7082 = vmul.f32 %v6090, 0.5
        %v7083 = vmul.f32 %v6095, 0.5
        %v7084 = vtanh.pop %v7020
        %v7085 = vtanh.pop %v7021
        %v7086 = vtanh.pop %v7022
        %v7087 = vtanh.pop %v7023
        %v7088 = vtanh.pop %v7024
        %v7089 = vtanh.pop %v7025
        %v7090 = vtanh.pop %v7026
        %v7091 = vtanh.pop %v7027
        %v7092 = vtanh.pop %v7028
        %v7093 = vtanh.pop %v7029
        %v7094 = vtanh.pop %v7030
        %v7095 = vtanh.pop %v7031
        %v7096 = vtanh.pop %v7032
        %v7097 = vtanh.pop %v7033
        %v7098 = vtanh.pop %v7034
        %v7099 = vtanh.pop %v7035
        %v7100 = vtanh.pop %v7036
        %v7101 = vtanh.pop %v7037
        %v7102 = vtanh.pop %v7038
        %v7103 = vtanh.pop %v7039
        %v7104 = vtanh.pop %v7040
        %v7105 = vtanh.pop %v7041
        %v7106 = vtanh.pop %v7042
        %v7107 = vtanh.pop %v7043
        %v7108 = vtanh.pop %v7044
        %v7109 = vtanh.pop %v7045
        %v7110 = vtanh.pop %v7046
        %v7111 = vtanh.pop %v7047
        %v7112 = vtanh.pop %v7048
        %v7113 = vtanh.pop %v7049
        %v7114 = vtanh.pop %v7050
        %v7115 = vtanh.pop %v7051
        %v7116 = vtanh.pop %v7052
        %v7117 = vtanh.pop %v7053
        %v7118 = vtanh.pop %v7054
        %v7119 = vtanh.pop %v7055
        %v7120 = vtanh.pop %v7056
        %v7121 = vtanh.pop %v7057
        %v7122 = vtanh.pop %v7058
        %v7123 = vtanh.pop %v7059
        %v7124 = vtanh.pop %v7060
        %v7125 = vtanh.pop %v7061
        %v7126 = vtanh.pop %v7062
        %v7127 = vtanh.pop %v7063
        %v7128 = vtanh.pop %v7064
        %v7129 = vtanh.pop %v7065
        %v7130 = vtanh.pop %v7066
        %v7131 = vtanh.pop %v7067
        %v7132 = vtanh.pop %v7068
        %v7133 = vtanh.pop %v7069
        %v7134 = vtanh.pop %v7070
        %v7135 = vtanh.pop %v7071
        %v7136 = vtanh.pop %v7072
        %v7137 = vtanh.pop %v7073
        %v7138 = vtanh.pop %v7074
        %v7139 = vtanh.pop %v7075
        %v7140 = vtanh.pop %v7076
        %v7141 = vtanh.pop %v7077
        %v7142 = vtanh.pop %v7078
        %v7143 = vtanh.pop %v7079
        %v7144 = vtanh.pop %v7080
        %v7145 = vtanh.pop %v7081
        %v7146 = vtanh.pop %v7082
        %v7147 = vtanh.pop %v7083
        %v7148 = vmul.f32 %v7084, 0.5
        %v7149 = vmul.f32 %v7085, 0.5
        %v7150 = vmul.f32 %v7086, 0.5
        %v7151 = vmul.f32 %v7087, 0.5
        %v7152 = vmul.f32 %v7088, 0.5
        %v7153 = vmul.f32 %v7089, 0.5
        %v7154 = vmul.f32 %v7090, 0.5
        %v7155 = vmul.f32 %v7091, 0.5
        %v7156 = vmul.f32 %v7092, 0.5
        %v7157 = vmul.f32 %v7093, 0.5
        %v7158 = vmul.f32 %v7094, 0.5
        %v7159 = vmul.f32 %v7095, 0.5
        %v7160 = vmul.f32 %v7096, 0.5
        %v7161 = vmul.f32 %v7097, 0.5
        %v7162 = vmul.f32 %v7098, 0.5
        %v7163 = vmul.f32 %v7099, 0.5
        %v7164 = vmul.f32 %v7100, 0.5
        %v7165 = vmul.f32 %v7101, 0.5
        %v7166 = vmul.f32 %v7102, 0.5
        %v7167 = vmul.f32 %v7103, 0.5
        %v7168 = vmul.f32 %v7104, 0.5
        %v7169 = vmul.f32 %v7105, 0.5
        %v7170 = vmul.f32 %v7106, 0.5
        %v7171 = vmul.f32 %v7107, 0.5
        %v7172 = vmul.f32 %v7108, 0.5
        %v7173 = vmul.f32 %v7109, 0.5
        %v7174 = vmul.f32 %v7110, 0.5
        %v7175 = vmul.f32 %v7111, 0.5
        %v7176 = vmul.f32 %v7112, 0.5
        %v7177 = vmul.f32 %v7113, 0.5
        %v7178 = vmul.f32 %v7114, 0.5
        %v7179 = vmul.f32 %v7115, 0.5
        %v7180 = vmul.f32 %v7116, 0.5
        %v7181 = vmul.f32 %v7117, 0.5
        %v7182 = vmul.f32 %v7118, 0.5
        %v7183 = vmul.f32 %v7119, 0.5
        %v7184 = vmul.f32 %v7120, 0.5
        %v7185 = vmul.f32 %v7121, 0.5
        %v7186 = vmul.f32 %v7122, 0.5
        %v7187 = vmul.f32 %v7123, 0.5
        %v7188 = vmul.f32 %v7124, 0.5
        %v7189 = vmul.f32 %v7125, 0.5
        %v7190 = vmul.f32 %v7126, 0.5
        %v7191 = vmul.f32 %v7127, 0.5
        %v7192 = vmul.f32 %v7128, 0.5
        %v7193 = vmul.f32 %v7129, 0.5
        %v7194 = vmul.f32 %v7130, 0.5
        %v7195 = vmul.f32 %v7131, 0.5
        %v7196 = vmul.f32 %v7132, 0.5
        %v7197 = vmul.f32 %v7133, 0.5
        %v7198 = vmul.f32 %v7134, 0.5
        %v7199 = vmul.f32 %v7135, 0.5
        %v7200 = vmul.f32 %v7136, 0.5
        %v7201 = vmul.f32 %v7137, 0.5
        %v7202 = vmul.f32 %v7138, 0.5
        %v7203 = vmul.f32 %v7139, 0.5
        %v7204 = vmul.f32 %v7140, 0.5
        %v7205 = vmul.f32 %v7141, 0.5
        %v7206 = vmul.f32 %v7142, 0.5
        %v7207 = vmul.f32 %v7143, 0.5
        %v7208 = vmul.f32 %v7144, 0.5
        %v7209 = vmul.f32 %v7145, 0.5
        %v7210 = vmul.f32 %v7146, 0.5
        %v7211 = vmul.f32 %v7147, 0.5
        %v7212 = vadd.f32 %v7148, 0.5
        %v7213 = vadd.f32 %v7149, 0.5
        %v7214 = vadd.f32 %v7150, 0.5
        %v7215 = vadd.f32 %v7151, 0.5
        %v7216 = vadd.f32 %v7152, 0.5
        %v7217 = vadd.f32 %v7153, 0.5
        %v7218 = vadd.f32 %v7154, 0.5
        %v7219 = vadd.f32 %v7155, 0.5
        %v7220 = vadd.f32 %v7156, 0.5
        %v7221 = vadd.f32 %v7157, 0.5
        %v7222 = vadd.f32 %v7158, 0.5
        %v7223 = vadd.f32 %v7159, 0.5
        %v7224 = vadd.f32 %v7160, 0.5
        %v7225 = vadd.f32 %v7161, 0.5
        %v7226 = vadd.f32 %v7162, 0.5
        %v7227 = vadd.f32 %v7163, 0.5
        %v7228 = vadd.f32 %v7164, 0.5
        %v7229 = vadd.f32 %v7165, 0.5
        %v7230 = vadd.f32 %v7166, 0.5
        %v7231 = vadd.f32 %v7167, 0.5
        %v7232 = vadd.f32 %v7168, 0.5
        %v7233 = vadd.f32 %v7169, 0.5
        %v7234 = vadd.f32 %v7170, 0.5
        %v7235 = vadd.f32 %v7171, 0.5
        %v7236 = vadd.f32 %v7172, 0.5
        %v7237 = vadd.f32 %v7173, 0.5
        %v7238 = vadd.f32 %v7174, 0.5
        %v7239 = vadd.f32 %v7175, 0.5
        %v7240 = vadd.f32 %v7176, 0.5
        %v7241 = vadd.f32 %v7177, 0.5
        %v7242 = vadd.f32 %v7178, 0.5
        %v7243 = vadd.f32 %v7179, 0.5
        %v7244 = vadd.f32 %v7180, 0.5
        %v7245 = vadd.f32 %v7181, 0.5
        %v7246 = vadd.f32 %v7182, 0.5
        %v7247 = vadd.f32 %v7183, 0.5
        %v7248 = vadd.f32 %v7184, 0.5
        %v7249 = vadd.f32 %v7185, 0.5
        %v7250 = vadd.f32 %v7186, 0.5
        %v7251 = vadd.f32 %v7187, 0.5
        %v7252 = vadd.f32 %v7188, 0.5
        %v7253 = vadd.f32 %v7189, 0.5
        %v7254 = vadd.f32 %v7190, 0.5
        %v7255 = vadd.f32 %v7191, 0.5
        %v7256 = vadd.f32 %v7192, 0.5
        %v7257 = vadd.f32 %v7193, 0.5
        %v7258 = vadd.f32 %v7194, 0.5
        %v7259 = vadd.f32 %v7195, 0.5
        %v7260 = vadd.f32 %v7196, 0.5
        %v7261 = vadd.f32 %v7197, 0.5
        %v7262 = vadd.f32 %v7198, 0.5
        %v7263 = vadd.f32 %v7199, 0.5
        %v7264 = vadd.f32 %v7200, 0.5
        %v7265 = vadd.f32 %v7201, 0.5
        %v7266 = vadd.f32 %v7202, 0.5
        %v7267 = vadd.f32 %v7203, 0.5
        %v7268 = vadd.f32 %v7204, 0.5
        %v7269 = vadd.f32 %v7205, 0.5
        %v7270 = vadd.f32 %v7206, 0.5
        %v7271 = vadd.f32 %v7207, 0.5
        %v7272 = vadd.f32 %v7208, 0.5
        %v7273 = vadd.f32 %v7209, 0.5
        %v7274 = vadd.f32 %v7210, 0.5
        %v7275 = vadd.f32 %v7211, 0.5
        %v7276 = vtanh.pop %v6190
        %v7277 = vtanh.pop %v6195
        %v7278 = vtanh.pop %v6200
        %v7279 = vtanh.pop %v6205
        %v7280 = vtanh.pop %v6210
        %v7281 = vtanh.pop %v6215
        %v7282 = vtanh.pop %v6220
        %v7283 = vtanh.pop %v6225
        %v7284 = vtanh.pop %v6230
        %v7285 = vtanh.pop %v6235
        %v7286 = vtanh.pop %v6240
        %v7287 = vtanh.pop %v6245
        %v7288 = vtanh.pop %v6250
        %v7289 = vtanh.pop %v6255
        %v7290 = vtanh.pop %v6260
        %v7291 = vtanh.pop %v6265
        %v7292 = vtanh.pop %v6270
        %v7293 = vtanh.pop %v6275
        %v7294 = vtanh.pop %v6280
        %v7295 = vtanh.pop %v6285
        %v7296 = vtanh.pop %v6290
        %v7297 = vtanh.pop %v6295
        %v7298 = vtanh.pop %v6300
        %v7299 = vtanh.pop %v6305
        %v7300 = vtanh.pop %v6310
        %v7301 = vtanh.pop %v6315
        %v7302 = vtanh.pop %v6320
        %v7303 = vtanh.pop %v6325
        %v7304 = vtanh.pop %v6330
        %v7305 = vtanh.pop %v6335
        %v7306 = vtanh.pop %v6340
        %v7307 = vtanh.pop %v6345
        %v7308 = vtanh.pop %v6350
        %v7309 = vtanh.pop %v6355
        %v7310 = vtanh.pop %v6360
        %v7311 = vtanh.pop %v6365
        %v7312 = vtanh.pop %v6370
        %v7313 = vtanh.pop %v6375
        %v7314 = vtanh.pop %v6380
        %v7315 = vtanh.pop %v6385
        %v7316 = vtanh.pop %v6390
        %v7317 = vtanh.pop %v6395
        %v7318 = vtanh.pop %v6400
        %v7319 = vtanh.pop %v6405
        %v7320 = vtanh.pop %v6410
        %v7321 = vtanh.pop %v6415
        %v7322 = vtanh.pop %v6420
        %v7323 = vtanh.pop %v6425
        %v7324 = vtanh.pop %v6430
        %v7325 = vtanh.pop %v6435
        %v7326 = vtanh.pop %v6440
        %v7327 = vtanh.pop %v6445
        %v7328 = vtanh.pop %v6450
        %v7329 = vtanh.pop %v6455
        %v7330 = vtanh.pop %v6460
        %v7331 = vtanh.pop %v6465
        %v7332 = vtanh.pop %v6470
        %v7333 = vtanh.pop %v6475
        %v7334 = vtanh.pop %v6480
        %v7335 = vtanh.pop %v6485
        %v7336 = vtanh.pop %v6490
        %v7337 = vtanh.pop %v6495
        %v7338 = vtanh.pop %v6500
        %v7339 = vtanh.pop %v6505
        %v7340 = vmul.f32 %v454, %v6700
        %v7341 = vmul.f32 %v455, %v6701
        %v7342 = vmul.f32 %v456, %v6702
        %v7343 = vmul.f32 %v457, %v6703
        %v7344 = vmul.f32 %v458, %v6704
        %v7345 = vmul.f32 %v459, %v6705
        %v7346 = vmul.f32 %v460, %v6706
        %v7347 = vmul.f32 %v461, %v6707
        %v7348 = vmul.f32 %v462, %v6708
        %v7349 = vmul.f32 %v463, %v6709
        %v7350 = vmul.f32 %v464, %v6710
        %v7351 = vmul.f32 %v465, %v6711
        %v7352 = vmul.f32 %v466, %v6712
        %v7353 = vmul.f32 %v467, %v6713
        %v7354 = vmul.f32 %v468, %v6714
        %v7355 = vmul.f32 %v469, %v6715
        %v7356 = vmul.f32 %v470, %v6716
        %v7357 = vmul.f32 %v471, %v6717
        %v7358 = vmul.f32 %v472, %v6718
        %v7359 = vmul.f32 %v473, %v6719
        %v7360 = vmul.f32 %v474, %v6720
        %v7361 = vmul.f32 %v475, %v6721
        %v7362 = vmul.f32 %v476, %v6722
        %v7363 = vmul.f32 %v477, %v6723
        %v7364 = vmul.f32 %v478, %v6724
        %v7365 = vmul.f32 %v479, %v6725
        %v7366 = vmul.f32 %v480, %v6726
        %v7367 = vmul.f32 %v481, %v6727
        %v7368 = vmul.f32 %v482, %v6728
        %v7369 = vmul.f32 %v483, %v6729
        %v7370 = vmul.f32 %v484, %v6730
        %v7371 = vmul.f32 %v485, %v6731
        %v7372 = vmul.f32 %v486, %v6732
        %v7373 = vmul.f32 %v487, %v6733
        %v7374 = vmul.f32 %v488, %v6734
        %v7375 = vmul.f32 %v489, %v6735
        %v7376 = vmul.f32 %v490, %v6736
        %v7377 = vmul.f32 %v491, %v6737
        %v7378 = vmul.f32 %v492, %v6738
        %v7379 = vmul.f32 %v493, %v6739
        %v7380 = vmul.f32 %v494, %v6740
        %v7381 = vmul.f32 %v495, %v6741
        %v7382 = vmul.f32 %v496, %v6742
        %v7383 = vmul.f32 %v497, %v6743
        %v7384 = vmul.f32 %v498, %v6744
        %v7385 = vmul.f32 %v499, %v6745
        %v7386 = vmul.f32 %v500, %v6746
        %v7387 = vmul.f32 %v501, %v6747
        %v7388 = vmul.f32 %v502, %v6748
        %v7389 = vmul.f32 %v503, %v6749
        %v7390 = vmul.f32 %v504, %v6750
        %v7391 = vmul.f32 %v505, %v6751
        %v7392 = vmul.f32 %v506, %v6752
        %v7393 = vmul.f32 %v507, %v6753
        %v7394 = vmul.f32 %v508, %v6754
        %v7395 = vmul.f32 %v509, %v6755
        %v7396 = vmul.f32 %v510, %v6756
        %v7397 = vmul.f32 %v511, %v6757
        %v7398 = vmul.f32 %v512, %v6758
        %v7399 = vmul.f32 %v513, %v6759
        %v7400 = vmul.f32 %v514, %v6760
        %v7401 = vmul.f32 %v515, %v6761
        %v7402 = vmul.f32 %v516, %v6762
        %v7403 = vmul.f32 %v517, %v6763
        %v7404 = vmul.f32 %v6956, %v7276
        %v7405 = vmul.f32 %v6957, %v7277
        %v7406 = vmul.f32 %v6958, %v7278
        %v7407 = vmul.f32 %v6959, %v7279
        %v7408 = vmul.f32 %v6960, %v7280
        %v7409 = vmul.f32 %v6961, %v7281
        %v7410 = vmul.f32 %v6962, %v7282
        %v7411 = vmul.f32 %v6963, %v7283
        %v7412 = vmul.f32 %v6964, %v7284
        %v7413 = vmul.f32 %v6965, %v7285
        %v7414 = vmul.f32 %v6966, %v7286
        %v7415 = vmul.f32 %v6967, %v7287
        %v7416 = vmul.f32 %v6968, %v7288
        %v7417 = vmul.f32 %v6969, %v7289
        %v7418 = vmul.f32 %v6970, %v7290
        %v7419 = vmul.f32 %v6971, %v7291
        %v7420 = vmul.f32 %v6972, %v7292
        %v7421 = vmul.f32 %v6973, %v7293
        %v7422 = vmul.f32 %v6974, %v7294
        %v7423 = vmul.f32 %v6975, %v7295
        %v7424 = vmul.f32 %v6976, %v7296
        %v7425 = vmul.f32 %v6977, %v7297
        %v7426 = vmul.f32 %v6978, %v7298
        %v7427 = vmul.f32 %v6979, %v7299
        %v7428 = vmul.f32 %v6980, %v7300
        %v7429 = vmul.f32 %v6981, %v7301
        %v7430 = vmul.f32 %v6982, %v7302
        %v7431 = vmul.f32 %v6983, %v7303
        %v7432 = vmul.f32 %v6984, %v7304
        %v7433 = vmul.f32 %v6985, %v7305
        %v7434 = vmul.f32 %v6986, %v7306
        %v7435 = vmul.f32 %v6987, %v7307
        %v7436 = vmul.f32 %v6988, %v7308
        %v7437 = vmul.f32 %v6989, %v7309
        %v7438 = vmul.f32 %v6990, %v7310
        %v7439 = vmul.f32 %v6991, %v7311
        %v7440 = vmul.f32 %v6992, %v7312
        %v7441 = vmul.f32 %v6993, %v7313
        %v7442 = vmul.f32 %v6994, %v7314
        %v7443 = vmul.f32 %v6995, %v7315
        %v7444 = vmul.f32 %v6996, %v7316
        %v7445 = vmul.f32 %v6997, %v7317
        %v7446 = vmul.f32 %v6998, %v7318
        %v7447 = vmul.f32 %v6999, %v7319
        %v7448 = vmul.f32 %v7000, %v7320
        %v7449 = vmul.f32 %v7001, %v7321
        %v7450 = vmul.f32 %v7002, %v7322
        %v7451 = vmul.f32 %v7003, %v7323
        %v7452 = vmul.f32 %v7004, %v7324
        %v7453 = vmul.f32 %v7005, %v7325
        %v7454 = vmul.f32 %v7006, %v7326
        %v7455 = vmul.f32 %v7007, %v7327
        %v7456 = vmul.f32 %v7008, %v7328
        %v7457 = vmul.f32 %v7009, %v7329
        %v7458 = vmul.f32 %v7010, %v7330
        %v7459 = vmul.f32 %v7011, %v7331
        %v7460 = vmul.f32 %v7012, %v7332
        %v7461 = vmul.f32 %v7013, %v7333
        %v7462 = vmul.f32 %v7014, %v7334
        %v7463 = vmul.f32 %v7015, %v7335
        %v7464 = vmul.f32 %v7016, %v7336
        %v7465 = vmul.f32 %v7017, %v7337
        %v7466 = vmul.f32 %v7018, %v7338
        %v7467 = vmul.f32 %v7019, %v7339
        %v7468 = vadd.f32 %v7404, %v7340
        %v7469 = vadd.f32 %v7405, %v7341
        %v7470 = vadd.f32 %v7406, %v7342
        %v7471 = vadd.f32 %v7407, %v7343
        %v7472 = vadd.f32 %v7408, %v7344
        %v7473 = vadd.f32 %v7409, %v7345
        %v7474 = vadd.f32 %v7410, %v7346
        %v7475 = vadd.f32 %v7411, %v7347
        %v7476 = vadd.f32 %v7412, %v7348
        %v7477 = vadd.f32 %v7413, %v7349
        %v7478 = vadd.f32 %v7414, %v7350
        %v7479 = vadd.f32 %v7415, %v7351
        %v7480 = vadd.f32 %v7416, %v7352
        %v7481 = vadd.f32 %v7417, %v7353
        %v7482 = vadd.f32 %v7418, %v7354
        %v7483 = vadd.f32 %v7419, %v7355
        %v7484 = vadd.f32 %v7420, %v7356
        %v7485 = vadd.f32 %v7421, %v7357
        %v7486 = vadd.f32 %v7422, %v7358
        %v7487 = vadd.f32 %v7423, %v7359
        %v7488 = vadd.f32 %v7424, %v7360
        %v7489 = vadd.f32 %v7425, %v7361
        %v7490 = vadd.f32 %v7426, %v7362
        %v7491 = vadd.f32 %v7427, %v7363
        %v7492 = vadd.f32 %v7428, %v7364
        %v7493 = vadd.f32 %v7429, %v7365
        %v7494 = vadd.f32 %v7430, %v7366
        %v7495 = vadd.f32 %v7431, %v7367
        %v7496 = vadd.f32 %v7432, %v7368
        %v7497 = vadd.f32 %v7433, %v7369
        %v7498 = vadd.f32 %v7434, %v7370
        %v7499 = vadd.f32 %v7435, %v7371
        %v7500 = vadd.f32 %v7436, %v7372
        %v7501 = vadd.f32 %v7437, %v7373
        %v7502 = vadd.f32 %v7438, %v7374
        %v7503 = vadd.f32 %v7439, %v7375
        %v7504 = vadd.f32 %v7440, %v7376
        %v7505 = vadd.f32 %v7441, %v7377
        %v7506 = vadd.f32 %v7442, %v7378
        %v7507 = vadd.f32 %v7443, %v7379
        %v7508 = vadd.f32 %v7444, %v7380
        %v7509 = vadd.f32 %v7445, %v7381
        %v7510 = vadd.f32 %v7446, %v7382
        %v7511 = vadd.f32 %v7447, %v7383
        %v7512 = vadd.f32 %v7448, %v7384
        %v7513 = vadd.f32 %v7449, %v7385
        %v7514 = vadd.f32 %v7450, %v7386
        %v7515 = vadd.f32 %v7451, %v7387
        %v7516 = vadd.f32 %v7452, %v7388
        %v7517 = vadd.f32 %v7453, %v7389
        %v7518 = vadd.f32 %v7454, %v7390
        %v7519 = vadd.f32 %v7455, %v7391
        %v7520 = vadd.f32 %v7456, %v7392
        %v7521 = vadd.f32 %v7457, %v7393
        %v7522 = vadd.f32 %v7458, %v7394
        %v7523 = vadd.f32 %v7459, %v7395
        %v7524 = vadd.f32 %v7460, %v7396
        %v7525 = vadd.f32 %v7461, %v7397
        %v7526 = vadd.f32 %v7462, %v7398
        %v7527 = vadd.f32 %v7463, %v7399
        %v7528 = vadd.f32 %v7464, %v7400
        %v7529 = vadd.f32 %v7465, %v7401
        %v7530 = vadd.f32 %v7466, %v7402
        %v7531 = vadd.f32 %v7467, %v7403
        %v7532 = vtanh.pop %v7468
        %v7533 = vtanh.pop %v7469
        %v7534 = vtanh.pop %v7470
        %v7535 = vtanh.pop %v7471
        %v7536 = vtanh.pop %v7472
        %v7537 = vtanh.pop %v7473
        %v7538 = vtanh.pop %v7474
        %v7539 = vtanh.pop %v7475
        %v7540 = vtanh.pop %v7476
        %v7541 = vtanh.pop %v7477
        %v7542 = vtanh.pop %v7478
        %v7543 = vtanh.pop %v7479
        %v7544 = vtanh.pop %v7480
        %v7545 = vtanh.pop %v7481
        %v7546 = vtanh.pop %v7482
        %v7547 = vtanh.pop %v7483
        %v7548 = vtanh.pop %v7484
        %v7549 = vtanh.pop %v7485
        %v7550 = vtanh.pop %v7486
        %v7551 = vtanh.pop %v7487
        %v7552 = vtanh.pop %v7488
        %v7553 = vtanh.pop %v7489
        %v7554 = vtanh.pop %v7490
        %v7555 = vtanh.pop %v7491
        %v7556 = vtanh.pop %v7492
        %v7557 = vtanh.pop %v7493
        %v7558 = vtanh.pop %v7494
        %v7559 = vtanh.pop %v7495
        %v7560 = vtanh.pop %v7496
        %v7561 = vtanh.pop %v7497
        %v7562 = vtanh.pop %v7498
        %v7563 = vtanh.pop %v7499
        %v7564 = vtanh.pop %v7500
        %v7565 = vtanh.pop %v7501
        %v7566 = vtanh.pop %v7502
        %v7567 = vtanh.pop %v7503
        %v7568 = vtanh.pop %v7504
        %v7569 = vtanh.pop %v7505
        %v7570 = vtanh.pop %v7506
        %v7571 = vtanh.pop %v7507
        %v7572 = vtanh.pop %v7508
        %v7573 = vtanh.pop %v7509
        %v7574 = vtanh.pop %v7510
        %v7575 = vtanh.pop %v7511
        %v7576 = vtanh.pop %v7512
        %v7577 = vtanh.pop %v7513
        %v7578 = vtanh.pop %v7514
        %v7579 = vtanh.pop %v7515
        %v7580 = vtanh.pop %v7516
        %v7581 = vtanh.pop %v7517
        %v7582 = vtanh.pop %v7518
        %v7583 = vtanh.pop %v7519
        %v7584 = vtanh.pop %v7520
        %v7585 = vtanh.pop %v7521
        %v7586 = vtanh.pop %v7522
        %v7587 = vtanh.pop %v7523
        %v7588 = vtanh.pop %v7524
        %v7589 = vtanh.pop %v7525
        %v7590 = vtanh.pop %v7526
        %v7591 = vtanh.pop %v7527
        %v7592 = vtanh.pop %v7528
        %v7593 = vtanh.pop %v7529
        %v7594 = vtanh.pop %v7530
        %v7595 = vtanh.pop %v7531
        %v7596 = vmul.f32 %v7532, %v7212
        %v7597 = vmul.f32 %v7533, %v7213
        %v7598 = vmul.f32 %v7534, %v7214
        %v7599 = vmul.f32 %v7535, %v7215
        %v7600 = vmul.f32 %v7536, %v7216
        %v7601 = vmul.f32 %v7537, %v7217
        %v7602 = vmul.f32 %v7538, %v7218
        %v7603 = vmul.f32 %v7539, %v7219
        %v7604 = vmul.f32 %v7540, %v7220
        %v7605 = vmul.f32 %v7541, %v7221
        %v7606 = vmul.f32 %v7542, %v7222
        %v7607 = vmul.f32 %v7543, %v7223
        %v7608 = vmul.f32 %v7544, %v7224
        %v7609 = vmul.f32 %v7545, %v7225
        %v7610 = vmul.f32 %v7546, %v7226
        %v7611 = vmul.f32 %v7547, %v7227
        %v7612 = vmul.f32 %v7548, %v7228
        %v7613 = vmul.f32 %v7549, %v7229
        %v7614 = vmul.f32 %v7550, %v7230
        %v7615 = vmul.f32 %v7551, %v7231
        %v7616 = vmul.f32 %v7552, %v7232
        %v7617 = vmul.f32 %v7553, %v7233
        %v7618 = vmul.f32 %v7554, %v7234
        %v7619 = vmul.f32 %v7555, %v7235
        %v7620 = vmul.f32 %v7556, %v7236
        %v7621 = vmul.f32 %v7557, %v7237
        %v7622 = vmul.f32 %v7558, %v7238
        %v7623 = vmul.f32 %v7559, %v7239
        %v7624 = vmul.f32 %v7560, %v7240
        %v7625 = vmul.f32 %v7561, %v7241
        %v7626 = vmul.f32 %v7562, %v7242
        %v7627 = vmul.f32 %v7563, %v7243
        %v7628 = vmul.f32 %v7564, %v7244
        %v7629 = vmul.f32 %v7565, %v7245
        %v7630 = vmul.f32 %v7566, %v7246
        %v7631 = vmul.f32 %v7567, %v7247
        %v7632 = vmul.f32 %v7568, %v7248
        %v7633 = vmul.f32 %v7569, %v7249
        %v7634 = vmul.f32 %v7570, %v7250
        %v7635 = vmul.f32 %v7571, %v7251
        %v7636 = vmul.f32 %v7572, %v7252
        %v7637 = vmul.f32 %v7573, %v7253
        %v7638 = vmul.f32 %v7574, %v7254
        %v7639 = vmul.f32 %v7575, %v7255
        %v7640 = vmul.f32 %v7576, %v7256
        %v7641 = vmul.f32 %v7577, %v7257
        %v7642 = vmul.f32 %v7578, %v7258
        %v7643 = vmul.f32 %v7579, %v7259
        %v7644 = vmul.f32 %v7580, %v7260
        %v7645 = vmul.f32 %v7581, %v7261
        %v7646 = vmul.f32 %v7582, %v7262
        %v7647 = vmul.f32 %v7583, %v7263
        %v7648 = vmul.f32 %v7584, %v7264
        %v7649 = vmul.f32 %v7585, %v7265
        %v7650 = vmul.f32 %v7586, %v7266
        %v7651 = vmul.f32 %v7587, %v7267
        %v7652 = vmul.f32 %v7588, %v7268
        %v7653 = vmul.f32 %v7589, %v7269
        %v7654 = vmul.f32 %v7590, %v7270
        %v7655 = vmul.f32 %v7591, %v7271
        %v7656 = vmul.f32 %v7592, %v7272
        %v7657 = vmul.f32 %v7593, %v7273
        %v7658 = vmul.f32 %v7594, %v7274
        %v7659 = vmul.f32 %v7595, %v7275
        %v7660 = vmul.f32 %v7468, 0.1
        %v7661 = vmul.f32 %v7469, 0.1
        %v7662 = vmul.f32 %v7470, 0.1
        %v7663 = vmul.f32 %v7471, 0.1
        %v7664 = vmul.f32 %v7472, 0.1
        %v7665 = vmul.f32 %v7473, 0.1
        %v7666 = vmul.f32 %v7474, 0.1
        %v7667 = vmul.f32 %v7475, 0.1
        %v7668 = vmul.f32 %v7476, 0.1
        %v7669 = vmul.f32 %v7477, 0.1
        %v7670 = vmul.f32 %v7478, 0.1
        %v7671 = vmul.f32 %v7479, 0.1
        %v7672 = vmul.f32 %v7480, 0.1
        %v7673 = vmul.f32 %v7481, 0.1
        %v7674 = vmul.f32 %v7482, 0.1
        %v7675 = vmul.f32 %v7483, 0.1
        %v7676 = vmul.f32 %v7484, 0.1
        %v7677 = vmul.f32 %v7485, 0.1
        %v7678 = vmul.f32 %v7486, 0.1
        %v7679 = vmul.f32 %v7487, 0.1
        %v7680 = vmul.f32 %v7488, 0.1
        %v7681 = vmul.f32 %v7489, 0.1
        %v7682 = vmul.f32 %v7490, 0.1
        %v7683 = vmul.f32 %v7491, 0.1
        %v7684 = vmul.f32 %v7492, 0.1
        %v7685 = vmul.f32 %v7493, 0.1
        %v7686 = vmul.f32 %v7494, 0.1
        %v7687 = vmul.f32 %v7495, 0.1
        %v7688 = vmul.f32 %v7496, 0.1
        %v7689 = vmul.f32 %v7497, 0.1
        %v7690 = vmul.f32 %v7498, 0.1
        %v7691 = vmul.f32 %v7499, 0.1
        %v7692 = vmul.f32 %v7500, 0.1
        %v7693 = vmul.f32 %v7501, 0.1
        %v7694 = vmul.f32 %v7502, 0.1
        %v7695 = vmul.f32 %v7503, 0.1
        %v7696 = vmul.f32 %v7504, 0.1
        %v7697 = vmul.f32 %v7505, 0.1
        %v7698 = vmul.f32 %v7506, 0.1
        %v7699 = vmul.f32 %v7507, 0.1
        %v7700 = vmul.f32 %v7508, 0.1
        %v7701 = vmul.f32 %v7509, 0.1
        %v7702 = vmul.f32 %v7510, 0.1
        %v7703 = vmul.f32 %v7511, 0.1
        %v7704 = vmul.f32 %v7512, 0.1
        %v7705 = vmul.f32 %v7513, 0.1
        %v7706 = vmul.f32 %v7514, 0.1
        %v7707 = vmul.f32 %v7515, 0.1
        %v7708 = vmul.f32 %v7516, 0.1
        %v7709 = vmul.f32 %v7517, 0.1
        %v7710 = vmul.f32 %v7518, 0.1
        %v7711 = vmul.f32 %v7519, 0.1
        %v7712 = vmul.f32 %v7520, 0.1
        %v7713 = vmul.f32 %v7521, 0.1
        %v7714 = vmul.f32 %v7522, 0.1
        %v7715 = vmul.f32 %v7523, 0.1
        %v7716 = vmul.f32 %v7524, 0.1
        %v7717 = vmul.f32 %v7525, 0.1
        %v7718 = vmul.f32 %v7526, 0.1
        %v7719 = vmul.f32 %v7527, 0.1
        %v7720 = vmul.f32 %v7528, 0.1
        %v7721 = vmul.f32 %v7529, 0.1
        %v7722 = vmul.f32 %v7530, 0.1
        %v7723 = vmul.f32 %v7531, 0.1
        %v7724 = vadd.f32 %v454, %v7660
        %v7725 = vadd.f32 %v455, %v7661
        %v7726 = vadd.f32 %v456, %v7662
        %v7727 = vadd.f32 %v457, %v7663
        %v7728 = vadd.f32 %v458, %v7664
        %v7729 = vadd.f32 %v459, %v7665
        %v7730 = vadd.f32 %v460, %v7666
        %v7731 = vadd.f32 %v461, %v7667
        %v7732 = vadd.f32 %v462, %v7668
        %v7733 = vadd.f32 %v463, %v7669
        %v7734 = vadd.f32 %v464, %v7670
        %v7735 = vadd.f32 %v465, %v7671
        %v7736 = vadd.f32 %v466, %v7672
        %v7737 = vadd.f32 %v467, %v7673
        %v7738 = vadd.f32 %v468, %v7674
        %v7739 = vadd.f32 %v469, %v7675
        %v7740 = vadd.f32 %v470, %v7676
        %v7741 = vadd.f32 %v471, %v7677
        %v7742 = vadd.f32 %v472, %v7678
        %v7743 = vadd.f32 %v473, %v7679
        %v7744 = vadd.f32 %v474, %v7680
        %v7745 = vadd.f32 %v475, %v7681
        %v7746 = vadd.f32 %v476, %v7682
        %v7747 = vadd.f32 %v477, %v7683
        %v7748 = vadd.f32 %v478, %v7684
        %v7749 = vadd.f32 %v479, %v7685
        %v7750 = vadd.f32 %v480, %v7686
        %v7751 = vadd.f32 %v481, %v7687
        %v7752 = vadd.f32 %v482, %v7688
        %v7753 = vadd.f32 %v483, %v7689
        %v7754 = vadd.f32 %v484, %v7690
        %v7755 = vadd.f32 %v485, %v7691
        %v7756 = vadd.f32 %v486, %v7692
        %v7757 = vadd.f32 %v487, %v7693
        %v7758 = vadd.f32 %v488, %v7694
        %v7759 = vadd.f32 %v489, %v7695
        %v7760 = vadd.f32 %v490, %v7696
        %v7761 = vadd.f32 %v491, %v7697
        %v7762 = vadd.f32 %v492, %v7698
        %v7763 = vadd.f32 %v493, %v7699
        %v7764 = vadd.f32 %v494, %v7700
        %v7765 = vadd.f32 %v495, %v7701
        %v7766 = vadd.f32 %v496, %v7702
        %v7767 = vadd.f32 %v497, %v7703
        %v7768 = vadd.f32 %v498, %v7704
        %v7769 = vadd.f32 %v499, %v7705
        %v7770 = vadd.f32 %v500, %v7706
        %v7771 = vadd.f32 %v501, %v7707
        %v7772 = vadd.f32 %v502, %v7708
        %v7773 = vadd.f32 %v503, %v7709
        %v7774 = vadd.f32 %v504, %v7710
        %v7775 = vadd.f32 %v505, %v7711
        %v7776 = vadd.f32 %v506, %v7712
        %v7777 = vadd.f32 %v507, %v7713
        %v7778 = vadd.f32 %v508, %v7714
        %v7779 = vadd.f32 %v509, %v7715
        %v7780 = vadd.f32 %v510, %v7716
        %v7781 = vadd.f32 %v511, %v7717
        %v7782 = vadd.f32 %v512, %v7718
        %v7783 = vadd.f32 %v513, %v7719
        %v7784 = vadd.f32 %v514, %v7720
        %v7785 = vadd.f32 %v515, %v7721
        %v7786 = vadd.f32 %v516, %v7722
        %v7787 = vadd.f32 %v517, %v7723
        %7788 = vst [vmem:[%s426] sm:$0xff] %v7724
        %7789 = vst [vmem:[%s426 + $0x8] sm:$0xff] %v7725
        %7790 = vst [vmem:[%s426 + $0x10] sm:$0xff] %v7726
        %7791 = vst [vmem:[%s426 + $0x18] sm:$0xff] %v7727
        %7792 = vst [vmem:[%s426 + $0x20] sm:$0xff] %v7728
        %7793 = vst [vmem:[%s426 + $0x28] sm:$0xff] %v7729
        %7794 = vst [vmem:[%s426 + $0x30] sm:$0xff] %v7730
        %7795 = vst [vmem:[%s426 + $0x38] sm:$0xff] %v7731
        %7796 = vst [vmem:[%s426 + $0x40] sm:$0xff] %v7732
        %7797 = vst [vmem:[%s426 + $0x48] sm:$0xff] %v7733
        %7798 = vst [vmem:[%s426 + $0x50] sm:$0xff] %v7734
        %7799 = vst [vmem:[%s426 + $0x58] sm:$0xff] %v7735
        %7800 = vst [vmem:[%s426 + $0x60] sm:$0xff] %v7736
        %7801 = vst [vmem:[%s426 + $0x68] sm:$0xff] %v7737
        %7802 = vst [vmem:[%s426 + $0x70] sm:$0xff] %v7738
        %7803 = vst [vmem:[%s426 + $0x78] sm:$0xff] %v7739
        %7804 = vst [vmem:[%s426 + $0x80] sm:$0xff] %v7740
        %7805 = vst [vmem:[%s426 + $0x88] sm:$0xff] %v7741
        %7806 = vst [vmem:[%s426 + $0x90] sm:$0xff] %v7742
        %7807 = vst [vmem:[%s426 + $0x98] sm:$0xff] %v7743
        %7808 = vst [vmem:[%s426 + $0xa0] sm:$0xff] %v7744
        %7809 = vst [vmem:[%s426 + $0xa8] sm:$0xff] %v7745
        %7810 = vst [vmem:[%s426 + $0xb0] sm:$0xff] %v7746
        %7811 = vst [vmem:[%s426 + $0xb8] sm:$0xff] %v7747
        %7812 = vst [vmem:[%s426 + $0xc0] sm:$0xff] %v7748
        %7813 = vst [vmem:[%s426 + $0xc8] sm:$0xff] %v7749
        %7814 = vst [vmem:[%s426 + $0xd0] sm:$0xff] %v7750
        %7815 = vst [vmem:[%s426 + $0xd8] sm:$0xff] %v7751
        %7816 = vst [vmem:[%s426 + $0xe0] sm:$0xff] %v7752
        %7817 = vst [vmem:[%s426 + $0xe8] sm:$0xff] %v7753
        %7818 = vst [vmem:[%s426 + $0xf0] sm:$0xff] %v7754
        %7819 = vst [vmem:[%s426 + $0xf8] sm:$0xff] %v7755
        %7820 = vst [vmem:[%s426 + $0x100] sm:$0xff] %v7756
        %7821 = vst [vmem:[%s426 + $0x108] sm:$0xff] %v7757
        %7822 = vst [vmem:[%s426 + $0x110] sm:$0xff] %v7758
        %7823 = vst [vmem:[%s426 + $0x118] sm:$0xff] %v7759
        %7824 = vst [vmem:[%s426 + $0x120] sm:$0xff] %v7760
        %7825 = vst [vmem:[%s426 + $0x128] sm:$0xff] %v7761
        %7826 = vst [vmem:[%s426 + $0x130] sm:$0xff] %v7762
        %7827 = vst [vmem:[%s426 + $0x138] sm:$0xff] %v7763
        %7828 = vst [vmem:[%s426 + $0x140] sm:$0xff] %v7764
        %7829 = vst [vmem:[%s426 + $0x148] sm:$0xff] %v7765
        %7830 = vst [vmem:[%s426 + $0x150] sm:$0xff] %v7766
        %7831 = vst [vmem:[%s426 + $0x158] sm:$0xff] %v7767
        %7832 = vst [vmem:[%s426 + $0x160] sm:$0xff] %v7768
        %7833 = vst [vmem:[%s426 + $0x168] sm:$0xff] %v7769
        %7834 = vst [vmem:[%s426 + $0x170] sm:$0xff] %v7770
        %7835 = vst [vmem:[%s426 + $0x178] sm:$0xff] %v7771
        %7836 = vst [vmem:[%s426 + $0x180] sm:$0xff] %v7772
        %7837 = vst [vmem:[%s426 + $0x188] sm:$0xff] %v7773
        %7838 = vst [vmem:[%s426 + $0x190] sm:$0xff] %v7774
        %7839 = vst [vmem:[%s426 + $0x198] sm:$0xff] %v7775
        %7840 = vst [vmem:[%s426 + $0x1a0] sm:$0xff] %v7776
        %7841 = vst [vmem:[%s426 + $0x1a8] sm:$0xff] %v7777
        %7842 = vst [vmem:[%s426 + $0x1b0] sm:$0xff] %v7778
        %7843 = vst [vmem:[%s426 + $0x1b8] sm:$0xff] %v7779
        %7844 = vst [vmem:[%s426 + $0x1c0] sm:$0xff] %v7780
        %7845 = vst [vmem:[%s426 + $0x1c8] sm:$0xff] %v7781
        %7846 = vst [vmem:[%s426 + $0x1d0] sm:$0xff] %v7782
        %7847 = vst [vmem:[%s426 + $0x1d8] sm:$0xff] %v7783
        %7848 = vst [vmem:[%s426 + $0x1e0] sm:$0xff] %v7784
        %7849 = vst [vmem:[%s426 + $0x1e8] sm:$0xff] %v7785
        %7850 = vst [vmem:[%s426 + $0x1f0] sm:$0xff] %v7786
        %7851 = vst [vmem:[%s426 + $0x1f8] sm:$0xff] %v7787
        %v7852 = vmul.f32 %v7596, 0.1
        %v7853 = vmul.f32 %v7597, 0.1
        %v7854 = vmul.f32 %v7598, 0.1
        %v7855 = vmul.f32 %v7599, 0.1
        %v7856 = vmul.f32 %v7600, 0.1
        %v7857 = vmul.f32 %v7601, 0.1
        %v7858 = vmul.f32 %v7602, 0.1
        %v7859 = vmul.f32 %v7603, 0.1
        %v7860 = vmul.f32 %v7604, 0.1
        %v7861 = vmul.f32 %v7605, 0.1
        %v7862 = vmul.f32 %v7606, 0.1
        %v7863 = vmul.f32 %v7607, 0.1
        %v7864 = vmul.f32 %v7608, 0.1
        %v7865 = vmul.f32 %v7609, 0.1
        %v7866 = vmul.f32 %v7610, 0.1
        %v7867 = vmul.f32 %v7611, 0.1
        %v7868 = vmul.f32 %v7612, 0.1
        %v7869 = vmul.f32 %v7613, 0.1
        %v7870 = vmul.f32 %v7614, 0.1
        %v7871 = vmul.f32 %v7615, 0.1
        %v7872 = vmul.f32 %v7616, 0.1
        %v7873 = vmul.f32 %v7617, 0.1
        %v7874 = vmul.f32 %v7618, 0.1
        %v7875 = vmul.f32 %v7619, 0.1
        %v7876 = vmul.f32 %v7620, 0.1
        %v7877 = vmul.f32 %v7621, 0.1
        %v7878 = vmul.f32 %v7622, 0.1
        %v7879 = vmul.f32 %v7623, 0.1
        %v7880 = vmul.f32 %v7624, 0.1
        %v7881 = vmul.f32 %v7625, 0.1
        %v7882 = vmul.f32 %v7626, 0.1
        %v7883 = vmul.f32 %v7627, 0.1
        %v7884 = vmul.f32 %v7628, 0.1
        %v7885 = vmul.f32 %v7629, 0.1
        %v7886 = vmul.f32 %v7630, 0.1
        %v7887 = vmul.f32 %v7631, 0.1
        %v7888 = vmul.f32 %v7632, 0.1
        %v7889 = vmul.f32 %v7633, 0.1
        %v7890 = vmul.f32 %v7634, 0.1
        %v7891 = vmul.f32 %v7635, 0.1
        %v7892 = vmul.f32 %v7636, 0.1
        %v7893 = vmul.f32 %v7637, 0.1
        %v7894 = vmul.f32 %v7638, 0.1
        %v7895 = vmul.f32 %v7639, 0.1
        %v7896 = vmul.f32 %v7640, 0.1
        %v7897 = vmul.f32 %v7641, 0.1
        %v7898 = vmul.f32 %v7642, 0.1
        %v7899 = vmul.f32 %v7643, 0.1
        %v7900 = vmul.f32 %v7644, 0.1
        %v7901 = vmul.f32 %v7645, 0.1
        %v7902 = vmul.f32 %v7646, 0.1
        %v7903 = vmul.f32 %v7647, 0.1
        %v7904 = vmul.f32 %v7648, 0.1
        %v7905 = vmul.f32 %v7649, 0.1
        %v7906 = vmul.f32 %v7650, 0.1
        %v7907 = vmul.f32 %v7651, 0.1
        %v7908 = vmul.f32 %v7652, 0.1
        %v7909 = vmul.f32 %v7653, 0.1
        %v7910 = vmul.f32 %v7654, 0.1
        %v7911 = vmul.f32 %v7655, 0.1
        %v7912 = vmul.f32 %v7656, 0.1
        %v7913 = vmul.f32 %v7657, 0.1
        %v7914 = vmul.f32 %v7658, 0.1
        %v7915 = vmul.f32 %v7659, 0.1
        %v7916 = vadd.f32 %v518, %v7852
        %v7917 = vadd.f32 %v519, %v7853
        %v7918 = vadd.f32 %v520, %v7854
        %v7919 = vadd.f32 %v521, %v7855
        %v7920 = vadd.f32 %v522, %v7856
        %v7921 = vadd.f32 %v523, %v7857
        %v7922 = vadd.f32 %v524, %v7858
        %v7923 = vadd.f32 %v525, %v7859
        %v7924 = vadd.f32 %v526, %v7860
        %v7925 = vadd.f32 %v527, %v7861
        %v7926 = vadd.f32 %v528, %v7862
        %v7927 = vadd.f32 %v529, %v7863
        %v7928 = vadd.f32 %v530, %v7864
        %v7929 = vadd.f32 %v531, %v7865
        %v7930 = vadd.f32 %v532, %v7866
        %v7931 = vadd.f32 %v533, %v7867
        %v7932 = vadd.f32 %v534, %v7868
        %v7933 = vadd.f32 %v535, %v7869
        %v7934 = vadd.f32 %v536, %v7870
        %v7935 = vadd.f32 %v537, %v7871
        %v7936 = vadd.f32 %v538, %v7872
        %v7937 = vadd.f32 %v539, %v7873
        %v7938 = vadd.f32 %v540, %v7874
        %v7939 = vadd.f32 %v541, %v7875
        %v7940 = vadd.f32 %v542, %v7876
        %v7941 = vadd.f32 %v543, %v7877
        %v7942 = vadd.f32 %v544, %v7878
        %v7943 = vadd.f32 %v545, %v7879
        %v7944 = vadd.f32 %v546, %v7880
        %v7945 = vadd.f32 %v547, %v7881
        %v7946 = vadd.f32 %v548, %v7882
        %v7947 = vadd.f32 %v549, %v7883
        %v7948 = vadd.f32 %v550, %v7884
        %v7949 = vadd.f32 %v551, %v7885
        %v7950 = vadd.f32 %v552, %v7886
        %v7951 = vadd.f32 %v553, %v7887
        %v7952 = vadd.f32 %v554, %v7888
        %v7953 = vadd.f32 %v555, %v7889
        %v7954 = vadd.f32 %v556, %v7890
        %v7955 = vadd.f32 %v557, %v7891
        %v7956 = vadd.f32 %v558, %v7892
        %v7957 = vadd.f32 %v559, %v7893
        %v7958 = vadd.f32 %v560, %v7894
        %v7959 = vadd.f32 %v561, %v7895
        %v7960 = vadd.f32 %v562, %v7896
        %v7961 = vadd.f32 %v563, %v7897
        %v7962 = vadd.f32 %v564, %v7898
        %v7963 = vadd.f32 %v565, %v7899
        %v7964 = vadd.f32 %v566, %v7900
        %v7965 = vadd.f32 %v567, %v7901
        %v7966 = vadd.f32 %v568, %v7902
        %v7967 = vadd.f32 %v569, %v7903
        %v7968 = vadd.f32 %v570, %v7904
        %v7969 = vadd.f32 %v571, %v7905
        %v7970 = vadd.f32 %v572, %v7906
        %v7971 = vadd.f32 %v573, %v7907
        %v7972 = vadd.f32 %v574, %v7908
        %v7973 = vadd.f32 %v575, %v7909
        %v7974 = vadd.f32 %v576, %v7910
        %v7975 = vadd.f32 %v577, %v7911
        %v7976 = vadd.f32 %v578, %v7912
        %v7977 = vadd.f32 %v579, %v7913
        %v7978 = vadd.f32 %v580, %v7914
        %v7979 = vadd.f32 %v581, %v7915
        %7980 = vst [vmem:[%s433] sm:$0xff] %v7916
        %7981 = vst [vmem:[%s433 + $0x8] sm:$0xff] %v7917
        %7982 = vst [vmem:[%s433 + $0x10] sm:$0xff] %v7918
        %7983 = vst [vmem:[%s433 + $0x18] sm:$0xff] %v7919
        %7984 = vst [vmem:[%s433 + $0x20] sm:$0xff] %v7920
        %7985 = vst [vmem:[%s433 + $0x28] sm:$0xff] %v7921
        %7986 = vst [vmem:[%s433 + $0x30] sm:$0xff] %v7922
        %7987 = vst [vmem:[%s433 + $0x38] sm:$0xff] %v7923
        %7988 = vst [vmem:[%s433 + $0x40] sm:$0xff] %v7924
        %7989 = vst [vmem:[%s433 + $0x48] sm:$0xff] %v7925
        %7990 = vst [vmem:[%s433 + $0x50] sm:$0xff] %v7926
        %7991 = vst [vmem:[%s433 + $0x58] sm:$0xff] %v7927
        %7992 = vst [vmem:[%s433 + $0x60] sm:$0xff] %v7928
        %7993 = vst [vmem:[%s433 + $0x68] sm:$0xff] %v7929
        %7994 = vst [vmem:[%s433 + $0x70] sm:$0xff] %v7930
        %7995 = vst [vmem:[%s433 + $0x78] sm:$0xff] %v7931
        %7996 = vst [vmem:[%s433 + $0x80] sm:$0xff] %v7932
        %7997 = vst [vmem:[%s433 + $0x88] sm:$0xff] %v7933
        %7998 = vst [vmem:[%s433 + $0x90] sm:$0xff] %v7934
        %7999 = vst [vmem:[%s433 + $0x98] sm:$0xff] %v7935
        %8000 = vst [vmem:[%s433 + $0xa0] sm:$0xff] %v7936
        %8001 = vst [vmem:[%s433 + $0xa8] sm:$0xff] %v7937
        %8002 = vst [vmem:[%s433 + $0xb0] sm:$0xff] %v7938
        %8003 = vst [vmem:[%s433 + $0xb8] sm:$0xff] %v7939
        %8004 = vst [vmem:[%s433 + $0xc0] sm:$0xff] %v7940
        %8005 = vst [vmem:[%s433 + $0xc8] sm:$0xff] %v7941
        %8006 = vst [vmem:[%s433 + $0xd0] sm:$0xff] %v7942
        %8007 = vst [vmem:[%s433 + $0xd8] sm:$0xff] %v7943
        %8008 = vst [vmem:[%s433 + $0xe0] sm:$0xff] %v7944
        %8009 = vst [vmem:[%s433 + $0xe8] sm:$0xff] %v7945
        %8010 = vst [vmem:[%s433 + $0xf0] sm:$0xff] %v7946
        %8011 = vst [vmem:[%s433 + $0xf8] sm:$0xff] %v7947
        %8012 = vst [vmem:[%s433 + $0x100] sm:$0xff] %v7948
        %8013 = vst [vmem:[%s433 + $0x108] sm:$0xff] %v7949
        %8014 = vst [vmem:[%s433 + $0x110] sm:$0xff] %v7950
        %8015 = vst [vmem:[%s433 + $0x118] sm:$0xff] %v7951
        %8016 = vst [vmem:[%s433 + $0x120] sm:$0xff] %v7952
        %8017 = vst [vmem:[%s433 + $0x128] sm:$0xff] %v7953
        %8018 = vst [vmem:[%s433 + $0x130] sm:$0xff] %v7954
        %8019 = vst [vmem:[%s433 + $0x138] sm:$0xff] %v7955
        %8020 = vst [vmem:[%s433 + $0x140] sm:$0xff] %v7956
        %8021 = vst [vmem:[%s433 + $0x148] sm:$0xff] %v7957
        %8022 = vst [vmem:[%s433 + $0x150] sm:$0xff] %v7958
        %8023 = vst [vmem:[%s433 + $0x158] sm:$0xff] %v7959
        %8024 = vst [vmem:[%s433 + $0x160] sm:$0xff] %v7960
        %8025 = vst [vmem:[%s433 + $0x168] sm:$0xff] %v7961
        %8026 = vst [vmem:[%s433 + $0x170] sm:$0xff] %v7962
        %8027 = vst [vmem:[%s433 + $0x178] sm:$0xff] %v7963
        %8028 = vst [vmem:[%s433 + $0x180] sm:$0xff] %v7964
        %8029 = vst [vmem:[%s433 + $0x188] sm:$0xff] %v7965
        %8030 = vst [vmem:[%s433 + $0x190] sm:$0xff] %v7966
        %8031 = vst [vmem:[%s433 + $0x198] sm:$0xff] %v7967
        %8032 = vst [vmem:[%s433 + $0x1a0] sm:$0xff] %v7968
        %8033 = vst [vmem:[%s433 + $0x1a8] sm:$0xff] %v7969
        %8034 = vst [vmem:[%s433 + $0x1b0] sm:$0xff] %v7970
        %8035 = vst [vmem:[%s433 + $0x1b8] sm:$0xff] %v7971
        %8036 = vst [vmem:[%s433 + $0x1c0] sm:$0xff] %v7972
        %8037 = vst [vmem:[%s433 + $0x1c8] sm:$0xff] %v7973
        %8038 = vst [vmem:[%s433 + $0x1d0] sm:$0xff] %v7974
        %8039 = vst [vmem:[%s433 + $0x1d8] sm:$0xff] %v7975
        %8040 = vst [vmem:[%s433 + $0x1e0] sm:$0xff] %v7976
        %8041 = vst [vmem:[%s433 + $0x1e8] sm:$0xff] %v7977
        %8042 = vst [vmem:[%s433 + $0x1f0] sm:$0xff] %v7978
        %8043 = vst [vmem:[%s433 + $0x1f8] sm:$0xff] %v7979
        %8044 = vst [vmem:[%s440] sm:$0xff] %v7468
        %8045 = vst [vmem:[%s440 + $0x8] sm:$0xff] %v7469
        %8046 = vst [vmem:[%s440 + $0x10] sm:$0xff] %v7470
        %8047 = vst [vmem:[%s440 + $0x18] sm:$0xff] %v7471
        %8048 = vst [vmem:[%s440 + $0x20] sm:$0xff] %v7472
        %8049 = vst [vmem:[%s440 + $0x28] sm:$0xff] %v7473
        %8050 = vst [vmem:[%s440 + $0x30] sm:$0xff] %v7474
        %8051 = vst [vmem:[%s440 + $0x38] sm:$0xff] %v7475
        %8052 = vst [vmem:[%s440 + $0x40] sm:$0xff] %v7476
        %8053 = vst [vmem:[%s440 + $0x48] sm:$0xff] %v7477
        %8054 = vst [vmem:[%s440 + $0x50] sm:$0xff] %v7478
        %8055 = vst [vmem:[%s440 + $0x58] sm:$0xff] %v7479
        %8056 = vst [vmem:[%s440 + $0x60] sm:$0xff] %v7480
        %8057 = vst [vmem:[%s440 + $0x68] sm:$0xff] %v7481
        %8058 = vst [vmem:[%s440 + $0x70] sm:$0xff] %v7482
        %8059 = vst [vmem:[%s440 + $0x78] sm:$0xff] %v7483
        %8060 = vst [vmem:[%s440 + $0x80] sm:$0xff] %v7484
        %8061 = vst [vmem:[%s440 + $0x88] sm:$0xff] %v7485
        %8062 = vst [vmem:[%s440 + $0x90] sm:$0xff] %v7486
        %8063 = vst [vmem:[%s440 + $0x98] sm:$0xff] %v7487
        %8064 = vst [vmem:[%s440 + $0xa0] sm:$0xff] %v7488
        %8065 = vst [vmem:[%s440 + $0xa8] sm:$0xff] %v7489
        %8066 = vst [vmem:[%s440 + $0xb0] sm:$0xff] %v7490
        %8067 = vst [vmem:[%s440 + $0xb8] sm:$0xff] %v7491
        %8068 = vst [vmem:[%s440 + $0xc0] sm:$0xff] %v7492
        %8069 = vst [vmem:[%s440 + $0xc8] sm:$0xff] %v7493
        %8070 = vst [vmem:[%s440 + $0xd0] sm:$0xff] %v7494
        %8071 = vst [vmem:[%s440 + $0xd8] sm:$0xff] %v7495
        %8072 = vst [vmem:[%s440 + $0xe0] sm:$0xff] %v7496
        %8073 = vst [vmem:[%s440 + $0xe8] sm:$0xff] %v7497
        %8074 = vst [vmem:[%s440 + $0xf0] sm:$0xff] %v7498
        %8075 = vst [vmem:[%s440 + $0xf8] sm:$0xff] %v7499
        %8076 = vst [vmem:[%s440 + $0x100] sm:$0xff] %v7500
        %8077 = vst [vmem:[%s440 + $0x108] sm:$0xff] %v7501
        %8078 = vst [vmem:[%s440 + $0x110] sm:$0xff] %v7502
        %8079 = vst [vmem:[%s440 + $0x118] sm:$0xff] %v7503
        %8080 = vst [vmem:[%s440 + $0x120] sm:$0xff] %v7504
        %8081 = vst [vmem:[%s440 + $0x128] sm:$0xff] %v7505
        %8082 = vst [vmem:[%s440 + $0x130] sm:$0xff] %v7506
        %8083 = vst [vmem:[%s440 + $0x138] sm:$0xff] %v7507
        %8084 = vst [vmem:[%s440 + $0x140] sm:$0xff] %v7508
        %8085 = vst [vmem:[%s440 + $0x148] sm:$0xff] %v7509
        %8086 = vst [vmem:[%s440 + $0x150] sm:$0xff] %v7510
        %8087 = vst [vmem:[%s440 + $0x158] sm:$0xff] %v7511
        %8088 = vst [vmem:[%s440 + $0x160] sm:$0xff] %v7512
        %8089 = vst [vmem:[%s440 + $0x168] sm:$0xff] %v7513
        %8090 = vst [vmem:[%s440 + $0x170] sm:$0xff] %v7514
        %8091 = vst [vmem:[%s440 + $0x178] sm:$0xff] %v7515
        %8092 = vst [vmem:[%s440 + $0x180] sm:$0xff] %v7516
        %8093 = vst [vmem:[%s440 + $0x188] sm:$0xff] %v7517
        %8094 = vst [vmem:[%s440 + $0x190] sm:$0xff] %v7518
        %8095 = vst [vmem:[%s440 + $0x198] sm:$0xff] %v7519
        %8096 = vst [vmem:[%s440 + $0x1a0] sm:$0xff] %v7520
        %8097 = vst [vmem:[%s440 + $0x1a8] sm:$0xff] %v7521
        %8098 = vst [vmem:[%s440 + $0x1b0] sm:$0xff] %v7522
        %8099 = vst [vmem:[%s440 + $0x1b8] sm:$0xff] %v7523
        %8100 = vst [vmem:[%s440 + $0x1c0] sm:$0xff] %v7524
        %8101 = vst [vmem:[%s440 + $0x1c8] sm:$0xff] %v7525
        %8102 = vst [vmem:[%s440 + $0x1d0] sm:$0xff] %v7526
        %8103 = vst [vmem:[%s440 + $0x1d8] sm:$0xff] %v7527
        %8104 = vst [vmem:[%s440 + $0x1e0] sm:$0xff] %v7528
        %8105 = vst [vmem:[%s440 + $0x1e8] sm:$0xff] %v7529
        %8106 = vst [vmem:[%s440 + $0x1f0] sm:$0xff] %v7530
        %8107 = vst [vmem:[%s440 + $0x1f8] sm:$0xff] %v7531
        %8108 = vst [vmem:[%s447] sm:$0xff] %v7596
        %8109 = vst [vmem:[%s447 + $0x8] sm:$0xff] %v7597
        %8110 = vst [vmem:[%s447 + $0x10] sm:$0xff] %v7598
        %8111 = vst [vmem:[%s447 + $0x18] sm:$0xff] %v7599
        %8112 = vst [vmem:[%s447 + $0x20] sm:$0xff] %v7600
        %8113 = vst [vmem:[%s447 + $0x28] sm:$0xff] %v7601
        %8114 = vst [vmem:[%s447 + $0x30] sm:$0xff] %v7602
        %8115 = vst [vmem:[%s447 + $0x38] sm:$0xff] %v7603
        %8116 = vst [vmem:[%s447 + $0x40] sm:$0xff] %v7604
        %8117 = vst [vmem:[%s447 + $0x48] sm:$0xff] %v7605
        %8118 = vst [vmem:[%s447 + $0x50] sm:$0xff] %v7606
        %8119 = vst [vmem:[%s447 + $0x58] sm:$0xff] %v7607
        %8120 = vst [vmem:[%s447 + $0x60] sm:$0xff] %v7608
        %8121 = vst [vmem:[%s447 + $0x68] sm:$0xff] %v7609
        %8122 = vst [vmem:[%s447 + $0x70] sm:$0xff] %v7610
        %8123 = vst [vmem:[%s447 + $0x78] sm:$0xff] %v7611
        %8124 = vst [vmem:[%s447 + $0x80] sm:$0xff] %v7612
        %8125 = vst [vmem:[%s447 + $0x88] sm:$0xff] %v7613
        %8126 = vst [vmem:[%s447 + $0x90] sm:$0xff] %v7614
        %8127 = vst [vmem:[%s447 + $0x98] sm:$0xff] %v7615
        %8128 = vst [vmem:[%s447 + $0xa0] sm:$0xff] %v7616
        %8129 = vst [vmem:[%s447 + $0xa8] sm:$0xff] %v7617
        %8130 = vst [vmem:[%s447 + $0xb0] sm:$0xff] %v7618
        %8131 = vst [vmem:[%s447 + $0xb8] sm:$0xff] %v7619
        %8132 = vst [vmem:[%s447 + $0xc0] sm:$0xff] %v7620
        %8133 = vst [vmem:[%s447 + $0xc8] sm:$0xff] %v7621
        %8134 = vst [vmem:[%s447 + $0xd0] sm:$0xff] %v7622
        %8135 = vst [vmem:[%s447 + $0xd8] sm:$0xff] %v7623
        %8136 = vst [vmem:[%s447 + $0xe0] sm:$0xff] %v7624
        %8137 = vst [vmem:[%s447 + $0xe8] sm:$0xff] %v7625
        %8138 = vst [vmem:[%s447 + $0xf0] sm:$0xff] %v7626
        %8139 = vst [vmem:[%s447 + $0xf8] sm:$0xff] %v7627
        %8140 = vst [vmem:[%s447 + $0x100] sm:$0xff] %v7628
        %8141 = vst [vmem:[%s447 + $0x108] sm:$0xff] %v7629
        %8142 = vst [vmem:[%s447 + $0x110] sm:$0xff] %v7630
        %8143 = vst [vmem:[%s447 + $0x118] sm:$0xff] %v7631
        %8144 = vst [vmem:[%s447 + $0x120] sm:$0xff] %v7632
        %8145 = vst [vmem:[%s447 + $0x128] sm:$0xff] %v7633
        %8146 = vst [vmem:[%s447 + $0x130] sm:$0xff] %v7634
        %8147 = vst [vmem:[%s447 + $0x138] sm:$0xff] %v7635
        %8148 = vst [vmem:[%s447 + $0x140] sm:$0xff] %v7636
        %8149 = vst [vmem:[%s447 + $0x148] sm:$0xff] %v7637
        %8150 = vst [vmem:[%s447 + $0x150] sm:$0xff] %v7638
        %8151 = vst [vmem:[%s447 + $0x158] sm:$0xff] %v7639
        %8152 = vst [vmem:[%s447 + $0x160] sm:$0xff] %v7640
        %8153 = vst [vmem:[%s447 + $0x168] sm:$0xff] %v7641
        %8154 = vst [vmem:[%s447 + $0x170] sm:$0xff] %v7642
        %8155 = vst [vmem:[%s447 + $0x178] sm:$0xff] %v7643
        %8156 = vst [vmem:[%s447 + $0x180] sm:$0xff] %v7644
        %8157 = vst [vmem:[%s447 + $0x188] sm:$0xff] %v7645
        %8158 = vst [vmem:[%s447 + $0x190] sm:$0xff] %v7646
        %8159 = vst [vmem:[%s447 + $0x198] sm:$0xff] %v7647
        %8160 = vst [vmem:[%s447 + $0x1a0] sm:$0xff] %v7648
        %8161 = vst [vmem:[%s447 + $0x1a8] sm:$0xff] %v7649
        %8162 = vst [vmem:[%s447 + $0x1b0] sm:$0xff] %v7650
        %8163 = vst [vmem:[%s447 + $0x1b8] sm:$0xff] %v7651
        %8164 = vst [vmem:[%s447 + $0x1c0] sm:$0xff] %v7652
        %8165 = vst [vmem:[%s447 + $0x1c8] sm:$0xff] %v7653
        %8166 = vst [vmem:[%s447 + $0x1d0] sm:$0xff] %v7654
        %8167 = vst [vmem:[%s447 + $0x1d8] sm:$0xff] %v7655
        %8168 = vst [vmem:[%s447 + $0x1e0] sm:$0xff] %v7656
        %8169 = vst [vmem:[%s447 + $0x1e8] sm:$0xff] %v7657
        %8170 = vst [vmem:[%s447 + $0x1f0] sm:$0xff] %v7658
        %8171 = vst [vmem:[%s447 + $0x1f8] sm:$0xff] %v7659
        %s8172 = sand.u32 %s181, 1
        %s8173 = scalar_lea.sflag [#allocation4], %s8172
        %s8174 = sand.u32 %s181, 1
        %s8175 = smul.addr %s8174, 512
        %s8176 = scalar_lea.vmem [#allocation10], %s8175
        %s8177 = sand.u32 %s37, 1
        %s8178 = scalar_lea.sflag [#allocation12], %s8177
        %s8179 = sand.u32 %s207, 1
        %s8180 = smul.addr %s8179, 512
        %s8181 = scalar_lea.vmem [#allocation11], %s8180
        %s8182 = sand.u32 %s37, 1
        %s8183 = scalar_lea.sflag [#allocation12], %s8182
        %s8184 = sand.u32 %s233, 1
        %s8185 = smul.addr %s8184, 512
        %s8186 = scalar_lea.vmem [#allocation13], %s8185
        %s8187 = sand.u32 %s259, 1
        %s8188 = scalar_lea.sflag [#allocation15], %s8187
        %s8189 = sand.u32 %s259, 1
        %s8190 = smul.addr %s8189, 512
        %s8191 = scalar_lea.vmem [#allocation14], %s8190
        // Predicated region
        $region61: #{tpu_custom_call.1} parent=43 // pred_check
          %p8192 = pneg %p191
        $region62: #{tpu_custom_call.1} parent=43 // pred_check_branch
          %8194 = sbr.rel (%p8192) target = $region64
        $region63: #{tpu_custom_call.1} parent=43 // pred_region
          %s8195 = smul.u32 64, %s37
          %s8197 = ssub.s32 8192, 8192
          %8198 = vsyncadd %s8173, %s8197
          %s8199 = smul.addr %s8195, 128
          %s8200 = scalar_lea.hbm %s6, %s8199
          %s8201 = sshll.u32 %s8176, 4
          %s8202 = int_to_ptr.vmem [resolvable:$true] %s8201
          %8207 = dma.vmem_to_hbm [thread:$0]  %s8202, 8192, %s8200, %s8173, 128, 128, 8
        $region64: #{tpu_custom_call.1} parent=43 // pred_fallthru
          _
        // Predicated region
        $region65: #{tpu_custom_call.1} parent=43 // pred_check
          %p8208 = pneg %p217
        $region66: #{tpu_custom_call.1} parent=43 // pred_check_branch
          %8210 = sbr.rel (%p8208) target = $region68
        $region67: #{tpu_custom_call.1} parent=43 // pred_region
          %s8211 = smul.u32 64, %s37
          %s8213 = ssub.s32 8192, 8192
          %8214 = vsyncadd %s8178, %s8213
          %s8215 = smul.addr %s8211, 128
          %s8216 = scalar_lea.hbm %s7, %s8215
          %s8217 = sshll.u32 %s8181, 4
          %s8218 = int_to_ptr.vmem [resolvable:$true] %s8217
          %8223 = dma.vmem_to_hbm [thread:$0]  %s8218, 8192, %s8216, %s8178, 128, 128, 8
        $region68: #{tpu_custom_call.1} parent=43 // pred_fallthru
          _
        // Predicated region
        $region69: #{tpu_custom_call.1} parent=43 // pred_check
          %p8224 = pneg %p243
        $region70: #{tpu_custom_call.1} parent=43 // pred_check_branch
          %8226 = sbr.rel (%p8224) target = $region72
        $region71: #{tpu_custom_call.1} parent=43 // pred_region
          %s8227 = smul.u32 64, %s37
          %s8229 = ssub.s32 8192, 8192
          %8230 = vsyncadd %s8183, %s8229
          %s8231 = smul.addr %s8227, 128
          %s8232 = scalar_lea.hbm %s8, %s8231
          %s8233 = sshll.u32 %s8186, 4
          %s8234 = int_to_ptr.vmem [resolvable:$true] %s8233
          %8239 = dma.vmem_to_hbm [thread:$0]  %s8234, 8192, %s8232, %s8183, 128, 128, 8
        $region72: #{tpu_custom_call.1} parent=43 // pred_fallthru
          _
        // Predicated region
        $region73: #{tpu_custom_call.1} parent=43 // pred_check
          %p8240 = pneg %p269
        $region74: #{tpu_custom_call.1} parent=43 // pred_check_branch
          %8242 = sbr.rel (%p8240) target = $region76
        $region75: #{tpu_custom_call.1} parent=43 // pred_region
          %s8243 = smul.u32 64, %s37
          %s8245 = ssub.s32 8192, 8192
          %8246 = vsyncadd %s8188, %s8245
          %s8247 = smul.addr %s8243, 128
          %s8248 = scalar_lea.hbm %s9, %s8247
          %s8249 = sshll.u32 %s8191, 4
          %s8250 = int_to_ptr.vmem [resolvable:$true] %s8249
          %8255 = dma.vmem_to_hbm [thread:$0]  %s8250, 8192, %s8248, %s8188, 128, 128, 8
        $region76: #{tpu_custom_call.1} parent=43 // pred_fallthru
          _
      $region44: #{tpu_custom_call.1} parent=5 // pred_fallthru
        _
      %p8256 = scmp.le.s32.totalorder 2, %s32
      // Predicated region
      $region77: #{tpu_custom_call.1} parent=5 // pred_check
        %p8257 = pneg %p8256
      $region78: #{tpu_custom_call.1} parent=5 // pred_check_branch
        %8259 = sbr.rel (%p8257) target = $region80
      $region79: #{tpu_custom_call.1} parent=5 // pred_region
        %s8260 = ssub.s32 %s32, 2
        // Predicated region
        $region81: #{tpu_custom_call.1} parent=79 // pred_check
          %p8261 = pneg %p197
        $region82: #{tpu_custom_call.1} parent=79 // pred_check_branch
          %8263 = sbr.rel (%p8261) target = $region84
        $region83: #{tpu_custom_call.1} parent=79 // pred_region
          %s8264 = sand.u32 %s182, 1
          %s8265 = scalar_lea.sflag [#allocation4], %s8264
          %s8266 = sand.u32 %s182, 1
          %s8267 = smul.addr %s8266, 512
          %s8268 = scalar_lea.vmem [#allocation10], %s8267
          %8269 = dma.done %s8265, 8192
        $region84: #{tpu_custom_call.1} parent=79 // pred_fallthru
          _
        // Predicated region
        $region85: #{tpu_custom_call.1} parent=79 // pred_check
          %p8270 = pneg %p223
        $region86: #{tpu_custom_call.1} parent=79 // pred_check_branch
          %8272 = sbr.rel (%p8270) target = $region88
        $region87: #{tpu_custom_call.1} parent=79 // pred_region
          %s8273 = sand.u32 %s38, 1
          %s8274 = scalar_lea.sflag [#allocation12], %s8273
          %s8275 = sand.u32 %s208, 1
          %s8276 = smul.addr %s8275, 512
          %s8277 = scalar_lea.vmem [#allocation11], %s8276
          %8278 = dma.done %s8274, 8192
        $region88: #{tpu_custom_call.1} parent=79 // pred_fallthru
          _
        // Predicated region
        $region89: #{tpu_custom_call.1} parent=79 // pred_check
          %p8279 = pneg %p249
        $region90: #{tpu_custom_call.1} parent=79 // pred_check_branch
          %8281 = sbr.rel (%p8279) target = $region92
        $region91: #{tpu_custom_call.1} parent=79 // pred_region
          %s8282 = sand.u32 %s38, 1
          %s8283 = scalar_lea.sflag [#allocation12], %s8282
          %s8284 = sand.u32 %s234, 1
          %s8285 = smul.addr %s8284, 512
          %s8286 = scalar_lea.vmem [#allocation13], %s8285
          %8287 = dma.done %s8283, 8192
        $region92: #{tpu_custom_call.1} parent=79 // pred_fallthru
          _
        // Predicated region
        $region93: #{tpu_custom_call.1} parent=79 // pred_check
          %p8288 = pneg %p275
        $region94: #{tpu_custom_call.1} parent=79 // pred_check_branch
          %8290 = sbr.rel (%p8288) target = $region96
        $region95: #{tpu_custom_call.1} parent=79 // pred_region
          %s8291 = sand.u32 %s260, 1
          %s8292 = scalar_lea.sflag [#allocation15], %s8291
          %s8293 = sand.u32 %s260, 1
          %s8294 = smul.addr %s8293, 512
          %s8295 = scalar_lea.vmem [#allocation14], %s8294
          %8296 = dma.done %s8292, 8192
        $region96: #{tpu_custom_call.1} parent=79 // pred_fallthru
          _
      $region80: #{tpu_custom_call.1} parent=5 // pred_fallthru
        _
    $region6: #{tpu_custom_call.1} parent=1 // loop_footer
      %s36 = sadd.s32 1, %s32
    $region7: #{tpu_custom_call.1} parent=1 // loop_footer_branch
      %31 = sbr.rel target = $region3
    $region8: #{tpu_custom_call.1} parent=1 // loop_exit
      _
    %8297 = vsyncpa [#allocation3], 1
    %s8298 = scalar_lea.sflag [#allocation3], 1
    %8299 = vsyncpa %s8298, 1
    %8300 = vsyncpa [#allocation6], 1
    %s8301 = scalar_lea.sflag [#allocation6], 1
    %8302 = vsyncpa %s8301, 1
    %8303 = vsyncpa [#allocation9], 1
    %8304 = vsyncpa [#allocation4], 1
    %s8305 = scalar_lea.sflag [#allocation4], 1
    %8306 = vsyncpa %s8305, 1
    %8307 = vsyncpa [#allocation12], 1
    %s8308 = scalar_lea.sflag [#allocation12], 1
    %8309 = vsyncpa %s8308, 1
    %8310 = vsyncpa [#allocation15], 1
    %s8311 = scalar_lea.sflag [#allocation15], 1
    %8312 = vsyncpa %s8311, 1

</llo_original>
